<compile_context>
chip_gen: v5e
topology: v5e:2x2
jax: 0.10.0
libtpu: 0.0.40
codegen_flags: <defaults>
</compile_context>

<pallas_src>
import functools

import jax
import jax.numpy as jnp
from jax.experimental import pallas as pl
from jax.experimental.pallas import tpu as pltpu


# ----------------------------- Pallas kernel -------------------------------

def _ffn_kernel(x_ref, win_ref, bin_ref, wh_ref, bh_ref, wout_ref, bout_ref,
                out_ref, *, num_hidden_layers: int, d_in: int):
    x = x_ref[...]                                        # (TM, d_in)

    # fc_in: K = d_in is tiny, so use VPU broadcast-FMAs instead of the MXU.
    # Normalization z = 2*(x-lb)/(ub-lb) - 1 is already folded into win/bin.
    z = bin_ref[...]                                      # (1, H) broadcasts up
    for i in range(d_in):
        z = z + x[:, i:i + 1] * win_ref[i:i + 1, :]       # (TM, H)
    z = jnp.tanh(z)

    # Residual hidden layers (static unroll; fine at small L).
    # TODO(synk): switch to lax.fori_loop(..., unroll=True) for large L to
    # bound vreg live ranges / code size.
    for l in range(num_hidden_layers):
        h = jnp.tanh(
            jnp.dot(z, wh_ref[l],
                    preferred_element_type=jnp.float32,
                    precision=jax.lax.Precision.HIGHEST)
            + bh_ref[l])
        z = h + z

    # fc_out into a lane-dense (TM, 128k) block; padded columns are zero.
    out_ref[...] = (
        jnp.dot(z, wout_ref[...],
                preferred_element_type=jnp.float32,
                precision=jax.lax.Precision.HIGHEST)
        + bout_ref[...])


# ----------------------------- JAX wrapper ----------------------------------

def feedforward_forward(x, params, lb, ub, *, tile_m=512):
    """x: (N, d_in) float32. Returns (N, d_out) float32."""
    N, d_in = x.shape
    w_in, b_in, w_h, b_h, w_out, b_out = params
    H = w_in.shape[1]
    L = w_h.shape[0]
    d_out = w_out.shape[1]

    tile_m = min(tile_m, N)
    assert N % tile_m == 0, "N must be divisible by tile_m"

    # ---- fold the affine normalization z = x*s + t into fc_in -------------
    s = (2.0 / (ub - lb)).astype(jnp.float32)             # (1, d_in)
    t = (-2.0 * lb / (ub - lb) - 1.0).astype(jnp.float32) # (1, d_in)
    w_in_f = (s.reshape(d_in, 1) * w_in).astype(jnp.float32)          # (d_in, H)
    # exact f32 fold (elementwise, no low-precision matmul involved)
    b_in_f = (b_in + jnp.sum(t.reshape(d_in, 1) * w_in, axis=0,
                             keepdims=True)).astype(jnp.float32)      # (1, H)

    # ---- lane-dense output: pad d_out up to a multiple of 128 --------------
    DP = max(128, pl.cdiv(d_out, 128) * 128)
    w_out_p = jnp.zeros((H, DP), jnp.float32).at[:, :d_out].set(w_out)
    b_out_p = jnp.zeros((1, DP), jnp.float32).at[:, :d_out].set(b_out)

    grid = (N // tile_m,)
    kernel = functools.partial(_ffn_kernel, num_hidden_layers=L, d_in=d_in)
    bcast = lambda i: (0, 0)

    out_p = pl.pallas_call(
        kernel,
        out_shape=jax.ShapeDtypeStruct((N, DP), jnp.float32),
        grid_spec=pltpu.PrefetchScalarGridSpec(
            num_scalar_prefetch=0,
            grid=grid,
            in_specs=[
                pl.BlockSpec((tile_m, d_in), lambda i: (i, 0)),   # x
                pl.BlockSpec((d_in, H), bcast),                   # folded w_in
                pl.BlockSpec((1, H), bcast),                      # folded b_in
                pl.BlockSpec((L, H, H), lambda i: (0, 0, 0)),     # w_h
                pl.BlockSpec((L, 1, H), lambda i: (0, 0, 0)),     # b_h
                pl.BlockSpec((H, DP), bcast),                     # padded w_out
                pl.BlockSpec((1, DP), bcast),                     # padded b_out
            ],
            out_specs=pl.BlockSpec((tile_m, DP), lambda i: (i, 0)),
        ),
        compiler_params=pltpu.CompilerParams(
            dimension_semantics=("parallel",)),
    )(x, w_in_f, b_in_f, w_h, b_h, w_out_p, b_out_p)

    return out_p[:, :d_out]


# ----------------------------- reference (pure JAX) -------------------------

def _reference(x, params, lb, ub):
    w_in, b_in, w_h, b_h, w_out, b_out = params
    hp = jax.lax.Precision.HIGHEST
    z = 2.0 * (x - lb) / (ub - lb) - 1.0
    z = jnp.tanh(jnp.dot(z, w_in, precision=hp) + b_in)
    for l in range(w_h.shape[0]):
        z = jnp.tanh(jnp.dot(z, w_h[l], precision=hp) + b_h[l]) + z
    return jnp.dot(z, w_out, precision=hp) + b_out


# ----------------------------- main ------------------------------------------

if __name__ == "__main__":
    d_in, d_out = 2, 3
    hidden_size, hidden_layers = 32, 3
    N = 1024            # tile_m=512 -> grid of 2 "parallel" steps (feeds 2 TCs on v7x)

    key = jax.random.PRNGKey(0)
    ks = jax.random.split(key, 8)

    def uniform_linear(k, fan_in, shape):
        bound = 1.0 / jnp.sqrt(jnp.float32(fan_in))
        return jax.random.uniform(k, shape, jnp.float32, -bound, bound)

    # PyTorch nn.Linear stores weight as (out, in); we keep (in, out) for x @ W.
    w_in = uniform_linear(ks[0], d_in, (d_in, hidden_size))
    b_in = uniform_linear(ks[1], d_in, (1, hidden_size))
    w_h = uniform_linear(ks[2], hidden_size,
                         (hidden_layers, hidden_size, hidden_size))
    b_h = uniform_linear(ks[3], hidden_size, (hidden_layers, 1, hidden_size))
    w_out = uniform_linear(ks[4], hidden_size, (hidden_size, d_out))
    b_out = uniform_linear(ks[5], hidden_size, (1, d_out))
    params = (w_in, b_in, w_h, b_h, w_out, b_out)

    # domain bounds (module falls back to [-1, 1] when not provided)
    lb = jnp.array([[-1.0, -1.0]], dtype=jnp.float32)
    ub = jnp.array([[1.0, 2.0]], dtype=jnp.float32)

    # points inside the rectangle [lb, ub]
    u01 = jax.random.uniform(ks[6], (N, d_in), jnp.float32)
    x = lb + u01 * (ub - lb)

    out = feedforward_forward(x, params, lb, ub, tile_m=512)
    out = jax.block_until_ready(out)

    ref = _reference(x, params, lb, ub)
    assert out.shape == (N, d_out)
    assert jnp.allclose(out, ref, atol=1e-5, rtol=1e-5), (
        float(jnp.max(jnp.abs(out - ref))))

    print("KERNEL_OK")
</pallas_src>

<mosaic_0001>
module attributes {stable_mosaic.version = 11 : i64} {
  func.func @_ffn_kernel(%arg0: i32, %arg1: memref<512x2xf32, #tpu.memory_space<vmem>>, %arg2: memref<2x32xf32, #tpu.memory_space<vmem>>, %arg3: memref<1x32xf32, #tpu.memory_space<vmem>>, %arg4: memref<3x32x32xf32, #tpu.memory_space<vmem>>, %arg5: memref<3x1x32xf32, #tpu.memory_space<vmem>>, %arg6: memref<32x128xf32, #tpu.memory_space<vmem>>, %arg7: memref<1x128xf32, #tpu.memory_space<vmem>>, %arg8: memref<512x128xf32, #tpu.memory_space<vmem>>) attributes {dimension_semantics = [#tpu.dimension_semantics<parallel>], iteration_bounds = array<i64: 2>, scalar_prefetch = 0 : i64, scratch_operands = 0 : i64, tpu.core_type = #tpu.core_type<tc>, window_params = [{transform_indices = @transform_0, window_bounds = array<i64: 512, 2>}, {pipeline_mode = #tpu.pipeline_mode<synchronous>, transform_indices = @transform_1, window_bounds = array<i64: 2, 32>}, {pipeline_mode = #tpu.pipeline_mode<synchronous>, transform_indices = @transform_2, window_bounds = array<i64: 1, 32>}, {pipeline_mode = #tpu.pipeline_mode<synchronous>, transform_indices = @transform_3, window_bounds = array<i64: 3, 32, 32>}, {pipeline_mode = #tpu.pipeline_mode<synchronous>, transform_indices = @transform_4, window_bounds = array<i64: 3, 1, 32>}, {pipeline_mode = #tpu.pipeline_mode<synchronous>, transform_indices = @transform_5, window_bounds = array<i64: 32, 128>}, {pipeline_mode = #tpu.pipeline_mode<synchronous>, transform_indices = @transform_6, window_bounds = array<i64: 1, 128>}, {transform_indices = @transform_7, window_bounds = array<i64: 512, 128>}]} {
    %c0 = arith.constant 0 : index
    %c0_0 = arith.constant 0 : index
    %0 = vector.load %arg1[%c0, %c0_0] : memref<512x2xf32, #tpu.memory_space<vmem>>, vector<512x2xf32>
    %c0_1 = arith.constant 0 : index
    %c0_2 = arith.constant 0 : index
    %1 = vector.load %arg3[%c0_1, %c0_2] : memref<1x32xf32, #tpu.memory_space<vmem>>, vector<1x32xf32>
    %2 = vector.extract_strided_slice %0 {offsets = [0, 0], sizes = [512, 1], strides = [1, 1]} : vector<512x2xf32> to vector<512x1xf32>
    %c0_3 = arith.constant 0 : index
    %c0_4 = arith.constant 0 : index
    %3 = vector.load %arg2[%c0_3, %c0_4] : memref<2x32xf32, #tpu.memory_space<vmem>>, vector<1x32xf32>
    %4 = vector.broadcast %2 : vector<512x1xf32> to vector<512x32xf32>
    %5 = vector.broadcast %3 : vector<1x32xf32> to vector<512x32xf32>
    %6 = arith.mulf %4, %5 : vector<512x32xf32>
    %7 = vector.broadcast %1 : vector<1x32xf32> to vector<512x32xf32>
    %8 = arith.addf %7, %6 : vector<512x32xf32>
    %9 = vector.extract_strided_slice %0 {offsets = [0, 1], sizes = [512, 1], strides = [1, 1]} : vector<512x2xf32> to vector<512x1xf32>
    %c1 = arith.constant 1 : index
    %c0_5 = arith.constant 0 : index
    %10 = vector.load %arg2[%c1, %c0_5] : memref<2x32xf32, #tpu.memory_space<vmem>>, vector<1x32xf32>
    %11 = vector.broadcast %9 : vector<512x1xf32> to vector<512x32xf32>
    %12 = vector.broadcast %10 : vector<1x32xf32> to vector<512x32xf32>
    %13 = arith.mulf %11, %12 : vector<512x32xf32>
    %14 = arith.addf %8, %13 : vector<512x32xf32>
    %15 = math.tanh %14 : vector<512x32xf32>
    %c0_6 = arith.constant 0 : index
    %c0_7 = arith.constant 0 : index
    %c0_8 = arith.constant 0 : index
    %16 = vector.load %arg4[%c0_6, %c0_7, %c0_8] : memref<3x32x32xf32, #tpu.memory_space<vmem>>, vector<1x32x32xf32>
    %17 = vector.shape_cast %16 : vector<1x32x32xf32> to vector<32x32xf32>
    %cst = arith.constant dense<0.000000e+00> : vector<512x32xf32>
    %18 = tpu.matmul %15, %17, %cst {dimension_numbers = #tpu.dot_dimension_numbers<[1], [0], [0], [1], [0, 0, 1, 1], [], []>, precision = #tpu.contract_precision<fp32>} : vector<512x32xf32>, vector<32x32xf32>, vector<512x32xf32> -> vector<512x32xf32>
    %c0_9 = arith.constant 0 : index
    %c0_10 = arith.constant 0 : index
    %c0_11 = arith.constant 0 : index
    %19 = vector.load %arg5[%c0_9, %c0_10, %c0_11] : memref<3x1x32xf32, #tpu.memory_space<vmem>>, vector<1x1x32xf32>
    %20 = vector.shape_cast %19 : vector<1x1x32xf32> to vector<1x32xf32>
    %21 = vector.broadcast %20 : vector<1x32xf32> to vector<512x32xf32>
    %22 = arith.addf %18, %21 : vector<512x32xf32>
    %23 = math.tanh %22 : vector<512x32xf32>
    %24 = arith.addf %23, %15 : vector<512x32xf32>
    %c1_12 = arith.constant 1 : index
    %c0_13 = arith.constant 0 : index
    %c0_14 = arith.constant 0 : index
    %25 = vector.load %arg4[%c1_12, %c0_13, %c0_14] : memref<3x32x32xf32, #tpu.memory_space<vmem>>, vector<1x32x32xf32>
    %26 = vector.shape_cast %25 : vector<1x32x32xf32> to vector<32x32xf32>
    %cst_15 = arith.constant dense<0.000000e+00> : vector<512x32xf32>
    %27 = tpu.matmul %24, %26, %cst_15 {dimension_numbers = #tpu.dot_dimension_numbers<[1], [0], [0], [1], [0, 0, 1, 1], [], []>, precision = #tpu.contract_precision<fp32>} : vector<512x32xf32>, vector<32x32xf32>, vector<512x32xf32> -> vector<512x32xf32>
    %c1_16 = arith.constant 1 : index
    %c0_17 = arith.constant 0 : index
    %c0_18 = arith.constant 0 : index
    %28 = vector.load %arg5[%c1_16, %c0_17, %c0_18] : memref<3x1x32xf32, #tpu.memory_space<vmem>>, vector<1x1x32xf32>
    %29 = vector.shape_cast %28 : vector<1x1x32xf32> to vector<1x32xf32>
    %30 = vector.broadcast %29 : vector<1x32xf32> to vector<512x32xf32>
    %31 = arith.addf %27, %30 : vector<512x32xf32>
    %32 = math.tanh %31 : vector<512x32xf32>
    %33 = arith.addf %32, %24 : vector<512x32xf32>
    %c2 = arith.constant 2 : index
    %c0_19 = arith.constant 0 : index
    %c0_20 = arith.constant 0 : index
    %34 = vector.load %arg4[%c2, %c0_19, %c0_20] : memref<3x32x32xf32, #tpu.memory_space<vmem>>, vector<1x32x32xf32>
    %35 = vector.shape_cast %34 : vector<1x32x32xf32> to vector<32x32xf32>
    %cst_21 = arith.constant dense<0.000000e+00> : vector<512x32xf32>
    %36 = tpu.matmul %33, %35, %cst_21 {dimension_numbers = #tpu.dot_dimension_numbers<[1], [0], [0], [1], [0, 0, 1, 1], [], []>, precision = #tpu.contract_precision<fp32>} : vector<512x32xf32>, vector<32x32xf32>, vector<512x32xf32> -> vector<512x32xf32>
    %c2_22 = arith.constant 2 : index
    %c0_23 = arith.constant 0 : index
    %c0_24 = arith.constant 0 : index
    %37 = vector.load %arg5[%c2_22, %c0_23, %c0_24] : memref<3x1x32xf32, #tpu.memory_space<vmem>>, vector<1x1x32xf32>
    %38 = vector.shape_cast %37 : vector<1x1x32xf32> to vector<1x32xf32>
    %39 = vector.broadcast %38 : vector<1x32xf32> to vector<512x32xf32>
    %40 = arith.addf %36, %39 : vector<512x32xf32>
    %41 = math.tanh %40 : vector<512x32xf32>
    %42 = arith.addf %41, %33 : vector<512x32xf32>
    %c0_25 = arith.constant 0 : index
    %c0_26 = arith.constant 0 : index
    %43 = vector.load %arg6[%c0_25, %c0_26] : memref<32x128xf32, #tpu.memory_space<vmem>>, vector<32x128xf32>
    %cst_27 = arith.constant dense<0.000000e+00> : vector<512x128xf32>
    %44 = tpu.matmul %42, %43, %cst_27 {dimension_numbers = #tpu.dot_dimension_numbers<[1], [0], [0], [1], [0, 0, 1, 1], [], []>, precision = #tpu.contract_precision<fp32>} : vector<512x32xf32>, vector<32x128xf32>, vector<512x128xf32> -> vector<512x128xf32>
    %c0_28 = arith.constant 0 : index
    %c0_29 = arith.constant 0 : index
    %45 = vector.load %arg7[%c0_28, %c0_29] : memref<1x128xf32, #tpu.memory_space<vmem>>, vector<1x128xf32>
    %46 = vector.broadcast %45 : vector<1x128xf32> to vector<512x128xf32>
    %47 = arith.addf %44, %46 : vector<512x128xf32>
    %c0_30 = arith.constant 0 : index
    %c0_31 = arith.constant 0 : index
    %48 = vector.load %arg8[%c0_30, %c0_31] : memref<512x128xf32, #tpu.memory_space<vmem>>, vector<512x128xf32>
    tpu.vector_store %arg8[%c0_30, %c0_31], %47 {strides = array<i32>} : memref<512x128xf32, #tpu.memory_space<vmem>>, vector<512x128xf32>,
    return
  }
  func.func @transform_0(%arg0: i32) -> (i32, i32) {
    %c0_i32 = arith.constant 0 : i32
    %c0_i32_0 = arith.constant 0 : i32
    return %arg0, %c0_i32 : i32, i32
  }
  func.func @transform_1(%arg0: i32) -> (i32, i32) {
    %c0_i32 = arith.constant 0 : i32
    %c0_i32_0 = arith.constant 0 : i32
    %c0_i32_1 = arith.constant 0 : i32
    return %c0_i32, %c0_i32_0 : i32, i32
  }
  func.func @transform_2(%arg0: i32) -> (i32, i32) {
    %c0_i32 = arith.constant 0 : i32
    %c0_i32_0 = arith.constant 0 : i32
    %c0_i32_1 = arith.constant 0 : i32
    return %c0_i32, %c0_i32_0 : i32, i32
  }
  func.func @transform_3(%arg0: i32) -> (i32, i32, i32) {
    %c0_i32 = arith.constant 0 : i32
    %c0_i32_0 = arith.constant 0 : i32
    %c0_i32_1 = arith.constant 0 : i32
    %c0_i32_2 = arith.constant 0 : i32
    return %c0_i32, %c0_i32_0, %c0_i32_1 : i32, i32, i32
  }
  func.func @transform_4(%arg0: i32) -> (i32, i32, i32) {
    %c0_i32 = arith.constant 0 : i32
    %c0_i32_0 = arith.constant 0 : i32
    %c0_i32_1 = arith.constant 0 : i32
    %c0_i32_2 = arith.constant 0 : i32
    return %c0_i32, %c0_i32_0, %c0_i32_1 : i32, i32, i32
  }
  func.func @transform_5(%arg0: i32) -> (i32, i32) {
    %c0_i32 = arith.constant 0 : i32
    %c0_i32_0 = arith.constant 0 : i32
    %c0_i32_1 = arith.constant 0 : i32
    return %c0_i32, %c0_i32_0 : i32, i32
  }
  func.func @transform_6(%arg0: i32) -> (i32, i32) {
    %c0_i32 = arith.constant 0 : i32
    %c0_i32_0 = arith.constant 0 : i32
    %c0_i32_1 = arith.constant 0 : i32
    return %c0_i32, %c0_i32_0 : i32, i32
  }
  func.func @transform_7(%arg0: i32) -> (i32, i32) {
    %c0_i32 = arith.constant 0 : i32
    %c0_i32_0 = arith.constant 0 : i32
    return %arg0, %c0_i32 : i32, i32
  }
}

</mosaic_0001>

<llo_original>
// kernel: tpu_custom_call.1
$region0: #{tpu_custom_call.1}
  #allocation0 [shape = 'u32[]', space=smem, size = 0x4, offset = 0x4, fixed_abs, tag = 'smem constant byte address 0x4 - core index']
  #allocation1 [shape = 'u32[72,128]{1,0:T(1,128)}', space=vmem, size = 0x9000, scoped, tag = 'internal scratch']
  %s0 = inlined_call_operand.vmem [shape: f32[1024,2], index: 0, kind: input, shape index: {}]
  %s1 = inlined_call_operand.vmem [shape: f32[2,32], index: 1, kind: input, shape index: {}]
  %s2 = inlined_call_operand.vmem [shape: f32[1,32], index: 2, kind: input, shape index: {}]
  %s3 = inlined_call_operand.vmem [shape: f32[3,32,32], index: 3, kind: input, shape index: {}]
  %s4 = inlined_call_operand.vmem [shape: f32[3,1,32], index: 4, kind: input, shape index: {}]
  %s5 = inlined_call_operand.vmem [shape: f32[32,128], index: 5, kind: input, shape index: {}]
  %s6 = inlined_call_operand.vmem [shape: f32[1,128], index: 6, kind: input, shape index: {}]
  %s7 = inlined_call_operand.hbm [shape: f32[1024,128], index: 7, kind: output, shape index: {}]
  %s8 = sld [smem:[#allocation0]]
  $region61: #{tpu_custom_call.1} parent=0
    _
  %s10 = ssub.s32 1, %s8
  %s11 = scalar_select 0, %s10, %s8
  $region1: #{tpu_custom_call.1} parent=0
    #allocation2 [shape = 'u8[524288]{0}', space=vmem, size = 0x80000, scoped, tag = 'output window, operand 0']
    #allocation3 [shape = 's32[2]{0}', space=sflag, size = 0x8, scoped, tag = 'scoped memory for tpu_custom_call.1']
    %12 = vsyncpa [#allocation3], 0
    %s13 = scalar_lea.sflag [#allocation3], 1
    %14 = vsyncpa %s13, 0
    loop: start=0, step=1, limit=4
    $region2: #{tpu_custom_call.1} parent=1 // loop_pre_header
      _
    $region3: #{tpu_custom_call.1} parent=1 // loop_header
      %s16 = sphi 0, %s20
      %p17 = scmp.ge.s32.totalorder %s16, 4
      %s26 = sphi 0, %s28
      %s29 = sphi 0, %s26
      %s30 = sphi 0, %s29
      %s46 = sphi 0, %s30
      %s50 = sphi 0, %s50
      %s52 = sphi 0, %s50
      %s53 = sphi 0, %s52
      %s67 = sphi 0, %s53
      %s71 = sphi 0, %s71
      %s73 = sphi 0, %s71
      %s74 = sphi 0, %s73
      %s88 = sphi 0, %s74
      %s92 = sphi 0, %s92
      %s94 = sphi 0, %s92
      %s95 = sphi 0, %s94
      %s109 = sphi 0, %s95
      %s113 = sphi 0, %s113
      %s115 = sphi 0, %s113
      %s116 = sphi 0, %s115
      %s130 = sphi 0, %s116
      %s134 = sphi 0, %s134
      %s136 = sphi 0, %s134
      %s137 = sphi 0, %s136
      %s151 = sphi 0, %s137
      %s155 = sphi 0, %s155
      %s157 = sphi 0, %s155
      %s158 = sphi 0, %s157
      %s172 = sphi 0, %s158
      %s178 = sphi 0, %s180
      %s181 = sphi 0, %s178
      %s182 = sphi 0, %s181
      %s198 = sphi 0, %s182
    $region4: #{tpu_custom_call.1} parent=1 // loop_header_branch
      %19 = sbr.rel (%p17) target = $region8
    $region5: #{tpu_custom_call.1} parent=1 // loop_body
      %s21 = ssub.s32 %s16, 1
      %s22 = ssub.s32 %s16, 2
      %s23 = sadd.s32 %s16, 1
      %s24 = ssub.s32 %s16, %s23
      %p25 = scmp.eq.s32.totalorder %s24, 0
      %s27 = sadd.s32 %s26, 1
      %s28 = scalar_select %p25, %s26, %s27
      %p31 = pneg %p25
      %p32 = scmp.eq.s32.totalorder %s16, 1
      %p33 = por %p31, %p32
      %p34 = scmp.ne.s32.totalorder %s26, %s29
      %p35 = scmp.eq.s32.totalorder %s16, 0
      %p36 = por %p34, %p35
      %p37 = scmp.ne.s32.totalorder %s26, %s29
      %p38 = scmp.eq.s32.totalorder %s21, 1
      %p39 = por %p37, %p38
      %p40 = scmp.ne.s32.totalorder %s29, %s30
      %p41 = scmp.eq.s32.totalorder %s21, 0
      %p42 = por %p40, %p41
      %p43 = scmp.ne.s32.totalorder %s29, %s30
      %p44 = scmp.eq.s32.totalorder %s22, 1
      %p45 = por %p43, %p44
      %p47 = scmp.ne.s32.totalorder %s30, %s46
      %p48 = scmp.eq.s32.totalorder %s22, 0
      %p49 = por %p47, %p48
      %s51 = sadd.s32 %s50, 1
      %p54 = scmp.eq.s32.totalorder %s16, 1
      %p55 = scmp.ne.s32.totalorder %s50, %s52
      %p56 = scmp.eq.s32.totalorder %s16, 0
      %p57 = por %p55, %p56
      %p58 = scmp.ne.s32.totalorder %s50, %s52
      %p59 = scmp.eq.s32.totalorder %s21, 1
      %p60 = por %p58, %p59
      %p61 = scmp.ne.s32.totalorder %s52, %s53
      %p62 = scmp.eq.s32.totalorder %s21, 0
      %p63 = por %p61, %p62
      %p64 = scmp.ne.s32.totalorder %s52, %s53
      %p65 = scmp.eq.s32.totalorder %s22, 1
      %p66 = por %p64, %p65
      %p68 = scmp.ne.s32.totalorder %s53, %s67
      %p69 = scmp.eq.s32.totalorder %s22, 0
      %p70 = por %p68, %p69
      %s72 = sadd.s32 %s71, 1
      %p75 = scmp.eq.s32.totalorder %s16, 1
      %p76 = scmp.ne.s32.totalorder %s71, %s73
      %p77 = scmp.eq.s32.totalorder %s16, 0
      %p78 = por %p76, %p77
      %p79 = scmp.ne.s32.totalorder %s71, %s73
      %p80 = scmp.eq.s32.totalorder %s21, 1
      %p81 = por %p79, %p80
      %p82 = scmp.ne.s32.totalorder %s73, %s74
      %p83 = scmp.eq.s32.totalorder %s21, 0
      %p84 = por %p82, %p83
      %p85 = scmp.ne.s32.totalorder %s73, %s74
      %p86 = scmp.eq.s32.totalorder %s22, 1
      %p87 = por %p85, %p86
      %p89 = scmp.ne.s32.totalorder %s74, %s88
      %p90 = scmp.eq.s32.totalorder %s22, 0
      %p91 = por %p89, %p90
      %s93 = sadd.s32 %s92, 1
      %p96 = scmp.eq.s32.totalorder %s16, 1
      %p97 = scmp.ne.s32.totalorder %s92, %s94
      %p98 = scmp.eq.s32.totalorder %s16, 0
      %p99 = por %p97, %p98
      %p100 = scmp.ne.s32.totalorder %s92, %s94
      %p101 = scmp.eq.s32.totalorder %s21, 1
      %p102 = por %p100, %p101
      %p103 = scmp.ne.s32.totalorder %s94, %s95
      %p104 = scmp.eq.s32.totalorder %s21, 0
      %p105 = por %p103, %p104
      %p106 = scmp.ne.s32.totalorder %s94, %s95
      %p107 = scmp.eq.s32.totalorder %s22, 1
      %p108 = por %p106, %p107
      %p110 = scmp.ne.s32.totalorder %s95, %s109
      %p111 = scmp.eq.s32.totalorder %s22, 0
      %p112 = por %p110, %p111
      %s114 = sadd.s32 %s113, 1
      %p117 = scmp.eq.s32.totalorder %s16, 1
      %p118 = scmp.ne.s32.totalorder %s113, %s115
      %p119 = scmp.eq.s32.totalorder %s16, 0
      %p120 = por %p118, %p119
      %p121 = scmp.ne.s32.totalorder %s113, %s115
      %p122 = scmp.eq.s32.totalorder %s21, 1
      %p123 = por %p121, %p122
      %p124 = scmp.ne.s32.totalorder %s115, %s116
      %p125 = scmp.eq.s32.totalorder %s21, 0
      %p126 = por %p124, %p125
      %p127 = scmp.ne.s32.totalorder %s115, %s116
      %p128 = scmp.eq.s32.totalorder %s22, 1
      %p129 = por %p127, %p128
      %p131 = scmp.ne.s32.totalorder %s116, %s130
      %p132 = scmp.eq.s32.totalorder %s22, 0
      %p133 = por %p131, %p132
      %s135 = sadd.s32 %s134, 1
      %p138 = scmp.eq.s32.totalorder %s16, 1
      %p139 = scmp.ne.s32.totalorder %s134, %s136
      %p140 = scmp.eq.s32.totalorder %s16, 0
      %p141 = por %p139, %p140
      %p142 = scmp.ne.s32.totalorder %s134, %s136
      %p143 = scmp.eq.s32.totalorder %s21, 1
      %p144 = por %p142, %p143
      %p145 = scmp.ne.s32.totalorder %s136, %s137
      %p146 = scmp.eq.s32.totalorder %s21, 0
      %p147 = por %p145, %p146
      %p148 = scmp.ne.s32.totalorder %s136, %s137
      %p149 = scmp.eq.s32.totalorder %s22, 1
      %p150 = por %p148, %p149
      %p152 = scmp.ne.s32.totalorder %s137, %s151
      %p153 = scmp.eq.s32.totalorder %s22, 0
      %p154 = por %p152, %p153
      %s156 = sadd.s32 %s155, 1
      %p159 = scmp.eq.s32.totalorder %s16, 1
      %p160 = scmp.ne.s32.totalorder %s155, %s157
      %p161 = scmp.eq.s32.totalorder %s16, 0
      %p162 = por %p160, %p161
      %p163 = scmp.ne.s32.totalorder %s155, %s157
      %p164 = scmp.eq.s32.totalorder %s21, 1
      %p165 = por %p163, %p164
      %p166 = scmp.ne.s32.totalorder %s157, %s158
      %p167 = scmp.eq.s32.totalorder %s21, 0
      %p168 = por %p166, %p167
      %p169 = scmp.ne.s32.totalorder %s157, %s158
      %p170 = scmp.eq.s32.totalorder %s22, 1
      %p171 = por %p169, %p170
      %p173 = scmp.ne.s32.totalorder %s158, %s172
      %p174 = scmp.eq.s32.totalorder %s22, 0
      %p175 = por %p173, %p174
      %s176 = ssub.s32 %s16, %s23
      %p177 = scmp.eq.s32.totalorder %s176, 0
      %s179 = sadd.s32 %s178, 1
      %s180 = scalar_select %p177, %s178, %s179
      %p183 = pneg %p177
      %p184 = scmp.eq.s32.totalorder %s16, 1
      %p185 = por %p183, %p184
      %p186 = scmp.ne.s32.totalorder %s178, %s181
      %p187 = scmp.eq.s32.totalorder %s16, 0
      %p188 = por %p186, %p187
      %p189 = scmp.ne.s32.totalorder %s178, %s181
      %p190 = scmp.eq.s32.totalorder %s21, 1
      %p191 = por %p189, %p190
      %p192 = scmp.ne.s32.totalorder %s181, %s182
      %p193 = scmp.eq.s32.totalorder %s21, 0
      %p194 = por %p192, %p193
      %p195 = scmp.ne.s32.totalorder %s181, %s182
      %p196 = scmp.eq.s32.totalorder %s22, 1
      %p197 = por %p195, %p196
      %p199 = scmp.ne.s32.totalorder %s182, %s198
      %p200 = scmp.eq.s32.totalorder %s22, 0
      %p201 = por %p199, %p200
      %p202 = scmp.le.s32.totalorder 1, %s16
      %p203 = scmp.lt.s32.totalorder %s16, 3
      %p204 = pnand %p202, %p203
      %p205 = pneg %p204
      // Predicated region
      $region9: #{tpu_custom_call.1} parent=5 // pred_check
        _
      $region10: #{tpu_custom_call.1} parent=5 // pred_check_branch
        %207 = sbr.rel (%p204) target = $region12
      $region11: #{tpu_custom_call.1} parent=5 // pred_region
        %s208 = ssub.s32 %s16, 1
        // Predicated region
        $region13: #{tpu_custom_call.1} parent=11 // pred_check
          %p209 = pneg %p63
        $region14: #{tpu_custom_call.1} parent=11 // pred_check_branch
          %211 = sbr.rel (%p209) target = $region16
        $region15: #{tpu_custom_call.1} parent=11 // pred_region
          _
        $region16: #{tpu_custom_call.1} parent=11 // pred_fallthru
          _
        // Predicated region
        $region17: #{tpu_custom_call.1} parent=11 // pred_check
          %p212 = pneg %p84
        $region18: #{tpu_custom_call.1} parent=11 // pred_check_branch
          %214 = sbr.rel (%p212) target = $region20
        $region19: #{tpu_custom_call.1} parent=11 // pred_region
          _
        $region20: #{tpu_custom_call.1} parent=11 // pred_fallthru
          _
        // Predicated region
        $region21: #{tpu_custom_call.1} parent=11 // pred_check
          %p215 = pneg %p105
        $region22: #{tpu_custom_call.1} parent=11 // pred_check_branch
          %217 = sbr.rel (%p215) target = $region24
        $region23: #{tpu_custom_call.1} parent=11 // pred_region
          _
        $region24: #{tpu_custom_call.1} parent=11 // pred_fallthru
          _
        // Predicated region
        $region25: #{tpu_custom_call.1} parent=11 // pred_check
          %p218 = pneg %p126
        $region26: #{tpu_custom_call.1} parent=11 // pred_check_branch
          %220 = sbr.rel (%p218) target = $region28
        $region27: #{tpu_custom_call.1} parent=11 // pred_region
          _
        $region28: #{tpu_custom_call.1} parent=11 // pred_fallthru
          _
        // Predicated region
        $region29: #{tpu_custom_call.1} parent=11 // pred_check
          %p221 = pneg %p147
        $region30: #{tpu_custom_call.1} parent=11 // pred_check_branch
          %223 = sbr.rel (%p221) target = $region32
        $region31: #{tpu_custom_call.1} parent=11 // pred_region
          _
        $region32: #{tpu_custom_call.1} parent=11 // pred_fallthru
          _
        // Predicated region
        $region33: #{tpu_custom_call.1} parent=11 // pred_check
          %p224 = pneg %p168
        $region34: #{tpu_custom_call.1} parent=11 // pred_check_branch
          %226 = sbr.rel (%p224) target = $region36
        $region35: #{tpu_custom_call.1} parent=11 // pred_region
          _
        $region36: #{tpu_custom_call.1} parent=11 // pred_fallthru
          _
      $region12: #{tpu_custom_call.1} parent=5 // pred_fallthru
        _
      %p227 = scmp.lt.s32.totalorder %s16, 2
      // Predicated region
      $region37: #{tpu_custom_call.1} parent=5 // pred_check
        %p228 = pneg %p227
      $region38: #{tpu_custom_call.1} parent=5 // pred_check_branch
        %230 = sbr.rel (%p228) target = $region40
      $region39: #{tpu_custom_call.1} parent=5 // pred_region
        // Predicated region
        $region41: #{tpu_custom_call.1} parent=39 // pred_check
          %p231 = pneg %p36
        $region42: #{tpu_custom_call.1} parent=39 // pred_check_branch
          %233 = sbr.rel (%p231) target = $region44
        $region43: #{tpu_custom_call.1} parent=39 // pred_region
          %s234 = smul.u32 64, %s16
          %p235 = scmp.lt.s32.totalorder %s234, 127
          %s236 = scalar_select %p235, %s234, 127
          %s237 = smul.addr %s236, 8
          %s238 = scalar_lea.vmem %s0, %s237
          %s239 = smul.u32 64, %s16
        $region44: #{tpu_custom_call.1} parent=39 // pred_fallthru
          _
      $region40: #{tpu_custom_call.1} parent=5 // pred_fallthru
        _
      %p240 = scmp.le.s32.totalorder 1, %s16
      %p241 = scmp.lt.s32.totalorder %s16, 3
      %p242 = pnand %p240, %p241
      %p243 = pneg %p242
      // Predicated region
      $region45: #{tpu_custom_call.1} parent=5 // pred_check
        _
      $region46: #{tpu_custom_call.1} parent=5 // pred_check_branch
        %245 = sbr.rel (%p242) target = $region48
      $region47: #{tpu_custom_call.1} parent=5 // pred_region
        %s246 = ssub.s32 %s16, 1
        %s247 = smul.u32 64, %s21
        %p248 = scmp.lt.s32.totalorder %s247, 127
        %s249 = scalar_select %p248, %s247, 127
        %s250 = smul.addr %s249, 8
        %s251 = scalar_lea.vmem %s0, %s250
        %p252 = pneg %p42
        %p253 = pneg %p39
        %p254 = pneg %p63
        %p255 = pneg %p60
        %p256 = pneg %p84
        %p257 = pneg %p81
        %p258 = pneg %p105
        %p259 = pneg %p102
        %p260 = pneg %p126
        %p261 = pneg %p123
        %p262 = pneg %p147
        %p263 = pneg %p144
        %p264 = pneg %p168
        %p265 = pneg %p165
        %p266 = pneg %p194
        %p267 = pneg %p191
        %s268 = sand.u32 %s181, 1
        %s269 = scalar_lea.sflag [#allocation3], %s268
        %s270 = sand.u32 %s181, 1
        %s271 = smul.addr %s270, 512
        %s272 = scalar_lea.vmem [#allocation2], %s271
        %s273 = smul.u32 64, %s21
        %p274 = scmp.lt.s32.totalorder %s273, 127
        %s275 = scalar_select %p274, %s273, 127
        %s276 = smul.addr %s275, 8
        %s277 = scalar_lea.vmem %s0, %s276
        %s278 = smul.u32 64, %s21
        %s279 = smul.u32 64, %s21
        %v280 = vld [vmem:[%s277] sm:$0xff]
        %v281 = vld [vmem:[%s277 + $0x8] sm:$0xff]
        %v282 = vld [vmem:[%s277 + $0x10] sm:$0xff]
        %v283 = vld [vmem:[%s277 + $0x18] sm:$0xff]
        %v284 = vld [vmem:[%s277 + $0x20] sm:$0xff]
        %v285 = vld [vmem:[%s277 + $0x28] sm:$0xff]
        %v286 = vld [vmem:[%s277 + $0x30] sm:$0xff]
        %v287 = vld [vmem:[%s277 + $0x38] sm:$0xff]
        %v288 = vld [vmem:[%s277 + $0x40] sm:$0xff]
        %v289 = vld [vmem:[%s277 + $0x48] sm:$0xff]
        %v290 = vld [vmem:[%s277 + $0x50] sm:$0xff]
        %v291 = vld [vmem:[%s277 + $0x58] sm:$0xff]
        %v292 = vld [vmem:[%s277 + $0x60] sm:$0xff]
        %v293 = vld [vmem:[%s277 + $0x68] sm:$0xff]
        %v294 = vld [vmem:[%s277 + $0x70] sm:$0xff]
        %v295 = vld [vmem:[%s277 + $0x78] sm:$0xff]
        %v296 = vld [vmem:[%s277 + $0x80] sm:$0xff]
        %v297 = vld [vmem:[%s277 + $0x88] sm:$0xff]
        %v298 = vld [vmem:[%s277 + $0x90] sm:$0xff]
        %v299 = vld [vmem:[%s277 + $0x98] sm:$0xff]
        %v300 = vld [vmem:[%s277 + $0xa0] sm:$0xff]
        %v301 = vld [vmem:[%s277 + $0xa8] sm:$0xff]
        %v302 = vld [vmem:[%s277 + $0xb0] sm:$0xff]
        %v303 = vld [vmem:[%s277 + $0xb8] sm:$0xff]
        %v304 = vld [vmem:[%s277 + $0xc0] sm:$0xff]
        %v305 = vld [vmem:[%s277 + $0xc8] sm:$0xff]
        %v306 = vld [vmem:[%s277 + $0xd0] sm:$0xff]
        %v307 = vld [vmem:[%s277 + $0xd8] sm:$0xff]
        %v308 = vld [vmem:[%s277 + $0xe0] sm:$0xff]
        %v309 = vld [vmem:[%s277 + $0xe8] sm:$0xff]
        %v310 = vld [vmem:[%s277 + $0xf0] sm:$0xff]
        %v311 = vld [vmem:[%s277 + $0xf8] sm:$0xff]
        %v312 = vld [vmem:[%s277 + $0x100] sm:$0xff]
        %v313 = vld [vmem:[%s277 + $0x108] sm:$0xff]
        %v314 = vld [vmem:[%s277 + $0x110] sm:$0xff]
        %v315 = vld [vmem:[%s277 + $0x118] sm:$0xff]
        %v316 = vld [vmem:[%s277 + $0x120] sm:$0xff]
        %v317 = vld [vmem:[%s277 + $0x128] sm:$0xff]
        %v318 = vld [vmem:[%s277 + $0x130] sm:$0xff]
        %v319 = vld [vmem:[%s277 + $0x138] sm:$0xff]
        %v320 = vld [vmem:[%s277 + $0x140] sm:$0xff]
        %v321 = vld [vmem:[%s277 + $0x148] sm:$0xff]
        %v322 = vld [vmem:[%s277 + $0x150] sm:$0xff]
        %v323 = vld [vmem:[%s277 + $0x158] sm:$0xff]
        %v324 = vld [vmem:[%s277 + $0x160] sm:$0xff]
        %v325 = vld [vmem:[%s277 + $0x168] sm:$0xff]
        %v326 = vld [vmem:[%s277 + $0x170] sm:$0xff]
        %v327 = vld [vmem:[%s277 + $0x178] sm:$0xff]
        %v328 = vld [vmem:[%s277 + $0x180] sm:$0xff]
        %v329 = vld [vmem:[%s277 + $0x188] sm:$0xff]
        %v330 = vld [vmem:[%s277 + $0x190] sm:$0xff]
        %v331 = vld [vmem:[%s277 + $0x198] sm:$0xff]
        %v332 = vld [vmem:[%s277 + $0x1a0] sm:$0xff]
        %v333 = vld [vmem:[%s277 + $0x1a8] sm:$0xff]
        %v334 = vld [vmem:[%s277 + $0x1b0] sm:$0xff]
        %v335 = vld [vmem:[%s277 + $0x1b8] sm:$0xff]
        %v336 = vld [vmem:[%s277 + $0x1c0] sm:$0xff]
        %v337 = vld [vmem:[%s277 + $0x1c8] sm:$0xff]
        %v338 = vld [vmem:[%s277 + $0x1d0] sm:$0xff]
        %v339 = vld [vmem:[%s277 + $0x1d8] sm:$0xff]
        %v340 = vld [vmem:[%s277 + $0x1e0] sm:$0xff]
        %v341 = vld [vmem:[%s277 + $0x1e8] sm:$0xff]
        %v342 = vld [vmem:[%s277 + $0x1f0] sm:$0xff]
        %v343 = vld [vmem:[%s277 + $0x1f8] sm:$0xff]
        %v344 = vld [vmem:[%s2] sm:$0x1]
        %v345 = vld [vmem:[%s1] sm:$0x1]
        %347 = vset.pattern.permute.xlu0 0
        %348 = vperm.xlu0 %347, %v280
        %v349 = vpop.permute.xlu0 %348
        %352 = vset.pattern.permute.xlu0 0
        %353 = vperm.xlu0 %352, %v281
        %v354 = vpop.permute.xlu0 %353
        %357 = vset.pattern.permute.xlu0 0
        %358 = vperm.xlu0 %357, %v282
        %v359 = vpop.permute.xlu0 %358
        %362 = vset.pattern.permute.xlu0 0
        %363 = vperm.xlu0 %362, %v283
        %v364 = vpop.permute.xlu0 %363
        %367 = vset.pattern.permute.xlu0 0
        %368 = vperm.xlu0 %367, %v284
        %v369 = vpop.permute.xlu0 %368
        %372 = vset.pattern.permute.xlu0 0
        %373 = vperm.xlu0 %372, %v285
        %v374 = vpop.permute.xlu0 %373
        %377 = vset.pattern.permute.xlu0 0
        %378 = vperm.xlu0 %377, %v286
        %v379 = vpop.permute.xlu0 %378
        %382 = vset.pattern.permute.xlu0 0
        %383 = vperm.xlu0 %382, %v287
        %v384 = vpop.permute.xlu0 %383
        %387 = vset.pattern.permute.xlu0 0
        %388 = vperm.xlu0 %387, %v288
        %v389 = vpop.permute.xlu0 %388
        %392 = vset.pattern.permute.xlu0 0
        %393 = vperm.xlu0 %392, %v289
        %v394 = vpop.permute.xlu0 %393
        %397 = vset.pattern.permute.xlu0 0
        %398 = vperm.xlu0 %397, %v290
        %v399 = vpop.permute.xlu0 %398
        %402 = vset.pattern.permute.xlu0 0
        %403 = vperm.xlu0 %402, %v291
        %v404 = vpop.permute.xlu0 %403
        %407 = vset.pattern.permute.xlu0 0
        %408 = vperm.xlu0 %407, %v292
        %v409 = vpop.permute.xlu0 %408
        %412 = vset.pattern.permute.xlu0 0
        %413 = vperm.xlu0 %412, %v293
        %v414 = vpop.permute.xlu0 %413
        %417 = vset.pattern.permute.xlu0 0
        %418 = vperm.xlu0 %417, %v294
        %v419 = vpop.permute.xlu0 %418
        %422 = vset.pattern.permute.xlu0 0
        %423 = vperm.xlu0 %422, %v295
        %v424 = vpop.permute.xlu0 %423
        %427 = vset.pattern.permute.xlu0 0
        %428 = vperm.xlu0 %427, %v296
        %v429 = vpop.permute.xlu0 %428
        %432 = vset.pattern.permute.xlu0 0
        %433 = vperm.xlu0 %432, %v297
        %v434 = vpop.permute.xlu0 %433
        %437 = vset.pattern.permute.xlu0 0
        %438 = vperm.xlu0 %437, %v298
        %v439 = vpop.permute.xlu0 %438
        %442 = vset.pattern.permute.xlu0 0
        %443 = vperm.xlu0 %442, %v299
        %v444 = vpop.permute.xlu0 %443
        %447 = vset.pattern.permute.xlu0 0
        %448 = vperm.xlu0 %447, %v300
        %v449 = vpop.permute.xlu0 %448
        %452 = vset.pattern.permute.xlu0 0
        %453 = vperm.xlu0 %452, %v301
        %v454 = vpop.permute.xlu0 %453
        %457 = vset.pattern.permute.xlu0 0
        %458 = vperm.xlu0 %457, %v302
        %v459 = vpop.permute.xlu0 %458
        %462 = vset.pattern.permute.xlu0 0
        %463 = vperm.xlu0 %462, %v303
        %v464 = vpop.permute.xlu0 %463
        %467 = vset.pattern.permute.xlu0 0
        %468 = vperm.xlu0 %467, %v304
        %v469 = vpop.permute.xlu0 %468
        %472 = vset.pattern.permute.xlu0 0
        %473 = vperm.xlu0 %472, %v305
        %v474 = vpop.permute.xlu0 %473
        %477 = vset.pattern.permute.xlu0 0
        %478 = vperm.xlu0 %477, %v306
        %v479 = vpop.permute.xlu0 %478
        %482 = vset.pattern.permute.xlu0 0
        %483 = vperm.xlu0 %482, %v307
        %v484 = vpop.permute.xlu0 %483
        %487 = vset.pattern.permute.xlu0 0
        %488 = vperm.xlu0 %487, %v308
        %v489 = vpop.permute.xlu0 %488
        %492 = vset.pattern.permute.xlu0 0
        %493 = vperm.xlu0 %492, %v309
        %v494 = vpop.permute.xlu0 %493
        %497 = vset.pattern.permute.xlu0 0
        %498 = vperm.xlu0 %497, %v310
        %v499 = vpop.permute.xlu0 %498
        %502 = vset.pattern.permute.xlu0 0
        %503 = vperm.xlu0 %502, %v311
        %v504 = vpop.permute.xlu0 %503
        %507 = vset.pattern.permute.xlu0 0
        %508 = vperm.xlu0 %507, %v312
        %v509 = vpop.permute.xlu0 %508
        %512 = vset.pattern.permute.xlu0 0
        %513 = vperm.xlu0 %512, %v313
        %v514 = vpop.permute.xlu0 %513
        %517 = vset.pattern.permute.xlu0 0
        %518 = vperm.xlu0 %517, %v314
        %v519 = vpop.permute.xlu0 %518
        %522 = vset.pattern.permute.xlu0 0
        %523 = vperm.xlu0 %522, %v315
        %v524 = vpop.permute.xlu0 %523
        %527 = vset.pattern.permute.xlu0 0
        %528 = vperm.xlu0 %527, %v316
        %v529 = vpop.permute.xlu0 %528
        %532 = vset.pattern.permute.xlu0 0
        %533 = vperm.xlu0 %532, %v317
        %v534 = vpop.permute.xlu0 %533
        %537 = vset.pattern.permute.xlu0 0
        %538 = vperm.xlu0 %537, %v318
        %v539 = vpop.permute.xlu0 %538
        %542 = vset.pattern.permute.xlu0 0
        %543 = vperm.xlu0 %542, %v319
        %v544 = vpop.permute.xlu0 %543
        %547 = vset.pattern.permute.xlu0 0
        %548 = vperm.xlu0 %547, %v320
        %v549 = vpop.permute.xlu0 %548
        %552 = vset.pattern.permute.xlu0 0
        %553 = vperm.xlu0 %552, %v321
        %v554 = vpop.permute.xlu0 %553
        %557 = vset.pattern.permute.xlu0 0
        %558 = vperm.xlu0 %557, %v322
        %v559 = vpop.permute.xlu0 %558
        %562 = vset.pattern.permute.xlu0 0
        %563 = vperm.xlu0 %562, %v323
        %v564 = vpop.permute.xlu0 %563
        %567 = vset.pattern.permute.xlu0 0
        %568 = vperm.xlu0 %567, %v324
        %v569 = vpop.permute.xlu0 %568
        %572 = vset.pattern.permute.xlu0 0
        %573 = vperm.xlu0 %572, %v325
        %v574 = vpop.permute.xlu0 %573
        %577 = vset.pattern.permute.xlu0 0
        %578 = vperm.xlu0 %577, %v326
        %v579 = vpop.permute.xlu0 %578
        %582 = vset.pattern.permute.xlu0 0
        %583 = vperm.xlu0 %582, %v327
        %v584 = vpop.permute.xlu0 %583
        %587 = vset.pattern.permute.xlu0 0
        %588 = vperm.xlu0 %587, %v328
        %v589 = vpop.permute.xlu0 %588
        %592 = vset.pattern.permute.xlu0 0
        %593 = vperm.xlu0 %592, %v329
        %v594 = vpop.permute.xlu0 %593
        %597 = vset.pattern.permute.xlu0 0
        %598 = vperm.xlu0 %597, %v330
        %v599 = vpop.permute.xlu0 %598
        %602 = vset.pattern.permute.xlu0 0
        %603 = vperm.xlu0 %602, %v331
        %v604 = vpop.permute.xlu0 %603
        %607 = vset.pattern.permute.xlu0 0
        %608 = vperm.xlu0 %607, %v332
        %v609 = vpop.permute.xlu0 %608
        %612 = vset.pattern.permute.xlu0 0
        %613 = vperm.xlu0 %612, %v333
        %v614 = vpop.permute.xlu0 %613
        %617 = vset.pattern.permute.xlu0 0
        %618 = vperm.xlu0 %617, %v334
        %v619 = vpop.permute.xlu0 %618
        %622 = vset.pattern.permute.xlu0 0
        %623 = vperm.xlu0 %622, %v335
        %v624 = vpop.permute.xlu0 %623
        %627 = vset.pattern.permute.xlu0 0
        %628 = vperm.xlu0 %627, %v336
        %v629 = vpop.permute.xlu0 %628
        %632 = vset.pattern.permute.xlu0 0
        %633 = vperm.xlu0 %632, %v337
        %v634 = vpop.permute.xlu0 %633
        %637 = vset.pattern.permute.xlu0 0
        %638 = vperm.xlu0 %637, %v338
        %v639 = vpop.permute.xlu0 %638
        %642 = vset.pattern.permute.xlu0 0
        %643 = vperm.xlu0 %642, %v339
        %v644 = vpop.permute.xlu0 %643
        %647 = vset.pattern.permute.xlu0 0
        %648 = vperm.xlu0 %647, %v340
        %v649 = vpop.permute.xlu0 %648
        %652 = vset.pattern.permute.xlu0 0
        %653 = vperm.xlu0 %652, %v341
        %v654 = vpop.permute.xlu0 %653
        %657 = vset.pattern.permute.xlu0 0
        %658 = vperm.xlu0 %657, %v342
        %v659 = vpop.permute.xlu0 %658
        %662 = vset.pattern.permute.xlu0 0
        %663 = vperm.xlu0 %662, %v343
        %v664 = vpop.permute.xlu0 %663
        %v666 = vperm.slane %v345, 0
        %v667 = vmul.f32 %v349, %v666
        %v668 = vmul.f32 %v354, %v666
        %v669 = vmul.f32 %v359, %v666
        %v670 = vmul.f32 %v364, %v666
        %v671 = vmul.f32 %v369, %v666
        %v672 = vmul.f32 %v374, %v666
        %v673 = vmul.f32 %v379, %v666
        %v674 = vmul.f32 %v384, %v666
        %v675 = vmul.f32 %v389, %v666
        %v676 = vmul.f32 %v394, %v666
        %v677 = vmul.f32 %v399, %v666
        %v678 = vmul.f32 %v404, %v666
        %v679 = vmul.f32 %v409, %v666
        %v680 = vmul.f32 %v414, %v666
        %v681 = vmul.f32 %v419, %v666
        %v682 = vmul.f32 %v424, %v666
        %v683 = vmul.f32 %v429, %v666
        %v684 = vmul.f32 %v434, %v666
        %v685 = vmul.f32 %v439, %v666
        %v686 = vmul.f32 %v444, %v666
        %v687 = vmul.f32 %v449, %v666
        %v688 = vmul.f32 %v454, %v666
        %v689 = vmul.f32 %v459, %v666
        %v690 = vmul.f32 %v464, %v666
        %v691 = vmul.f32 %v469, %v666
        %v692 = vmul.f32 %v474, %v666
        %v693 = vmul.f32 %v479, %v666
        %v694 = vmul.f32 %v484, %v666
        %v695 = vmul.f32 %v489, %v666
        %v696 = vmul.f32 %v494, %v666
        %v697 = vmul.f32 %v499, %v666
        %v698 = vmul.f32 %v504, %v666
        %v699 = vmul.f32 %v509, %v666
        %v700 = vmul.f32 %v514, %v666
        %v701 = vmul.f32 %v519, %v666
        %v702 = vmul.f32 %v524, %v666
        %v703 = vmul.f32 %v529, %v666
        %v704 = vmul.f32 %v534, %v666
        %v705 = vmul.f32 %v539, %v666
        %v706 = vmul.f32 %v544, %v666
        %v707 = vmul.f32 %v549, %v666
        %v708 = vmul.f32 %v554, %v666
        %v709 = vmul.f32 %v559, %v666
        %v710 = vmul.f32 %v564, %v666
        %v711 = vmul.f32 %v569, %v666
        %v712 = vmul.f32 %v574, %v666
        %v713 = vmul.f32 %v579, %v666
        %v714 = vmul.f32 %v584, %v666
        %v715 = vmul.f32 %v589, %v666
        %v716 = vmul.f32 %v594, %v666
        %v717 = vmul.f32 %v599, %v666
        %v718 = vmul.f32 %v604, %v666
        %v719 = vmul.f32 %v609, %v666
        %v720 = vmul.f32 %v614, %v666
        %v721 = vmul.f32 %v619, %v666
        %v722 = vmul.f32 %v624, %v666
        %v723 = vmul.f32 %v629, %v666
        %v724 = vmul.f32 %v634, %v666
        %v725 = vmul.f32 %v639, %v666
        %v726 = vmul.f32 %v644, %v666
        %v727 = vmul.f32 %v649, %v666
        %v728 = vmul.f32 %v654, %v666
        %v729 = vmul.f32 %v659, %v666
        %v730 = vmul.f32 %v664, %v666
        %v732 = vperm.slane %v344, 0
        %v734 = vadd.f32 %v732, %v667
        %v735 = vadd.f32 %v732, %v668
        %v736 = vadd.f32 %v732, %v669
        %v737 = vadd.f32 %v732, %v670
        %v738 = vadd.f32 %v732, %v671
        %v739 = vadd.f32 %v732, %v672
        %v740 = vadd.f32 %v732, %v673
        %v741 = vadd.f32 %v732, %v674
        %v742 = vadd.f32 %v732, %v675
        %v743 = vadd.f32 %v732, %v676
        %v744 = vadd.f32 %v732, %v677
        %v745 = vadd.f32 %v732, %v678
        %v746 = vadd.f32 %v732, %v679
        %v747 = vadd.f32 %v732, %v680
        %v748 = vadd.f32 %v732, %v681
        %v749 = vadd.f32 %v732, %v682
        %v750 = vadd.f32 %v732, %v683
        %v751 = vadd.f32 %v732, %v684
        %v752 = vadd.f32 %v732, %v685
        %v753 = vadd.f32 %v732, %v686
        %v754 = vadd.f32 %v732, %v687
        %v755 = vadd.f32 %v732, %v688
        %v756 = vadd.f32 %v732, %v689
        %v757 = vadd.f32 %v732, %v690
        %v758 = vadd.f32 %v732, %v691
        %v759 = vadd.f32 %v732, %v692
        %v760 = vadd.f32 %v732, %v693
        %v761 = vadd.f32 %v732, %v694
        %v762 = vadd.f32 %v732, %v695
        %v763 = vadd.f32 %v732, %v696
        %v764 = vadd.f32 %v732, %v697
        %v765 = vadd.f32 %v732, %v698
        %v766 = vadd.f32 %v732, %v699
        %v767 = vadd.f32 %v732, %v700
        %v768 = vadd.f32 %v732, %v701
        %v769 = vadd.f32 %v732, %v702
        %v770 = vadd.f32 %v732, %v703
        %v771 = vadd.f32 %v732, %v704
        %v772 = vadd.f32 %v732, %v705
        %v773 = vadd.f32 %v732, %v706
        %v774 = vadd.f32 %v732, %v707
        %v775 = vadd.f32 %v732, %v708
        %v776 = vadd.f32 %v732, %v709
        %v777 = vadd.f32 %v732, %v710
        %v778 = vadd.f32 %v732, %v711
        %v779 = vadd.f32 %v732, %v712
        %v780 = vadd.f32 %v732, %v713
        %v781 = vadd.f32 %v732, %v714
        %v782 = vadd.f32 %v732, %v715
        %v783 = vadd.f32 %v732, %v716
        %v784 = vadd.f32 %v732, %v717
        %v785 = vadd.f32 %v732, %v718
        %v786 = vadd.f32 %v732, %v719
        %v787 = vadd.f32 %v732, %v720
        %v788 = vadd.f32 %v732, %v721
        %v789 = vadd.f32 %v732, %v722
        %v790 = vadd.f32 %v732, %v723
        %v791 = vadd.f32 %v732, %v724
        %v792 = vadd.f32 %v732, %v725
        %v793 = vadd.f32 %v732, %v726
        %v794 = vadd.f32 %v732, %v727
        %v795 = vadd.f32 %v732, %v728
        %v796 = vadd.f32 %v732, %v729
        %v797 = vadd.f32 %v732, %v730
        %v798 = vld [vmem:[%s1 + $0x1] sm:$0x1]
        %799 = vset.pattern.permute.xlu0 1
        %800 = vperm.xlu0 %799, %v280
        %v801 = vpop.permute.xlu0 %800
        %803 = vset.pattern.permute.xlu0 1
        %804 = vperm.xlu0 %803, %v281
        %v805 = vpop.permute.xlu0 %804
        %807 = vset.pattern.permute.xlu0 1
        %808 = vperm.xlu0 %807, %v282
        %v809 = vpop.permute.xlu0 %808
        %811 = vset.pattern.permute.xlu0 1
        %812 = vperm.xlu0 %811, %v283
        %v813 = vpop.permute.xlu0 %812
        %815 = vset.pattern.permute.xlu0 1
        %816 = vperm.xlu0 %815, %v284
        %v817 = vpop.permute.xlu0 %816
        %819 = vset.pattern.permute.xlu0 1
        %820 = vperm.xlu0 %819, %v285
        %v821 = vpop.permute.xlu0 %820
        %823 = vset.pattern.permute.xlu0 1
        %824 = vperm.xlu0 %823, %v286
        %v825 = vpop.permute.xlu0 %824
        %827 = vset.pattern.permute.xlu0 1
        %828 = vperm.xlu0 %827, %v287
        %v829 = vpop.permute.xlu0 %828
        %831 = vset.pattern.permute.xlu0 1
        %832 = vperm.xlu0 %831, %v288
        %v833 = vpop.permute.xlu0 %832
        %835 = vset.pattern.permute.xlu0 1
        %836 = vperm.xlu0 %835, %v289
        %v837 = vpop.permute.xlu0 %836
        %839 = vset.pattern.permute.xlu0 1
        %840 = vperm.xlu0 %839, %v290
        %v841 = vpop.permute.xlu0 %840
        %843 = vset.pattern.permute.xlu0 1
        %844 = vperm.xlu0 %843, %v291
        %v845 = vpop.permute.xlu0 %844
        %847 = vset.pattern.permute.xlu0 1
        %848 = vperm.xlu0 %847, %v292
        %v849 = vpop.permute.xlu0 %848
        %851 = vset.pattern.permute.xlu0 1
        %852 = vperm.xlu0 %851, %v293
        %v853 = vpop.permute.xlu0 %852
        %855 = vset.pattern.permute.xlu0 1
        %856 = vperm.xlu0 %855, %v294
        %v857 = vpop.permute.xlu0 %856
        %859 = vset.pattern.permute.xlu0 1
        %860 = vperm.xlu0 %859, %v295
        %v861 = vpop.permute.xlu0 %860
        %863 = vset.pattern.permute.xlu0 1
        %864 = vperm.xlu0 %863, %v296
        %v865 = vpop.permute.xlu0 %864
        %867 = vset.pattern.permute.xlu0 1
        %868 = vperm.xlu0 %867, %v297
        %v869 = vpop.permute.xlu0 %868
        %871 = vset.pattern.permute.xlu0 1
        %872 = vperm.xlu0 %871, %v298
        %v873 = vpop.permute.xlu0 %872
        %875 = vset.pattern.permute.xlu0 1
        %876 = vperm.xlu0 %875, %v299
        %v877 = vpop.permute.xlu0 %876
        %879 = vset.pattern.permute.xlu0 1
        %880 = vperm.xlu0 %879, %v300
        %v881 = vpop.permute.xlu0 %880
        %883 = vset.pattern.permute.xlu0 1
        %884 = vperm.xlu0 %883, %v301
        %v885 = vpop.permute.xlu0 %884
        %887 = vset.pattern.permute.xlu0 1
        %888 = vperm.xlu0 %887, %v302
        %v889 = vpop.permute.xlu0 %888
        %891 = vset.pattern.permute.xlu0 1
        %892 = vperm.xlu0 %891, %v303
        %v893 = vpop.permute.xlu0 %892
        %895 = vset.pattern.permute.xlu0 1
        %896 = vperm.xlu0 %895, %v304
        %v897 = vpop.permute.xlu0 %896
        %899 = vset.pattern.permute.xlu0 1
        %900 = vperm.xlu0 %899, %v305
        %v901 = vpop.permute.xlu0 %900
        %903 = vset.pattern.permute.xlu0 1
        %904 = vperm.xlu0 %903, %v306
        %v905 = vpop.permute.xlu0 %904
        %907 = vset.pattern.permute.xlu0 1
        %908 = vperm.xlu0 %907, %v307
        %v909 = vpop.permute.xlu0 %908
        %911 = vset.pattern.permute.xlu0 1
        %912 = vperm.xlu0 %911, %v308
        %v913 = vpop.permute.xlu0 %912
        %915 = vset.pattern.permute.xlu0 1
        %916 = vperm.xlu0 %915, %v309
        %v917 = vpop.permute.xlu0 %916
        %919 = vset.pattern.permute.xlu0 1
        %920 = vperm.xlu0 %919, %v310
        %v921 = vpop.permute.xlu0 %920
        %923 = vset.pattern.permute.xlu0 1
        %924 = vperm.xlu0 %923, %v311
        %v925 = vpop.permute.xlu0 %924
        %927 = vset.pattern.permute.xlu0 1
        %928 = vperm.xlu0 %927, %v312
        %v929 = vpop.permute.xlu0 %928
        %931 = vset.pattern.permute.xlu0 1
        %932 = vperm.xlu0 %931, %v313
        %v933 = vpop.permute.xlu0 %932
        %935 = vset.pattern.permute.xlu0 1
        %936 = vperm.xlu0 %935, %v314
        %v937 = vpop.permute.xlu0 %936
        %939 = vset.pattern.permute.xlu0 1
        %940 = vperm.xlu0 %939, %v315
        %v941 = vpop.permute.xlu0 %940
        %943 = vset.pattern.permute.xlu0 1
        %944 = vperm.xlu0 %943, %v316
        %v945 = vpop.permute.xlu0 %944
        %947 = vset.pattern.permute.xlu0 1
        %948 = vperm.xlu0 %947, %v317
        %v949 = vpop.permute.xlu0 %948
        %951 = vset.pattern.permute.xlu0 1
        %952 = vperm.xlu0 %951, %v318
        %v953 = vpop.permute.xlu0 %952
        %955 = vset.pattern.permute.xlu0 1
        %956 = vperm.xlu0 %955, %v319
        %v957 = vpop.permute.xlu0 %956
        %959 = vset.pattern.permute.xlu0 1
        %960 = vperm.xlu0 %959, %v320
        %v961 = vpop.permute.xlu0 %960
        %963 = vset.pattern.permute.xlu0 1
        %964 = vperm.xlu0 %963, %v321
        %v965 = vpop.permute.xlu0 %964
        %967 = vset.pattern.permute.xlu0 1
        %968 = vperm.xlu0 %967, %v322
        %v969 = vpop.permute.xlu0 %968
        %971 = vset.pattern.permute.xlu0 1
        %972 = vperm.xlu0 %971, %v323
        %v973 = vpop.permute.xlu0 %972
        %975 = vset.pattern.permute.xlu0 1
        %976 = vperm.xlu0 %975, %v324
        %v977 = vpop.permute.xlu0 %976
        %979 = vset.pattern.permute.xlu0 1
        %980 = vperm.xlu0 %979, %v325
        %v981 = vpop.permute.xlu0 %980
        %983 = vset.pattern.permute.xlu0 1
        %984 = vperm.xlu0 %983, %v326
        %v985 = vpop.permute.xlu0 %984
        %987 = vset.pattern.permute.xlu0 1
        %988 = vperm.xlu0 %987, %v327
        %v989 = vpop.permute.xlu0 %988
        %991 = vset.pattern.permute.xlu0 1
        %992 = vperm.xlu0 %991, %v328
        %v993 = vpop.permute.xlu0 %992
        %995 = vset.pattern.permute.xlu0 1
        %996 = vperm.xlu0 %995, %v329
        %v997 = vpop.permute.xlu0 %996
        %999 = vset.pattern.permute.xlu0 1
        %1000 = vperm.xlu0 %999, %v330
        %v1001 = vpop.permute.xlu0 %1000
        %1003 = vset.pattern.permute.xlu0 1
        %1004 = vperm.xlu0 %1003, %v331
        %v1005 = vpop.permute.xlu0 %1004
        %1007 = vset.pattern.permute.xlu0 1
        %1008 = vperm.xlu0 %1007, %v332
        %v1009 = vpop.permute.xlu0 %1008
        %1011 = vset.pattern.permute.xlu0 1
        %1012 = vperm.xlu0 %1011, %v333
        %v1013 = vpop.permute.xlu0 %1012
        %1015 = vset.pattern.permute.xlu0 1
        %1016 = vperm.xlu0 %1015, %v334
        %v1017 = vpop.permute.xlu0 %1016
        %1019 = vset.pattern.permute.xlu0 1
        %1020 = vperm.xlu0 %1019, %v335
        %v1021 = vpop.permute.xlu0 %1020
        %1023 = vset.pattern.permute.xlu0 1
        %1024 = vperm.xlu0 %1023, %v336
        %v1025 = vpop.permute.xlu0 %1024
        %1027 = vset.pattern.permute.xlu0 1
        %1028 = vperm.xlu0 %1027, %v337
        %v1029 = vpop.permute.xlu0 %1028
        %1031 = vset.pattern.permute.xlu0 1
        %1032 = vperm.xlu0 %1031, %v338
        %v1033 = vpop.permute.xlu0 %1032
        %1035 = vset.pattern.permute.xlu0 1
        %1036 = vperm.xlu0 %1035, %v339
        %v1037 = vpop.permute.xlu0 %1036
        %1039 = vset.pattern.permute.xlu0 1
        %1040 = vperm.xlu0 %1039, %v340
        %v1041 = vpop.permute.xlu0 %1040
        %1043 = vset.pattern.permute.xlu0 1
        %1044 = vperm.xlu0 %1043, %v341
        %v1045 = vpop.permute.xlu0 %1044
        %1047 = vset.pattern.permute.xlu0 1
        %1048 = vperm.xlu0 %1047, %v342
        %v1049 = vpop.permute.xlu0 %1048
        %1051 = vset.pattern.permute.xlu0 1
        %1052 = vperm.xlu0 %1051, %v343
        %v1053 = vpop.permute.xlu0 %1052
        %v1055 = vperm.slane %v798, 0
        %v1056 = vmul.f32 %v801, %v1055
        %v1057 = vmul.f32 %v805, %v1055
        %v1058 = vmul.f32 %v809, %v1055
        %v1059 = vmul.f32 %v813, %v1055
        %v1060 = vmul.f32 %v817, %v1055
        %v1061 = vmul.f32 %v821, %v1055
        %v1062 = vmul.f32 %v825, %v1055
        %v1063 = vmul.f32 %v829, %v1055
        %v1064 = vmul.f32 %v833, %v1055
        %v1065 = vmul.f32 %v837, %v1055
        %v1066 = vmul.f32 %v841, %v1055
        %v1067 = vmul.f32 %v845, %v1055
        %v1068 = vmul.f32 %v849, %v1055
        %v1069 = vmul.f32 %v853, %v1055
        %v1070 = vmul.f32 %v857, %v1055
        %v1071 = vmul.f32 %v861, %v1055
        %v1072 = vmul.f32 %v865, %v1055
        %v1073 = vmul.f32 %v869, %v1055
        %v1074 = vmul.f32 %v873, %v1055
        %v1075 = vmul.f32 %v877, %v1055
        %v1076 = vmul.f32 %v881, %v1055
        %v1077 = vmul.f32 %v885, %v1055
        %v1078 = vmul.f32 %v889, %v1055
        %v1079 = vmul.f32 %v893, %v1055
        %v1080 = vmul.f32 %v897, %v1055
        %v1081 = vmul.f32 %v901, %v1055
        %v1082 = vmul.f32 %v905, %v1055
        %v1083 = vmul.f32 %v909, %v1055
        %v1084 = vmul.f32 %v913, %v1055
        %v1085 = vmul.f32 %v917, %v1055
        %v1086 = vmul.f32 %v921, %v1055
        %v1087 = vmul.f32 %v925, %v1055
        %v1088 = vmul.f32 %v929, %v1055
        %v1089 = vmul.f32 %v933, %v1055
        %v1090 = vmul.f32 %v937, %v1055
        %v1091 = vmul.f32 %v941, %v1055
        %v1092 = vmul.f32 %v945, %v1055
        %v1093 = vmul.f32 %v949, %v1055
        %v1094 = vmul.f32 %v953, %v1055
        %v1095 = vmul.f32 %v957, %v1055
        %v1096 = vmul.f32 %v961, %v1055
        %v1097 = vmul.f32 %v965, %v1055
        %v1098 = vmul.f32 %v969, %v1055
        %v1099 = vmul.f32 %v973, %v1055
        %v1100 = vmul.f32 %v977, %v1055
        %v1101 = vmul.f32 %v981, %v1055
        %v1102 = vmul.f32 %v985, %v1055
        %v1103 = vmul.f32 %v989, %v1055
        %v1104 = vmul.f32 %v993, %v1055
        %v1105 = vmul.f32 %v997, %v1055
        %v1106 = vmul.f32 %v1001, %v1055
        %v1107 = vmul.f32 %v1005, %v1055
        %v1108 = vmul.f32 %v1009, %v1055
        %v1109 = vmul.f32 %v1013, %v1055
        %v1110 = vmul.f32 %v1017, %v1055
        %v1111 = vmul.f32 %v1021, %v1055
        %v1112 = vmul.f32 %v1025, %v1055
        %v1113 = vmul.f32 %v1029, %v1055
        %v1114 = vmul.f32 %v1033, %v1055
        %v1115 = vmul.f32 %v1037, %v1055
        %v1116 = vmul.f32 %v1041, %v1055
        %v1117 = vmul.f32 %v1045, %v1055
        %v1118 = vmul.f32 %v1049, %v1055
        %v1119 = vmul.f32 %v1053, %v1055
        %v1120 = vadd.f32 %v734, %v1056
        %v1121 = vadd.f32 %v735, %v1057
        %v1122 = vadd.f32 %v736, %v1058
        %v1123 = vadd.f32 %v737, %v1059
        %v1124 = vadd.f32 %v738, %v1060
        %v1125 = vadd.f32 %v739, %v1061
        %v1126 = vadd.f32 %v740, %v1062
        %v1127 = vadd.f32 %v741, %v1063
        %v1128 = vadd.f32 %v742, %v1064
        %v1129 = vadd.f32 %v743, %v1065
        %v1130 = vadd.f32 %v744, %v1066
        %v1131 = vadd.f32 %v745, %v1067
        %v1132 = vadd.f32 %v746, %v1068
        %v1133 = vadd.f32 %v747, %v1069
        %v1134 = vadd.f32 %v748, %v1070
        %v1135 = vadd.f32 %v749, %v1071
        %v1136 = vadd.f32 %v750, %v1072
        %v1137 = vadd.f32 %v751, %v1073
        %v1138 = vadd.f32 %v752, %v1074
        %v1139 = vadd.f32 %v753, %v1075
        %v1140 = vadd.f32 %v754, %v1076
        %v1141 = vadd.f32 %v755, %v1077
        %v1142 = vadd.f32 %v756, %v1078
        %v1143 = vadd.f32 %v757, %v1079
        %v1144 = vadd.f32 %v758, %v1080
        %v1145 = vadd.f32 %v759, %v1081
        %v1146 = vadd.f32 %v760, %v1082
        %v1147 = vadd.f32 %v761, %v1083
        %v1148 = vadd.f32 %v762, %v1084
        %v1149 = vadd.f32 %v763, %v1085
        %v1150 = vadd.f32 %v764, %v1086
        %v1151 = vadd.f32 %v765, %v1087
        %v1152 = vadd.f32 %v766, %v1088
        %v1153 = vadd.f32 %v767, %v1089
        %v1154 = vadd.f32 %v768, %v1090
        %v1155 = vadd.f32 %v769, %v1091
        %v1156 = vadd.f32 %v770, %v1092
        %v1157 = vadd.f32 %v771, %v1093
        %v1158 = vadd.f32 %v772, %v1094
        %v1159 = vadd.f32 %v773, %v1095
        %v1160 = vadd.f32 %v774, %v1096
        %v1161 = vadd.f32 %v775, %v1097
        %v1162 = vadd.f32 %v776, %v1098
        %v1163 = vadd.f32 %v777, %v1099
        %v1164 = vadd.f32 %v778, %v1100
        %v1165 = vadd.f32 %v779, %v1101
        %v1166 = vadd.f32 %v780, %v1102
        %v1167 = vadd.f32 %v781, %v1103
        %v1168 = vadd.f32 %v782, %v1104
        %v1169 = vadd.f32 %v783, %v1105
        %v1170 = vadd.f32 %v784, %v1106
        %v1171 = vadd.f32 %v785, %v1107
        %v1172 = vadd.f32 %v786, %v1108
        %v1173 = vadd.f32 %v787, %v1109
        %v1174 = vadd.f32 %v788, %v1110
        %v1175 = vadd.f32 %v789, %v1111
        %v1176 = vadd.f32 %v790, %v1112
        %v1177 = vadd.f32 %v791, %v1113
        %v1178 = vadd.f32 %v792, %v1114
        %v1179 = vadd.f32 %v793, %v1115
        %v1180 = vadd.f32 %v794, %v1116
        %v1181 = vadd.f32 %v795, %v1117
        %v1182 = vadd.f32 %v796, %v1118
        %v1183 = vadd.f32 %v797, %v1119
        %v1184 = vtanh.pop %v1120
        %v1185 = vtanh.pop %v1121
        %v1186 = vtanh.pop %v1122
        %v1187 = vtanh.pop %v1123
        %v1188 = vtanh.pop %v1124
        %v1189 = vtanh.pop %v1125
        %v1190 = vtanh.pop %v1126
        %v1191 = vtanh.pop %v1127
        %v1192 = vtanh.pop %v1128
        %v1193 = vtanh.pop %v1129
        %v1194 = vtanh.pop %v1130
        %v1195 = vtanh.pop %v1131
        %v1196 = vtanh.pop %v1132
        %v1197 = vtanh.pop %v1133
        %v1198 = vtanh.pop %v1134
        %v1199 = vtanh.pop %v1135
        %v1200 = vtanh.pop %v1136
        %v1201 = vtanh.pop %v1137
        %v1202 = vtanh.pop %v1138
        %v1203 = vtanh.pop %v1139
        %v1204 = vtanh.pop %v1140
        %v1205 = vtanh.pop %v1141
        %v1206 = vtanh.pop %v1142
        %v1207 = vtanh.pop %v1143
        %v1208 = vtanh.pop %v1144
        %v1209 = vtanh.pop %v1145
        %v1210 = vtanh.pop %v1146
        %v1211 = vtanh.pop %v1147
        %v1212 = vtanh.pop %v1148
        %v1213 = vtanh.pop %v1149
        %v1214 = vtanh.pop %v1150
        %v1215 = vtanh.pop %v1151
        %v1216 = vtanh.pop %v1152
        %v1217 = vtanh.pop %v1153
        %v1218 = vtanh.pop %v1154
        %v1219 = vtanh.pop %v1155
        %v1220 = vtanh.pop %v1156
        %v1221 = vtanh.pop %v1157
        %v1222 = vtanh.pop %v1158
        %v1223 = vtanh.pop %v1159
        %v1224 = vtanh.pop %v1160
        %v1225 = vtanh.pop %v1161
        %v1226 = vtanh.pop %v1162
        %v1227 = vtanh.pop %v1163
        %v1228 = vtanh.pop %v1164
        %v1229 = vtanh.pop %v1165
        %v1230 = vtanh.pop %v1166
        %v1231 = vtanh.pop %v1167
        %v1232 = vtanh.pop %v1168
        %v1233 = vtanh.pop %v1169
        %v1234 = vtanh.pop %v1170
        %v1235 = vtanh.pop %v1171
        %v1236 = vtanh.pop %v1172
        %v1237 = vtanh.pop %v1173
        %v1238 = vtanh.pop %v1174
        %v1239 = vtanh.pop %v1175
        %v1240 = vtanh.pop %v1176
        %v1241 = vtanh.pop %v1177
        %v1242 = vtanh.pop %v1178
        %v1243 = vtanh.pop %v1179
        %v1244 = vtanh.pop %v1180
        %v1245 = vtanh.pop %v1181
        %v1246 = vtanh.pop %v1182
        %v1247 = vtanh.pop %v1183
        %v1248 = vld [vmem:[%s3] sm:$0xff]
        %v1249 = vld [vmem:[%s3 + $0x8] sm:$0xff]
        %v1250 = vld [vmem:[%s3 + $0x10] sm:$0xff]
        %v1251 = vld [vmem:[%s3 + $0x18] sm:$0xff]
        %v1252 = vld [vmem:[%s4] sm:$0x1]
        %v1254 = vperm.slane %v1252, 0
        %vm1256 = vcmask 261120
        %v1258 = vsel %vm1256, %v1184, 0
        %v1261 = vsel %vm1256, %v1185, 0
        %v1264 = vsel %vm1256, %v1186, 0
        %v1267 = vsel %vm1256, %v1187, 0
        %v1270 = vsel %vm1256, %v1188, 0
        %v1273 = vsel %vm1256, %v1189, 0
        %v1276 = vsel %vm1256, %v1190, 0
        %v1279 = vsel %vm1256, %v1191, 0
        %v1282 = vsel %vm1256, %v1192, 0
        %v1285 = vsel %vm1256, %v1193, 0
        %v1288 = vsel %vm1256, %v1194, 0
        %v1291 = vsel %vm1256, %v1195, 0
        %v1294 = vsel %vm1256, %v1196, 0
        %v1297 = vsel %vm1256, %v1197, 0
        %v1300 = vsel %vm1256, %v1198, 0
        %v1303 = vsel %vm1256, %v1199, 0
        %v1306 = vsel %vm1256, %v1200, 0
        %v1309 = vsel %vm1256, %v1201, 0
        %v1312 = vsel %vm1256, %v1202, 0
        %v1315 = vsel %vm1256, %v1203, 0
        %v1318 = vsel %vm1256, %v1204, 0
        %v1321 = vsel %vm1256, %v1205, 0
        %v1324 = vsel %vm1256, %v1206, 0
        %v1327 = vsel %vm1256, %v1207, 0
        %v1330 = vsel %vm1256, %v1208, 0
        %v1333 = vsel %vm1256, %v1209, 0
        %v1336 = vsel %vm1256, %v1210, 0
        %v1339 = vsel %vm1256, %v1211, 0
        %v1342 = vsel %vm1256, %v1212, 0
        %v1345 = vsel %vm1256, %v1213, 0
        %v1348 = vsel %vm1256, %v1214, 0
        %v1351 = vsel %vm1256, %v1215, 0
        %v1354 = vsel %vm1256, %v1216, 0
        %v1357 = vsel %vm1256, %v1217, 0
        %v1360 = vsel %vm1256, %v1218, 0
        %v1363 = vsel %vm1256, %v1219, 0
        %v1366 = vsel %vm1256, %v1220, 0
        %v1369 = vsel %vm1256, %v1221, 0
        %v1372 = vsel %vm1256, %v1222, 0
        %v1375 = vsel %vm1256, %v1223, 0
        %v1378 = vsel %vm1256, %v1224, 0
        %v1381 = vsel %vm1256, %v1225, 0
        %v1384 = vsel %vm1256, %v1226, 0
        %v1387 = vsel %vm1256, %v1227, 0
        %v1390 = vsel %vm1256, %v1228, 0
        %v1393 = vsel %vm1256, %v1229, 0
        %v1396 = vsel %vm1256, %v1230, 0
        %v1399 = vsel %vm1256, %v1231, 0
        %v1402 = vsel %vm1256, %v1232, 0
        %v1405 = vsel %vm1256, %v1233, 0
        %v1408 = vsel %vm1256, %v1234, 0
        %v1411 = vsel %vm1256, %v1235, 0
        %v1414 = vsel %vm1256, %v1236, 0
        %v1417 = vsel %vm1256, %v1237, 0
        %v1420 = vsel %vm1256, %v1238, 0
        %v1423 = vsel %vm1256, %v1239, 0
        %v1426 = vsel %vm1256, %v1240, 0
        %v1429 = vsel %vm1256, %v1241, 0
        %v1432 = vsel %vm1256, %v1242, 0
        %v1435 = vsel %vm1256, %v1243, 0
        %v1438 = vsel %vm1256, %v1244, 0
        %v1441 = vsel %vm1256, %v1245, 0
        %v1444 = vsel %vm1256, %v1246, 0
        %v1447 = vsel %vm1256, %v1247, 0
        %1449 = vmatpush.msra.mxu0 0.0
        %1450 = vmatpush.msra.mxu0 0.0
        %1451 = vmatpush.msra.mxu0 0.0
        %1452 = vmatpush.msra.mxu0 0.0
        %1453 = vmatpush.msra.mxu0 0.0
        %1454 = vmatpush.msra.mxu0 0.0
        %1455 = vmatpush.msra.mxu0 0.0
        %1456 = vmatpush.msra.mxu0 0.0
        %1457 = vmatpush.msra.mxu0 0.0
        %1458 = vmatpush.msra.mxu0 0.0
        %1459 = vmatpush.msra.mxu0 0.0
        %1460 = vmatpush.msra.mxu0 0.0
        %v1461 = vand.u32 %v1251, 4294901760
        %1462 = vmatpush.msra.mxu0 %v1461
        %v1463 = vand.u32 %v1250, 4294901760
        %1464 = vmatpush.msra.mxu0 %v1463
        %v1465 = vand.u32 %v1249, 4294901760
        %1466 = vmatpush.msra.mxu0 %v1465
        %v1467 = vand.u32 %v1248, 4294901760
        %1468 = vmatpush.msra.mxu0 %v1467
        %v1469 = vand.u32 %v1258, 4294901760
        %v1470 = vsub.f32 %v1258, %v1469
        %v1471 = vand.u32 %v1470, 4294901760
        %v1472 = vsub.f32 %v1470, %v1471
        %v1473 = vand.u32 %v1472, 4294901760
        %1474 = vmatmul.f32.gmra.mxu0 %v1473
        %v1475 = vpop.f32.mrf.mxu0
        %v1476 = vadd.f32 %v1254, %v1475
        %v1477 = vand.u32 %v1261, 4294901760
        %v1478 = vsub.f32 %v1261, %v1477
        %v1479 = vand.u32 %v1478, 4294901760
        %v1480 = vsub.f32 %v1478, %v1479
        %v1481 = vand.u32 %v1480, 4294901760
        %1482 = vmatmul.f32.gmra.mxu0 %v1481
        %v1483 = vpop.f32.mrf.mxu0
        %v1484 = vadd.f32 %v1254, %v1483
        %v1485 = vand.u32 %v1264, 4294901760
        %v1486 = vsub.f32 %v1264, %v1485
        %v1487 = vand.u32 %v1486, 4294901760
        %v1488 = vsub.f32 %v1486, %v1487
        %v1489 = vand.u32 %v1488, 4294901760
        %1490 = vmatmul.f32.gmra.mxu0 %v1489
        %v1491 = vpop.f32.mrf.mxu0
        %v1492 = vadd.f32 %v1254, %v1491
        %v1493 = vand.u32 %v1267, 4294901760
        %v1494 = vsub.f32 %v1267, %v1493
        %v1495 = vand.u32 %v1494, 4294901760
        %v1496 = vsub.f32 %v1494, %v1495
        %v1497 = vand.u32 %v1496, 4294901760
        %1498 = vmatmul.f32.gmra.mxu0 %v1497
        %v1499 = vpop.f32.mrf.mxu0
        %v1500 = vadd.f32 %v1254, %v1499
        %v1501 = vand.u32 %v1270, 4294901760
        %v1502 = vsub.f32 %v1270, %v1501
        %v1503 = vand.u32 %v1502, 4294901760
        %v1504 = vsub.f32 %v1502, %v1503
        %v1505 = vand.u32 %v1504, 4294901760
        %1506 = vmatmul.f32.gmra.mxu0 %v1505
        %v1507 = vpop.f32.mrf.mxu0
        %v1508 = vadd.f32 %v1254, %v1507
        %v1509 = vand.u32 %v1273, 4294901760
        %v1510 = vsub.f32 %v1273, %v1509
        %v1511 = vand.u32 %v1510, 4294901760
        %v1512 = vsub.f32 %v1510, %v1511
        %v1513 = vand.u32 %v1512, 4294901760
        %1514 = vmatmul.f32.gmra.mxu0 %v1513
        %v1515 = vpop.f32.mrf.mxu0
        %v1516 = vadd.f32 %v1254, %v1515
        %v1517 = vand.u32 %v1276, 4294901760
        %v1518 = vsub.f32 %v1276, %v1517
        %v1519 = vand.u32 %v1518, 4294901760
        %v1520 = vsub.f32 %v1518, %v1519
        %v1521 = vand.u32 %v1520, 4294901760
        %1522 = vmatmul.f32.gmra.mxu0 %v1521
        %v1523 = vpop.f32.mrf.mxu0
        %v1524 = vadd.f32 %v1254, %v1523
        %v1525 = vand.u32 %v1279, 4294901760
        %v1526 = vsub.f32 %v1279, %v1525
        %v1527 = vand.u32 %v1526, 4294901760
        %v1528 = vsub.f32 %v1526, %v1527
        %v1529 = vand.u32 %v1528, 4294901760
        %1530 = vmatmul.f32.gmra.mxu0 %v1529
        %v1531 = vpop.f32.mrf.mxu0
        %v1532 = vadd.f32 %v1254, %v1531
        %v1533 = vand.u32 %v1282, 4294901760
        %v1534 = vsub.f32 %v1282, %v1533
        %v1535 = vand.u32 %v1534, 4294901760
        %v1536 = vsub.f32 %v1534, %v1535
        %v1537 = vand.u32 %v1536, 4294901760
        %1538 = vmatmul.f32.gmra.mxu0 %v1537
        %v1539 = vpop.f32.mrf.mxu0
        %v1540 = vadd.f32 %v1254, %v1539
        %v1541 = vand.u32 %v1285, 4294901760
        %v1542 = vsub.f32 %v1285, %v1541
        %v1543 = vand.u32 %v1542, 4294901760
        %v1544 = vsub.f32 %v1542, %v1543
        %v1545 = vand.u32 %v1544, 4294901760
        %1546 = vmatmul.f32.gmra.mxu0 %v1545
        %v1547 = vpop.f32.mrf.mxu0
        %v1548 = vadd.f32 %v1254, %v1547
        %v1549 = vand.u32 %v1288, 4294901760
        %v1550 = vsub.f32 %v1288, %v1549
        %v1551 = vand.u32 %v1550, 4294901760
        %v1552 = vsub.f32 %v1550, %v1551
        %v1553 = vand.u32 %v1552, 4294901760
        %1554 = vmatmul.f32.gmra.mxu0 %v1553
        %v1555 = vpop.f32.mrf.mxu0
        %v1556 = vadd.f32 %v1254, %v1555
        %v1557 = vand.u32 %v1291, 4294901760
        %v1558 = vsub.f32 %v1291, %v1557
        %v1559 = vand.u32 %v1558, 4294901760
        %v1560 = vsub.f32 %v1558, %v1559
        %v1561 = vand.u32 %v1560, 4294901760
        %1562 = vmatmul.f32.gmra.mxu0 %v1561
        %v1563 = vpop.f32.mrf.mxu0
        %v1564 = vadd.f32 %v1254, %v1563
        %v1565 = vand.u32 %v1294, 4294901760
        %v1566 = vsub.f32 %v1294, %v1565
        %v1567 = vand.u32 %v1566, 4294901760
        %v1568 = vsub.f32 %v1566, %v1567
        %v1569 = vand.u32 %v1568, 4294901760
        %1570 = vmatmul.f32.gmra.mxu0 %v1569
        %v1571 = vpop.f32.mrf.mxu0
        %v1572 = vadd.f32 %v1254, %v1571
        %v1573 = vand.u32 %v1297, 4294901760
        %v1574 = vsub.f32 %v1297, %v1573
        %v1575 = vand.u32 %v1574, 4294901760
        %v1576 = vsub.f32 %v1574, %v1575
        %v1577 = vand.u32 %v1576, 4294901760
        %1578 = vmatmul.f32.gmra.mxu0 %v1577
        %v1579 = vpop.f32.mrf.mxu0
        %v1580 = vadd.f32 %v1254, %v1579
        %v1581 = vand.u32 %v1300, 4294901760
        %v1582 = vsub.f32 %v1300, %v1581
        %v1583 = vand.u32 %v1582, 4294901760
        %v1584 = vsub.f32 %v1582, %v1583
        %v1585 = vand.u32 %v1584, 4294901760
        %1586 = vmatmul.f32.gmra.mxu0 %v1585
        %v1587 = vpop.f32.mrf.mxu0
        %v1588 = vadd.f32 %v1254, %v1587
        %v1589 = vand.u32 %v1303, 4294901760
        %v1590 = vsub.f32 %v1303, %v1589
        %v1591 = vand.u32 %v1590, 4294901760
        %v1592 = vsub.f32 %v1590, %v1591
        %v1593 = vand.u32 %v1592, 4294901760
        %1594 = vmatmul.f32.gmra.mxu0 %v1593
        %v1595 = vpop.f32.mrf.mxu0
        %v1596 = vadd.f32 %v1254, %v1595
        %v1597 = vand.u32 %v1306, 4294901760
        %v1598 = vsub.f32 %v1306, %v1597
        %v1599 = vand.u32 %v1598, 4294901760
        %v1600 = vsub.f32 %v1598, %v1599
        %v1601 = vand.u32 %v1600, 4294901760
        %1602 = vmatmul.f32.gmra.mxu0 %v1601
        %v1603 = vpop.f32.mrf.mxu0
        %v1604 = vadd.f32 %v1254, %v1603
        %v1605 = vand.u32 %v1309, 4294901760
        %v1606 = vsub.f32 %v1309, %v1605
        %v1607 = vand.u32 %v1606, 4294901760
        %v1608 = vsub.f32 %v1606, %v1607
        %v1609 = vand.u32 %v1608, 4294901760
        %1610 = vmatmul.f32.gmra.mxu0 %v1609
        %v1611 = vpop.f32.mrf.mxu0
        %v1612 = vadd.f32 %v1254, %v1611
        %v1613 = vand.u32 %v1312, 4294901760
        %v1614 = vsub.f32 %v1312, %v1613
        %v1615 = vand.u32 %v1614, 4294901760
        %v1616 = vsub.f32 %v1614, %v1615
        %v1617 = vand.u32 %v1616, 4294901760
        %1618 = vmatmul.f32.gmra.mxu0 %v1617
        %v1619 = vpop.f32.mrf.mxu0
        %v1620 = vadd.f32 %v1254, %v1619
        %v1621 = vand.u32 %v1315, 4294901760
        %v1622 = vsub.f32 %v1315, %v1621
        %v1623 = vand.u32 %v1622, 4294901760
        %v1624 = vsub.f32 %v1622, %v1623
        %v1625 = vand.u32 %v1624, 4294901760
        %1626 = vmatmul.f32.gmra.mxu0 %v1625
        %v1627 = vpop.f32.mrf.mxu0
        %v1628 = vadd.f32 %v1254, %v1627
        %v1629 = vand.u32 %v1318, 4294901760
        %v1630 = vsub.f32 %v1318, %v1629
        %v1631 = vand.u32 %v1630, 4294901760
        %v1632 = vsub.f32 %v1630, %v1631
        %v1633 = vand.u32 %v1632, 4294901760
        %1634 = vmatmul.f32.gmra.mxu0 %v1633
        %v1635 = vpop.f32.mrf.mxu0
        %v1636 = vadd.f32 %v1254, %v1635
        %v1637 = vand.u32 %v1321, 4294901760
        %v1638 = vsub.f32 %v1321, %v1637
        %v1639 = vand.u32 %v1638, 4294901760
        %v1640 = vsub.f32 %v1638, %v1639
        %v1641 = vand.u32 %v1640, 4294901760
        %1642 = vmatmul.f32.gmra.mxu0 %v1641
        %v1643 = vpop.f32.mrf.mxu0
        %v1644 = vadd.f32 %v1254, %v1643
        %v1645 = vand.u32 %v1324, 4294901760
        %v1646 = vsub.f32 %v1324, %v1645
        %v1647 = vand.u32 %v1646, 4294901760
        %v1648 = vsub.f32 %v1646, %v1647
        %v1649 = vand.u32 %v1648, 4294901760
        %1650 = vmatmul.f32.gmra.mxu0 %v1649
        %v1651 = vpop.f32.mrf.mxu0
        %v1652 = vadd.f32 %v1254, %v1651
        %v1653 = vand.u32 %v1327, 4294901760
        %v1654 = vsub.f32 %v1327, %v1653
        %v1655 = vand.u32 %v1654, 4294901760
        %v1656 = vsub.f32 %v1654, %v1655
        %v1657 = vand.u32 %v1656, 4294901760
        %1658 = vmatmul.f32.gmra.mxu0 %v1657
        %v1659 = vpop.f32.mrf.mxu0
        %v1660 = vadd.f32 %v1254, %v1659
        %v1661 = vand.u32 %v1330, 4294901760
        %v1662 = vsub.f32 %v1330, %v1661
        %v1663 = vand.u32 %v1662, 4294901760
        %v1664 = vsub.f32 %v1662, %v1663
        %v1665 = vand.u32 %v1664, 4294901760
        %1666 = vmatmul.f32.gmra.mxu0 %v1665
        %v1667 = vpop.f32.mrf.mxu0
        %v1668 = vadd.f32 %v1254, %v1667
        %v1669 = vand.u32 %v1333, 4294901760
        %v1670 = vsub.f32 %v1333, %v1669
        %v1671 = vand.u32 %v1670, 4294901760
        %v1672 = vsub.f32 %v1670, %v1671
        %v1673 = vand.u32 %v1672, 4294901760
        %1674 = vmatmul.f32.gmra.mxu0 %v1673
        %v1675 = vpop.f32.mrf.mxu0
        %v1676 = vadd.f32 %v1254, %v1675
        %v1677 = vand.u32 %v1336, 4294901760
        %v1678 = vsub.f32 %v1336, %v1677
        %v1679 = vand.u32 %v1678, 4294901760
        %v1680 = vsub.f32 %v1678, %v1679
        %v1681 = vand.u32 %v1680, 4294901760
        %1682 = vmatmul.f32.gmra.mxu0 %v1681
        %v1683 = vpop.f32.mrf.mxu0
        %v1684 = vadd.f32 %v1254, %v1683
        %v1685 = vand.u32 %v1339, 4294901760
        %v1686 = vsub.f32 %v1339, %v1685
        %v1687 = vand.u32 %v1686, 4294901760
        %v1688 = vsub.f32 %v1686, %v1687
        %v1689 = vand.u32 %v1688, 4294901760
        %1690 = vmatmul.f32.gmra.mxu0 %v1689
        %v1691 = vpop.f32.mrf.mxu0
        %v1692 = vadd.f32 %v1254, %v1691
        %v1693 = vand.u32 %v1342, 4294901760
        %v1694 = vsub.f32 %v1342, %v1693
        %v1695 = vand.u32 %v1694, 4294901760
        %v1696 = vsub.f32 %v1694, %v1695
        %v1697 = vand.u32 %v1696, 4294901760
        %1698 = vmatmul.f32.gmra.mxu0 %v1697
        %v1699 = vpop.f32.mrf.mxu0
        %v1700 = vadd.f32 %v1254, %v1699
        %v1701 = vand.u32 %v1345, 4294901760
        %v1702 = vsub.f32 %v1345, %v1701
        %v1703 = vand.u32 %v1702, 4294901760
        %v1704 = vsub.f32 %v1702, %v1703
        %v1705 = vand.u32 %v1704, 4294901760
        %1706 = vmatmul.f32.gmra.mxu0 %v1705
        %v1707 = vpop.f32.mrf.mxu0
        %v1708 = vadd.f32 %v1254, %v1707
        %v1709 = vand.u32 %v1348, 4294901760
        %v1710 = vsub.f32 %v1348, %v1709
        %v1711 = vand.u32 %v1710, 4294901760
        %v1712 = vsub.f32 %v1710, %v1711
        %v1713 = vand.u32 %v1712, 4294901760
        %1714 = vmatmul.f32.gmra.mxu0 %v1713
        %v1715 = vpop.f32.mrf.mxu0
        %v1716 = vadd.f32 %v1254, %v1715
        %v1717 = vand.u32 %v1351, 4294901760
        %v1718 = vsub.f32 %v1351, %v1717
        %v1719 = vand.u32 %v1718, 4294901760
        %v1720 = vsub.f32 %v1718, %v1719
        %v1721 = vand.u32 %v1720, 4294901760
        %1722 = vmatmul.f32.gmra.mxu0 %v1721
        %v1723 = vpop.f32.mrf.mxu0
        %v1724 = vadd.f32 %v1254, %v1723
        %v1725 = vand.u32 %v1354, 4294901760
        %v1726 = vsub.f32 %v1354, %v1725
        %v1727 = vand.u32 %v1726, 4294901760
        %v1728 = vsub.f32 %v1726, %v1727
        %v1729 = vand.u32 %v1728, 4294901760
        %1730 = vmatmul.f32.gmra.mxu0 %v1729
        %v1731 = vpop.f32.mrf.mxu0
        %v1732 = vadd.f32 %v1254, %v1731
        %v1733 = vand.u32 %v1357, 4294901760
        %v1734 = vsub.f32 %v1357, %v1733
        %v1735 = vand.u32 %v1734, 4294901760
        %v1736 = vsub.f32 %v1734, %v1735
        %v1737 = vand.u32 %v1736, 4294901760
        %1738 = vmatmul.f32.gmra.mxu0 %v1737
        %v1739 = vpop.f32.mrf.mxu0
        %v1740 = vadd.f32 %v1254, %v1739
        %v1741 = vand.u32 %v1360, 4294901760
        %v1742 = vsub.f32 %v1360, %v1741
        %v1743 = vand.u32 %v1742, 4294901760
        %v1744 = vsub.f32 %v1742, %v1743
        %v1745 = vand.u32 %v1744, 4294901760
        %1746 = vmatmul.f32.gmra.mxu0 %v1745
        %v1747 = vpop.f32.mrf.mxu0
        %v1748 = vadd.f32 %v1254, %v1747
        %v1749 = vand.u32 %v1363, 4294901760
        %v1750 = vsub.f32 %v1363, %v1749
        %v1751 = vand.u32 %v1750, 4294901760
        %v1752 = vsub.f32 %v1750, %v1751
        %v1753 = vand.u32 %v1752, 4294901760
        %1754 = vmatmul.f32.gmra.mxu0 %v1753
        %v1755 = vpop.f32.mrf.mxu0
        %v1756 = vadd.f32 %v1254, %v1755
        %v1757 = vand.u32 %v1366, 4294901760
        %v1758 = vsub.f32 %v1366, %v1757
        %v1759 = vand.u32 %v1758, 4294901760
        %v1760 = vsub.f32 %v1758, %v1759
        %v1761 = vand.u32 %v1760, 4294901760
        %1762 = vmatmul.f32.gmra.mxu0 %v1761
        %v1763 = vpop.f32.mrf.mxu0
        %v1764 = vadd.f32 %v1254, %v1763
        %v1765 = vand.u32 %v1369, 4294901760
        %v1766 = vsub.f32 %v1369, %v1765
        %v1767 = vand.u32 %v1766, 4294901760
        %v1768 = vsub.f32 %v1766, %v1767
        %v1769 = vand.u32 %v1768, 4294901760
        %1770 = vmatmul.f32.gmra.mxu0 %v1769
        %v1771 = vpop.f32.mrf.mxu0
        %v1772 = vadd.f32 %v1254, %v1771
        %v1773 = vand.u32 %v1372, 4294901760
        %v1774 = vsub.f32 %v1372, %v1773
        %v1775 = vand.u32 %v1774, 4294901760
        %v1776 = vsub.f32 %v1774, %v1775
        %v1777 = vand.u32 %v1776, 4294901760
        %1778 = vmatmul.f32.gmra.mxu0 %v1777
        %v1779 = vpop.f32.mrf.mxu0
        %v1780 = vadd.f32 %v1254, %v1779
        %v1781 = vand.u32 %v1375, 4294901760
        %v1782 = vsub.f32 %v1375, %v1781
        %v1783 = vand.u32 %v1782, 4294901760
        %v1784 = vsub.f32 %v1782, %v1783
        %v1785 = vand.u32 %v1784, 4294901760
        %1786 = vmatmul.f32.gmra.mxu0 %v1785
        %v1787 = vpop.f32.mrf.mxu0
        %v1788 = vadd.f32 %v1254, %v1787
        %v1789 = vand.u32 %v1378, 4294901760
        %v1790 = vsub.f32 %v1378, %v1789
        %v1791 = vand.u32 %v1790, 4294901760
        %v1792 = vsub.f32 %v1790, %v1791
        %v1793 = vand.u32 %v1792, 4294901760
        %1794 = vmatmul.f32.gmra.mxu0 %v1793
        %v1795 = vpop.f32.mrf.mxu0
        %v1796 = vadd.f32 %v1254, %v1795
        %v1797 = vand.u32 %v1381, 4294901760
        %v1798 = vsub.f32 %v1381, %v1797
        %v1799 = vand.u32 %v1798, 4294901760
        %v1800 = vsub.f32 %v1798, %v1799
        %v1801 = vand.u32 %v1800, 4294901760
        %1802 = vmatmul.f32.gmra.mxu0 %v1801
        %v1803 = vpop.f32.mrf.mxu0
        %v1804 = vadd.f32 %v1254, %v1803
        %v1805 = vand.u32 %v1384, 4294901760
        %v1806 = vsub.f32 %v1384, %v1805
        %v1807 = vand.u32 %v1806, 4294901760
        %v1808 = vsub.f32 %v1806, %v1807
        %v1809 = vand.u32 %v1808, 4294901760
        %1810 = vmatmul.f32.gmra.mxu0 %v1809
        %v1811 = vpop.f32.mrf.mxu0
        %v1812 = vadd.f32 %v1254, %v1811
        %v1813 = vand.u32 %v1387, 4294901760
        %v1814 = vsub.f32 %v1387, %v1813
        %v1815 = vand.u32 %v1814, 4294901760
        %v1816 = vsub.f32 %v1814, %v1815
        %v1817 = vand.u32 %v1816, 4294901760
        %1818 = vmatmul.f32.gmra.mxu0 %v1817
        %v1819 = vpop.f32.mrf.mxu0
        %v1820 = vadd.f32 %v1254, %v1819
        %v1821 = vand.u32 %v1390, 4294901760
        %v1822 = vsub.f32 %v1390, %v1821
        %v1823 = vand.u32 %v1822, 4294901760
        %v1824 = vsub.f32 %v1822, %v1823
        %v1825 = vand.u32 %v1824, 4294901760
        %1826 = vmatmul.f32.gmra.mxu0 %v1825
        %v1827 = vpop.f32.mrf.mxu0
        %v1828 = vadd.f32 %v1254, %v1827
        %v1829 = vand.u32 %v1393, 4294901760
        %v1830 = vsub.f32 %v1393, %v1829
        %v1831 = vand.u32 %v1830, 4294901760
        %v1832 = vsub.f32 %v1830, %v1831
        %v1833 = vand.u32 %v1832, 4294901760
        %1834 = vmatmul.f32.gmra.mxu0 %v1833
        %v1835 = vpop.f32.mrf.mxu0
        %v1836 = vadd.f32 %v1254, %v1835
        %v1837 = vand.u32 %v1396, 4294901760
        %v1838 = vsub.f32 %v1396, %v1837
        %v1839 = vand.u32 %v1838, 4294901760
        %v1840 = vsub.f32 %v1838, %v1839
        %v1841 = vand.u32 %v1840, 4294901760
        %1842 = vmatmul.f32.gmra.mxu0 %v1841
        %v1843 = vpop.f32.mrf.mxu0
        %v1844 = vadd.f32 %v1254, %v1843
        %v1845 = vand.u32 %v1399, 4294901760
        %v1846 = vsub.f32 %v1399, %v1845
        %v1847 = vand.u32 %v1846, 4294901760
        %v1848 = vsub.f32 %v1846, %v1847
        %v1849 = vand.u32 %v1848, 4294901760
        %1850 = vmatmul.f32.gmra.mxu0 %v1849
        %v1851 = vpop.f32.mrf.mxu0
        %v1852 = vadd.f32 %v1254, %v1851
        %v1853 = vand.u32 %v1402, 4294901760
        %v1854 = vsub.f32 %v1402, %v1853
        %v1855 = vand.u32 %v1854, 4294901760
        %v1856 = vsub.f32 %v1854, %v1855
        %v1857 = vand.u32 %v1856, 4294901760
        %1858 = vmatmul.f32.gmra.mxu0 %v1857
        %v1859 = vpop.f32.mrf.mxu0
        %v1860 = vadd.f32 %v1254, %v1859
        %v1861 = vand.u32 %v1405, 4294901760
        %v1862 = vsub.f32 %v1405, %v1861
        %v1863 = vand.u32 %v1862, 4294901760
        %v1864 = vsub.f32 %v1862, %v1863
        %v1865 = vand.u32 %v1864, 4294901760
        %1866 = vmatmul.f32.gmra.mxu0 %v1865
        %v1867 = vpop.f32.mrf.mxu0
        %v1868 = vadd.f32 %v1254, %v1867
        %v1869 = vand.u32 %v1408, 4294901760
        %v1870 = vsub.f32 %v1408, %v1869
        %v1871 = vand.u32 %v1870, 4294901760
        %v1872 = vsub.f32 %v1870, %v1871
        %v1873 = vand.u32 %v1872, 4294901760
        %1874 = vmatmul.f32.gmra.mxu0 %v1873
        %v1875 = vpop.f32.mrf.mxu0
        %v1876 = vadd.f32 %v1254, %v1875
        %v1877 = vand.u32 %v1411, 4294901760
        %v1878 = vsub.f32 %v1411, %v1877
        %v1879 = vand.u32 %v1878, 4294901760
        %v1880 = vsub.f32 %v1878, %v1879
        %v1881 = vand.u32 %v1880, 4294901760
        %1882 = vmatmul.f32.gmra.mxu0 %v1881
        %v1883 = vpop.f32.mrf.mxu0
        %v1884 = vadd.f32 %v1254, %v1883
        %v1885 = vand.u32 %v1414, 4294901760
        %v1886 = vsub.f32 %v1414, %v1885
        %v1887 = vand.u32 %v1886, 4294901760
        %v1888 = vsub.f32 %v1886, %v1887
        %v1889 = vand.u32 %v1888, 4294901760
        %1890 = vmatmul.f32.gmra.mxu0 %v1889
        %v1891 = vpop.f32.mrf.mxu0
        %v1892 = vadd.f32 %v1254, %v1891
        %v1893 = vand.u32 %v1417, 4294901760
        %v1894 = vsub.f32 %v1417, %v1893
        %v1895 = vand.u32 %v1894, 4294901760
        %v1896 = vsub.f32 %v1894, %v1895
        %v1897 = vand.u32 %v1896, 4294901760
        %1898 = vmatmul.f32.gmra.mxu0 %v1897
        %v1899 = vpop.f32.mrf.mxu0
        %v1900 = vadd.f32 %v1254, %v1899
        %v1901 = vand.u32 %v1420, 4294901760
        %v1902 = vsub.f32 %v1420, %v1901
        %v1903 = vand.u32 %v1902, 4294901760
        %v1904 = vsub.f32 %v1902, %v1903
        %v1905 = vand.u32 %v1904, 4294901760
        %1906 = vmatmul.f32.gmra.mxu0 %v1905
        %v1907 = vpop.f32.mrf.mxu0
        %v1908 = vadd.f32 %v1254, %v1907
        %v1909 = vand.u32 %v1423, 4294901760
        %v1910 = vsub.f32 %v1423, %v1909
        %v1911 = vand.u32 %v1910, 4294901760
        %v1912 = vsub.f32 %v1910, %v1911
        %v1913 = vand.u32 %v1912, 4294901760
        %1914 = vmatmul.f32.gmra.mxu0 %v1913
        %v1915 = vpop.f32.mrf.mxu0
        %v1916 = vadd.f32 %v1254, %v1915
        %v1917 = vand.u32 %v1426, 4294901760
        %v1918 = vsub.f32 %v1426, %v1917
        %v1919 = vand.u32 %v1918, 4294901760
        %v1920 = vsub.f32 %v1918, %v1919
        %v1921 = vand.u32 %v1920, 4294901760
        %1922 = vmatmul.f32.gmra.mxu0 %v1921
        %v1923 = vpop.f32.mrf.mxu0
        %v1924 = vadd.f32 %v1254, %v1923
        %v1925 = vand.u32 %v1429, 4294901760
        %v1926 = vsub.f32 %v1429, %v1925
        %v1927 = vand.u32 %v1926, 4294901760
        %v1928 = vsub.f32 %v1926, %v1927
        %v1929 = vand.u32 %v1928, 4294901760
        %1930 = vmatmul.f32.gmra.mxu0 %v1929
        %v1931 = vpop.f32.mrf.mxu0
        %v1932 = vadd.f32 %v1254, %v1931
        %v1933 = vand.u32 %v1432, 4294901760
        %v1934 = vsub.f32 %v1432, %v1933
        %v1935 = vand.u32 %v1934, 4294901760
        %v1936 = vsub.f32 %v1934, %v1935
        %v1937 = vand.u32 %v1936, 4294901760
        %1938 = vmatmul.f32.gmra.mxu0 %v1937
        %v1939 = vpop.f32.mrf.mxu0
        %v1940 = vadd.f32 %v1254, %v1939
        %v1941 = vand.u32 %v1435, 4294901760
        %v1942 = vsub.f32 %v1435, %v1941
        %v1943 = vand.u32 %v1942, 4294901760
        %v1944 = vsub.f32 %v1942, %v1943
        %v1945 = vand.u32 %v1944, 4294901760
        %1946 = vmatmul.f32.gmra.mxu0 %v1945
        %v1947 = vpop.f32.mrf.mxu0
        %v1948 = vadd.f32 %v1254, %v1947
        %v1949 = vand.u32 %v1438, 4294901760
        %v1950 = vsub.f32 %v1438, %v1949
        %v1951 = vand.u32 %v1950, 4294901760
        %v1952 = vsub.f32 %v1950, %v1951
        %v1953 = vand.u32 %v1952, 4294901760
        %1954 = vmatmul.f32.gmra.mxu0 %v1953
        %v1955 = vpop.f32.mrf.mxu0
        %v1956 = vadd.f32 %v1254, %v1955
        %v1957 = vand.u32 %v1441, 4294901760
        %v1958 = vsub.f32 %v1441, %v1957
        %v1959 = vand.u32 %v1958, 4294901760
        %v1960 = vsub.f32 %v1958, %v1959
        %v1961 = vand.u32 %v1960, 4294901760
        %1962 = vmatmul.f32.gmra.mxu0 %v1961
        %v1963 = vpop.f32.mrf.mxu0
        %v1964 = vadd.f32 %v1254, %v1963
        %v1965 = vand.u32 %v1444, 4294901760
        %v1966 = vsub.f32 %v1444, %v1965
        %v1967 = vand.u32 %v1966, 4294901760
        %v1968 = vsub.f32 %v1966, %v1967
        %v1969 = vand.u32 %v1968, 4294901760
        %1970 = vmatmul.f32.gmra.mxu0 %v1969
        %v1971 = vpop.f32.mrf.mxu0
        %v1972 = vadd.f32 %v1254, %v1971
        %v1973 = vand.u32 %v1447, 4294901760
        %v1974 = vsub.f32 %v1447, %v1973
        %v1975 = vand.u32 %v1974, 4294901760
        %v1976 = vsub.f32 %v1974, %v1975
        %v1977 = vand.u32 %v1976, 4294901760
        %1978 = vmatmul.f32.gmra.mxu0 %v1977
        %v1979 = vpop.f32.mrf.mxu0
        %v1980 = vadd.f32 %v1254, %v1979
        %1981 = vdwg.mxu0
        %1982 = vmatpush.msra.mxu0 0.0
        %1983 = vmatpush.msra.mxu0 0.0
        %1984 = vmatpush.msra.mxu0 0.0
        %1985 = vmatpush.msra.mxu0 0.0
        %1986 = vmatpush.msra.mxu0 0.0
        %1987 = vmatpush.msra.mxu0 0.0
        %1988 = vmatpush.msra.mxu0 0.0
        %1989 = vmatpush.msra.mxu0 0.0
        %1990 = vmatpush.msra.mxu0 0.0
        %1991 = vmatpush.msra.mxu0 0.0
        %1992 = vmatpush.msra.mxu0 0.0
        %1993 = vmatpush.msra.mxu0 0.0
        %v1994 = vand.u32 %v1251, 4294901760
        %v1995 = vsub.f32 %v1251, %v1994
        %v1996 = vand.u32 %v1995, 4294901760
        %v1997 = vsub.f32 %v1995, %v1996
        %v1998 = vand.u32 %v1997, 4294901760
        %1999 = vmatpush.msra.mxu0 %v1998
        %v2000 = vand.u32 %v1250, 4294901760
        %v2001 = vsub.f32 %v1250, %v2000
        %v2002 = vand.u32 %v2001, 4294901760
        %v2003 = vsub.f32 %v2001, %v2002
        %v2004 = vand.u32 %v2003, 4294901760
        %2005 = vmatpush.msra.mxu0 %v2004
        %v2006 = vand.u32 %v1249, 4294901760
        %v2007 = vsub.f32 %v1249, %v2006
        %v2008 = vand.u32 %v2007, 4294901760
        %v2009 = vsub.f32 %v2007, %v2008
        %v2010 = vand.u32 %v2009, 4294901760
        %2011 = vmatpush.msra.mxu0 %v2010
        %v2012 = vand.u32 %v1248, 4294901760
        %v2013 = vsub.f32 %v1248, %v2012
        %v2014 = vand.u32 %v2013, 4294901760
        %v2015 = vsub.f32 %v2013, %v2014
        %v2016 = vand.u32 %v2015, 4294901760
        %2017 = vmatpush.msra.mxu0 %v2016
        %v2018 = vand.u32 %v1258, 4294901760
        %2019 = vmatmul.f32.gmra.mxu0 %v2018
        %v2020 = vpop.f32.mrf.mxu0
        %v2021 = vadd.f32 %v1476, %v2020
        %v2022 = vand.u32 %v1261, 4294901760
        %2023 = vmatmul.f32.gmra.mxu0 %v2022
        %v2024 = vpop.f32.mrf.mxu0
        %v2025 = vadd.f32 %v1484, %v2024
        %v2026 = vand.u32 %v1264, 4294901760
        %2027 = vmatmul.f32.gmra.mxu0 %v2026
        %v2028 = vpop.f32.mrf.mxu0
        %v2029 = vadd.f32 %v1492, %v2028
        %v2030 = vand.u32 %v1267, 4294901760
        %2031 = vmatmul.f32.gmra.mxu0 %v2030
        %v2032 = vpop.f32.mrf.mxu0
        %v2033 = vadd.f32 %v1500, %v2032
        %v2034 = vand.u32 %v1270, 4294901760
        %2035 = vmatmul.f32.gmra.mxu0 %v2034
        %v2036 = vpop.f32.mrf.mxu0
        %v2037 = vadd.f32 %v1508, %v2036
        %v2038 = vand.u32 %v1273, 4294901760
        %2039 = vmatmul.f32.gmra.mxu0 %v2038
        %v2040 = vpop.f32.mrf.mxu0
        %v2041 = vadd.f32 %v1516, %v2040
        %v2042 = vand.u32 %v1276, 4294901760
        %2043 = vmatmul.f32.gmra.mxu0 %v2042
        %v2044 = vpop.f32.mrf.mxu0
        %v2045 = vadd.f32 %v1524, %v2044
        %v2046 = vand.u32 %v1279, 4294901760
        %2047 = vmatmul.f32.gmra.mxu0 %v2046
        %v2048 = vpop.f32.mrf.mxu0
        %v2049 = vadd.f32 %v1532, %v2048
        %v2050 = vand.u32 %v1282, 4294901760
        %2051 = vmatmul.f32.gmra.mxu0 %v2050
        %v2052 = vpop.f32.mrf.mxu0
        %v2053 = vadd.f32 %v1540, %v2052
        %v2054 = vand.u32 %v1285, 4294901760
        %2055 = vmatmul.f32.gmra.mxu0 %v2054
        %v2056 = vpop.f32.mrf.mxu0
        %v2057 = vadd.f32 %v1548, %v2056
        %v2058 = vand.u32 %v1288, 4294901760
        %2059 = vmatmul.f32.gmra.mxu0 %v2058
        %v2060 = vpop.f32.mrf.mxu0
        %v2061 = vadd.f32 %v1556, %v2060
        %v2062 = vand.u32 %v1291, 4294901760
        %2063 = vmatmul.f32.gmra.mxu0 %v2062
        %v2064 = vpop.f32.mrf.mxu0
        %v2065 = vadd.f32 %v1564, %v2064
        %v2066 = vand.u32 %v1294, 4294901760
        %2067 = vmatmul.f32.gmra.mxu0 %v2066
        %v2068 = vpop.f32.mrf.mxu0
        %v2069 = vadd.f32 %v1572, %v2068
        %v2070 = vand.u32 %v1297, 4294901760
        %2071 = vmatmul.f32.gmra.mxu0 %v2070
        %v2072 = vpop.f32.mrf.mxu0
        %v2073 = vadd.f32 %v1580, %v2072
        %v2074 = vand.u32 %v1300, 4294901760
        %2075 = vmatmul.f32.gmra.mxu0 %v2074
        %v2076 = vpop.f32.mrf.mxu0
        %v2077 = vadd.f32 %v1588, %v2076
        %v2078 = vand.u32 %v1303, 4294901760
        %2079 = vmatmul.f32.gmra.mxu0 %v2078
        %v2080 = vpop.f32.mrf.mxu0
        %v2081 = vadd.f32 %v1596, %v2080
        %v2082 = vand.u32 %v1306, 4294901760
        %2083 = vmatmul.f32.gmra.mxu0 %v2082
        %v2084 = vpop.f32.mrf.mxu0
        %v2085 = vadd.f32 %v1604, %v2084
        %v2086 = vand.u32 %v1309, 4294901760
        %2087 = vmatmul.f32.gmra.mxu0 %v2086
        %v2088 = vpop.f32.mrf.mxu0
        %v2089 = vadd.f32 %v1612, %v2088
        %v2090 = vand.u32 %v1312, 4294901760
        %2091 = vmatmul.f32.gmra.mxu0 %v2090
        %v2092 = vpop.f32.mrf.mxu0
        %v2093 = vadd.f32 %v1620, %v2092
        %v2094 = vand.u32 %v1315, 4294901760
        %2095 = vmatmul.f32.gmra.mxu0 %v2094
        %v2096 = vpop.f32.mrf.mxu0
        %v2097 = vadd.f32 %v1628, %v2096
        %v2098 = vand.u32 %v1318, 4294901760
        %2099 = vmatmul.f32.gmra.mxu0 %v2098
        %v2100 = vpop.f32.mrf.mxu0
        %v2101 = vadd.f32 %v1636, %v2100
        %v2102 = vand.u32 %v1321, 4294901760
        %2103 = vmatmul.f32.gmra.mxu0 %v2102
        %v2104 = vpop.f32.mrf.mxu0
        %v2105 = vadd.f32 %v1644, %v2104
        %v2106 = vand.u32 %v1324, 4294901760
        %2107 = vmatmul.f32.gmra.mxu0 %v2106
        %v2108 = vpop.f32.mrf.mxu0
        %v2109 = vadd.f32 %v1652, %v2108
        %v2110 = vand.u32 %v1327, 4294901760
        %2111 = vmatmul.f32.gmra.mxu0 %v2110
        %v2112 = vpop.f32.mrf.mxu0
        %v2113 = vadd.f32 %v1660, %v2112
        %v2114 = vand.u32 %v1330, 4294901760
        %2115 = vmatmul.f32.gmra.mxu0 %v2114
        %v2116 = vpop.f32.mrf.mxu0
        %v2117 = vadd.f32 %v1668, %v2116
        %v2118 = vand.u32 %v1333, 4294901760
        %2119 = vmatmul.f32.gmra.mxu0 %v2118
        %v2120 = vpop.f32.mrf.mxu0
        %v2121 = vadd.f32 %v1676, %v2120
        %v2122 = vand.u32 %v1336, 4294901760
        %2123 = vmatmul.f32.gmra.mxu0 %v2122
        %v2124 = vpop.f32.mrf.mxu0
        %v2125 = vadd.f32 %v1684, %v2124
        %v2126 = vand.u32 %v1339, 4294901760
        %2127 = vmatmul.f32.gmra.mxu0 %v2126
        %v2128 = vpop.f32.mrf.mxu0
        %v2129 = vadd.f32 %v1692, %v2128
        %v2130 = vand.u32 %v1342, 4294901760
        %2131 = vmatmul.f32.gmra.mxu0 %v2130
        %v2132 = vpop.f32.mrf.mxu0
        %v2133 = vadd.f32 %v1700, %v2132
        %v2134 = vand.u32 %v1345, 4294901760
        %2135 = vmatmul.f32.gmra.mxu0 %v2134
        %v2136 = vpop.f32.mrf.mxu0
        %v2137 = vadd.f32 %v1708, %v2136
        %v2138 = vand.u32 %v1348, 4294901760
        %2139 = vmatmul.f32.gmra.mxu0 %v2138
        %v2140 = vpop.f32.mrf.mxu0
        %v2141 = vadd.f32 %v1716, %v2140
        %v2142 = vand.u32 %v1351, 4294901760
        %2143 = vmatmul.f32.gmra.mxu0 %v2142
        %v2144 = vpop.f32.mrf.mxu0
        %v2145 = vadd.f32 %v1724, %v2144
        %v2146 = vand.u32 %v1354, 4294901760
        %2147 = vmatmul.f32.gmra.mxu0 %v2146
        %v2148 = vpop.f32.mrf.mxu0
        %v2149 = vadd.f32 %v1732, %v2148
        %v2150 = vand.u32 %v1357, 4294901760
        %2151 = vmatmul.f32.gmra.mxu0 %v2150
        %v2152 = vpop.f32.mrf.mxu0
        %v2153 = vadd.f32 %v1740, %v2152
        %v2154 = vand.u32 %v1360, 4294901760
        %2155 = vmatmul.f32.gmra.mxu0 %v2154
        %v2156 = vpop.f32.mrf.mxu0
        %v2157 = vadd.f32 %v1748, %v2156
        %v2158 = vand.u32 %v1363, 4294901760
        %2159 = vmatmul.f32.gmra.mxu0 %v2158
        %v2160 = vpop.f32.mrf.mxu0
        %v2161 = vadd.f32 %v1756, %v2160
        %v2162 = vand.u32 %v1366, 4294901760
        %2163 = vmatmul.f32.gmra.mxu0 %v2162
        %v2164 = vpop.f32.mrf.mxu0
        %v2165 = vadd.f32 %v1764, %v2164
        %v2166 = vand.u32 %v1369, 4294901760
        %2167 = vmatmul.f32.gmra.mxu0 %v2166
        %v2168 = vpop.f32.mrf.mxu0
        %v2169 = vadd.f32 %v1772, %v2168
        %v2170 = vand.u32 %v1372, 4294901760
        %2171 = vmatmul.f32.gmra.mxu0 %v2170
        %v2172 = vpop.f32.mrf.mxu0
        %v2173 = vadd.f32 %v1780, %v2172
        %v2174 = vand.u32 %v1375, 4294901760
        %2175 = vmatmul.f32.gmra.mxu0 %v2174
        %v2176 = vpop.f32.mrf.mxu0
        %v2177 = vadd.f32 %v1788, %v2176
        %v2178 = vand.u32 %v1378, 4294901760
        %2179 = vmatmul.f32.gmra.mxu0 %v2178
        %v2180 = vpop.f32.mrf.mxu0
        %v2181 = vadd.f32 %v1796, %v2180
        %v2182 = vand.u32 %v1381, 4294901760
        %2183 = vmatmul.f32.gmra.mxu0 %v2182
        %v2184 = vpop.f32.mrf.mxu0
        %v2185 = vadd.f32 %v1804, %v2184
        %v2186 = vand.u32 %v1384, 4294901760
        %2187 = vmatmul.f32.gmra.mxu0 %v2186
        %v2188 = vpop.f32.mrf.mxu0
        %v2189 = vadd.f32 %v1812, %v2188
        %v2190 = vand.u32 %v1387, 4294901760
        %2191 = vmatmul.f32.gmra.mxu0 %v2190
        %v2192 = vpop.f32.mrf.mxu0
        %v2193 = vadd.f32 %v1820, %v2192
        %v2194 = vand.u32 %v1390, 4294901760
        %2195 = vmatmul.f32.gmra.mxu0 %v2194
        %v2196 = vpop.f32.mrf.mxu0
        %v2197 = vadd.f32 %v1828, %v2196
        %v2198 = vand.u32 %v1393, 4294901760
        %2199 = vmatmul.f32.gmra.mxu0 %v2198
        %v2200 = vpop.f32.mrf.mxu0
        %v2201 = vadd.f32 %v1836, %v2200
        %v2202 = vand.u32 %v1396, 4294901760
        %2203 = vmatmul.f32.gmra.mxu0 %v2202
        %v2204 = vpop.f32.mrf.mxu0
        %v2205 = vadd.f32 %v1844, %v2204
        %v2206 = vand.u32 %v1399, 4294901760
        %2207 = vmatmul.f32.gmra.mxu0 %v2206
        %v2208 = vpop.f32.mrf.mxu0
        %v2209 = vadd.f32 %v1852, %v2208
        %v2210 = vand.u32 %v1402, 4294901760
        %2211 = vmatmul.f32.gmra.mxu0 %v2210
        %v2212 = vpop.f32.mrf.mxu0
        %v2213 = vadd.f32 %v1860, %v2212
        %v2214 = vand.u32 %v1405, 4294901760
        %2215 = vmatmul.f32.gmra.mxu0 %v2214
        %v2216 = vpop.f32.mrf.mxu0
        %v2217 = vadd.f32 %v1868, %v2216
        %v2218 = vand.u32 %v1408, 4294901760
        %2219 = vmatmul.f32.gmra.mxu0 %v2218
        %v2220 = vpop.f32.mrf.mxu0
        %v2221 = vadd.f32 %v1876, %v2220
        %v2222 = vand.u32 %v1411, 4294901760
        %2223 = vmatmul.f32.gmra.mxu0 %v2222
        %v2224 = vpop.f32.mrf.mxu0
        %v2225 = vadd.f32 %v1884, %v2224
        %v2226 = vand.u32 %v1414, 4294901760
        %2227 = vmatmul.f32.gmra.mxu0 %v2226
        %v2228 = vpop.f32.mrf.mxu0
        %v2229 = vadd.f32 %v1892, %v2228
        %v2230 = vand.u32 %v1417, 4294901760
        %2231 = vmatmul.f32.gmra.mxu0 %v2230
        %v2232 = vpop.f32.mrf.mxu0
        %v2233 = vadd.f32 %v1900, %v2232
        %v2234 = vand.u32 %v1420, 4294901760
        %2235 = vmatmul.f32.gmra.mxu0 %v2234
        %v2236 = vpop.f32.mrf.mxu0
        %v2237 = vadd.f32 %v1908, %v2236
        %v2238 = vand.u32 %v1423, 4294901760
        %2239 = vmatmul.f32.gmra.mxu0 %v2238
        %v2240 = vpop.f32.mrf.mxu0
        %v2241 = vadd.f32 %v1916, %v2240
        %v2242 = vand.u32 %v1426, 4294901760
        %2243 = vmatmul.f32.gmra.mxu0 %v2242
        %v2244 = vpop.f32.mrf.mxu0
        %v2245 = vadd.f32 %v1924, %v2244
        %v2246 = vand.u32 %v1429, 4294901760
        %2247 = vmatmul.f32.gmra.mxu0 %v2246
        %v2248 = vpop.f32.mrf.mxu0
        %v2249 = vadd.f32 %v1932, %v2248
        %v2250 = vand.u32 %v1432, 4294901760
        %2251 = vmatmul.f32.gmra.mxu0 %v2250
        %v2252 = vpop.f32.mrf.mxu0
        %v2253 = vadd.f32 %v1940, %v2252
        %v2254 = vand.u32 %v1435, 4294901760
        %2255 = vmatmul.f32.gmra.mxu0 %v2254
        %v2256 = vpop.f32.mrf.mxu0
        %v2257 = vadd.f32 %v1948, %v2256
        %v2258 = vand.u32 %v1438, 4294901760
        %2259 = vmatmul.f32.gmra.mxu0 %v2258
        %v2260 = vpop.f32.mrf.mxu0
        %v2261 = vadd.f32 %v1956, %v2260
        %v2262 = vand.u32 %v1441, 4294901760
        %2263 = vmatmul.f32.gmra.mxu0 %v2262
        %v2264 = vpop.f32.mrf.mxu0
        %v2265 = vadd.f32 %v1964, %v2264
        %v2266 = vand.u32 %v1444, 4294901760
        %2267 = vmatmul.f32.gmra.mxu0 %v2266
        %v2268 = vpop.f32.mrf.mxu0
        %v2269 = vadd.f32 %v1972, %v2268
        %v2270 = vand.u32 %v1447, 4294901760
        %2271 = vmatmul.f32.gmra.mxu0 %v2270
        %v2272 = vpop.f32.mrf.mxu0
        %v2273 = vadd.f32 %v1980, %v2272
        %2274 = vdwg.mxu0
        %2275 = vmatpush.msra.mxu0 0.0
        %2276 = vmatpush.msra.mxu0 0.0
        %2277 = vmatpush.msra.mxu0 0.0
        %2278 = vmatpush.msra.mxu0 0.0
        %2279 = vmatpush.msra.mxu0 0.0
        %2280 = vmatpush.msra.mxu0 0.0
        %2281 = vmatpush.msra.mxu0 0.0
        %2282 = vmatpush.msra.mxu0 0.0
        %2283 = vmatpush.msra.mxu0 0.0
        %2284 = vmatpush.msra.mxu0 0.0
        %2285 = vmatpush.msra.mxu0 0.0
        %2286 = vmatpush.msra.mxu0 0.0
        %v2287 = vand.u32 %v1251, 4294901760
        %v2288 = vsub.f32 %v1251, %v2287
        %2289 = vmatpush.msra.mxu0 %v2288
        %v2290 = vand.u32 %v1250, 4294901760
        %v2291 = vsub.f32 %v1250, %v2290
        %2292 = vmatpush.msra.mxu0 %v2291
        %v2293 = vand.u32 %v1249, 4294901760
        %v2294 = vsub.f32 %v1249, %v2293
        %2295 = vmatpush.msra.mxu0 %v2294
        %v2296 = vand.u32 %v1248, 4294901760
        %v2297 = vsub.f32 %v1248, %v2296
        %2298 = vmatpush.msra.mxu0 %v2297
        %v2299 = vand.u32 %v1258, 4294901760
        %v2300 = vsub.f32 %v1258, %v2299
        %2301 = vmatmul.f32.gmra.mxu0 %v2300
        %v2302 = vpop.f32.mrf.mxu0
        %v2303 = vadd.f32 %v2021, %v2302
        %v2304 = vand.u32 %v1261, 4294901760
        %v2305 = vsub.f32 %v1261, %v2304
        %2306 = vmatmul.f32.gmra.mxu0 %v2305
        %v2307 = vpop.f32.mrf.mxu0
        %v2308 = vadd.f32 %v2025, %v2307
        %v2309 = vand.u32 %v1264, 4294901760
        %v2310 = vsub.f32 %v1264, %v2309
        %2311 = vmatmul.f32.gmra.mxu0 %v2310
        %v2312 = vpop.f32.mrf.mxu0
        %v2313 = vadd.f32 %v2029, %v2312
        %v2314 = vand.u32 %v1267, 4294901760
        %v2315 = vsub.f32 %v1267, %v2314
        %2316 = vmatmul.f32.gmra.mxu0 %v2315
        %v2317 = vpop.f32.mrf.mxu0
        %v2318 = vadd.f32 %v2033, %v2317
        %v2319 = vand.u32 %v1270, 4294901760
        %v2320 = vsub.f32 %v1270, %v2319
        %2321 = vmatmul.f32.gmra.mxu0 %v2320
        %v2322 = vpop.f32.mrf.mxu0
        %v2323 = vadd.f32 %v2037, %v2322
        %v2324 = vand.u32 %v1273, 4294901760
        %v2325 = vsub.f32 %v1273, %v2324
        %2326 = vmatmul.f32.gmra.mxu0 %v2325
        %v2327 = vpop.f32.mrf.mxu0
        %v2328 = vadd.f32 %v2041, %v2327
        %v2329 = vand.u32 %v1276, 4294901760
        %v2330 = vsub.f32 %v1276, %v2329
        %2331 = vmatmul.f32.gmra.mxu0 %v2330
        %v2332 = vpop.f32.mrf.mxu0
        %v2333 = vadd.f32 %v2045, %v2332
        %v2334 = vand.u32 %v1279, 4294901760
        %v2335 = vsub.f32 %v1279, %v2334
        %2336 = vmatmul.f32.gmra.mxu0 %v2335
        %v2337 = vpop.f32.mrf.mxu0
        %v2338 = vadd.f32 %v2049, %v2337
        %v2339 = vand.u32 %v1282, 4294901760
        %v2340 = vsub.f32 %v1282, %v2339
        %2341 = vmatmul.f32.gmra.mxu0 %v2340
        %v2342 = vpop.f32.mrf.mxu0
        %v2343 = vadd.f32 %v2053, %v2342
        %v2344 = vand.u32 %v1285, 4294901760
        %v2345 = vsub.f32 %v1285, %v2344
        %2346 = vmatmul.f32.gmra.mxu0 %v2345
        %v2347 = vpop.f32.mrf.mxu0
        %v2348 = vadd.f32 %v2057, %v2347
        %v2349 = vand.u32 %v1288, 4294901760
        %v2350 = vsub.f32 %v1288, %v2349
        %2351 = vmatmul.f32.gmra.mxu0 %v2350
        %v2352 = vpop.f32.mrf.mxu0
        %v2353 = vadd.f32 %v2061, %v2352
        %v2354 = vand.u32 %v1291, 4294901760
        %v2355 = vsub.f32 %v1291, %v2354
        %2356 = vmatmul.f32.gmra.mxu0 %v2355
        %v2357 = vpop.f32.mrf.mxu0
        %v2358 = vadd.f32 %v2065, %v2357
        %v2359 = vand.u32 %v1294, 4294901760
        %v2360 = vsub.f32 %v1294, %v2359
        %2361 = vmatmul.f32.gmra.mxu0 %v2360
        %v2362 = vpop.f32.mrf.mxu0
        %v2363 = vadd.f32 %v2069, %v2362
        %v2364 = vand.u32 %v1297, 4294901760
        %v2365 = vsub.f32 %v1297, %v2364
        %2366 = vmatmul.f32.gmra.mxu0 %v2365
        %v2367 = vpop.f32.mrf.mxu0
        %v2368 = vadd.f32 %v2073, %v2367
        %v2369 = vand.u32 %v1300, 4294901760
        %v2370 = vsub.f32 %v1300, %v2369
        %2371 = vmatmul.f32.gmra.mxu0 %v2370
        %v2372 = vpop.f32.mrf.mxu0
        %v2373 = vadd.f32 %v2077, %v2372
        %v2374 = vand.u32 %v1303, 4294901760
        %v2375 = vsub.f32 %v1303, %v2374
        %2376 = vmatmul.f32.gmra.mxu0 %v2375
        %v2377 = vpop.f32.mrf.mxu0
        %v2378 = vadd.f32 %v2081, %v2377
        %v2379 = vand.u32 %v1306, 4294901760
        %v2380 = vsub.f32 %v1306, %v2379
        %2381 = vmatmul.f32.gmra.mxu0 %v2380
        %v2382 = vpop.f32.mrf.mxu0
        %v2383 = vadd.f32 %v2085, %v2382
        %v2384 = vand.u32 %v1309, 4294901760
        %v2385 = vsub.f32 %v1309, %v2384
        %2386 = vmatmul.f32.gmra.mxu0 %v2385
        %v2387 = vpop.f32.mrf.mxu0
        %v2388 = vadd.f32 %v2089, %v2387
        %v2389 = vand.u32 %v1312, 4294901760
        %v2390 = vsub.f32 %v1312, %v2389
        %2391 = vmatmul.f32.gmra.mxu0 %v2390
        %v2392 = vpop.f32.mrf.mxu0
        %v2393 = vadd.f32 %v2093, %v2392
        %v2394 = vand.u32 %v1315, 4294901760
        %v2395 = vsub.f32 %v1315, %v2394
        %2396 = vmatmul.f32.gmra.mxu0 %v2395
        %v2397 = vpop.f32.mrf.mxu0
        %v2398 = vadd.f32 %v2097, %v2397
        %v2399 = vand.u32 %v1318, 4294901760
        %v2400 = vsub.f32 %v1318, %v2399
        %2401 = vmatmul.f32.gmra.mxu0 %v2400
        %v2402 = vpop.f32.mrf.mxu0
        %v2403 = vadd.f32 %v2101, %v2402
        %v2404 = vand.u32 %v1321, 4294901760
        %v2405 = vsub.f32 %v1321, %v2404
        %2406 = vmatmul.f32.gmra.mxu0 %v2405
        %v2407 = vpop.f32.mrf.mxu0
        %v2408 = vadd.f32 %v2105, %v2407
        %v2409 = vand.u32 %v1324, 4294901760
        %v2410 = vsub.f32 %v1324, %v2409
        %2411 = vmatmul.f32.gmra.mxu0 %v2410
        %v2412 = vpop.f32.mrf.mxu0
        %v2413 = vadd.f32 %v2109, %v2412
        %v2414 = vand.u32 %v1327, 4294901760
        %v2415 = vsub.f32 %v1327, %v2414
        %2416 = vmatmul.f32.gmra.mxu0 %v2415
        %v2417 = vpop.f32.mrf.mxu0
        %v2418 = vadd.f32 %v2113, %v2417
        %v2419 = vand.u32 %v1330, 4294901760
        %v2420 = vsub.f32 %v1330, %v2419
        %2421 = vmatmul.f32.gmra.mxu0 %v2420
        %v2422 = vpop.f32.mrf.mxu0
        %v2423 = vadd.f32 %v2117, %v2422
        %v2424 = vand.u32 %v1333, 4294901760
        %v2425 = vsub.f32 %v1333, %v2424
        %2426 = vmatmul.f32.gmra.mxu0 %v2425
        %v2427 = vpop.f32.mrf.mxu0
        %v2428 = vadd.f32 %v2121, %v2427
        %v2429 = vand.u32 %v1336, 4294901760
        %v2430 = vsub.f32 %v1336, %v2429
        %2431 = vmatmul.f32.gmra.mxu0 %v2430
        %v2432 = vpop.f32.mrf.mxu0
        %v2433 = vadd.f32 %v2125, %v2432
        %v2434 = vand.u32 %v1339, 4294901760
        %v2435 = vsub.f32 %v1339, %v2434
        %2436 = vmatmul.f32.gmra.mxu0 %v2435
        %v2437 = vpop.f32.mrf.mxu0
        %v2438 = vadd.f32 %v2129, %v2437
        %v2439 = vand.u32 %v1342, 4294901760
        %v2440 = vsub.f32 %v1342, %v2439
        %2441 = vmatmul.f32.gmra.mxu0 %v2440
        %v2442 = vpop.f32.mrf.mxu0
        %v2443 = vadd.f32 %v2133, %v2442
        %v2444 = vand.u32 %v1345, 4294901760
        %v2445 = vsub.f32 %v1345, %v2444
        %2446 = vmatmul.f32.gmra.mxu0 %v2445
        %v2447 = vpop.f32.mrf.mxu0
        %v2448 = vadd.f32 %v2137, %v2447
        %v2449 = vand.u32 %v1348, 4294901760
        %v2450 = vsub.f32 %v1348, %v2449
        %2451 = vmatmul.f32.gmra.mxu0 %v2450
        %v2452 = vpop.f32.mrf.mxu0
        %v2453 = vadd.f32 %v2141, %v2452
        %v2454 = vand.u32 %v1351, 4294901760
        %v2455 = vsub.f32 %v1351, %v2454
        %2456 = vmatmul.f32.gmra.mxu0 %v2455
        %v2457 = vpop.f32.mrf.mxu0
        %v2458 = vadd.f32 %v2145, %v2457
        %v2459 = vand.u32 %v1354, 4294901760
        %v2460 = vsub.f32 %v1354, %v2459
        %2461 = vmatmul.f32.gmra.mxu0 %v2460
        %v2462 = vpop.f32.mrf.mxu0
        %v2463 = vadd.f32 %v2149, %v2462
        %v2464 = vand.u32 %v1357, 4294901760
        %v2465 = vsub.f32 %v1357, %v2464
        %2466 = vmatmul.f32.gmra.mxu0 %v2465
        %v2467 = vpop.f32.mrf.mxu0
        %v2468 = vadd.f32 %v2153, %v2467
        %v2469 = vand.u32 %v1360, 4294901760
        %v2470 = vsub.f32 %v1360, %v2469
        %2471 = vmatmul.f32.gmra.mxu0 %v2470
        %v2472 = vpop.f32.mrf.mxu0
        %v2473 = vadd.f32 %v2157, %v2472
        %v2474 = vand.u32 %v1363, 4294901760
        %v2475 = vsub.f32 %v1363, %v2474
        %2476 = vmatmul.f32.gmra.mxu0 %v2475
        %v2477 = vpop.f32.mrf.mxu0
        %v2478 = vadd.f32 %v2161, %v2477
        %v2479 = vand.u32 %v1366, 4294901760
        %v2480 = vsub.f32 %v1366, %v2479
        %2481 = vmatmul.f32.gmra.mxu0 %v2480
        %v2482 = vpop.f32.mrf.mxu0
        %v2483 = vadd.f32 %v2165, %v2482
        %v2484 = vand.u32 %v1369, 4294901760
        %v2485 = vsub.f32 %v1369, %v2484
        %2486 = vmatmul.f32.gmra.mxu0 %v2485
        %v2487 = vpop.f32.mrf.mxu0
        %v2488 = vadd.f32 %v2169, %v2487
        %v2489 = vand.u32 %v1372, 4294901760
        %v2490 = vsub.f32 %v1372, %v2489
        %2491 = vmatmul.f32.gmra.mxu0 %v2490
        %v2492 = vpop.f32.mrf.mxu0
        %v2493 = vadd.f32 %v2173, %v2492
        %v2494 = vand.u32 %v1375, 4294901760
        %v2495 = vsub.f32 %v1375, %v2494
        %2496 = vmatmul.f32.gmra.mxu0 %v2495
        %v2497 = vpop.f32.mrf.mxu0
        %v2498 = vadd.f32 %v2177, %v2497
        %v2499 = vand.u32 %v1378, 4294901760
        %v2500 = vsub.f32 %v1378, %v2499
        %2501 = vmatmul.f32.gmra.mxu0 %v2500
        %v2502 = vpop.f32.mrf.mxu0
        %v2503 = vadd.f32 %v2181, %v2502
        %v2504 = vand.u32 %v1381, 4294901760
        %v2505 = vsub.f32 %v1381, %v2504
        %2506 = vmatmul.f32.gmra.mxu0 %v2505
        %v2507 = vpop.f32.mrf.mxu0
        %v2508 = vadd.f32 %v2185, %v2507
        %v2509 = vand.u32 %v1384, 4294901760
        %v2510 = vsub.f32 %v1384, %v2509
        %2511 = vmatmul.f32.gmra.mxu0 %v2510
        %v2512 = vpop.f32.mrf.mxu0
        %v2513 = vadd.f32 %v2189, %v2512
        %v2514 = vand.u32 %v1387, 4294901760
        %v2515 = vsub.f32 %v1387, %v2514
        %2516 = vmatmul.f32.gmra.mxu0 %v2515
        %v2517 = vpop.f32.mrf.mxu0
        %v2518 = vadd.f32 %v2193, %v2517
        %v2519 = vand.u32 %v1390, 4294901760
        %v2520 = vsub.f32 %v1390, %v2519
        %2521 = vmatmul.f32.gmra.mxu0 %v2520
        %v2522 = vpop.f32.mrf.mxu0
        %v2523 = vadd.f32 %v2197, %v2522
        %v2524 = vand.u32 %v1393, 4294901760
        %v2525 = vsub.f32 %v1393, %v2524
        %2526 = vmatmul.f32.gmra.mxu0 %v2525
        %v2527 = vpop.f32.mrf.mxu0
        %v2528 = vadd.f32 %v2201, %v2527
        %v2529 = vand.u32 %v1396, 4294901760
        %v2530 = vsub.f32 %v1396, %v2529
        %2531 = vmatmul.f32.gmra.mxu0 %v2530
        %v2532 = vpop.f32.mrf.mxu0
        %v2533 = vadd.f32 %v2205, %v2532
        %v2534 = vand.u32 %v1399, 4294901760
        %v2535 = vsub.f32 %v1399, %v2534
        %2536 = vmatmul.f32.gmra.mxu0 %v2535
        %v2537 = vpop.f32.mrf.mxu0
        %v2538 = vadd.f32 %v2209, %v2537
        %v2539 = vand.u32 %v1402, 4294901760
        %v2540 = vsub.f32 %v1402, %v2539
        %2541 = vmatmul.f32.gmra.mxu0 %v2540
        %v2542 = vpop.f32.mrf.mxu0
        %v2543 = vadd.f32 %v2213, %v2542
        %v2544 = vand.u32 %v1405, 4294901760
        %v2545 = vsub.f32 %v1405, %v2544
        %2546 = vmatmul.f32.gmra.mxu0 %v2545
        %v2547 = vpop.f32.mrf.mxu0
        %v2548 = vadd.f32 %v2217, %v2547
        %v2549 = vand.u32 %v1408, 4294901760
        %v2550 = vsub.f32 %v1408, %v2549
        %2551 = vmatmul.f32.gmra.mxu0 %v2550
        %v2552 = vpop.f32.mrf.mxu0
        %v2553 = vadd.f32 %v2221, %v2552
        %v2554 = vand.u32 %v1411, 4294901760
        %v2555 = vsub.f32 %v1411, %v2554
        %2556 = vmatmul.f32.gmra.mxu0 %v2555
        %v2557 = vpop.f32.mrf.mxu0
        %v2558 = vadd.f32 %v2225, %v2557
        %v2559 = vand.u32 %v1414, 4294901760
        %v2560 = vsub.f32 %v1414, %v2559
        %2561 = vmatmul.f32.gmra.mxu0 %v2560
        %v2562 = vpop.f32.mrf.mxu0
        %v2563 = vadd.f32 %v2229, %v2562
        %v2564 = vand.u32 %v1417, 4294901760
        %v2565 = vsub.f32 %v1417, %v2564
        %2566 = vmatmul.f32.gmra.mxu0 %v2565
        %v2567 = vpop.f32.mrf.mxu0
        %v2568 = vadd.f32 %v2233, %v2567
        %v2569 = vand.u32 %v1420, 4294901760
        %v2570 = vsub.f32 %v1420, %v2569
        %2571 = vmatmul.f32.gmra.mxu0 %v2570
        %v2572 = vpop.f32.mrf.mxu0
        %v2573 = vadd.f32 %v2237, %v2572
        %v2574 = vand.u32 %v1423, 4294901760
        %v2575 = vsub.f32 %v1423, %v2574
        %2576 = vmatmul.f32.gmra.mxu0 %v2575
        %v2577 = vpop.f32.mrf.mxu0
        %v2578 = vadd.f32 %v2241, %v2577
        %v2579 = vand.u32 %v1426, 4294901760
        %v2580 = vsub.f32 %v1426, %v2579
        %2581 = vmatmul.f32.gmra.mxu0 %v2580
        %v2582 = vpop.f32.mrf.mxu0
        %v2583 = vadd.f32 %v2245, %v2582
        %v2584 = vand.u32 %v1429, 4294901760
        %v2585 = vsub.f32 %v1429, %v2584
        %2586 = vmatmul.f32.gmra.mxu0 %v2585
        %v2587 = vpop.f32.mrf.mxu0
        %v2588 = vadd.f32 %v2249, %v2587
        %v2589 = vand.u32 %v1432, 4294901760
        %v2590 = vsub.f32 %v1432, %v2589
        %2591 = vmatmul.f32.gmra.mxu0 %v2590
        %v2592 = vpop.f32.mrf.mxu0
        %v2593 = vadd.f32 %v2253, %v2592
        %v2594 = vand.u32 %v1435, 4294901760
        %v2595 = vsub.f32 %v1435, %v2594
        %2596 = vmatmul.f32.gmra.mxu0 %v2595
        %v2597 = vpop.f32.mrf.mxu0
        %v2598 = vadd.f32 %v2257, %v2597
        %v2599 = vand.u32 %v1438, 4294901760
        %v2600 = vsub.f32 %v1438, %v2599
        %2601 = vmatmul.f32.gmra.mxu0 %v2600
        %v2602 = vpop.f32.mrf.mxu0
        %v2603 = vadd.f32 %v2261, %v2602
        %v2604 = vand.u32 %v1441, 4294901760
        %v2605 = vsub.f32 %v1441, %v2604
        %2606 = vmatmul.f32.gmra.mxu0 %v2605
        %v2607 = vpop.f32.mrf.mxu0
        %v2608 = vadd.f32 %v2265, %v2607
        %v2609 = vand.u32 %v1444, 4294901760
        %v2610 = vsub.f32 %v1444, %v2609
        %2611 = vmatmul.f32.gmra.mxu0 %v2610
        %v2612 = vpop.f32.mrf.mxu0
        %v2613 = vadd.f32 %v2269, %v2612
        %v2614 = vand.u32 %v1447, 4294901760
        %v2615 = vsub.f32 %v1447, %v2614
        %2616 = vmatmul.f32.gmra.mxu0 %v2615
        %v2617 = vpop.f32.mrf.mxu0
        %v2618 = vadd.f32 %v2273, %v2617
        %2619 = vdwg.mxu0
        %2620 = vmatpush.msra.mxu0 0.0
        %2621 = vmatpush.msra.mxu0 0.0
        %2622 = vmatpush.msra.mxu0 0.0
        %2623 = vmatpush.msra.mxu0 0.0
        %2624 = vmatpush.msra.mxu0 0.0
        %2625 = vmatpush.msra.mxu0 0.0
        %2626 = vmatpush.msra.mxu0 0.0
        %2627 = vmatpush.msra.mxu0 0.0
        %2628 = vmatpush.msra.mxu0 0.0
        %2629 = vmatpush.msra.mxu0 0.0
        %2630 = vmatpush.msra.mxu0 0.0
        %2631 = vmatpush.msra.mxu0 0.0
        %v2632 = vand.u32 %v1251, 4294901760
        %2633 = vmatpush.msra.mxu0 %v2632
        %v2634 = vand.u32 %v1250, 4294901760
        %2635 = vmatpush.msra.mxu0 %v2634
        %v2636 = vand.u32 %v1249, 4294901760
        %2637 = vmatpush.msra.mxu0 %v2636
        %v2638 = vand.u32 %v1248, 4294901760
        %2639 = vmatpush.msra.mxu0 %v2638
        %v2640 = vand.u32 %v1258, 4294901760
        %v2641 = vsub.f32 %v1258, %v2640
        %v2642 = vand.u32 %v2641, 4294901760
        %2643 = vmatmul.f32.gmra.mxu0 %v2642
        %v2644 = vpop.f32.mrf.mxu0
        %v2645 = vadd.f32 %v2303, %v2644
        %v2646 = vand.u32 %v1261, 4294901760
        %v2647 = vsub.f32 %v1261, %v2646
        %v2648 = vand.u32 %v2647, 4294901760
        %2649 = vmatmul.f32.gmra.mxu0 %v2648
        %v2650 = vpop.f32.mrf.mxu0
        %v2651 = vadd.f32 %v2308, %v2650
        %v2652 = vand.u32 %v1264, 4294901760
        %v2653 = vsub.f32 %v1264, %v2652
        %v2654 = vand.u32 %v2653, 4294901760
        %2655 = vmatmul.f32.gmra.mxu0 %v2654
        %v2656 = vpop.f32.mrf.mxu0
        %v2657 = vadd.f32 %v2313, %v2656
        %v2658 = vand.u32 %v1267, 4294901760
        %v2659 = vsub.f32 %v1267, %v2658
        %v2660 = vand.u32 %v2659, 4294901760
        %2661 = vmatmul.f32.gmra.mxu0 %v2660
        %v2662 = vpop.f32.mrf.mxu0
        %v2663 = vadd.f32 %v2318, %v2662
        %v2664 = vand.u32 %v1270, 4294901760
        %v2665 = vsub.f32 %v1270, %v2664
        %v2666 = vand.u32 %v2665, 4294901760
        %2667 = vmatmul.f32.gmra.mxu0 %v2666
        %v2668 = vpop.f32.mrf.mxu0
        %v2669 = vadd.f32 %v2323, %v2668
        %v2670 = vand.u32 %v1273, 4294901760
        %v2671 = vsub.f32 %v1273, %v2670
        %v2672 = vand.u32 %v2671, 4294901760
        %2673 = vmatmul.f32.gmra.mxu0 %v2672
        %v2674 = vpop.f32.mrf.mxu0
        %v2675 = vadd.f32 %v2328, %v2674
        %v2676 = vand.u32 %v1276, 4294901760
        %v2677 = vsub.f32 %v1276, %v2676
        %v2678 = vand.u32 %v2677, 4294901760
        %2679 = vmatmul.f32.gmra.mxu0 %v2678
        %v2680 = vpop.f32.mrf.mxu0
        %v2681 = vadd.f32 %v2333, %v2680
        %v2682 = vand.u32 %v1279, 4294901760
        %v2683 = vsub.f32 %v1279, %v2682
        %v2684 = vand.u32 %v2683, 4294901760
        %2685 = vmatmul.f32.gmra.mxu0 %v2684
        %v2686 = vpop.f32.mrf.mxu0
        %v2687 = vadd.f32 %v2338, %v2686
        %v2688 = vand.u32 %v1282, 4294901760
        %v2689 = vsub.f32 %v1282, %v2688
        %v2690 = vand.u32 %v2689, 4294901760
        %2691 = vmatmul.f32.gmra.mxu0 %v2690
        %v2692 = vpop.f32.mrf.mxu0
        %v2693 = vadd.f32 %v2343, %v2692
        %v2694 = vand.u32 %v1285, 4294901760
        %v2695 = vsub.f32 %v1285, %v2694
        %v2696 = vand.u32 %v2695, 4294901760
        %2697 = vmatmul.f32.gmra.mxu0 %v2696
        %v2698 = vpop.f32.mrf.mxu0
        %v2699 = vadd.f32 %v2348, %v2698
        %v2700 = vand.u32 %v1288, 4294901760
        %v2701 = vsub.f32 %v1288, %v2700
        %v2702 = vand.u32 %v2701, 4294901760
        %2703 = vmatmul.f32.gmra.mxu0 %v2702
        %v2704 = vpop.f32.mrf.mxu0
        %v2705 = vadd.f32 %v2353, %v2704
        %v2706 = vand.u32 %v1291, 4294901760
        %v2707 = vsub.f32 %v1291, %v2706
        %v2708 = vand.u32 %v2707, 4294901760
        %2709 = vmatmul.f32.gmra.mxu0 %v2708
        %v2710 = vpop.f32.mrf.mxu0
        %v2711 = vadd.f32 %v2358, %v2710
        %v2712 = vand.u32 %v1294, 4294901760
        %v2713 = vsub.f32 %v1294, %v2712
        %v2714 = vand.u32 %v2713, 4294901760
        %2715 = vmatmul.f32.gmra.mxu0 %v2714
        %v2716 = vpop.f32.mrf.mxu0
        %v2717 = vadd.f32 %v2363, %v2716
        %v2718 = vand.u32 %v1297, 4294901760
        %v2719 = vsub.f32 %v1297, %v2718
        %v2720 = vand.u32 %v2719, 4294901760
        %2721 = vmatmul.f32.gmra.mxu0 %v2720
        %v2722 = vpop.f32.mrf.mxu0
        %v2723 = vadd.f32 %v2368, %v2722
        %v2724 = vand.u32 %v1300, 4294901760
        %v2725 = vsub.f32 %v1300, %v2724
        %v2726 = vand.u32 %v2725, 4294901760
        %2727 = vmatmul.f32.gmra.mxu0 %v2726
        %v2728 = vpop.f32.mrf.mxu0
        %v2729 = vadd.f32 %v2373, %v2728
        %v2730 = vand.u32 %v1303, 4294901760
        %v2731 = vsub.f32 %v1303, %v2730
        %v2732 = vand.u32 %v2731, 4294901760
        %2733 = vmatmul.f32.gmra.mxu0 %v2732
        %v2734 = vpop.f32.mrf.mxu0
        %v2735 = vadd.f32 %v2378, %v2734
        %v2736 = vand.u32 %v1306, 4294901760
        %v2737 = vsub.f32 %v1306, %v2736
        %v2738 = vand.u32 %v2737, 4294901760
        %2739 = vmatmul.f32.gmra.mxu0 %v2738
        %v2740 = vpop.f32.mrf.mxu0
        %v2741 = vadd.f32 %v2383, %v2740
        %v2742 = vand.u32 %v1309, 4294901760
        %v2743 = vsub.f32 %v1309, %v2742
        %v2744 = vand.u32 %v2743, 4294901760
        %2745 = vmatmul.f32.gmra.mxu0 %v2744
        %v2746 = vpop.f32.mrf.mxu0
        %v2747 = vadd.f32 %v2388, %v2746
        %v2748 = vand.u32 %v1312, 4294901760
        %v2749 = vsub.f32 %v1312, %v2748
        %v2750 = vand.u32 %v2749, 4294901760
        %2751 = vmatmul.f32.gmra.mxu0 %v2750
        %v2752 = vpop.f32.mrf.mxu0
        %v2753 = vadd.f32 %v2393, %v2752
        %v2754 = vand.u32 %v1315, 4294901760
        %v2755 = vsub.f32 %v1315, %v2754
        %v2756 = vand.u32 %v2755, 4294901760
        %2757 = vmatmul.f32.gmra.mxu0 %v2756
        %v2758 = vpop.f32.mrf.mxu0
        %v2759 = vadd.f32 %v2398, %v2758
        %v2760 = vand.u32 %v1318, 4294901760
        %v2761 = vsub.f32 %v1318, %v2760
        %v2762 = vand.u32 %v2761, 4294901760
        %2763 = vmatmul.f32.gmra.mxu0 %v2762
        %v2764 = vpop.f32.mrf.mxu0
        %v2765 = vadd.f32 %v2403, %v2764
        %v2766 = vand.u32 %v1321, 4294901760
        %v2767 = vsub.f32 %v1321, %v2766
        %v2768 = vand.u32 %v2767, 4294901760
        %2769 = vmatmul.f32.gmra.mxu0 %v2768
        %v2770 = vpop.f32.mrf.mxu0
        %v2771 = vadd.f32 %v2408, %v2770
        %v2772 = vand.u32 %v1324, 4294901760
        %v2773 = vsub.f32 %v1324, %v2772
        %v2774 = vand.u32 %v2773, 4294901760
        %2775 = vmatmul.f32.gmra.mxu0 %v2774
        %v2776 = vpop.f32.mrf.mxu0
        %v2777 = vadd.f32 %v2413, %v2776
        %v2778 = vand.u32 %v1327, 4294901760
        %v2779 = vsub.f32 %v1327, %v2778
        %v2780 = vand.u32 %v2779, 4294901760
        %2781 = vmatmul.f32.gmra.mxu0 %v2780
        %v2782 = vpop.f32.mrf.mxu0
        %v2783 = vadd.f32 %v2418, %v2782
        %v2784 = vand.u32 %v1330, 4294901760
        %v2785 = vsub.f32 %v1330, %v2784
        %v2786 = vand.u32 %v2785, 4294901760
        %2787 = vmatmul.f32.gmra.mxu0 %v2786
        %v2788 = vpop.f32.mrf.mxu0
        %v2789 = vadd.f32 %v2423, %v2788
        %v2790 = vand.u32 %v1333, 4294901760
        %v2791 = vsub.f32 %v1333, %v2790
        %v2792 = vand.u32 %v2791, 4294901760
        %2793 = vmatmul.f32.gmra.mxu0 %v2792
        %v2794 = vpop.f32.mrf.mxu0
        %v2795 = vadd.f32 %v2428, %v2794
        %v2796 = vand.u32 %v1336, 4294901760
        %v2797 = vsub.f32 %v1336, %v2796
        %v2798 = vand.u32 %v2797, 4294901760
        %2799 = vmatmul.f32.gmra.mxu0 %v2798
        %v2800 = vpop.f32.mrf.mxu0
        %v2801 = vadd.f32 %v2433, %v2800
        %v2802 = vand.u32 %v1339, 4294901760
        %v2803 = vsub.f32 %v1339, %v2802
        %v2804 = vand.u32 %v2803, 4294901760
        %2805 = vmatmul.f32.gmra.mxu0 %v2804
        %v2806 = vpop.f32.mrf.mxu0
        %v2807 = vadd.f32 %v2438, %v2806
        %v2808 = vand.u32 %v1342, 4294901760
        %v2809 = vsub.f32 %v1342, %v2808
        %v2810 = vand.u32 %v2809, 4294901760
        %2811 = vmatmul.f32.gmra.mxu0 %v2810
        %v2812 = vpop.f32.mrf.mxu0
        %v2813 = vadd.f32 %v2443, %v2812
        %v2814 = vand.u32 %v1345, 4294901760
        %v2815 = vsub.f32 %v1345, %v2814
        %v2816 = vand.u32 %v2815, 4294901760
        %2817 = vmatmul.f32.gmra.mxu0 %v2816
        %v2818 = vpop.f32.mrf.mxu0
        %v2819 = vadd.f32 %v2448, %v2818
        %v2820 = vand.u32 %v1348, 4294901760
        %v2821 = vsub.f32 %v1348, %v2820
        %v2822 = vand.u32 %v2821, 4294901760
        %2823 = vmatmul.f32.gmra.mxu0 %v2822
        %v2824 = vpop.f32.mrf.mxu0
        %v2825 = vadd.f32 %v2453, %v2824
        %v2826 = vand.u32 %v1351, 4294901760
        %v2827 = vsub.f32 %v1351, %v2826
        %v2828 = vand.u32 %v2827, 4294901760
        %2829 = vmatmul.f32.gmra.mxu0 %v2828
        %v2830 = vpop.f32.mrf.mxu0
        %v2831 = vadd.f32 %v2458, %v2830
        %v2832 = vand.u32 %v1354, 4294901760
        %v2833 = vsub.f32 %v1354, %v2832
        %v2834 = vand.u32 %v2833, 4294901760
        %2835 = vmatmul.f32.gmra.mxu0 %v2834
        %v2836 = vpop.f32.mrf.mxu0
        %v2837 = vadd.f32 %v2463, %v2836
        %v2838 = vand.u32 %v1357, 4294901760
        %v2839 = vsub.f32 %v1357, %v2838
        %v2840 = vand.u32 %v2839, 4294901760
        %2841 = vmatmul.f32.gmra.mxu0 %v2840
        %v2842 = vpop.f32.mrf.mxu0
        %v2843 = vadd.f32 %v2468, %v2842
        %v2844 = vand.u32 %v1360, 4294901760
        %v2845 = vsub.f32 %v1360, %v2844
        %v2846 = vand.u32 %v2845, 4294901760
        %2847 = vmatmul.f32.gmra.mxu0 %v2846
        %v2848 = vpop.f32.mrf.mxu0
        %v2849 = vadd.f32 %v2473, %v2848
        %v2850 = vand.u32 %v1363, 4294901760
        %v2851 = vsub.f32 %v1363, %v2850
        %v2852 = vand.u32 %v2851, 4294901760
        %2853 = vmatmul.f32.gmra.mxu0 %v2852
        %v2854 = vpop.f32.mrf.mxu0
        %v2855 = vadd.f32 %v2478, %v2854
        %v2856 = vand.u32 %v1366, 4294901760
        %v2857 = vsub.f32 %v1366, %v2856
        %v2858 = vand.u32 %v2857, 4294901760
        %2859 = vmatmul.f32.gmra.mxu0 %v2858
        %v2860 = vpop.f32.mrf.mxu0
        %v2861 = vadd.f32 %v2483, %v2860
        %v2862 = vand.u32 %v1369, 4294901760
        %v2863 = vsub.f32 %v1369, %v2862
        %v2864 = vand.u32 %v2863, 4294901760
        %2865 = vmatmul.f32.gmra.mxu0 %v2864
        %v2866 = vpop.f32.mrf.mxu0
        %v2867 = vadd.f32 %v2488, %v2866
        %v2868 = vand.u32 %v1372, 4294901760
        %v2869 = vsub.f32 %v1372, %v2868
        %v2870 = vand.u32 %v2869, 4294901760
        %2871 = vmatmul.f32.gmra.mxu0 %v2870
        %v2872 = vpop.f32.mrf.mxu0
        %v2873 = vadd.f32 %v2493, %v2872
        %v2874 = vand.u32 %v1375, 4294901760
        %v2875 = vsub.f32 %v1375, %v2874
        %v2876 = vand.u32 %v2875, 4294901760
        %2877 = vmatmul.f32.gmra.mxu0 %v2876
        %v2878 = vpop.f32.mrf.mxu0
        %v2879 = vadd.f32 %v2498, %v2878
        %v2880 = vand.u32 %v1378, 4294901760
        %v2881 = vsub.f32 %v1378, %v2880
        %v2882 = vand.u32 %v2881, 4294901760
        %2883 = vmatmul.f32.gmra.mxu0 %v2882
        %v2884 = vpop.f32.mrf.mxu0
        %v2885 = vadd.f32 %v2503, %v2884
        %v2886 = vand.u32 %v1381, 4294901760
        %v2887 = vsub.f32 %v1381, %v2886
        %v2888 = vand.u32 %v2887, 4294901760
        %2889 = vmatmul.f32.gmra.mxu0 %v2888
        %v2890 = vpop.f32.mrf.mxu0
        %v2891 = vadd.f32 %v2508, %v2890
        %v2892 = vand.u32 %v1384, 4294901760
        %v2893 = vsub.f32 %v1384, %v2892
        %v2894 = vand.u32 %v2893, 4294901760
        %2895 = vmatmul.f32.gmra.mxu0 %v2894
        %v2896 = vpop.f32.mrf.mxu0
        %v2897 = vadd.f32 %v2513, %v2896
        %v2898 = vand.u32 %v1387, 4294901760
        %v2899 = vsub.f32 %v1387, %v2898
        %v2900 = vand.u32 %v2899, 4294901760
        %2901 = vmatmul.f32.gmra.mxu0 %v2900
        %v2902 = vpop.f32.mrf.mxu0
        %v2903 = vadd.f32 %v2518, %v2902
        %v2904 = vand.u32 %v1390, 4294901760
        %v2905 = vsub.f32 %v1390, %v2904
        %v2906 = vand.u32 %v2905, 4294901760
        %2907 = vmatmul.f32.gmra.mxu0 %v2906
        %v2908 = vpop.f32.mrf.mxu0
        %v2909 = vadd.f32 %v2523, %v2908
        %v2910 = vand.u32 %v1393, 4294901760
        %v2911 = vsub.f32 %v1393, %v2910
        %v2912 = vand.u32 %v2911, 4294901760
        %2913 = vmatmul.f32.gmra.mxu0 %v2912
        %v2914 = vpop.f32.mrf.mxu0
        %v2915 = vadd.f32 %v2528, %v2914
        %v2916 = vand.u32 %v1396, 4294901760
        %v2917 = vsub.f32 %v1396, %v2916
        %v2918 = vand.u32 %v2917, 4294901760
        %2919 = vmatmul.f32.gmra.mxu0 %v2918
        %v2920 = vpop.f32.mrf.mxu0
        %v2921 = vadd.f32 %v2533, %v2920
        %v2922 = vand.u32 %v1399, 4294901760
        %v2923 = vsub.f32 %v1399, %v2922
        %v2924 = vand.u32 %v2923, 4294901760
        %2925 = vmatmul.f32.gmra.mxu0 %v2924
        %v2926 = vpop.f32.mrf.mxu0
        %v2927 = vadd.f32 %v2538, %v2926
        %v2928 = vand.u32 %v1402, 4294901760
        %v2929 = vsub.f32 %v1402, %v2928
        %v2930 = vand.u32 %v2929, 4294901760
        %2931 = vmatmul.f32.gmra.mxu0 %v2930
        %v2932 = vpop.f32.mrf.mxu0
        %v2933 = vadd.f32 %v2543, %v2932
        %v2934 = vand.u32 %v1405, 4294901760
        %v2935 = vsub.f32 %v1405, %v2934
        %v2936 = vand.u32 %v2935, 4294901760
        %2937 = vmatmul.f32.gmra.mxu0 %v2936
        %v2938 = vpop.f32.mrf.mxu0
        %v2939 = vadd.f32 %v2548, %v2938
        %v2940 = vand.u32 %v1408, 4294901760
        %v2941 = vsub.f32 %v1408, %v2940
        %v2942 = vand.u32 %v2941, 4294901760
        %2943 = vmatmul.f32.gmra.mxu0 %v2942
        %v2944 = vpop.f32.mrf.mxu0
        %v2945 = vadd.f32 %v2553, %v2944
        %v2946 = vand.u32 %v1411, 4294901760
        %v2947 = vsub.f32 %v1411, %v2946
        %v2948 = vand.u32 %v2947, 4294901760
        %2949 = vmatmul.f32.gmra.mxu0 %v2948
        %v2950 = vpop.f32.mrf.mxu0
        %v2951 = vadd.f32 %v2558, %v2950
        %v2952 = vand.u32 %v1414, 4294901760
        %v2953 = vsub.f32 %v1414, %v2952
        %v2954 = vand.u32 %v2953, 4294901760
        %2955 = vmatmul.f32.gmra.mxu0 %v2954
        %v2956 = vpop.f32.mrf.mxu0
        %v2957 = vadd.f32 %v2563, %v2956
        %v2958 = vand.u32 %v1417, 4294901760
        %v2959 = vsub.f32 %v1417, %v2958
        %v2960 = vand.u32 %v2959, 4294901760
        %2961 = vmatmul.f32.gmra.mxu0 %v2960
        %v2962 = vpop.f32.mrf.mxu0
        %v2963 = vadd.f32 %v2568, %v2962
        %v2964 = vand.u32 %v1420, 4294901760
        %v2965 = vsub.f32 %v1420, %v2964
        %v2966 = vand.u32 %v2965, 4294901760
        %2967 = vmatmul.f32.gmra.mxu0 %v2966
        %v2968 = vpop.f32.mrf.mxu0
        %v2969 = vadd.f32 %v2573, %v2968
        %v2970 = vand.u32 %v1423, 4294901760
        %v2971 = vsub.f32 %v1423, %v2970
        %v2972 = vand.u32 %v2971, 4294901760
        %2973 = vmatmul.f32.gmra.mxu0 %v2972
        %v2974 = vpop.f32.mrf.mxu0
        %v2975 = vadd.f32 %v2578, %v2974
        %v2976 = vand.u32 %v1426, 4294901760
        %v2977 = vsub.f32 %v1426, %v2976
        %v2978 = vand.u32 %v2977, 4294901760
        %2979 = vmatmul.f32.gmra.mxu0 %v2978
        %v2980 = vpop.f32.mrf.mxu0
        %v2981 = vadd.f32 %v2583, %v2980
        %v2982 = vand.u32 %v1429, 4294901760
        %v2983 = vsub.f32 %v1429, %v2982
        %v2984 = vand.u32 %v2983, 4294901760
        %2985 = vmatmul.f32.gmra.mxu0 %v2984
        %v2986 = vpop.f32.mrf.mxu0
        %v2987 = vadd.f32 %v2588, %v2986
        %v2988 = vand.u32 %v1432, 4294901760
        %v2989 = vsub.f32 %v1432, %v2988
        %v2990 = vand.u32 %v2989, 4294901760
        %2991 = vmatmul.f32.gmra.mxu0 %v2990
        %v2992 = vpop.f32.mrf.mxu0
        %v2993 = vadd.f32 %v2593, %v2992
        %v2994 = vand.u32 %v1435, 4294901760
        %v2995 = vsub.f32 %v1435, %v2994
        %v2996 = vand.u32 %v2995, 4294901760
        %2997 = vmatmul.f32.gmra.mxu0 %v2996
        %v2998 = vpop.f32.mrf.mxu0
        %v2999 = vadd.f32 %v2598, %v2998
        %v3000 = vand.u32 %v1438, 4294901760
        %v3001 = vsub.f32 %v1438, %v3000
        %v3002 = vand.u32 %v3001, 4294901760
        %3003 = vmatmul.f32.gmra.mxu0 %v3002
        %v3004 = vpop.f32.mrf.mxu0
        %v3005 = vadd.f32 %v2603, %v3004
        %v3006 = vand.u32 %v1441, 4294901760
        %v3007 = vsub.f32 %v1441, %v3006
        %v3008 = vand.u32 %v3007, 4294901760
        %3009 = vmatmul.f32.gmra.mxu0 %v3008
        %v3010 = vpop.f32.mrf.mxu0
        %v3011 = vadd.f32 %v2608, %v3010
        %v3012 = vand.u32 %v1444, 4294901760
        %v3013 = vsub.f32 %v1444, %v3012
        %v3014 = vand.u32 %v3013, 4294901760
        %3015 = vmatmul.f32.gmra.mxu0 %v3014
        %v3016 = vpop.f32.mrf.mxu0
        %v3017 = vadd.f32 %v2613, %v3016
        %v3018 = vand.u32 %v1447, 4294901760
        %v3019 = vsub.f32 %v1447, %v3018
        %v3020 = vand.u32 %v3019, 4294901760
        %3021 = vmatmul.f32.gmra.mxu0 %v3020
        %v3022 = vpop.f32.mrf.mxu0
        %v3023 = vadd.f32 %v2618, %v3022
        %3024 = vdwg.mxu0
        %3025 = vmatpush.msra.mxu0 0.0
        %3026 = vmatpush.msra.mxu0 0.0
        %3027 = vmatpush.msra.mxu0 0.0
        %3028 = vmatpush.msra.mxu0 0.0
        %3029 = vmatpush.msra.mxu0 0.0
        %3030 = vmatpush.msra.mxu0 0.0
        %3031 = vmatpush.msra.mxu0 0.0
        %3032 = vmatpush.msra.mxu0 0.0
        %3033 = vmatpush.msra.mxu0 0.0
        %3034 = vmatpush.msra.mxu0 0.0
        %3035 = vmatpush.msra.mxu0 0.0
        %3036 = vmatpush.msra.mxu0 0.0
        %v3037 = vand.u32 %v1251, 4294901760
        %v3038 = vsub.f32 %v1251, %v3037
        %v3039 = vand.u32 %v3038, 4294901760
        %3040 = vmatpush.msra.mxu0 %v3039
        %v3041 = vand.u32 %v1250, 4294901760
        %v3042 = vsub.f32 %v1250, %v3041
        %v3043 = vand.u32 %v3042, 4294901760
        %3044 = vmatpush.msra.mxu0 %v3043
        %v3045 = vand.u32 %v1249, 4294901760
        %v3046 = vsub.f32 %v1249, %v3045
        %v3047 = vand.u32 %v3046, 4294901760
        %3048 = vmatpush.msra.mxu0 %v3047
        %v3049 = vand.u32 %v1248, 4294901760
        %v3050 = vsub.f32 %v1248, %v3049
        %v3051 = vand.u32 %v3050, 4294901760
        %3052 = vmatpush.msra.mxu0 %v3051
        %v3053 = vand.u32 %v1258, 4294901760
        %3054 = vmatmul.f32.gmra.mxu0 %v3053
        %v3055 = vpop.f32.mrf.mxu0
        %v3056 = vadd.f32 %v2645, %v3055
        %v3057 = vand.u32 %v1261, 4294901760
        %3058 = vmatmul.f32.gmra.mxu0 %v3057
        %v3059 = vpop.f32.mrf.mxu0
        %v3060 = vadd.f32 %v2651, %v3059
        %v3061 = vand.u32 %v1264, 4294901760
        %3062 = vmatmul.f32.gmra.mxu0 %v3061
        %v3063 = vpop.f32.mrf.mxu0
        %v3064 = vadd.f32 %v2657, %v3063
        %v3065 = vand.u32 %v1267, 4294901760
        %3066 = vmatmul.f32.gmra.mxu0 %v3065
        %v3067 = vpop.f32.mrf.mxu0
        %v3068 = vadd.f32 %v2663, %v3067
        %v3069 = vand.u32 %v1270, 4294901760
        %3070 = vmatmul.f32.gmra.mxu0 %v3069
        %v3071 = vpop.f32.mrf.mxu0
        %v3072 = vadd.f32 %v2669, %v3071
        %v3073 = vand.u32 %v1273, 4294901760
        %3074 = vmatmul.f32.gmra.mxu0 %v3073
        %v3075 = vpop.f32.mrf.mxu0
        %v3076 = vadd.f32 %v2675, %v3075
        %v3077 = vand.u32 %v1276, 4294901760
        %3078 = vmatmul.f32.gmra.mxu0 %v3077
        %v3079 = vpop.f32.mrf.mxu0
        %v3080 = vadd.f32 %v2681, %v3079
        %v3081 = vand.u32 %v1279, 4294901760
        %3082 = vmatmul.f32.gmra.mxu0 %v3081
        %v3083 = vpop.f32.mrf.mxu0
        %v3084 = vadd.f32 %v2687, %v3083
        %v3085 = vand.u32 %v1282, 4294901760
        %3086 = vmatmul.f32.gmra.mxu0 %v3085
        %v3087 = vpop.f32.mrf.mxu0
        %v3088 = vadd.f32 %v2693, %v3087
        %v3089 = vand.u32 %v1285, 4294901760
        %3090 = vmatmul.f32.gmra.mxu0 %v3089
        %v3091 = vpop.f32.mrf.mxu0
        %v3092 = vadd.f32 %v2699, %v3091
        %v3093 = vand.u32 %v1288, 4294901760
        %3094 = vmatmul.f32.gmra.mxu0 %v3093
        %v3095 = vpop.f32.mrf.mxu0
        %v3096 = vadd.f32 %v2705, %v3095
        %v3097 = vand.u32 %v1291, 4294901760
        %3098 = vmatmul.f32.gmra.mxu0 %v3097
        %v3099 = vpop.f32.mrf.mxu0
        %v3100 = vadd.f32 %v2711, %v3099
        %v3101 = vand.u32 %v1294, 4294901760
        %3102 = vmatmul.f32.gmra.mxu0 %v3101
        %v3103 = vpop.f32.mrf.mxu0
        %v3104 = vadd.f32 %v2717, %v3103
        %v3105 = vand.u32 %v1297, 4294901760
        %3106 = vmatmul.f32.gmra.mxu0 %v3105
        %v3107 = vpop.f32.mrf.mxu0
        %v3108 = vadd.f32 %v2723, %v3107
        %v3109 = vand.u32 %v1300, 4294901760
        %3110 = vmatmul.f32.gmra.mxu0 %v3109
        %v3111 = vpop.f32.mrf.mxu0
        %v3112 = vadd.f32 %v2729, %v3111
        %v3113 = vand.u32 %v1303, 4294901760
        %3114 = vmatmul.f32.gmra.mxu0 %v3113
        %v3115 = vpop.f32.mrf.mxu0
        %v3116 = vadd.f32 %v2735, %v3115
        %v3117 = vand.u32 %v1306, 4294901760
        %3118 = vmatmul.f32.gmra.mxu0 %v3117
        %v3119 = vpop.f32.mrf.mxu0
        %v3120 = vadd.f32 %v2741, %v3119
        %v3121 = vand.u32 %v1309, 4294901760
        %3122 = vmatmul.f32.gmra.mxu0 %v3121
        %v3123 = vpop.f32.mrf.mxu0
        %v3124 = vadd.f32 %v2747, %v3123
        %v3125 = vand.u32 %v1312, 4294901760
        %3126 = vmatmul.f32.gmra.mxu0 %v3125
        %v3127 = vpop.f32.mrf.mxu0
        %v3128 = vadd.f32 %v2753, %v3127
        %v3129 = vand.u32 %v1315, 4294901760
        %3130 = vmatmul.f32.gmra.mxu0 %v3129
        %v3131 = vpop.f32.mrf.mxu0
        %v3132 = vadd.f32 %v2759, %v3131
        %v3133 = vand.u32 %v1318, 4294901760
        %3134 = vmatmul.f32.gmra.mxu0 %v3133
        %v3135 = vpop.f32.mrf.mxu0
        %v3136 = vadd.f32 %v2765, %v3135
        %v3137 = vand.u32 %v1321, 4294901760
        %3138 = vmatmul.f32.gmra.mxu0 %v3137
        %v3139 = vpop.f32.mrf.mxu0
        %v3140 = vadd.f32 %v2771, %v3139
        %v3141 = vand.u32 %v1324, 4294901760
        %3142 = vmatmul.f32.gmra.mxu0 %v3141
        %v3143 = vpop.f32.mrf.mxu0
        %v3144 = vadd.f32 %v2777, %v3143
        %v3145 = vand.u32 %v1327, 4294901760
        %3146 = vmatmul.f32.gmra.mxu0 %v3145
        %v3147 = vpop.f32.mrf.mxu0
        %v3148 = vadd.f32 %v2783, %v3147
        %v3149 = vand.u32 %v1330, 4294901760
        %3150 = vmatmul.f32.gmra.mxu0 %v3149
        %v3151 = vpop.f32.mrf.mxu0
        %v3152 = vadd.f32 %v2789, %v3151
        %v3153 = vand.u32 %v1333, 4294901760
        %3154 = vmatmul.f32.gmra.mxu0 %v3153
        %v3155 = vpop.f32.mrf.mxu0
        %v3156 = vadd.f32 %v2795, %v3155
        %v3157 = vand.u32 %v1336, 4294901760
        %3158 = vmatmul.f32.gmra.mxu0 %v3157
        %v3159 = vpop.f32.mrf.mxu0
        %v3160 = vadd.f32 %v2801, %v3159
        %v3161 = vand.u32 %v1339, 4294901760
        %3162 = vmatmul.f32.gmra.mxu0 %v3161
        %v3163 = vpop.f32.mrf.mxu0
        %v3164 = vadd.f32 %v2807, %v3163
        %v3165 = vand.u32 %v1342, 4294901760
        %3166 = vmatmul.f32.gmra.mxu0 %v3165
        %v3167 = vpop.f32.mrf.mxu0
        %v3168 = vadd.f32 %v2813, %v3167
        %v3169 = vand.u32 %v1345, 4294901760
        %3170 = vmatmul.f32.gmra.mxu0 %v3169
        %v3171 = vpop.f32.mrf.mxu0
        %v3172 = vadd.f32 %v2819, %v3171
        %v3173 = vand.u32 %v1348, 4294901760
        %3174 = vmatmul.f32.gmra.mxu0 %v3173
        %v3175 = vpop.f32.mrf.mxu0
        %v3176 = vadd.f32 %v2825, %v3175
        %v3177 = vand.u32 %v1351, 4294901760
        %3178 = vmatmul.f32.gmra.mxu0 %v3177
        %v3179 = vpop.f32.mrf.mxu0
        %v3180 = vadd.f32 %v2831, %v3179
        %v3181 = vand.u32 %v1354, 4294901760
        %3182 = vmatmul.f32.gmra.mxu0 %v3181
        %v3183 = vpop.f32.mrf.mxu0
        %v3184 = vadd.f32 %v2837, %v3183
        %v3185 = vand.u32 %v1357, 4294901760
        %3186 = vmatmul.f32.gmra.mxu0 %v3185
        %v3187 = vpop.f32.mrf.mxu0
        %v3188 = vadd.f32 %v2843, %v3187
        %v3189 = vand.u32 %v1360, 4294901760
        %3190 = vmatmul.f32.gmra.mxu0 %v3189
        %v3191 = vpop.f32.mrf.mxu0
        %v3192 = vadd.f32 %v2849, %v3191
        %v3193 = vand.u32 %v1363, 4294901760
        %3194 = vmatmul.f32.gmra.mxu0 %v3193
        %v3195 = vpop.f32.mrf.mxu0
        %v3196 = vadd.f32 %v2855, %v3195
        %v3197 = vand.u32 %v1366, 4294901760
        %3198 = vmatmul.f32.gmra.mxu0 %v3197
        %v3199 = vpop.f32.mrf.mxu0
        %v3200 = vadd.f32 %v2861, %v3199
        %v3201 = vand.u32 %v1369, 4294901760
        %3202 = vmatmul.f32.gmra.mxu0 %v3201
        %v3203 = vpop.f32.mrf.mxu0
        %v3204 = vadd.f32 %v2867, %v3203
        %v3205 = vand.u32 %v1372, 4294901760
        %3206 = vmatmul.f32.gmra.mxu0 %v3205
        %v3207 = vpop.f32.mrf.mxu0
        %v3208 = vadd.f32 %v2873, %v3207
        %v3209 = vand.u32 %v1375, 4294901760
        %3210 = vmatmul.f32.gmra.mxu0 %v3209
        %v3211 = vpop.f32.mrf.mxu0
        %v3212 = vadd.f32 %v2879, %v3211
        %v3213 = vand.u32 %v1378, 4294901760
        %3214 = vmatmul.f32.gmra.mxu0 %v3213
        %v3215 = vpop.f32.mrf.mxu0
        %v3216 = vadd.f32 %v2885, %v3215
        %v3217 = vand.u32 %v1381, 4294901760
        %3218 = vmatmul.f32.gmra.mxu0 %v3217
        %v3219 = vpop.f32.mrf.mxu0
        %v3220 = vadd.f32 %v2891, %v3219
        %v3221 = vand.u32 %v1384, 4294901760
        %3222 = vmatmul.f32.gmra.mxu0 %v3221
        %v3223 = vpop.f32.mrf.mxu0
        %v3224 = vadd.f32 %v2897, %v3223
        %v3225 = vand.u32 %v1387, 4294901760
        %3226 = vmatmul.f32.gmra.mxu0 %v3225
        %v3227 = vpop.f32.mrf.mxu0
        %v3228 = vadd.f32 %v2903, %v3227
        %v3229 = vand.u32 %v1390, 4294901760
        %3230 = vmatmul.f32.gmra.mxu0 %v3229
        %v3231 = vpop.f32.mrf.mxu0
        %v3232 = vadd.f32 %v2909, %v3231
        %v3233 = vand.u32 %v1393, 4294901760
        %3234 = vmatmul.f32.gmra.mxu0 %v3233
        %v3235 = vpop.f32.mrf.mxu0
        %v3236 = vadd.f32 %v2915, %v3235
        %v3237 = vand.u32 %v1396, 4294901760
        %3238 = vmatmul.f32.gmra.mxu0 %v3237
        %v3239 = vpop.f32.mrf.mxu0
        %v3240 = vadd.f32 %v2921, %v3239
        %v3241 = vand.u32 %v1399, 4294901760
        %3242 = vmatmul.f32.gmra.mxu0 %v3241
        %v3243 = vpop.f32.mrf.mxu0
        %v3244 = vadd.f32 %v2927, %v3243
        %v3245 = vand.u32 %v1402, 4294901760
        %3246 = vmatmul.f32.gmra.mxu0 %v3245
        %v3247 = vpop.f32.mrf.mxu0
        %v3248 = vadd.f32 %v2933, %v3247
        %v3249 = vand.u32 %v1405, 4294901760
        %3250 = vmatmul.f32.gmra.mxu0 %v3249
        %v3251 = vpop.f32.mrf.mxu0
        %v3252 = vadd.f32 %v2939, %v3251
        %v3253 = vand.u32 %v1408, 4294901760
        %3254 = vmatmul.f32.gmra.mxu0 %v3253
        %v3255 = vpop.f32.mrf.mxu0
        %v3256 = vadd.f32 %v2945, %v3255
        %v3257 = vand.u32 %v1411, 4294901760
        %3258 = vmatmul.f32.gmra.mxu0 %v3257
        %v3259 = vpop.f32.mrf.mxu0
        %v3260 = vadd.f32 %v2951, %v3259
        %v3261 = vand.u32 %v1414, 4294901760
        %3262 = vmatmul.f32.gmra.mxu0 %v3261
        %v3263 = vpop.f32.mrf.mxu0
        %v3264 = vadd.f32 %v2957, %v3263
        %v3265 = vand.u32 %v1417, 4294901760
        %3266 = vmatmul.f32.gmra.mxu0 %v3265
        %v3267 = vpop.f32.mrf.mxu0
        %v3268 = vadd.f32 %v2963, %v3267
        %v3269 = vand.u32 %v1420, 4294901760
        %3270 = vmatmul.f32.gmra.mxu0 %v3269
        %v3271 = vpop.f32.mrf.mxu0
        %v3272 = vadd.f32 %v2969, %v3271
        %v3273 = vand.u32 %v1423, 4294901760
        %3274 = vmatmul.f32.gmra.mxu0 %v3273
        %v3275 = vpop.f32.mrf.mxu0
        %v3276 = vadd.f32 %v2975, %v3275
        %v3277 = vand.u32 %v1426, 4294901760
        %3278 = vmatmul.f32.gmra.mxu0 %v3277
        %v3279 = vpop.f32.mrf.mxu0
        %v3280 = vadd.f32 %v2981, %v3279
        %v3281 = vand.u32 %v1429, 4294901760
        %3282 = vmatmul.f32.gmra.mxu0 %v3281
        %v3283 = vpop.f32.mrf.mxu0
        %v3284 = vadd.f32 %v2987, %v3283
        %v3285 = vand.u32 %v1432, 4294901760
        %3286 = vmatmul.f32.gmra.mxu0 %v3285
        %v3287 = vpop.f32.mrf.mxu0
        %v3288 = vadd.f32 %v2993, %v3287
        %v3289 = vand.u32 %v1435, 4294901760
        %3290 = vmatmul.f32.gmra.mxu0 %v3289
        %v3291 = vpop.f32.mrf.mxu0
        %v3292 = vadd.f32 %v2999, %v3291
        %v3293 = vand.u32 %v1438, 4294901760
        %3294 = vmatmul.f32.gmra.mxu0 %v3293
        %v3295 = vpop.f32.mrf.mxu0
        %v3296 = vadd.f32 %v3005, %v3295
        %v3297 = vand.u32 %v1441, 4294901760
        %3298 = vmatmul.f32.gmra.mxu0 %v3297
        %v3299 = vpop.f32.mrf.mxu0
        %v3300 = vadd.f32 %v3011, %v3299
        %v3301 = vand.u32 %v1444, 4294901760
        %3302 = vmatmul.f32.gmra.mxu0 %v3301
        %v3303 = vpop.f32.mrf.mxu0
        %v3304 = vadd.f32 %v3017, %v3303
        %v3305 = vand.u32 %v1447, 4294901760
        %3306 = vmatmul.f32.gmra.mxu0 %v3305
        %v3307 = vpop.f32.mrf.mxu0
        %v3308 = vadd.f32 %v3023, %v3307
        %3309 = vdwg.mxu0
        %3310 = vmatpush.msra.mxu0 0.0
        %3311 = vmatpush.msra.mxu0 0.0
        %3312 = vmatpush.msra.mxu0 0.0
        %3313 = vmatpush.msra.mxu0 0.0
        %3314 = vmatpush.msra.mxu0 0.0
        %3315 = vmatpush.msra.mxu0 0.0
        %3316 = vmatpush.msra.mxu0 0.0
        %3317 = vmatpush.msra.mxu0 0.0
        %3318 = vmatpush.msra.mxu0 0.0
        %3319 = vmatpush.msra.mxu0 0.0
        %3320 = vmatpush.msra.mxu0 0.0
        %3321 = vmatpush.msra.mxu0 0.0
        %v3322 = vand.u32 %v1251, 4294901760
        %3323 = vmatpush.msra.mxu0 %v3322
        %v3324 = vand.u32 %v1250, 4294901760
        %3325 = vmatpush.msra.mxu0 %v3324
        %v3326 = vand.u32 %v1249, 4294901760
        %3327 = vmatpush.msra.mxu0 %v3326
        %v3328 = vand.u32 %v1248, 4294901760
        %3329 = vmatpush.msra.mxu0 %v3328
        %v3330 = vand.u32 %v1258, 4294901760
        %3331 = vmatmul.f32.gmra.mxu0 %v3330
        %v3332 = vpop.f32.mrf.mxu0
        %v3333 = vadd.f32 %v3056, %v3332
        %v3334 = vand.u32 %v1261, 4294901760
        %3335 = vmatmul.f32.gmra.mxu0 %v3334
        %v3336 = vpop.f32.mrf.mxu0
        %v3337 = vadd.f32 %v3060, %v3336
        %v3338 = vand.u32 %v1264, 4294901760
        %3339 = vmatmul.f32.gmra.mxu0 %v3338
        %v3340 = vpop.f32.mrf.mxu0
        %v3341 = vadd.f32 %v3064, %v3340
        %v3342 = vand.u32 %v1267, 4294901760
        %3343 = vmatmul.f32.gmra.mxu0 %v3342
        %v3344 = vpop.f32.mrf.mxu0
        %v3345 = vadd.f32 %v3068, %v3344
        %v3346 = vand.u32 %v1270, 4294901760
        %3347 = vmatmul.f32.gmra.mxu0 %v3346
        %v3348 = vpop.f32.mrf.mxu0
        %v3349 = vadd.f32 %v3072, %v3348
        %v3350 = vand.u32 %v1273, 4294901760
        %3351 = vmatmul.f32.gmra.mxu0 %v3350
        %v3352 = vpop.f32.mrf.mxu0
        %v3353 = vadd.f32 %v3076, %v3352
        %v3354 = vand.u32 %v1276, 4294901760
        %3355 = vmatmul.f32.gmra.mxu0 %v3354
        %v3356 = vpop.f32.mrf.mxu0
        %v3357 = vadd.f32 %v3080, %v3356
        %v3358 = vand.u32 %v1279, 4294901760
        %3359 = vmatmul.f32.gmra.mxu0 %v3358
        %v3360 = vpop.f32.mrf.mxu0
        %v3361 = vadd.f32 %v3084, %v3360
        %v3362 = vand.u32 %v1282, 4294901760
        %3363 = vmatmul.f32.gmra.mxu0 %v3362
        %v3364 = vpop.f32.mrf.mxu0
        %v3365 = vadd.f32 %v3088, %v3364
        %v3366 = vand.u32 %v1285, 4294901760
        %3367 = vmatmul.f32.gmra.mxu0 %v3366
        %v3368 = vpop.f32.mrf.mxu0
        %v3369 = vadd.f32 %v3092, %v3368
        %v3370 = vand.u32 %v1288, 4294901760
        %3371 = vmatmul.f32.gmra.mxu0 %v3370
        %v3372 = vpop.f32.mrf.mxu0
        %v3373 = vadd.f32 %v3096, %v3372
        %v3374 = vand.u32 %v1291, 4294901760
        %3375 = vmatmul.f32.gmra.mxu0 %v3374
        %v3376 = vpop.f32.mrf.mxu0
        %v3377 = vadd.f32 %v3100, %v3376
        %v3378 = vand.u32 %v1294, 4294901760
        %3379 = vmatmul.f32.gmra.mxu0 %v3378
        %v3380 = vpop.f32.mrf.mxu0
        %v3381 = vadd.f32 %v3104, %v3380
        %v3382 = vand.u32 %v1297, 4294901760
        %3383 = vmatmul.f32.gmra.mxu0 %v3382
        %v3384 = vpop.f32.mrf.mxu0
        %v3385 = vadd.f32 %v3108, %v3384
        %v3386 = vand.u32 %v1300, 4294901760
        %3387 = vmatmul.f32.gmra.mxu0 %v3386
        %v3388 = vpop.f32.mrf.mxu0
        %v3389 = vadd.f32 %v3112, %v3388
        %v3390 = vand.u32 %v1303, 4294901760
        %3391 = vmatmul.f32.gmra.mxu0 %v3390
        %v3392 = vpop.f32.mrf.mxu0
        %v3393 = vadd.f32 %v3116, %v3392
        %v3394 = vand.u32 %v1306, 4294901760
        %3395 = vmatmul.f32.gmra.mxu0 %v3394
        %v3396 = vpop.f32.mrf.mxu0
        %v3397 = vadd.f32 %v3120, %v3396
        %v3398 = vand.u32 %v1309, 4294901760
        %3399 = vmatmul.f32.gmra.mxu0 %v3398
        %v3400 = vpop.f32.mrf.mxu0
        %v3401 = vadd.f32 %v3124, %v3400
        %v3402 = vand.u32 %v1312, 4294901760
        %3403 = vmatmul.f32.gmra.mxu0 %v3402
        %v3404 = vpop.f32.mrf.mxu0
        %v3405 = vadd.f32 %v3128, %v3404
        %v3406 = vand.u32 %v1315, 4294901760
        %3407 = vmatmul.f32.gmra.mxu0 %v3406
        %v3408 = vpop.f32.mrf.mxu0
        %v3409 = vadd.f32 %v3132, %v3408
        %v3410 = vand.u32 %v1318, 4294901760
        %3411 = vmatmul.f32.gmra.mxu0 %v3410
        %v3412 = vpop.f32.mrf.mxu0
        %v3413 = vadd.f32 %v3136, %v3412
        %v3414 = vand.u32 %v1321, 4294901760
        %3415 = vmatmul.f32.gmra.mxu0 %v3414
        %v3416 = vpop.f32.mrf.mxu0
        %v3417 = vadd.f32 %v3140, %v3416
        %v3418 = vand.u32 %v1324, 4294901760
        %3419 = vmatmul.f32.gmra.mxu0 %v3418
        %v3420 = vpop.f32.mrf.mxu0
        %v3421 = vadd.f32 %v3144, %v3420
        %v3422 = vand.u32 %v1327, 4294901760
        %3423 = vmatmul.f32.gmra.mxu0 %v3422
        %v3424 = vpop.f32.mrf.mxu0
        %v3425 = vadd.f32 %v3148, %v3424
        %v3426 = vand.u32 %v1330, 4294901760
        %3427 = vmatmul.f32.gmra.mxu0 %v3426
        %v3428 = vpop.f32.mrf.mxu0
        %v3429 = vadd.f32 %v3152, %v3428
        %v3430 = vand.u32 %v1333, 4294901760
        %3431 = vmatmul.f32.gmra.mxu0 %v3430
        %v3432 = vpop.f32.mrf.mxu0
        %v3433 = vadd.f32 %v3156, %v3432
        %v3434 = vand.u32 %v1336, 4294901760
        %3435 = vmatmul.f32.gmra.mxu0 %v3434
        %v3436 = vpop.f32.mrf.mxu0
        %v3437 = vadd.f32 %v3160, %v3436
        %v3438 = vand.u32 %v1339, 4294901760
        %3439 = vmatmul.f32.gmra.mxu0 %v3438
        %v3440 = vpop.f32.mrf.mxu0
        %v3441 = vadd.f32 %v3164, %v3440
        %v3442 = vand.u32 %v1342, 4294901760
        %3443 = vmatmul.f32.gmra.mxu0 %v3442
        %v3444 = vpop.f32.mrf.mxu0
        %v3445 = vadd.f32 %v3168, %v3444
        %v3446 = vand.u32 %v1345, 4294901760
        %3447 = vmatmul.f32.gmra.mxu0 %v3446
        %v3448 = vpop.f32.mrf.mxu0
        %v3449 = vadd.f32 %v3172, %v3448
        %v3450 = vand.u32 %v1348, 4294901760
        %3451 = vmatmul.f32.gmra.mxu0 %v3450
        %v3452 = vpop.f32.mrf.mxu0
        %v3453 = vadd.f32 %v3176, %v3452
        %v3454 = vand.u32 %v1351, 4294901760
        %3455 = vmatmul.f32.gmra.mxu0 %v3454
        %v3456 = vpop.f32.mrf.mxu0
        %v3457 = vadd.f32 %v3180, %v3456
        %v3458 = vand.u32 %v1354, 4294901760
        %3459 = vmatmul.f32.gmra.mxu0 %v3458
        %v3460 = vpop.f32.mrf.mxu0
        %v3461 = vadd.f32 %v3184, %v3460
        %v3462 = vand.u32 %v1357, 4294901760
        %3463 = vmatmul.f32.gmra.mxu0 %v3462
        %v3464 = vpop.f32.mrf.mxu0
        %v3465 = vadd.f32 %v3188, %v3464
        %v3466 = vand.u32 %v1360, 4294901760
        %3467 = vmatmul.f32.gmra.mxu0 %v3466
        %v3468 = vpop.f32.mrf.mxu0
        %v3469 = vadd.f32 %v3192, %v3468
        %v3470 = vand.u32 %v1363, 4294901760
        %3471 = vmatmul.f32.gmra.mxu0 %v3470
        %v3472 = vpop.f32.mrf.mxu0
        %v3473 = vadd.f32 %v3196, %v3472
        %v3474 = vand.u32 %v1366, 4294901760
        %3475 = vmatmul.f32.gmra.mxu0 %v3474
        %v3476 = vpop.f32.mrf.mxu0
        %v3477 = vadd.f32 %v3200, %v3476
        %v3478 = vand.u32 %v1369, 4294901760
        %3479 = vmatmul.f32.gmra.mxu0 %v3478
        %v3480 = vpop.f32.mrf.mxu0
        %v3481 = vadd.f32 %v3204, %v3480
        %v3482 = vand.u32 %v1372, 4294901760
        %3483 = vmatmul.f32.gmra.mxu0 %v3482
        %v3484 = vpop.f32.mrf.mxu0
        %v3485 = vadd.f32 %v3208, %v3484
        %v3486 = vand.u32 %v1375, 4294901760
        %3487 = vmatmul.f32.gmra.mxu0 %v3486
        %v3488 = vpop.f32.mrf.mxu0
        %v3489 = vadd.f32 %v3212, %v3488
        %v3490 = vand.u32 %v1378, 4294901760
        %3491 = vmatmul.f32.gmra.mxu0 %v3490
        %v3492 = vpop.f32.mrf.mxu0
        %v3493 = vadd.f32 %v3216, %v3492
        %v3494 = vand.u32 %v1381, 4294901760
        %3495 = vmatmul.f32.gmra.mxu0 %v3494
        %v3496 = vpop.f32.mrf.mxu0
        %v3497 = vadd.f32 %v3220, %v3496
        %v3498 = vand.u32 %v1384, 4294901760
        %3499 = vmatmul.f32.gmra.mxu0 %v3498
        %v3500 = vpop.f32.mrf.mxu0
        %v3501 = vadd.f32 %v3224, %v3500
        %v3502 = vand.u32 %v1387, 4294901760
        %3503 = vmatmul.f32.gmra.mxu0 %v3502
        %v3504 = vpop.f32.mrf.mxu0
        %v3505 = vadd.f32 %v3228, %v3504
        %v3506 = vand.u32 %v1390, 4294901760
        %3507 = vmatmul.f32.gmra.mxu0 %v3506
        %v3508 = vpop.f32.mrf.mxu0
        %v3509 = vadd.f32 %v3232, %v3508
        %v3510 = vand.u32 %v1393, 4294901760
        %3511 = vmatmul.f32.gmra.mxu0 %v3510
        %v3512 = vpop.f32.mrf.mxu0
        %v3513 = vadd.f32 %v3236, %v3512
        %v3514 = vand.u32 %v1396, 4294901760
        %3515 = vmatmul.f32.gmra.mxu0 %v3514
        %v3516 = vpop.f32.mrf.mxu0
        %v3517 = vadd.f32 %v3240, %v3516
        %v3518 = vand.u32 %v1399, 4294901760
        %3519 = vmatmul.f32.gmra.mxu0 %v3518
        %v3520 = vpop.f32.mrf.mxu0
        %v3521 = vadd.f32 %v3244, %v3520
        %v3522 = vand.u32 %v1402, 4294901760
        %3523 = vmatmul.f32.gmra.mxu0 %v3522
        %v3524 = vpop.f32.mrf.mxu0
        %v3525 = vadd.f32 %v3248, %v3524
        %v3526 = vand.u32 %v1405, 4294901760
        %3527 = vmatmul.f32.gmra.mxu0 %v3526
        %v3528 = vpop.f32.mrf.mxu0
        %v3529 = vadd.f32 %v3252, %v3528
        %v3530 = vand.u32 %v1408, 4294901760
        %3531 = vmatmul.f32.gmra.mxu0 %v3530
        %v3532 = vpop.f32.mrf.mxu0
        %v3533 = vadd.f32 %v3256, %v3532
        %v3534 = vand.u32 %v1411, 4294901760
        %3535 = vmatmul.f32.gmra.mxu0 %v3534
        %v3536 = vpop.f32.mrf.mxu0
        %v3537 = vadd.f32 %v3260, %v3536
        %v3538 = vand.u32 %v1414, 4294901760
        %3539 = vmatmul.f32.gmra.mxu0 %v3538
        %v3540 = vpop.f32.mrf.mxu0
        %v3541 = vadd.f32 %v3264, %v3540
        %v3542 = vand.u32 %v1417, 4294901760
        %3543 = vmatmul.f32.gmra.mxu0 %v3542
        %v3544 = vpop.f32.mrf.mxu0
        %v3545 = vadd.f32 %v3268, %v3544
        %v3546 = vand.u32 %v1420, 4294901760
        %3547 = vmatmul.f32.gmra.mxu0 %v3546
        %v3548 = vpop.f32.mrf.mxu0
        %v3549 = vadd.f32 %v3272, %v3548
        %v3550 = vand.u32 %v1423, 4294901760
        %3551 = vmatmul.f32.gmra.mxu0 %v3550
        %v3552 = vpop.f32.mrf.mxu0
        %v3553 = vadd.f32 %v3276, %v3552
        %v3554 = vand.u32 %v1426, 4294901760
        %3555 = vmatmul.f32.gmra.mxu0 %v3554
        %v3556 = vpop.f32.mrf.mxu0
        %v3557 = vadd.f32 %v3280, %v3556
        %v3558 = vand.u32 %v1429, 4294901760
        %3559 = vmatmul.f32.gmra.mxu0 %v3558
        %v3560 = vpop.f32.mrf.mxu0
        %v3561 = vadd.f32 %v3284, %v3560
        %v3562 = vand.u32 %v1432, 4294901760
        %3563 = vmatmul.f32.gmra.mxu0 %v3562
        %v3564 = vpop.f32.mrf.mxu0
        %v3565 = vadd.f32 %v3288, %v3564
        %v3566 = vand.u32 %v1435, 4294901760
        %3567 = vmatmul.f32.gmra.mxu0 %v3566
        %v3568 = vpop.f32.mrf.mxu0
        %v3569 = vadd.f32 %v3292, %v3568
        %v3570 = vand.u32 %v1438, 4294901760
        %3571 = vmatmul.f32.gmra.mxu0 %v3570
        %v3572 = vpop.f32.mrf.mxu0
        %v3573 = vadd.f32 %v3296, %v3572
        %v3574 = vand.u32 %v1441, 4294901760
        %3575 = vmatmul.f32.gmra.mxu0 %v3574
        %v3576 = vpop.f32.mrf.mxu0
        %v3577 = vadd.f32 %v3300, %v3576
        %v3578 = vand.u32 %v1444, 4294901760
        %3579 = vmatmul.f32.gmra.mxu0 %v3578
        %v3580 = vpop.f32.mrf.mxu0
        %v3581 = vadd.f32 %v3304, %v3580
        %v3582 = vand.u32 %v1447, 4294901760
        %3583 = vmatmul.f32.gmra.mxu0 %v3582
        %v3584 = vpop.f32.mrf.mxu0
        %v3585 = vadd.f32 %v3308, %v3584
        %3586 = vdwg.mxu0
        %v3587 = vtanh.pop %v3333
        %v3588 = vtanh.pop %v3337
        %v3589 = vtanh.pop %v3341
        %v3590 = vtanh.pop %v3345
        %v3591 = vtanh.pop %v3349
        %v3592 = vtanh.pop %v3353
        %v3593 = vtanh.pop %v3357
        %v3594 = vtanh.pop %v3361
        %v3595 = vtanh.pop %v3365
        %v3596 = vtanh.pop %v3369
        %v3597 = vtanh.pop %v3373
        %v3598 = vtanh.pop %v3377
        %v3599 = vtanh.pop %v3381
        %v3600 = vtanh.pop %v3385
        %v3601 = vtanh.pop %v3389
        %v3602 = vtanh.pop %v3393
        %v3603 = vtanh.pop %v3397
        %v3604 = vtanh.pop %v3401
        %v3605 = vtanh.pop %v3405
        %v3606 = vtanh.pop %v3409
        %v3607 = vtanh.pop %v3413
        %v3608 = vtanh.pop %v3417
        %v3609 = vtanh.pop %v3421
        %v3610 = vtanh.pop %v3425
        %v3611 = vtanh.pop %v3429
        %v3612 = vtanh.pop %v3433
        %v3613 = vtanh.pop %v3437
        %v3614 = vtanh.pop %v3441
        %v3615 = vtanh.pop %v3445
        %v3616 = vtanh.pop %v3449
        %v3617 = vtanh.pop %v3453
        %v3618 = vtanh.pop %v3457
        %v3619 = vtanh.pop %v3461
        %v3620 = vtanh.pop %v3465
        %v3621 = vtanh.pop %v3469
        %v3622 = vtanh.pop %v3473
        %v3623 = vtanh.pop %v3477
        %v3624 = vtanh.pop %v3481
        %v3625 = vtanh.pop %v3485
        %v3626 = vtanh.pop %v3489
        %v3627 = vtanh.pop %v3493
        %v3628 = vtanh.pop %v3497
        %v3629 = vtanh.pop %v3501
        %v3630 = vtanh.pop %v3505
        %v3631 = vtanh.pop %v3509
        %v3632 = vtanh.pop %v3513
        %v3633 = vtanh.pop %v3517
        %v3634 = vtanh.pop %v3521
        %v3635 = vtanh.pop %v3525
        %v3636 = vtanh.pop %v3529
        %v3637 = vtanh.pop %v3533
        %v3638 = vtanh.pop %v3537
        %v3639 = vtanh.pop %v3541
        %v3640 = vtanh.pop %v3545
        %v3641 = vtanh.pop %v3549
        %v3642 = vtanh.pop %v3553
        %v3643 = vtanh.pop %v3557
        %v3644 = vtanh.pop %v3561
        %v3645 = vtanh.pop %v3565
        %v3646 = vtanh.pop %v3569
        %v3647 = vtanh.pop %v3573
        %v3648 = vtanh.pop %v3577
        %v3649 = vtanh.pop %v3581
        %v3650 = vtanh.pop %v3585
        %v3651 = vadd.f32 %v3587, %v1184
        %v3652 = vadd.f32 %v3588, %v1185
        %v3653 = vadd.f32 %v3589, %v1186
        %v3654 = vadd.f32 %v3590, %v1187
        %v3655 = vadd.f32 %v3591, %v1188
        %v3656 = vadd.f32 %v3592, %v1189
        %v3657 = vadd.f32 %v3593, %v1190
        %v3658 = vadd.f32 %v3594, %v1191
        %v3659 = vadd.f32 %v3595, %v1192
        %v3660 = vadd.f32 %v3596, %v1193
        %v3661 = vadd.f32 %v3597, %v1194
        %v3662 = vadd.f32 %v3598, %v1195
        %v3663 = vadd.f32 %v3599, %v1196
        %v3664 = vadd.f32 %v3600, %v1197
        %v3665 = vadd.f32 %v3601, %v1198
        %v3666 = vadd.f32 %v3602, %v1199
        %v3667 = vadd.f32 %v3603, %v1200
        %v3668 = vadd.f32 %v3604, %v1201
        %v3669 = vadd.f32 %v3605, %v1202
        %v3670 = vadd.f32 %v3606, %v1203
        %v3671 = vadd.f32 %v3607, %v1204
        %v3672 = vadd.f32 %v3608, %v1205
        %v3673 = vadd.f32 %v3609, %v1206
        %v3674 = vadd.f32 %v3610, %v1207
        %v3675 = vadd.f32 %v3611, %v1208
        %v3676 = vadd.f32 %v3612, %v1209
        %v3677 = vadd.f32 %v3613, %v1210
        %v3678 = vadd.f32 %v3614, %v1211
        %v3679 = vadd.f32 %v3615, %v1212
        %v3680 = vadd.f32 %v3616, %v1213
        %v3681 = vadd.f32 %v3617, %v1214
        %v3682 = vadd.f32 %v3618, %v1215
        %v3683 = vadd.f32 %v3619, %v1216
        %v3684 = vadd.f32 %v3620, %v1217
        %v3685 = vadd.f32 %v3621, %v1218
        %v3686 = vadd.f32 %v3622, %v1219
        %v3687 = vadd.f32 %v3623, %v1220
        %v3688 = vadd.f32 %v3624, %v1221
        %v3689 = vadd.f32 %v3625, %v1222
        %v3690 = vadd.f32 %v3626, %v1223
        %v3691 = vadd.f32 %v3627, %v1224
        %v3692 = vadd.f32 %v3628, %v1225
        %v3693 = vadd.f32 %v3629, %v1226
        %v3694 = vadd.f32 %v3630, %v1227
        %v3695 = vadd.f32 %v3631, %v1228
        %v3696 = vadd.f32 %v3632, %v1229
        %v3697 = vadd.f32 %v3633, %v1230
        %v3698 = vadd.f32 %v3634, %v1231
        %v3699 = vadd.f32 %v3635, %v1232
        %v3700 = vadd.f32 %v3636, %v1233
        %v3701 = vadd.f32 %v3637, %v1234
        %v3702 = vadd.f32 %v3638, %v1235
        %v3703 = vadd.f32 %v3639, %v1236
        %v3704 = vadd.f32 %v3640, %v1237
        %v3705 = vadd.f32 %v3641, %v1238
        %v3706 = vadd.f32 %v3642, %v1239
        %v3707 = vadd.f32 %v3643, %v1240
        %v3708 = vadd.f32 %v3644, %v1241
        %v3709 = vadd.f32 %v3645, %v1242
        %v3710 = vadd.f32 %v3646, %v1243
        %v3711 = vadd.f32 %v3647, %v1244
        %v3712 = vadd.f32 %v3648, %v1245
        %v3713 = vadd.f32 %v3649, %v1246
        %v3714 = vadd.f32 %v3650, %v1247
        %s3715 = scalar_lea.vmem %s3, 32
        %v3716 = vld [vmem:[%s3715] sm:$0xff]
        %v3717 = vld [vmem:[%s3715 + $0x8] sm:$0xff]
        %v3718 = vld [vmem:[%s3715 + $0x10] sm:$0xff]
        %v3719 = vld [vmem:[%s3715 + $0x18] sm:$0xff]
        %s3720 = scalar_lea.vmem %s4, 1
        %v3721 = vld [vmem:[%s3720] sm:$0x1]
        %v3723 = vperm.slane %v3721, 0
        %v3726 = vsel %vm1256, %v3651, 0
        %v3729 = vsel %vm1256, %v3652, 0
        %v3732 = vsel %vm1256, %v3653, 0
        %v3735 = vsel %vm1256, %v3654, 0
        %v3738 = vsel %vm1256, %v3655, 0
        %v3741 = vsel %vm1256, %v3656, 0
        %v3744 = vsel %vm1256, %v3657, 0
        %v3747 = vsel %vm1256, %v3658, 0
        %v3750 = vsel %vm1256, %v3659, 0
        %v3753 = vsel %vm1256, %v3660, 0
        %v3756 = vsel %vm1256, %v3661, 0
        %v3759 = vsel %vm1256, %v3662, 0
        %v3762 = vsel %vm1256, %v3663, 0
        %v3765 = vsel %vm1256, %v3664, 0
        %v3768 = vsel %vm1256, %v3665, 0
        %v3771 = vsel %vm1256, %v3666, 0
        %v3774 = vsel %vm1256, %v3667, 0
        %v3777 = vsel %vm1256, %v3668, 0
        %v3780 = vsel %vm1256, %v3669, 0
        %v3783 = vsel %vm1256, %v3670, 0
        %v3786 = vsel %vm1256, %v3671, 0
        %v3789 = vsel %vm1256, %v3672, 0
        %v3792 = vsel %vm1256, %v3673, 0
        %v3795 = vsel %vm1256, %v3674, 0
        %v3798 = vsel %vm1256, %v3675, 0
        %v3801 = vsel %vm1256, %v3676, 0
        %v3804 = vsel %vm1256, %v3677, 0
        %v3807 = vsel %vm1256, %v3678, 0
        %v3810 = vsel %vm1256, %v3679, 0
        %v3813 = vsel %vm1256, %v3680, 0
        %v3816 = vsel %vm1256, %v3681, 0
        %v3819 = vsel %vm1256, %v3682, 0
        %v3822 = vsel %vm1256, %v3683, 0
        %v3825 = vsel %vm1256, %v3684, 0
        %v3828 = vsel %vm1256, %v3685, 0
        %v3831 = vsel %vm1256, %v3686, 0
        %v3834 = vsel %vm1256, %v3687, 0
        %v3837 = vsel %vm1256, %v3688, 0
        %v3840 = vsel %vm1256, %v3689, 0
        %v3843 = vsel %vm1256, %v3690, 0
        %v3846 = vsel %vm1256, %v3691, 0
        %v3849 = vsel %vm1256, %v3692, 0
        %v3852 = vsel %vm1256, %v3693, 0
        %v3855 = vsel %vm1256, %v3694, 0
        %v3858 = vsel %vm1256, %v3695, 0
        %v3861 = vsel %vm1256, %v3696, 0
        %v3864 = vsel %vm1256, %v3697, 0
        %v3867 = vsel %vm1256, %v3698, 0
        %v3870 = vsel %vm1256, %v3699, 0
        %v3873 = vsel %vm1256, %v3700, 0
        %v3876 = vsel %vm1256, %v3701, 0
        %v3879 = vsel %vm1256, %v3702, 0
        %v3882 = vsel %vm1256, %v3703, 0
        %v3885 = vsel %vm1256, %v3704, 0
        %v3888 = vsel %vm1256, %v3705, 0
        %v3891 = vsel %vm1256, %v3706, 0
        %v3894 = vsel %vm1256, %v3707, 0
        %v3897 = vsel %vm1256, %v3708, 0
        %v3900 = vsel %vm1256, %v3709, 0
        %v3903 = vsel %vm1256, %v3710, 0
        %v3906 = vsel %vm1256, %v3711, 0
        %v3909 = vsel %vm1256, %v3712, 0
        %v3912 = vsel %vm1256, %v3713, 0
        %v3915 = vsel %vm1256, %v3714, 0
        %3917 = vmatpush.msra.mxu0 0.0
        %3918 = vmatpush.msra.mxu0 0.0
        %3919 = vmatpush.msra.mxu0 0.0
        %3920 = vmatpush.msra.mxu0 0.0
        %3921 = vmatpush.msra.mxu0 0.0
        %3922 = vmatpush.msra.mxu0 0.0
        %3923 = vmatpush.msra.mxu0 0.0
        %3924 = vmatpush.msra.mxu0 0.0
        %3925 = vmatpush.msra.mxu0 0.0
        %3926 = vmatpush.msra.mxu0 0.0
        %3927 = vmatpush.msra.mxu0 0.0
        %3928 = vmatpush.msra.mxu0 0.0
        %v3929 = vand.u32 %v3719, 4294901760
        %3930 = vmatpush.msra.mxu0 %v3929
        %v3931 = vand.u32 %v3718, 4294901760
        %3932 = vmatpush.msra.mxu0 %v3931
        %v3933 = vand.u32 %v3717, 4294901760
        %3934 = vmatpush.msra.mxu0 %v3933
        %v3935 = vand.u32 %v3716, 4294901760
        %3936 = vmatpush.msra.mxu0 %v3935
        %v3937 = vand.u32 %v3726, 4294901760
        %v3938 = vsub.f32 %v3726, %v3937
        %v3939 = vand.u32 %v3938, 4294901760
        %v3940 = vsub.f32 %v3938, %v3939
        %v3941 = vand.u32 %v3940, 4294901760
        %3942 = vmatmul.f32.gmra.mxu0 %v3941
        %v3943 = vpop.f32.mrf.mxu0
        %v3944 = vadd.f32 %v3723, %v3943
        %v3945 = vand.u32 %v3729, 4294901760
        %v3946 = vsub.f32 %v3729, %v3945
        %v3947 = vand.u32 %v3946, 4294901760
        %v3948 = vsub.f32 %v3946, %v3947
        %v3949 = vand.u32 %v3948, 4294901760
        %3950 = vmatmul.f32.gmra.mxu0 %v3949
        %v3951 = vpop.f32.mrf.mxu0
        %v3952 = vadd.f32 %v3723, %v3951
        %v3953 = vand.u32 %v3732, 4294901760
        %v3954 = vsub.f32 %v3732, %v3953
        %v3955 = vand.u32 %v3954, 4294901760
        %v3956 = vsub.f32 %v3954, %v3955
        %v3957 = vand.u32 %v3956, 4294901760
        %3958 = vmatmul.f32.gmra.mxu0 %v3957
        %v3959 = vpop.f32.mrf.mxu0
        %v3960 = vadd.f32 %v3723, %v3959
        %v3961 = vand.u32 %v3735, 4294901760
        %v3962 = vsub.f32 %v3735, %v3961
        %v3963 = vand.u32 %v3962, 4294901760
        %v3964 = vsub.f32 %v3962, %v3963
        %v3965 = vand.u32 %v3964, 4294901760
        %3966 = vmatmul.f32.gmra.mxu0 %v3965
        %v3967 = vpop.f32.mrf.mxu0
        %v3968 = vadd.f32 %v3723, %v3967
        %v3969 = vand.u32 %v3738, 4294901760
        %v3970 = vsub.f32 %v3738, %v3969
        %v3971 = vand.u32 %v3970, 4294901760
        %v3972 = vsub.f32 %v3970, %v3971
        %v3973 = vand.u32 %v3972, 4294901760
        %3974 = vmatmul.f32.gmra.mxu0 %v3973
        %v3975 = vpop.f32.mrf.mxu0
        %v3976 = vadd.f32 %v3723, %v3975
        %v3977 = vand.u32 %v3741, 4294901760
        %v3978 = vsub.f32 %v3741, %v3977
        %v3979 = vand.u32 %v3978, 4294901760
        %v3980 = vsub.f32 %v3978, %v3979
        %v3981 = vand.u32 %v3980, 4294901760
        %3982 = vmatmul.f32.gmra.mxu0 %v3981
        %v3983 = vpop.f32.mrf.mxu0
        %v3984 = vadd.f32 %v3723, %v3983
        %v3985 = vand.u32 %v3744, 4294901760
        %v3986 = vsub.f32 %v3744, %v3985
        %v3987 = vand.u32 %v3986, 4294901760
        %v3988 = vsub.f32 %v3986, %v3987
        %v3989 = vand.u32 %v3988, 4294901760
        %3990 = vmatmul.f32.gmra.mxu0 %v3989
        %v3991 = vpop.f32.mrf.mxu0
        %v3992 = vadd.f32 %v3723, %v3991
        %v3993 = vand.u32 %v3747, 4294901760
        %v3994 = vsub.f32 %v3747, %v3993
        %v3995 = vand.u32 %v3994, 4294901760
        %v3996 = vsub.f32 %v3994, %v3995
        %v3997 = vand.u32 %v3996, 4294901760
        %3998 = vmatmul.f32.gmra.mxu0 %v3997
        %v3999 = vpop.f32.mrf.mxu0
        %v4000 = vadd.f32 %v3723, %v3999
        %v4001 = vand.u32 %v3750, 4294901760
        %v4002 = vsub.f32 %v3750, %v4001
        %v4003 = vand.u32 %v4002, 4294901760
        %v4004 = vsub.f32 %v4002, %v4003
        %v4005 = vand.u32 %v4004, 4294901760
        %4006 = vmatmul.f32.gmra.mxu0 %v4005
        %v4007 = vpop.f32.mrf.mxu0
        %v4008 = vadd.f32 %v3723, %v4007
        %v4009 = vand.u32 %v3753, 4294901760
        %v4010 = vsub.f32 %v3753, %v4009
        %v4011 = vand.u32 %v4010, 4294901760
        %v4012 = vsub.f32 %v4010, %v4011
        %v4013 = vand.u32 %v4012, 4294901760
        %4014 = vmatmul.f32.gmra.mxu0 %v4013
        %v4015 = vpop.f32.mrf.mxu0
        %v4016 = vadd.f32 %v3723, %v4015
        %v4017 = vand.u32 %v3756, 4294901760
        %v4018 = vsub.f32 %v3756, %v4017
        %v4019 = vand.u32 %v4018, 4294901760
        %v4020 = vsub.f32 %v4018, %v4019
        %v4021 = vand.u32 %v4020, 4294901760
        %4022 = vmatmul.f32.gmra.mxu0 %v4021
        %v4023 = vpop.f32.mrf.mxu0
        %v4024 = vadd.f32 %v3723, %v4023
        %v4025 = vand.u32 %v3759, 4294901760
        %v4026 = vsub.f32 %v3759, %v4025
        %v4027 = vand.u32 %v4026, 4294901760
        %v4028 = vsub.f32 %v4026, %v4027
        %v4029 = vand.u32 %v4028, 4294901760
        %4030 = vmatmul.f32.gmra.mxu0 %v4029
        %v4031 = vpop.f32.mrf.mxu0
        %v4032 = vadd.f32 %v3723, %v4031
        %v4033 = vand.u32 %v3762, 4294901760
        %v4034 = vsub.f32 %v3762, %v4033
        %v4035 = vand.u32 %v4034, 4294901760
        %v4036 = vsub.f32 %v4034, %v4035
        %v4037 = vand.u32 %v4036, 4294901760
        %4038 = vmatmul.f32.gmra.mxu0 %v4037
        %v4039 = vpop.f32.mrf.mxu0
        %v4040 = vadd.f32 %v3723, %v4039
        %v4041 = vand.u32 %v3765, 4294901760
        %v4042 = vsub.f32 %v3765, %v4041
        %v4043 = vand.u32 %v4042, 4294901760
        %v4044 = vsub.f32 %v4042, %v4043
        %v4045 = vand.u32 %v4044, 4294901760
        %4046 = vmatmul.f32.gmra.mxu0 %v4045
        %v4047 = vpop.f32.mrf.mxu0
        %v4048 = vadd.f32 %v3723, %v4047
        %v4049 = vand.u32 %v3768, 4294901760
        %v4050 = vsub.f32 %v3768, %v4049
        %v4051 = vand.u32 %v4050, 4294901760
        %v4052 = vsub.f32 %v4050, %v4051
        %v4053 = vand.u32 %v4052, 4294901760
        %4054 = vmatmul.f32.gmra.mxu0 %v4053
        %v4055 = vpop.f32.mrf.mxu0
        %v4056 = vadd.f32 %v3723, %v4055
        %v4057 = vand.u32 %v3771, 4294901760
        %v4058 = vsub.f32 %v3771, %v4057
        %v4059 = vand.u32 %v4058, 4294901760
        %v4060 = vsub.f32 %v4058, %v4059
        %v4061 = vand.u32 %v4060, 4294901760
        %4062 = vmatmul.f32.gmra.mxu0 %v4061
        %v4063 = vpop.f32.mrf.mxu0
        %v4064 = vadd.f32 %v3723, %v4063
        %v4065 = vand.u32 %v3774, 4294901760
        %v4066 = vsub.f32 %v3774, %v4065
        %v4067 = vand.u32 %v4066, 4294901760
        %v4068 = vsub.f32 %v4066, %v4067
        %v4069 = vand.u32 %v4068, 4294901760
        %4070 = vmatmul.f32.gmra.mxu0 %v4069
        %v4071 = vpop.f32.mrf.mxu0
        %v4072 = vadd.f32 %v3723, %v4071
        %v4073 = vand.u32 %v3777, 4294901760
        %v4074 = vsub.f32 %v3777, %v4073
        %v4075 = vand.u32 %v4074, 4294901760
        %v4076 = vsub.f32 %v4074, %v4075
        %v4077 = vand.u32 %v4076, 4294901760
        %4078 = vmatmul.f32.gmra.mxu0 %v4077
        %v4079 = vpop.f32.mrf.mxu0
        %v4080 = vadd.f32 %v3723, %v4079
        %v4081 = vand.u32 %v3780, 4294901760
        %v4082 = vsub.f32 %v3780, %v4081
        %v4083 = vand.u32 %v4082, 4294901760
        %v4084 = vsub.f32 %v4082, %v4083
        %v4085 = vand.u32 %v4084, 4294901760
        %4086 = vmatmul.f32.gmra.mxu0 %v4085
        %v4087 = vpop.f32.mrf.mxu0
        %v4088 = vadd.f32 %v3723, %v4087
        %v4089 = vand.u32 %v3783, 4294901760
        %v4090 = vsub.f32 %v3783, %v4089
        %v4091 = vand.u32 %v4090, 4294901760
        %v4092 = vsub.f32 %v4090, %v4091
        %v4093 = vand.u32 %v4092, 4294901760
        %4094 = vmatmul.f32.gmra.mxu0 %v4093
        %v4095 = vpop.f32.mrf.mxu0
        %v4096 = vadd.f32 %v3723, %v4095
        %v4097 = vand.u32 %v3786, 4294901760
        %v4098 = vsub.f32 %v3786, %v4097
        %v4099 = vand.u32 %v4098, 4294901760
        %v4100 = vsub.f32 %v4098, %v4099
        %v4101 = vand.u32 %v4100, 4294901760
        %4102 = vmatmul.f32.gmra.mxu0 %v4101
        %v4103 = vpop.f32.mrf.mxu0
        %v4104 = vadd.f32 %v3723, %v4103
        %v4105 = vand.u32 %v3789, 4294901760
        %v4106 = vsub.f32 %v3789, %v4105
        %v4107 = vand.u32 %v4106, 4294901760
        %v4108 = vsub.f32 %v4106, %v4107
        %v4109 = vand.u32 %v4108, 4294901760
        %4110 = vmatmul.f32.gmra.mxu0 %v4109
        %v4111 = vpop.f32.mrf.mxu0
        %v4112 = vadd.f32 %v3723, %v4111
        %v4113 = vand.u32 %v3792, 4294901760
        %v4114 = vsub.f32 %v3792, %v4113
        %v4115 = vand.u32 %v4114, 4294901760
        %v4116 = vsub.f32 %v4114, %v4115
        %v4117 = vand.u32 %v4116, 4294901760
        %4118 = vmatmul.f32.gmra.mxu0 %v4117
        %v4119 = vpop.f32.mrf.mxu0
        %v4120 = vadd.f32 %v3723, %v4119
        %v4121 = vand.u32 %v3795, 4294901760
        %v4122 = vsub.f32 %v3795, %v4121
        %v4123 = vand.u32 %v4122, 4294901760
        %v4124 = vsub.f32 %v4122, %v4123
        %v4125 = vand.u32 %v4124, 4294901760
        %4126 = vmatmul.f32.gmra.mxu0 %v4125
        %v4127 = vpop.f32.mrf.mxu0
        %v4128 = vadd.f32 %v3723, %v4127
        %v4129 = vand.u32 %v3798, 4294901760
        %v4130 = vsub.f32 %v3798, %v4129
        %v4131 = vand.u32 %v4130, 4294901760
        %v4132 = vsub.f32 %v4130, %v4131
        %v4133 = vand.u32 %v4132, 4294901760
        %4134 = vmatmul.f32.gmra.mxu0 %v4133
        %v4135 = vpop.f32.mrf.mxu0
        %v4136 = vadd.f32 %v3723, %v4135
        %v4137 = vand.u32 %v3801, 4294901760
        %v4138 = vsub.f32 %v3801, %v4137
        %v4139 = vand.u32 %v4138, 4294901760
        %v4140 = vsub.f32 %v4138, %v4139
        %v4141 = vand.u32 %v4140, 4294901760
        %4142 = vmatmul.f32.gmra.mxu0 %v4141
        %v4143 = vpop.f32.mrf.mxu0
        %v4144 = vadd.f32 %v3723, %v4143
        %v4145 = vand.u32 %v3804, 4294901760
        %v4146 = vsub.f32 %v3804, %v4145
        %v4147 = vand.u32 %v4146, 4294901760
        %v4148 = vsub.f32 %v4146, %v4147
        %v4149 = vand.u32 %v4148, 4294901760
        %4150 = vmatmul.f32.gmra.mxu0 %v4149
        %v4151 = vpop.f32.mrf.mxu0
        %v4152 = vadd.f32 %v3723, %v4151
        %v4153 = vand.u32 %v3807, 4294901760
        %v4154 = vsub.f32 %v3807, %v4153
        %v4155 = vand.u32 %v4154, 4294901760
        %v4156 = vsub.f32 %v4154, %v4155
        %v4157 = vand.u32 %v4156, 4294901760
        %4158 = vmatmul.f32.gmra.mxu0 %v4157
        %v4159 = vpop.f32.mrf.mxu0
        %v4160 = vadd.f32 %v3723, %v4159
        %v4161 = vand.u32 %v3810, 4294901760
        %v4162 = vsub.f32 %v3810, %v4161
        %v4163 = vand.u32 %v4162, 4294901760
        %v4164 = vsub.f32 %v4162, %v4163
        %v4165 = vand.u32 %v4164, 4294901760
        %4166 = vmatmul.f32.gmra.mxu0 %v4165
        %v4167 = vpop.f32.mrf.mxu0
        %v4168 = vadd.f32 %v3723, %v4167
        %v4169 = vand.u32 %v3813, 4294901760
        %v4170 = vsub.f32 %v3813, %v4169
        %v4171 = vand.u32 %v4170, 4294901760
        %v4172 = vsub.f32 %v4170, %v4171
        %v4173 = vand.u32 %v4172, 4294901760
        %4174 = vmatmul.f32.gmra.mxu0 %v4173
        %v4175 = vpop.f32.mrf.mxu0
        %v4176 = vadd.f32 %v3723, %v4175
        %v4177 = vand.u32 %v3816, 4294901760
        %v4178 = vsub.f32 %v3816, %v4177
        %v4179 = vand.u32 %v4178, 4294901760
        %v4180 = vsub.f32 %v4178, %v4179
        %v4181 = vand.u32 %v4180, 4294901760
        %4182 = vmatmul.f32.gmra.mxu0 %v4181
        %v4183 = vpop.f32.mrf.mxu0
        %v4184 = vadd.f32 %v3723, %v4183
        %v4185 = vand.u32 %v3819, 4294901760
        %v4186 = vsub.f32 %v3819, %v4185
        %v4187 = vand.u32 %v4186, 4294901760
        %v4188 = vsub.f32 %v4186, %v4187
        %v4189 = vand.u32 %v4188, 4294901760
        %4190 = vmatmul.f32.gmra.mxu0 %v4189
        %v4191 = vpop.f32.mrf.mxu0
        %v4192 = vadd.f32 %v3723, %v4191
        %v4193 = vand.u32 %v3822, 4294901760
        %v4194 = vsub.f32 %v3822, %v4193
        %v4195 = vand.u32 %v4194, 4294901760
        %v4196 = vsub.f32 %v4194, %v4195
        %v4197 = vand.u32 %v4196, 4294901760
        %4198 = vmatmul.f32.gmra.mxu0 %v4197
        %v4199 = vpop.f32.mrf.mxu0
        %v4200 = vadd.f32 %v3723, %v4199
        %v4201 = vand.u32 %v3825, 4294901760
        %v4202 = vsub.f32 %v3825, %v4201
        %v4203 = vand.u32 %v4202, 4294901760
        %v4204 = vsub.f32 %v4202, %v4203
        %v4205 = vand.u32 %v4204, 4294901760
        %4206 = vmatmul.f32.gmra.mxu0 %v4205
        %v4207 = vpop.f32.mrf.mxu0
        %v4208 = vadd.f32 %v3723, %v4207
        %v4209 = vand.u32 %v3828, 4294901760
        %v4210 = vsub.f32 %v3828, %v4209
        %v4211 = vand.u32 %v4210, 4294901760
        %v4212 = vsub.f32 %v4210, %v4211
        %v4213 = vand.u32 %v4212, 4294901760
        %4214 = vmatmul.f32.gmra.mxu0 %v4213
        %v4215 = vpop.f32.mrf.mxu0
        %v4216 = vadd.f32 %v3723, %v4215
        %v4217 = vand.u32 %v3831, 4294901760
        %v4218 = vsub.f32 %v3831, %v4217
        %v4219 = vand.u32 %v4218, 4294901760
        %v4220 = vsub.f32 %v4218, %v4219
        %v4221 = vand.u32 %v4220, 4294901760
        %4222 = vmatmul.f32.gmra.mxu0 %v4221
        %v4223 = vpop.f32.mrf.mxu0
        %v4224 = vadd.f32 %v3723, %v4223
        %v4225 = vand.u32 %v3834, 4294901760
        %v4226 = vsub.f32 %v3834, %v4225
        %v4227 = vand.u32 %v4226, 4294901760
        %v4228 = vsub.f32 %v4226, %v4227
        %v4229 = vand.u32 %v4228, 4294901760
        %4230 = vmatmul.f32.gmra.mxu0 %v4229
        %v4231 = vpop.f32.mrf.mxu0
        %v4232 = vadd.f32 %v3723, %v4231
        %v4233 = vand.u32 %v3837, 4294901760
        %v4234 = vsub.f32 %v3837, %v4233
        %v4235 = vand.u32 %v4234, 4294901760
        %v4236 = vsub.f32 %v4234, %v4235
        %v4237 = vand.u32 %v4236, 4294901760
        %4238 = vmatmul.f32.gmra.mxu0 %v4237
        %v4239 = vpop.f32.mrf.mxu0
        %v4240 = vadd.f32 %v3723, %v4239
        %v4241 = vand.u32 %v3840, 4294901760
        %v4242 = vsub.f32 %v3840, %v4241
        %v4243 = vand.u32 %v4242, 4294901760
        %v4244 = vsub.f32 %v4242, %v4243
        %v4245 = vand.u32 %v4244, 4294901760
        %4246 = vmatmul.f32.gmra.mxu0 %v4245
        %v4247 = vpop.f32.mrf.mxu0
        %v4248 = vadd.f32 %v3723, %v4247
        %v4249 = vand.u32 %v3843, 4294901760
        %v4250 = vsub.f32 %v3843, %v4249
        %v4251 = vand.u32 %v4250, 4294901760
        %v4252 = vsub.f32 %v4250, %v4251
        %v4253 = vand.u32 %v4252, 4294901760
        %4254 = vmatmul.f32.gmra.mxu0 %v4253
        %v4255 = vpop.f32.mrf.mxu0
        %v4256 = vadd.f32 %v3723, %v4255
        %v4257 = vand.u32 %v3846, 4294901760
        %v4258 = vsub.f32 %v3846, %v4257
        %v4259 = vand.u32 %v4258, 4294901760
        %v4260 = vsub.f32 %v4258, %v4259
        %v4261 = vand.u32 %v4260, 4294901760
        %4262 = vmatmul.f32.gmra.mxu0 %v4261
        %v4263 = vpop.f32.mrf.mxu0
        %v4264 = vadd.f32 %v3723, %v4263
        %v4265 = vand.u32 %v3849, 4294901760
        %v4266 = vsub.f32 %v3849, %v4265
        %v4267 = vand.u32 %v4266, 4294901760
        %v4268 = vsub.f32 %v4266, %v4267
        %v4269 = vand.u32 %v4268, 4294901760
        %4270 = vmatmul.f32.gmra.mxu0 %v4269
        %v4271 = vpop.f32.mrf.mxu0
        %v4272 = vadd.f32 %v3723, %v4271
        %v4273 = vand.u32 %v3852, 4294901760
        %v4274 = vsub.f32 %v3852, %v4273
        %v4275 = vand.u32 %v4274, 4294901760
        %v4276 = vsub.f32 %v4274, %v4275
        %v4277 = vand.u32 %v4276, 4294901760
        %4278 = vmatmul.f32.gmra.mxu0 %v4277
        %v4279 = vpop.f32.mrf.mxu0
        %v4280 = vadd.f32 %v3723, %v4279
        %v4281 = vand.u32 %v3855, 4294901760
        %v4282 = vsub.f32 %v3855, %v4281
        %v4283 = vand.u32 %v4282, 4294901760
        %v4284 = vsub.f32 %v4282, %v4283
        %v4285 = vand.u32 %v4284, 4294901760
        %4286 = vmatmul.f32.gmra.mxu0 %v4285
        %v4287 = vpop.f32.mrf.mxu0
        %v4288 = vadd.f32 %v3723, %v4287
        %v4289 = vand.u32 %v3858, 4294901760
        %v4290 = vsub.f32 %v3858, %v4289
        %v4291 = vand.u32 %v4290, 4294901760
        %v4292 = vsub.f32 %v4290, %v4291
        %v4293 = vand.u32 %v4292, 4294901760
        %4294 = vmatmul.f32.gmra.mxu0 %v4293
        %v4295 = vpop.f32.mrf.mxu0
        %v4296 = vadd.f32 %v3723, %v4295
        %v4297 = vand.u32 %v3861, 4294901760
        %v4298 = vsub.f32 %v3861, %v4297
        %v4299 = vand.u32 %v4298, 4294901760
        %v4300 = vsub.f32 %v4298, %v4299
        %v4301 = vand.u32 %v4300, 4294901760
        %4302 = vmatmul.f32.gmra.mxu0 %v4301
        %v4303 = vpop.f32.mrf.mxu0
        %v4304 = vadd.f32 %v3723, %v4303
        %v4305 = vand.u32 %v3864, 4294901760
        %v4306 = vsub.f32 %v3864, %v4305
        %v4307 = vand.u32 %v4306, 4294901760
        %v4308 = vsub.f32 %v4306, %v4307
        %v4309 = vand.u32 %v4308, 4294901760
        %4310 = vmatmul.f32.gmra.mxu0 %v4309
        %v4311 = vpop.f32.mrf.mxu0
        %v4312 = vadd.f32 %v3723, %v4311
        %v4313 = vand.u32 %v3867, 4294901760
        %v4314 = vsub.f32 %v3867, %v4313
        %v4315 = vand.u32 %v4314, 4294901760
        %v4316 = vsub.f32 %v4314, %v4315
        %v4317 = vand.u32 %v4316, 4294901760
        %4318 = vmatmul.f32.gmra.mxu0 %v4317
        %v4319 = vpop.f32.mrf.mxu0
        %v4320 = vadd.f32 %v3723, %v4319
        %v4321 = vand.u32 %v3870, 4294901760
        %v4322 = vsub.f32 %v3870, %v4321
        %v4323 = vand.u32 %v4322, 4294901760
        %v4324 = vsub.f32 %v4322, %v4323
        %v4325 = vand.u32 %v4324, 4294901760
        %4326 = vmatmul.f32.gmra.mxu0 %v4325
        %v4327 = vpop.f32.mrf.mxu0
        %v4328 = vadd.f32 %v3723, %v4327
        %v4329 = vand.u32 %v3873, 4294901760
        %v4330 = vsub.f32 %v3873, %v4329
        %v4331 = vand.u32 %v4330, 4294901760
        %v4332 = vsub.f32 %v4330, %v4331
        %v4333 = vand.u32 %v4332, 4294901760
        %4334 = vmatmul.f32.gmra.mxu0 %v4333
        %v4335 = vpop.f32.mrf.mxu0
        %v4336 = vadd.f32 %v3723, %v4335
        %v4337 = vand.u32 %v3876, 4294901760
        %v4338 = vsub.f32 %v3876, %v4337
        %v4339 = vand.u32 %v4338, 4294901760
        %v4340 = vsub.f32 %v4338, %v4339
        %v4341 = vand.u32 %v4340, 4294901760
        %4342 = vmatmul.f32.gmra.mxu0 %v4341
        %v4343 = vpop.f32.mrf.mxu0
        %v4344 = vadd.f32 %v3723, %v4343
        %v4345 = vand.u32 %v3879, 4294901760
        %v4346 = vsub.f32 %v3879, %v4345
        %v4347 = vand.u32 %v4346, 4294901760
        %v4348 = vsub.f32 %v4346, %v4347
        %v4349 = vand.u32 %v4348, 4294901760
        %4350 = vmatmul.f32.gmra.mxu0 %v4349
        %v4351 = vpop.f32.mrf.mxu0
        %v4352 = vadd.f32 %v3723, %v4351
        %v4353 = vand.u32 %v3882, 4294901760
        %v4354 = vsub.f32 %v3882, %v4353
        %v4355 = vand.u32 %v4354, 4294901760
        %v4356 = vsub.f32 %v4354, %v4355
        %v4357 = vand.u32 %v4356, 4294901760
        %4358 = vmatmul.f32.gmra.mxu0 %v4357
        %v4359 = vpop.f32.mrf.mxu0
        %v4360 = vadd.f32 %v3723, %v4359
        %v4361 = vand.u32 %v3885, 4294901760
        %v4362 = vsub.f32 %v3885, %v4361
        %v4363 = vand.u32 %v4362, 4294901760
        %v4364 = vsub.f32 %v4362, %v4363
        %v4365 = vand.u32 %v4364, 4294901760
        %4366 = vmatmul.f32.gmra.mxu0 %v4365
        %v4367 = vpop.f32.mrf.mxu0
        %v4368 = vadd.f32 %v3723, %v4367
        %v4369 = vand.u32 %v3888, 4294901760
        %v4370 = vsub.f32 %v3888, %v4369
        %v4371 = vand.u32 %v4370, 4294901760
        %v4372 = vsub.f32 %v4370, %v4371
        %v4373 = vand.u32 %v4372, 4294901760
        %4374 = vmatmul.f32.gmra.mxu0 %v4373
        %v4375 = vpop.f32.mrf.mxu0
        %v4376 = vadd.f32 %v3723, %v4375
        %v4377 = vand.u32 %v3891, 4294901760
        %v4378 = vsub.f32 %v3891, %v4377
        %v4379 = vand.u32 %v4378, 4294901760
        %v4380 = vsub.f32 %v4378, %v4379
        %v4381 = vand.u32 %v4380, 4294901760
        %4382 = vmatmul.f32.gmra.mxu0 %v4381
        %v4383 = vpop.f32.mrf.mxu0
        %v4384 = vadd.f32 %v3723, %v4383
        %v4385 = vand.u32 %v3894, 4294901760
        %v4386 = vsub.f32 %v3894, %v4385
        %v4387 = vand.u32 %v4386, 4294901760
        %v4388 = vsub.f32 %v4386, %v4387
        %v4389 = vand.u32 %v4388, 4294901760
        %4390 = vmatmul.f32.gmra.mxu0 %v4389
        %v4391 = vpop.f32.mrf.mxu0
        %v4392 = vadd.f32 %v3723, %v4391
        %v4393 = vand.u32 %v3897, 4294901760
        %v4394 = vsub.f32 %v3897, %v4393
        %v4395 = vand.u32 %v4394, 4294901760
        %v4396 = vsub.f32 %v4394, %v4395
        %v4397 = vand.u32 %v4396, 4294901760
        %4398 = vmatmul.f32.gmra.mxu0 %v4397
        %v4399 = vpop.f32.mrf.mxu0
        %v4400 = vadd.f32 %v3723, %v4399
        %v4401 = vand.u32 %v3900, 4294901760
        %v4402 = vsub.f32 %v3900, %v4401
        %v4403 = vand.u32 %v4402, 4294901760
        %v4404 = vsub.f32 %v4402, %v4403
        %v4405 = vand.u32 %v4404, 4294901760
        %4406 = vmatmul.f32.gmra.mxu0 %v4405
        %v4407 = vpop.f32.mrf.mxu0
        %v4408 = vadd.f32 %v3723, %v4407
        %v4409 = vand.u32 %v3903, 4294901760
        %v4410 = vsub.f32 %v3903, %v4409
        %v4411 = vand.u32 %v4410, 4294901760
        %v4412 = vsub.f32 %v4410, %v4411
        %v4413 = vand.u32 %v4412, 4294901760
        %4414 = vmatmul.f32.gmra.mxu0 %v4413
        %v4415 = vpop.f32.mrf.mxu0
        %v4416 = vadd.f32 %v3723, %v4415
        %v4417 = vand.u32 %v3906, 4294901760
        %v4418 = vsub.f32 %v3906, %v4417
        %v4419 = vand.u32 %v4418, 4294901760
        %v4420 = vsub.f32 %v4418, %v4419
        %v4421 = vand.u32 %v4420, 4294901760
        %4422 = vmatmul.f32.gmra.mxu0 %v4421
        %v4423 = vpop.f32.mrf.mxu0
        %v4424 = vadd.f32 %v3723, %v4423
        %v4425 = vand.u32 %v3909, 4294901760
        %v4426 = vsub.f32 %v3909, %v4425
        %v4427 = vand.u32 %v4426, 4294901760
        %v4428 = vsub.f32 %v4426, %v4427
        %v4429 = vand.u32 %v4428, 4294901760
        %4430 = vmatmul.f32.gmra.mxu0 %v4429
        %v4431 = vpop.f32.mrf.mxu0
        %v4432 = vadd.f32 %v3723, %v4431
        %v4433 = vand.u32 %v3912, 4294901760
        %v4434 = vsub.f32 %v3912, %v4433
        %v4435 = vand.u32 %v4434, 4294901760
        %v4436 = vsub.f32 %v4434, %v4435
        %v4437 = vand.u32 %v4436, 4294901760
        %4438 = vmatmul.f32.gmra.mxu0 %v4437
        %v4439 = vpop.f32.mrf.mxu0
        %v4440 = vadd.f32 %v3723, %v4439
        %v4441 = vand.u32 %v3915, 4294901760
        %v4442 = vsub.f32 %v3915, %v4441
        %v4443 = vand.u32 %v4442, 4294901760
        %v4444 = vsub.f32 %v4442, %v4443
        %v4445 = vand.u32 %v4444, 4294901760
        %4446 = vmatmul.f32.gmra.mxu0 %v4445
        %v4447 = vpop.f32.mrf.mxu0
        %v4448 = vadd.f32 %v3723, %v4447
        %4449 = vdwg.mxu0
        %4450 = vmatpush.msra.mxu0 0.0
        %4451 = vmatpush.msra.mxu0 0.0
        %4452 = vmatpush.msra.mxu0 0.0
        %4453 = vmatpush.msra.mxu0 0.0
        %4454 = vmatpush.msra.mxu0 0.0
        %4455 = vmatpush.msra.mxu0 0.0
        %4456 = vmatpush.msra.mxu0 0.0
        %4457 = vmatpush.msra.mxu0 0.0
        %4458 = vmatpush.msra.mxu0 0.0
        %4459 = vmatpush.msra.mxu0 0.0
        %4460 = vmatpush.msra.mxu0 0.0
        %4461 = vmatpush.msra.mxu0 0.0
        %v4462 = vand.u32 %v3719, 4294901760
        %v4463 = vsub.f32 %v3719, %v4462
        %v4464 = vand.u32 %v4463, 4294901760
        %v4465 = vsub.f32 %v4463, %v4464
        %v4466 = vand.u32 %v4465, 4294901760
        %4467 = vmatpush.msra.mxu0 %v4466
        %v4468 = vand.u32 %v3718, 4294901760
        %v4469 = vsub.f32 %v3718, %v4468
        %v4470 = vand.u32 %v4469, 4294901760
        %v4471 = vsub.f32 %v4469, %v4470
        %v4472 = vand.u32 %v4471, 4294901760
        %4473 = vmatpush.msra.mxu0 %v4472
        %v4474 = vand.u32 %v3717, 4294901760
        %v4475 = vsub.f32 %v3717, %v4474
        %v4476 = vand.u32 %v4475, 4294901760
        %v4477 = vsub.f32 %v4475, %v4476
        %v4478 = vand.u32 %v4477, 4294901760
        %4479 = vmatpush.msra.mxu0 %v4478
        %v4480 = vand.u32 %v3716, 4294901760
        %v4481 = vsub.f32 %v3716, %v4480
        %v4482 = vand.u32 %v4481, 4294901760
        %v4483 = vsub.f32 %v4481, %v4482
        %v4484 = vand.u32 %v4483, 4294901760
        %4485 = vmatpush.msra.mxu0 %v4484
        %v4486 = vand.u32 %v3726, 4294901760
        %4487 = vmatmul.f32.gmra.mxu0 %v4486
        %v4488 = vpop.f32.mrf.mxu0
        %v4489 = vadd.f32 %v3944, %v4488
        %v4490 = vand.u32 %v3729, 4294901760
        %4491 = vmatmul.f32.gmra.mxu0 %v4490
        %v4492 = vpop.f32.mrf.mxu0
        %v4493 = vadd.f32 %v3952, %v4492
        %v4494 = vand.u32 %v3732, 4294901760
        %4495 = vmatmul.f32.gmra.mxu0 %v4494
        %v4496 = vpop.f32.mrf.mxu0
        %v4497 = vadd.f32 %v3960, %v4496
        %v4498 = vand.u32 %v3735, 4294901760
        %4499 = vmatmul.f32.gmra.mxu0 %v4498
        %v4500 = vpop.f32.mrf.mxu0
        %v4501 = vadd.f32 %v3968, %v4500
        %v4502 = vand.u32 %v3738, 4294901760
        %4503 = vmatmul.f32.gmra.mxu0 %v4502
        %v4504 = vpop.f32.mrf.mxu0
        %v4505 = vadd.f32 %v3976, %v4504
        %v4506 = vand.u32 %v3741, 4294901760
        %4507 = vmatmul.f32.gmra.mxu0 %v4506
        %v4508 = vpop.f32.mrf.mxu0
        %v4509 = vadd.f32 %v3984, %v4508
        %v4510 = vand.u32 %v3744, 4294901760
        %4511 = vmatmul.f32.gmra.mxu0 %v4510
        %v4512 = vpop.f32.mrf.mxu0
        %v4513 = vadd.f32 %v3992, %v4512
        %v4514 = vand.u32 %v3747, 4294901760
        %4515 = vmatmul.f32.gmra.mxu0 %v4514
        %v4516 = vpop.f32.mrf.mxu0
        %v4517 = vadd.f32 %v4000, %v4516
        %v4518 = vand.u32 %v3750, 4294901760
        %4519 = vmatmul.f32.gmra.mxu0 %v4518
        %v4520 = vpop.f32.mrf.mxu0
        %v4521 = vadd.f32 %v4008, %v4520
        %v4522 = vand.u32 %v3753, 4294901760
        %4523 = vmatmul.f32.gmra.mxu0 %v4522
        %v4524 = vpop.f32.mrf.mxu0
        %v4525 = vadd.f32 %v4016, %v4524
        %v4526 = vand.u32 %v3756, 4294901760
        %4527 = vmatmul.f32.gmra.mxu0 %v4526
        %v4528 = vpop.f32.mrf.mxu0
        %v4529 = vadd.f32 %v4024, %v4528
        %v4530 = vand.u32 %v3759, 4294901760
        %4531 = vmatmul.f32.gmra.mxu0 %v4530
        %v4532 = vpop.f32.mrf.mxu0
        %v4533 = vadd.f32 %v4032, %v4532
        %v4534 = vand.u32 %v3762, 4294901760
        %4535 = vmatmul.f32.gmra.mxu0 %v4534
        %v4536 = vpop.f32.mrf.mxu0
        %v4537 = vadd.f32 %v4040, %v4536
        %v4538 = vand.u32 %v3765, 4294901760
        %4539 = vmatmul.f32.gmra.mxu0 %v4538
        %v4540 = vpop.f32.mrf.mxu0
        %v4541 = vadd.f32 %v4048, %v4540
        %v4542 = vand.u32 %v3768, 4294901760
        %4543 = vmatmul.f32.gmra.mxu0 %v4542
        %v4544 = vpop.f32.mrf.mxu0
        %v4545 = vadd.f32 %v4056, %v4544
        %v4546 = vand.u32 %v3771, 4294901760
        %4547 = vmatmul.f32.gmra.mxu0 %v4546
        %v4548 = vpop.f32.mrf.mxu0
        %v4549 = vadd.f32 %v4064, %v4548
        %v4550 = vand.u32 %v3774, 4294901760
        %4551 = vmatmul.f32.gmra.mxu0 %v4550
        %v4552 = vpop.f32.mrf.mxu0
        %v4553 = vadd.f32 %v4072, %v4552
        %v4554 = vand.u32 %v3777, 4294901760
        %4555 = vmatmul.f32.gmra.mxu0 %v4554
        %v4556 = vpop.f32.mrf.mxu0
        %v4557 = vadd.f32 %v4080, %v4556
        %v4558 = vand.u32 %v3780, 4294901760
        %4559 = vmatmul.f32.gmra.mxu0 %v4558
        %v4560 = vpop.f32.mrf.mxu0
        %v4561 = vadd.f32 %v4088, %v4560
        %v4562 = vand.u32 %v3783, 4294901760
        %4563 = vmatmul.f32.gmra.mxu0 %v4562
        %v4564 = vpop.f32.mrf.mxu0
        %v4565 = vadd.f32 %v4096, %v4564
        %v4566 = vand.u32 %v3786, 4294901760
        %4567 = vmatmul.f32.gmra.mxu0 %v4566
        %v4568 = vpop.f32.mrf.mxu0
        %v4569 = vadd.f32 %v4104, %v4568
        %v4570 = vand.u32 %v3789, 4294901760
        %4571 = vmatmul.f32.gmra.mxu0 %v4570
        %v4572 = vpop.f32.mrf.mxu0
        %v4573 = vadd.f32 %v4112, %v4572
        %v4574 = vand.u32 %v3792, 4294901760
        %4575 = vmatmul.f32.gmra.mxu0 %v4574
        %v4576 = vpop.f32.mrf.mxu0
        %v4577 = vadd.f32 %v4120, %v4576
        %v4578 = vand.u32 %v3795, 4294901760
        %4579 = vmatmul.f32.gmra.mxu0 %v4578
        %v4580 = vpop.f32.mrf.mxu0
        %v4581 = vadd.f32 %v4128, %v4580
        %v4582 = vand.u32 %v3798, 4294901760
        %4583 = vmatmul.f32.gmra.mxu0 %v4582
        %v4584 = vpop.f32.mrf.mxu0
        %v4585 = vadd.f32 %v4136, %v4584
        %v4586 = vand.u32 %v3801, 4294901760
        %4587 = vmatmul.f32.gmra.mxu0 %v4586
        %v4588 = vpop.f32.mrf.mxu0
        %v4589 = vadd.f32 %v4144, %v4588
        %v4590 = vand.u32 %v3804, 4294901760
        %4591 = vmatmul.f32.gmra.mxu0 %v4590
        %v4592 = vpop.f32.mrf.mxu0
        %v4593 = vadd.f32 %v4152, %v4592
        %v4594 = vand.u32 %v3807, 4294901760
        %4595 = vmatmul.f32.gmra.mxu0 %v4594
        %v4596 = vpop.f32.mrf.mxu0
        %v4597 = vadd.f32 %v4160, %v4596
        %v4598 = vand.u32 %v3810, 4294901760
        %4599 = vmatmul.f32.gmra.mxu0 %v4598
        %v4600 = vpop.f32.mrf.mxu0
        %v4601 = vadd.f32 %v4168, %v4600
        %v4602 = vand.u32 %v3813, 4294901760
        %4603 = vmatmul.f32.gmra.mxu0 %v4602
        %v4604 = vpop.f32.mrf.mxu0
        %v4605 = vadd.f32 %v4176, %v4604
        %v4606 = vand.u32 %v3816, 4294901760
        %4607 = vmatmul.f32.gmra.mxu0 %v4606
        %v4608 = vpop.f32.mrf.mxu0
        %v4609 = vadd.f32 %v4184, %v4608
        %v4610 = vand.u32 %v3819, 4294901760
        %4611 = vmatmul.f32.gmra.mxu0 %v4610
        %v4612 = vpop.f32.mrf.mxu0
        %v4613 = vadd.f32 %v4192, %v4612
        %v4614 = vand.u32 %v3822, 4294901760
        %4615 = vmatmul.f32.gmra.mxu0 %v4614
        %v4616 = vpop.f32.mrf.mxu0
        %v4617 = vadd.f32 %v4200, %v4616
        %v4618 = vand.u32 %v3825, 4294901760
        %4619 = vmatmul.f32.gmra.mxu0 %v4618
        %v4620 = vpop.f32.mrf.mxu0
        %v4621 = vadd.f32 %v4208, %v4620
        %v4622 = vand.u32 %v3828, 4294901760
        %4623 = vmatmul.f32.gmra.mxu0 %v4622
        %v4624 = vpop.f32.mrf.mxu0
        %v4625 = vadd.f32 %v4216, %v4624
        %v4626 = vand.u32 %v3831, 4294901760
        %4627 = vmatmul.f32.gmra.mxu0 %v4626
        %v4628 = vpop.f32.mrf.mxu0
        %v4629 = vadd.f32 %v4224, %v4628
        %v4630 = vand.u32 %v3834, 4294901760
        %4631 = vmatmul.f32.gmra.mxu0 %v4630
        %v4632 = vpop.f32.mrf.mxu0
        %v4633 = vadd.f32 %v4232, %v4632
        %v4634 = vand.u32 %v3837, 4294901760
        %4635 = vmatmul.f32.gmra.mxu0 %v4634
        %v4636 = vpop.f32.mrf.mxu0
        %v4637 = vadd.f32 %v4240, %v4636
        %v4638 = vand.u32 %v3840, 4294901760
        %4639 = vmatmul.f32.gmra.mxu0 %v4638
        %v4640 = vpop.f32.mrf.mxu0
        %v4641 = vadd.f32 %v4248, %v4640
        %v4642 = vand.u32 %v3843, 4294901760
        %4643 = vmatmul.f32.gmra.mxu0 %v4642
        %v4644 = vpop.f32.mrf.mxu0
        %v4645 = vadd.f32 %v4256, %v4644
        %v4646 = vand.u32 %v3846, 4294901760
        %4647 = vmatmul.f32.gmra.mxu0 %v4646
        %v4648 = vpop.f32.mrf.mxu0
        %v4649 = vadd.f32 %v4264, %v4648
        %v4650 = vand.u32 %v3849, 4294901760
        %4651 = vmatmul.f32.gmra.mxu0 %v4650
        %v4652 = vpop.f32.mrf.mxu0
        %v4653 = vadd.f32 %v4272, %v4652
        %v4654 = vand.u32 %v3852, 4294901760
        %4655 = vmatmul.f32.gmra.mxu0 %v4654
        %v4656 = vpop.f32.mrf.mxu0
        %v4657 = vadd.f32 %v4280, %v4656
        %v4658 = vand.u32 %v3855, 4294901760
        %4659 = vmatmul.f32.gmra.mxu0 %v4658
        %v4660 = vpop.f32.mrf.mxu0
        %v4661 = vadd.f32 %v4288, %v4660
        %v4662 = vand.u32 %v3858, 4294901760
        %4663 = vmatmul.f32.gmra.mxu0 %v4662
        %v4664 = vpop.f32.mrf.mxu0
        %v4665 = vadd.f32 %v4296, %v4664
        %v4666 = vand.u32 %v3861, 4294901760
        %4667 = vmatmul.f32.gmra.mxu0 %v4666
        %v4668 = vpop.f32.mrf.mxu0
        %v4669 = vadd.f32 %v4304, %v4668
        %v4670 = vand.u32 %v3864, 4294901760
        %4671 = vmatmul.f32.gmra.mxu0 %v4670
        %v4672 = vpop.f32.mrf.mxu0
        %v4673 = vadd.f32 %v4312, %v4672
        %v4674 = vand.u32 %v3867, 4294901760
        %4675 = vmatmul.f32.gmra.mxu0 %v4674
        %v4676 = vpop.f32.mrf.mxu0
        %v4677 = vadd.f32 %v4320, %v4676
        %v4678 = vand.u32 %v3870, 4294901760
        %4679 = vmatmul.f32.gmra.mxu0 %v4678
        %v4680 = vpop.f32.mrf.mxu0
        %v4681 = vadd.f32 %v4328, %v4680
        %v4682 = vand.u32 %v3873, 4294901760
        %4683 = vmatmul.f32.gmra.mxu0 %v4682
        %v4684 = vpop.f32.mrf.mxu0
        %v4685 = vadd.f32 %v4336, %v4684
        %v4686 = vand.u32 %v3876, 4294901760
        %4687 = vmatmul.f32.gmra.mxu0 %v4686
        %v4688 = vpop.f32.mrf.mxu0
        %v4689 = vadd.f32 %v4344, %v4688
        %v4690 = vand.u32 %v3879, 4294901760
        %4691 = vmatmul.f32.gmra.mxu0 %v4690
        %v4692 = vpop.f32.mrf.mxu0
        %v4693 = vadd.f32 %v4352, %v4692
        %v4694 = vand.u32 %v3882, 4294901760
        %4695 = vmatmul.f32.gmra.mxu0 %v4694
        %v4696 = vpop.f32.mrf.mxu0
        %v4697 = vadd.f32 %v4360, %v4696
        %v4698 = vand.u32 %v3885, 4294901760
        %4699 = vmatmul.f32.gmra.mxu0 %v4698
        %v4700 = vpop.f32.mrf.mxu0
        %v4701 = vadd.f32 %v4368, %v4700
        %v4702 = vand.u32 %v3888, 4294901760
        %4703 = vmatmul.f32.gmra.mxu0 %v4702
        %v4704 = vpop.f32.mrf.mxu0
        %v4705 = vadd.f32 %v4376, %v4704
        %v4706 = vand.u32 %v3891, 4294901760
        %4707 = vmatmul.f32.gmra.mxu0 %v4706
        %v4708 = vpop.f32.mrf.mxu0
        %v4709 = vadd.f32 %v4384, %v4708
        %v4710 = vand.u32 %v3894, 4294901760
        %4711 = vmatmul.f32.gmra.mxu0 %v4710
        %v4712 = vpop.f32.mrf.mxu0
        %v4713 = vadd.f32 %v4392, %v4712
        %v4714 = vand.u32 %v3897, 4294901760
        %4715 = vmatmul.f32.gmra.mxu0 %v4714
        %v4716 = vpop.f32.mrf.mxu0
        %v4717 = vadd.f32 %v4400, %v4716
        %v4718 = vand.u32 %v3900, 4294901760
        %4719 = vmatmul.f32.gmra.mxu0 %v4718
        %v4720 = vpop.f32.mrf.mxu0
        %v4721 = vadd.f32 %v4408, %v4720
        %v4722 = vand.u32 %v3903, 4294901760
        %4723 = vmatmul.f32.gmra.mxu0 %v4722
        %v4724 = vpop.f32.mrf.mxu0
        %v4725 = vadd.f32 %v4416, %v4724
        %v4726 = vand.u32 %v3906, 4294901760
        %4727 = vmatmul.f32.gmra.mxu0 %v4726
        %v4728 = vpop.f32.mrf.mxu0
        %v4729 = vadd.f32 %v4424, %v4728
        %v4730 = vand.u32 %v3909, 4294901760
        %4731 = vmatmul.f32.gmra.mxu0 %v4730
        %v4732 = vpop.f32.mrf.mxu0
        %v4733 = vadd.f32 %v4432, %v4732
        %v4734 = vand.u32 %v3912, 4294901760
        %4735 = vmatmul.f32.gmra.mxu0 %v4734
        %v4736 = vpop.f32.mrf.mxu0
        %v4737 = vadd.f32 %v4440, %v4736
        %v4738 = vand.u32 %v3915, 4294901760
        %4739 = vmatmul.f32.gmra.mxu0 %v4738
        %v4740 = vpop.f32.mrf.mxu0
        %v4741 = vadd.f32 %v4448, %v4740
        %4742 = vdwg.mxu0
        %4743 = vmatpush.msra.mxu0 0.0
        %4744 = vmatpush.msra.mxu0 0.0
        %4745 = vmatpush.msra.mxu0 0.0
        %4746 = vmatpush.msra.mxu0 0.0
        %4747 = vmatpush.msra.mxu0 0.0
        %4748 = vmatpush.msra.mxu0 0.0
        %4749 = vmatpush.msra.mxu0 0.0
        %4750 = vmatpush.msra.mxu0 0.0
        %4751 = vmatpush.msra.mxu0 0.0
        %4752 = vmatpush.msra.mxu0 0.0
        %4753 = vmatpush.msra.mxu0 0.0
        %4754 = vmatpush.msra.mxu0 0.0
        %v4755 = vand.u32 %v3719, 4294901760
        %v4756 = vsub.f32 %v3719, %v4755
        %4757 = vmatpush.msra.mxu0 %v4756
        %v4758 = vand.u32 %v3718, 4294901760
        %v4759 = vsub.f32 %v3718, %v4758
        %4760 = vmatpush.msra.mxu0 %v4759
        %v4761 = vand.u32 %v3717, 4294901760
        %v4762 = vsub.f32 %v3717, %v4761
        %4763 = vmatpush.msra.mxu0 %v4762
        %v4764 = vand.u32 %v3716, 4294901760
        %v4765 = vsub.f32 %v3716, %v4764
        %4766 = vmatpush.msra.mxu0 %v4765
        %v4767 = vand.u32 %v3726, 4294901760
        %v4768 = vsub.f32 %v3726, %v4767
        %4769 = vmatmul.f32.gmra.mxu0 %v4768
        %v4770 = vpop.f32.mrf.mxu0
        %v4771 = vadd.f32 %v4489, %v4770
        %v4772 = vand.u32 %v3729, 4294901760
        %v4773 = vsub.f32 %v3729, %v4772
        %4774 = vmatmul.f32.gmra.mxu0 %v4773
        %v4775 = vpop.f32.mrf.mxu0
        %v4776 = vadd.f32 %v4493, %v4775
        %v4777 = vand.u32 %v3732, 4294901760
        %v4778 = vsub.f32 %v3732, %v4777
        %4779 = vmatmul.f32.gmra.mxu0 %v4778
        %v4780 = vpop.f32.mrf.mxu0
        %v4781 = vadd.f32 %v4497, %v4780
        %v4782 = vand.u32 %v3735, 4294901760
        %v4783 = vsub.f32 %v3735, %v4782
        %4784 = vmatmul.f32.gmra.mxu0 %v4783
        %v4785 = vpop.f32.mrf.mxu0
        %v4786 = vadd.f32 %v4501, %v4785
        %v4787 = vand.u32 %v3738, 4294901760
        %v4788 = vsub.f32 %v3738, %v4787
        %4789 = vmatmul.f32.gmra.mxu0 %v4788
        %v4790 = vpop.f32.mrf.mxu0
        %v4791 = vadd.f32 %v4505, %v4790
        %v4792 = vand.u32 %v3741, 4294901760
        %v4793 = vsub.f32 %v3741, %v4792
        %4794 = vmatmul.f32.gmra.mxu0 %v4793
        %v4795 = vpop.f32.mrf.mxu0
        %v4796 = vadd.f32 %v4509, %v4795
        %v4797 = vand.u32 %v3744, 4294901760
        %v4798 = vsub.f32 %v3744, %v4797
        %4799 = vmatmul.f32.gmra.mxu0 %v4798
        %v4800 = vpop.f32.mrf.mxu0
        %v4801 = vadd.f32 %v4513, %v4800
        %v4802 = vand.u32 %v3747, 4294901760
        %v4803 = vsub.f32 %v3747, %v4802
        %4804 = vmatmul.f32.gmra.mxu0 %v4803
        %v4805 = vpop.f32.mrf.mxu0
        %v4806 = vadd.f32 %v4517, %v4805
        %v4807 = vand.u32 %v3750, 4294901760
        %v4808 = vsub.f32 %v3750, %v4807
        %4809 = vmatmul.f32.gmra.mxu0 %v4808
        %v4810 = vpop.f32.mrf.mxu0
        %v4811 = vadd.f32 %v4521, %v4810
        %v4812 = vand.u32 %v3753, 4294901760
        %v4813 = vsub.f32 %v3753, %v4812
        %4814 = vmatmul.f32.gmra.mxu0 %v4813
        %v4815 = vpop.f32.mrf.mxu0
        %v4816 = vadd.f32 %v4525, %v4815
        %v4817 = vand.u32 %v3756, 4294901760
        %v4818 = vsub.f32 %v3756, %v4817
        %4819 = vmatmul.f32.gmra.mxu0 %v4818
        %v4820 = vpop.f32.mrf.mxu0
        %v4821 = vadd.f32 %v4529, %v4820
        %v4822 = vand.u32 %v3759, 4294901760
        %v4823 = vsub.f32 %v3759, %v4822
        %4824 = vmatmul.f32.gmra.mxu0 %v4823
        %v4825 = vpop.f32.mrf.mxu0
        %v4826 = vadd.f32 %v4533, %v4825
        %v4827 = vand.u32 %v3762, 4294901760
        %v4828 = vsub.f32 %v3762, %v4827
        %4829 = vmatmul.f32.gmra.mxu0 %v4828
        %v4830 = vpop.f32.mrf.mxu0
        %v4831 = vadd.f32 %v4537, %v4830
        %v4832 = vand.u32 %v3765, 4294901760
        %v4833 = vsub.f32 %v3765, %v4832
        %4834 = vmatmul.f32.gmra.mxu0 %v4833
        %v4835 = vpop.f32.mrf.mxu0
        %v4836 = vadd.f32 %v4541, %v4835
        %v4837 = vand.u32 %v3768, 4294901760
        %v4838 = vsub.f32 %v3768, %v4837
        %4839 = vmatmul.f32.gmra.mxu0 %v4838
        %v4840 = vpop.f32.mrf.mxu0
        %v4841 = vadd.f32 %v4545, %v4840
        %v4842 = vand.u32 %v3771, 4294901760
        %v4843 = vsub.f32 %v3771, %v4842
        %4844 = vmatmul.f32.gmra.mxu0 %v4843
        %v4845 = vpop.f32.mrf.mxu0
        %v4846 = vadd.f32 %v4549, %v4845
        %v4847 = vand.u32 %v3774, 4294901760
        %v4848 = vsub.f32 %v3774, %v4847
        %4849 = vmatmul.f32.gmra.mxu0 %v4848
        %v4850 = vpop.f32.mrf.mxu0
        %v4851 = vadd.f32 %v4553, %v4850
        %v4852 = vand.u32 %v3777, 4294901760
        %v4853 = vsub.f32 %v3777, %v4852
        %4854 = vmatmul.f32.gmra.mxu0 %v4853
        %v4855 = vpop.f32.mrf.mxu0
        %v4856 = vadd.f32 %v4557, %v4855
        %v4857 = vand.u32 %v3780, 4294901760
        %v4858 = vsub.f32 %v3780, %v4857
        %4859 = vmatmul.f32.gmra.mxu0 %v4858
        %v4860 = vpop.f32.mrf.mxu0
        %v4861 = vadd.f32 %v4561, %v4860
        %v4862 = vand.u32 %v3783, 4294901760
        %v4863 = vsub.f32 %v3783, %v4862
        %4864 = vmatmul.f32.gmra.mxu0 %v4863
        %v4865 = vpop.f32.mrf.mxu0
        %v4866 = vadd.f32 %v4565, %v4865
        %v4867 = vand.u32 %v3786, 4294901760
        %v4868 = vsub.f32 %v3786, %v4867
        %4869 = vmatmul.f32.gmra.mxu0 %v4868
        %v4870 = vpop.f32.mrf.mxu0
        %v4871 = vadd.f32 %v4569, %v4870
        %v4872 = vand.u32 %v3789, 4294901760
        %v4873 = vsub.f32 %v3789, %v4872
        %4874 = vmatmul.f32.gmra.mxu0 %v4873
        %v4875 = vpop.f32.mrf.mxu0
        %v4876 = vadd.f32 %v4573, %v4875
        %v4877 = vand.u32 %v3792, 4294901760
        %v4878 = vsub.f32 %v3792, %v4877
        %4879 = vmatmul.f32.gmra.mxu0 %v4878
        %v4880 = vpop.f32.mrf.mxu0
        %v4881 = vadd.f32 %v4577, %v4880
        %v4882 = vand.u32 %v3795, 4294901760
        %v4883 = vsub.f32 %v3795, %v4882
        %4884 = vmatmul.f32.gmra.mxu0 %v4883
        %v4885 = vpop.f32.mrf.mxu0
        %v4886 = vadd.f32 %v4581, %v4885
        %v4887 = vand.u32 %v3798, 4294901760
        %v4888 = vsub.f32 %v3798, %v4887
        %4889 = vmatmul.f32.gmra.mxu0 %v4888
        %v4890 = vpop.f32.mrf.mxu0
        %v4891 = vadd.f32 %v4585, %v4890
        %v4892 = vand.u32 %v3801, 4294901760
        %v4893 = vsub.f32 %v3801, %v4892
        %4894 = vmatmul.f32.gmra.mxu0 %v4893
        %v4895 = vpop.f32.mrf.mxu0
        %v4896 = vadd.f32 %v4589, %v4895
        %v4897 = vand.u32 %v3804, 4294901760
        %v4898 = vsub.f32 %v3804, %v4897
        %4899 = vmatmul.f32.gmra.mxu0 %v4898
        %v4900 = vpop.f32.mrf.mxu0
        %v4901 = vadd.f32 %v4593, %v4900
        %v4902 = vand.u32 %v3807, 4294901760
        %v4903 = vsub.f32 %v3807, %v4902
        %4904 = vmatmul.f32.gmra.mxu0 %v4903
        %v4905 = vpop.f32.mrf.mxu0
        %v4906 = vadd.f32 %v4597, %v4905
        %v4907 = vand.u32 %v3810, 4294901760
        %v4908 = vsub.f32 %v3810, %v4907
        %4909 = vmatmul.f32.gmra.mxu0 %v4908
        %v4910 = vpop.f32.mrf.mxu0
        %v4911 = vadd.f32 %v4601, %v4910
        %v4912 = vand.u32 %v3813, 4294901760
        %v4913 = vsub.f32 %v3813, %v4912
        %4914 = vmatmul.f32.gmra.mxu0 %v4913
        %v4915 = vpop.f32.mrf.mxu0
        %v4916 = vadd.f32 %v4605, %v4915
        %v4917 = vand.u32 %v3816, 4294901760
        %v4918 = vsub.f32 %v3816, %v4917
        %4919 = vmatmul.f32.gmra.mxu0 %v4918
        %v4920 = vpop.f32.mrf.mxu0
        %v4921 = vadd.f32 %v4609, %v4920
        %v4922 = vand.u32 %v3819, 4294901760
        %v4923 = vsub.f32 %v3819, %v4922
        %4924 = vmatmul.f32.gmra.mxu0 %v4923
        %v4925 = vpop.f32.mrf.mxu0
        %v4926 = vadd.f32 %v4613, %v4925
        %v4927 = vand.u32 %v3822, 4294901760
        %v4928 = vsub.f32 %v3822, %v4927
        %4929 = vmatmul.f32.gmra.mxu0 %v4928
        %v4930 = vpop.f32.mrf.mxu0
        %v4931 = vadd.f32 %v4617, %v4930
        %v4932 = vand.u32 %v3825, 4294901760
        %v4933 = vsub.f32 %v3825, %v4932
        %4934 = vmatmul.f32.gmra.mxu0 %v4933
        %v4935 = vpop.f32.mrf.mxu0
        %v4936 = vadd.f32 %v4621, %v4935
        %v4937 = vand.u32 %v3828, 4294901760
        %v4938 = vsub.f32 %v3828, %v4937
        %4939 = vmatmul.f32.gmra.mxu0 %v4938
        %v4940 = vpop.f32.mrf.mxu0
        %v4941 = vadd.f32 %v4625, %v4940
        %v4942 = vand.u32 %v3831, 4294901760
        %v4943 = vsub.f32 %v3831, %v4942
        %4944 = vmatmul.f32.gmra.mxu0 %v4943
        %v4945 = vpop.f32.mrf.mxu0
        %v4946 = vadd.f32 %v4629, %v4945
        %v4947 = vand.u32 %v3834, 4294901760
        %v4948 = vsub.f32 %v3834, %v4947
        %4949 = vmatmul.f32.gmra.mxu0 %v4948
        %v4950 = vpop.f32.mrf.mxu0
        %v4951 = vadd.f32 %v4633, %v4950
        %v4952 = vand.u32 %v3837, 4294901760
        %v4953 = vsub.f32 %v3837, %v4952
        %4954 = vmatmul.f32.gmra.mxu0 %v4953
        %v4955 = vpop.f32.mrf.mxu0
        %v4956 = vadd.f32 %v4637, %v4955
        %v4957 = vand.u32 %v3840, 4294901760
        %v4958 = vsub.f32 %v3840, %v4957
        %4959 = vmatmul.f32.gmra.mxu0 %v4958
        %v4960 = vpop.f32.mrf.mxu0
        %v4961 = vadd.f32 %v4641, %v4960
        %v4962 = vand.u32 %v3843, 4294901760
        %v4963 = vsub.f32 %v3843, %v4962
        %4964 = vmatmul.f32.gmra.mxu0 %v4963
        %v4965 = vpop.f32.mrf.mxu0
        %v4966 = vadd.f32 %v4645, %v4965
        %v4967 = vand.u32 %v3846, 4294901760
        %v4968 = vsub.f32 %v3846, %v4967
        %4969 = vmatmul.f32.gmra.mxu0 %v4968
        %v4970 = vpop.f32.mrf.mxu0
        %v4971 = vadd.f32 %v4649, %v4970
        %v4972 = vand.u32 %v3849, 4294901760
        %v4973 = vsub.f32 %v3849, %v4972
        %4974 = vmatmul.f32.gmra.mxu0 %v4973
        %v4975 = vpop.f32.mrf.mxu0
        %v4976 = vadd.f32 %v4653, %v4975
        %v4977 = vand.u32 %v3852, 4294901760
        %v4978 = vsub.f32 %v3852, %v4977
        %4979 = vmatmul.f32.gmra.mxu0 %v4978
        %v4980 = vpop.f32.mrf.mxu0
        %v4981 = vadd.f32 %v4657, %v4980
        %v4982 = vand.u32 %v3855, 4294901760
        %v4983 = vsub.f32 %v3855, %v4982
        %4984 = vmatmul.f32.gmra.mxu0 %v4983
        %v4985 = vpop.f32.mrf.mxu0
        %v4986 = vadd.f32 %v4661, %v4985
        %v4987 = vand.u32 %v3858, 4294901760
        %v4988 = vsub.f32 %v3858, %v4987
        %4989 = vmatmul.f32.gmra.mxu0 %v4988
        %v4990 = vpop.f32.mrf.mxu0
        %v4991 = vadd.f32 %v4665, %v4990
        %v4992 = vand.u32 %v3861, 4294901760
        %v4993 = vsub.f32 %v3861, %v4992
        %4994 = vmatmul.f32.gmra.mxu0 %v4993
        %v4995 = vpop.f32.mrf.mxu0
        %v4996 = vadd.f32 %v4669, %v4995
        %v4997 = vand.u32 %v3864, 4294901760
        %v4998 = vsub.f32 %v3864, %v4997
        %4999 = vmatmul.f32.gmra.mxu0 %v4998
        %v5000 = vpop.f32.mrf.mxu0
        %v5001 = vadd.f32 %v4673, %v5000
        %v5002 = vand.u32 %v3867, 4294901760
        %v5003 = vsub.f32 %v3867, %v5002
        %5004 = vmatmul.f32.gmra.mxu0 %v5003
        %v5005 = vpop.f32.mrf.mxu0
        %v5006 = vadd.f32 %v4677, %v5005
        %v5007 = vand.u32 %v3870, 4294901760
        %v5008 = vsub.f32 %v3870, %v5007
        %5009 = vmatmul.f32.gmra.mxu0 %v5008
        %v5010 = vpop.f32.mrf.mxu0
        %v5011 = vadd.f32 %v4681, %v5010
        %v5012 = vand.u32 %v3873, 4294901760
        %v5013 = vsub.f32 %v3873, %v5012
        %5014 = vmatmul.f32.gmra.mxu0 %v5013
        %v5015 = vpop.f32.mrf.mxu0
        %v5016 = vadd.f32 %v4685, %v5015
        %v5017 = vand.u32 %v3876, 4294901760
        %v5018 = vsub.f32 %v3876, %v5017
        %5019 = vmatmul.f32.gmra.mxu0 %v5018
        %v5020 = vpop.f32.mrf.mxu0
        %v5021 = vadd.f32 %v4689, %v5020
        %v5022 = vand.u32 %v3879, 4294901760
        %v5023 = vsub.f32 %v3879, %v5022
        %5024 = vmatmul.f32.gmra.mxu0 %v5023
        %v5025 = vpop.f32.mrf.mxu0
        %v5026 = vadd.f32 %v4693, %v5025
        %v5027 = vand.u32 %v3882, 4294901760
        %v5028 = vsub.f32 %v3882, %v5027
        %5029 = vmatmul.f32.gmra.mxu0 %v5028
        %v5030 = vpop.f32.mrf.mxu0
        %v5031 = vadd.f32 %v4697, %v5030
        %v5032 = vand.u32 %v3885, 4294901760
        %v5033 = vsub.f32 %v3885, %v5032
        %5034 = vmatmul.f32.gmra.mxu0 %v5033
        %v5035 = vpop.f32.mrf.mxu0
        %v5036 = vadd.f32 %v4701, %v5035
        %v5037 = vand.u32 %v3888, 4294901760
        %v5038 = vsub.f32 %v3888, %v5037
        %5039 = vmatmul.f32.gmra.mxu0 %v5038
        %v5040 = vpop.f32.mrf.mxu0
        %v5041 = vadd.f32 %v4705, %v5040
        %v5042 = vand.u32 %v3891, 4294901760
        %v5043 = vsub.f32 %v3891, %v5042
        %5044 = vmatmul.f32.gmra.mxu0 %v5043
        %v5045 = vpop.f32.mrf.mxu0
        %v5046 = vadd.f32 %v4709, %v5045
        %v5047 = vand.u32 %v3894, 4294901760
        %v5048 = vsub.f32 %v3894, %v5047
        %5049 = vmatmul.f32.gmra.mxu0 %v5048
        %v5050 = vpop.f32.mrf.mxu0
        %v5051 = vadd.f32 %v4713, %v5050
        %v5052 = vand.u32 %v3897, 4294901760
        %v5053 = vsub.f32 %v3897, %v5052
        %5054 = vmatmul.f32.gmra.mxu0 %v5053
        %v5055 = vpop.f32.mrf.mxu0
        %v5056 = vadd.f32 %v4717, %v5055
        %v5057 = vand.u32 %v3900, 4294901760
        %v5058 = vsub.f32 %v3900, %v5057
        %5059 = vmatmul.f32.gmra.mxu0 %v5058
        %v5060 = vpop.f32.mrf.mxu0
        %v5061 = vadd.f32 %v4721, %v5060
        %v5062 = vand.u32 %v3903, 4294901760
        %v5063 = vsub.f32 %v3903, %v5062
        %5064 = vmatmul.f32.gmra.mxu0 %v5063
        %v5065 = vpop.f32.mrf.mxu0
        %v5066 = vadd.f32 %v4725, %v5065
        %v5067 = vand.u32 %v3906, 4294901760
        %v5068 = vsub.f32 %v3906, %v5067
        %5069 = vmatmul.f32.gmra.mxu0 %v5068
        %v5070 = vpop.f32.mrf.mxu0
        %v5071 = vadd.f32 %v4729, %v5070
        %v5072 = vand.u32 %v3909, 4294901760
        %v5073 = vsub.f32 %v3909, %v5072
        %5074 = vmatmul.f32.gmra.mxu0 %v5073
        %v5075 = vpop.f32.mrf.mxu0
        %v5076 = vadd.f32 %v4733, %v5075
        %v5077 = vand.u32 %v3912, 4294901760
        %v5078 = vsub.f32 %v3912, %v5077
        %5079 = vmatmul.f32.gmra.mxu0 %v5078
        %v5080 = vpop.f32.mrf.mxu0
        %v5081 = vadd.f32 %v4737, %v5080
        %v5082 = vand.u32 %v3915, 4294901760
        %v5083 = vsub.f32 %v3915, %v5082
        %5084 = vmatmul.f32.gmra.mxu0 %v5083
        %v5085 = vpop.f32.mrf.mxu0
        %v5086 = vadd.f32 %v4741, %v5085
        %5087 = vdwg.mxu0
        %5088 = vmatpush.msra.mxu0 0.0
        %5089 = vmatpush.msra.mxu0 0.0
        %5090 = vmatpush.msra.mxu0 0.0
        %5091 = vmatpush.msra.mxu0 0.0
        %5092 = vmatpush.msra.mxu0 0.0
        %5093 = vmatpush.msra.mxu0 0.0
        %5094 = vmatpush.msra.mxu0 0.0
        %5095 = vmatpush.msra.mxu0 0.0
        %5096 = vmatpush.msra.mxu0 0.0
        %5097 = vmatpush.msra.mxu0 0.0
        %5098 = vmatpush.msra.mxu0 0.0
        %5099 = vmatpush.msra.mxu0 0.0
        %v5100 = vand.u32 %v3719, 4294901760
        %5101 = vmatpush.msra.mxu0 %v5100
        %v5102 = vand.u32 %v3718, 4294901760
        %5103 = vmatpush.msra.mxu0 %v5102
        %v5104 = vand.u32 %v3717, 4294901760
        %5105 = vmatpush.msra.mxu0 %v5104
        %v5106 = vand.u32 %v3716, 4294901760
        %5107 = vmatpush.msra.mxu0 %v5106
        %v5108 = vand.u32 %v3726, 4294901760
        %v5109 = vsub.f32 %v3726, %v5108
        %v5110 = vand.u32 %v5109, 4294901760
        %5111 = vmatmul.f32.gmra.mxu0 %v5110
        %v5112 = vpop.f32.mrf.mxu0
        %v5113 = vadd.f32 %v4771, %v5112
        %v5114 = vand.u32 %v3729, 4294901760
        %v5115 = vsub.f32 %v3729, %v5114
        %v5116 = vand.u32 %v5115, 4294901760
        %5117 = vmatmul.f32.gmra.mxu0 %v5116
        %v5118 = vpop.f32.mrf.mxu0
        %v5119 = vadd.f32 %v4776, %v5118
        %v5120 = vand.u32 %v3732, 4294901760
        %v5121 = vsub.f32 %v3732, %v5120
        %v5122 = vand.u32 %v5121, 4294901760
        %5123 = vmatmul.f32.gmra.mxu0 %v5122
        %v5124 = vpop.f32.mrf.mxu0
        %v5125 = vadd.f32 %v4781, %v5124
        %v5126 = vand.u32 %v3735, 4294901760
        %v5127 = vsub.f32 %v3735, %v5126
        %v5128 = vand.u32 %v5127, 4294901760
        %5129 = vmatmul.f32.gmra.mxu0 %v5128
        %v5130 = vpop.f32.mrf.mxu0
        %v5131 = vadd.f32 %v4786, %v5130
        %v5132 = vand.u32 %v3738, 4294901760
        %v5133 = vsub.f32 %v3738, %v5132
        %v5134 = vand.u32 %v5133, 4294901760
        %5135 = vmatmul.f32.gmra.mxu0 %v5134
        %v5136 = vpop.f32.mrf.mxu0
        %v5137 = vadd.f32 %v4791, %v5136
        %v5138 = vand.u32 %v3741, 4294901760
        %v5139 = vsub.f32 %v3741, %v5138
        %v5140 = vand.u32 %v5139, 4294901760
        %5141 = vmatmul.f32.gmra.mxu0 %v5140
        %v5142 = vpop.f32.mrf.mxu0
        %v5143 = vadd.f32 %v4796, %v5142
        %v5144 = vand.u32 %v3744, 4294901760
        %v5145 = vsub.f32 %v3744, %v5144
        %v5146 = vand.u32 %v5145, 4294901760
        %5147 = vmatmul.f32.gmra.mxu0 %v5146
        %v5148 = vpop.f32.mrf.mxu0
        %v5149 = vadd.f32 %v4801, %v5148
        %v5150 = vand.u32 %v3747, 4294901760
        %v5151 = vsub.f32 %v3747, %v5150
        %v5152 = vand.u32 %v5151, 4294901760
        %5153 = vmatmul.f32.gmra.mxu0 %v5152
        %v5154 = vpop.f32.mrf.mxu0
        %v5155 = vadd.f32 %v4806, %v5154
        %v5156 = vand.u32 %v3750, 4294901760
        %v5157 = vsub.f32 %v3750, %v5156
        %v5158 = vand.u32 %v5157, 4294901760
        %5159 = vmatmul.f32.gmra.mxu0 %v5158
        %v5160 = vpop.f32.mrf.mxu0
        %v5161 = vadd.f32 %v4811, %v5160
        %v5162 = vand.u32 %v3753, 4294901760
        %v5163 = vsub.f32 %v3753, %v5162
        %v5164 = vand.u32 %v5163, 4294901760
        %5165 = vmatmul.f32.gmra.mxu0 %v5164
        %v5166 = vpop.f32.mrf.mxu0
        %v5167 = vadd.f32 %v4816, %v5166
        %v5168 = vand.u32 %v3756, 4294901760
        %v5169 = vsub.f32 %v3756, %v5168
        %v5170 = vand.u32 %v5169, 4294901760
        %5171 = vmatmul.f32.gmra.mxu0 %v5170
        %v5172 = vpop.f32.mrf.mxu0
        %v5173 = vadd.f32 %v4821, %v5172
        %v5174 = vand.u32 %v3759, 4294901760
        %v5175 = vsub.f32 %v3759, %v5174
        %v5176 = vand.u32 %v5175, 4294901760
        %5177 = vmatmul.f32.gmra.mxu0 %v5176
        %v5178 = vpop.f32.mrf.mxu0
        %v5179 = vadd.f32 %v4826, %v5178
        %v5180 = vand.u32 %v3762, 4294901760
        %v5181 = vsub.f32 %v3762, %v5180
        %v5182 = vand.u32 %v5181, 4294901760
        %5183 = vmatmul.f32.gmra.mxu0 %v5182
        %v5184 = vpop.f32.mrf.mxu0
        %v5185 = vadd.f32 %v4831, %v5184
        %v5186 = vand.u32 %v3765, 4294901760
        %v5187 = vsub.f32 %v3765, %v5186
        %v5188 = vand.u32 %v5187, 4294901760
        %5189 = vmatmul.f32.gmra.mxu0 %v5188
        %v5190 = vpop.f32.mrf.mxu0
        %v5191 = vadd.f32 %v4836, %v5190
        %v5192 = vand.u32 %v3768, 4294901760
        %v5193 = vsub.f32 %v3768, %v5192
        %v5194 = vand.u32 %v5193, 4294901760
        %5195 = vmatmul.f32.gmra.mxu0 %v5194
        %v5196 = vpop.f32.mrf.mxu0
        %v5197 = vadd.f32 %v4841, %v5196
        %v5198 = vand.u32 %v3771, 4294901760
        %v5199 = vsub.f32 %v3771, %v5198
        %v5200 = vand.u32 %v5199, 4294901760
        %5201 = vmatmul.f32.gmra.mxu0 %v5200
        %v5202 = vpop.f32.mrf.mxu0
        %v5203 = vadd.f32 %v4846, %v5202
        %v5204 = vand.u32 %v3774, 4294901760
        %v5205 = vsub.f32 %v3774, %v5204
        %v5206 = vand.u32 %v5205, 4294901760
        %5207 = vmatmul.f32.gmra.mxu0 %v5206
        %v5208 = vpop.f32.mrf.mxu0
        %v5209 = vadd.f32 %v4851, %v5208
        %v5210 = vand.u32 %v3777, 4294901760
        %v5211 = vsub.f32 %v3777, %v5210
        %v5212 = vand.u32 %v5211, 4294901760
        %5213 = vmatmul.f32.gmra.mxu0 %v5212
        %v5214 = vpop.f32.mrf.mxu0
        %v5215 = vadd.f32 %v4856, %v5214
        %v5216 = vand.u32 %v3780, 4294901760
        %v5217 = vsub.f32 %v3780, %v5216
        %v5218 = vand.u32 %v5217, 4294901760
        %5219 = vmatmul.f32.gmra.mxu0 %v5218
        %v5220 = vpop.f32.mrf.mxu0
        %v5221 = vadd.f32 %v4861, %v5220
        %v5222 = vand.u32 %v3783, 4294901760
        %v5223 = vsub.f32 %v3783, %v5222
        %v5224 = vand.u32 %v5223, 4294901760
        %5225 = vmatmul.f32.gmra.mxu0 %v5224
        %v5226 = vpop.f32.mrf.mxu0
        %v5227 = vadd.f32 %v4866, %v5226
        %v5228 = vand.u32 %v3786, 4294901760
        %v5229 = vsub.f32 %v3786, %v5228
        %v5230 = vand.u32 %v5229, 4294901760
        %5231 = vmatmul.f32.gmra.mxu0 %v5230
        %v5232 = vpop.f32.mrf.mxu0
        %v5233 = vadd.f32 %v4871, %v5232
        %v5234 = vand.u32 %v3789, 4294901760
        %v5235 = vsub.f32 %v3789, %v5234
        %v5236 = vand.u32 %v5235, 4294901760
        %5237 = vmatmul.f32.gmra.mxu0 %v5236
        %v5238 = vpop.f32.mrf.mxu0
        %v5239 = vadd.f32 %v4876, %v5238
        %v5240 = vand.u32 %v3792, 4294901760
        %v5241 = vsub.f32 %v3792, %v5240
        %v5242 = vand.u32 %v5241, 4294901760
        %5243 = vmatmul.f32.gmra.mxu0 %v5242
        %v5244 = vpop.f32.mrf.mxu0
        %v5245 = vadd.f32 %v4881, %v5244
        %v5246 = vand.u32 %v3795, 4294901760
        %v5247 = vsub.f32 %v3795, %v5246
        %v5248 = vand.u32 %v5247, 4294901760
        %5249 = vmatmul.f32.gmra.mxu0 %v5248
        %v5250 = vpop.f32.mrf.mxu0
        %v5251 = vadd.f32 %v4886, %v5250
        %v5252 = vand.u32 %v3798, 4294901760
        %v5253 = vsub.f32 %v3798, %v5252
        %v5254 = vand.u32 %v5253, 4294901760
        %5255 = vmatmul.f32.gmra.mxu0 %v5254
        %v5256 = vpop.f32.mrf.mxu0
        %v5257 = vadd.f32 %v4891, %v5256
        %v5258 = vand.u32 %v3801, 4294901760
        %v5259 = vsub.f32 %v3801, %v5258
        %v5260 = vand.u32 %v5259, 4294901760
        %5261 = vmatmul.f32.gmra.mxu0 %v5260
        %v5262 = vpop.f32.mrf.mxu0
        %v5263 = vadd.f32 %v4896, %v5262
        %v5264 = vand.u32 %v3804, 4294901760
        %v5265 = vsub.f32 %v3804, %v5264
        %v5266 = vand.u32 %v5265, 4294901760
        %5267 = vmatmul.f32.gmra.mxu0 %v5266
        %v5268 = vpop.f32.mrf.mxu0
        %v5269 = vadd.f32 %v4901, %v5268
        %v5270 = vand.u32 %v3807, 4294901760
        %v5271 = vsub.f32 %v3807, %v5270
        %v5272 = vand.u32 %v5271, 4294901760
        %5273 = vmatmul.f32.gmra.mxu0 %v5272
        %v5274 = vpop.f32.mrf.mxu0
        %v5275 = vadd.f32 %v4906, %v5274
        %v5276 = vand.u32 %v3810, 4294901760
        %v5277 = vsub.f32 %v3810, %v5276
        %v5278 = vand.u32 %v5277, 4294901760
        %5279 = vmatmul.f32.gmra.mxu0 %v5278
        %v5280 = vpop.f32.mrf.mxu0
        %v5281 = vadd.f32 %v4911, %v5280
        %v5282 = vand.u32 %v3813, 4294901760
        %v5283 = vsub.f32 %v3813, %v5282
        %v5284 = vand.u32 %v5283, 4294901760
        %5285 = vmatmul.f32.gmra.mxu0 %v5284
        %v5286 = vpop.f32.mrf.mxu0
        %v5287 = vadd.f32 %v4916, %v5286
        %v5288 = vand.u32 %v3816, 4294901760
        %v5289 = vsub.f32 %v3816, %v5288
        %v5290 = vand.u32 %v5289, 4294901760
        %5291 = vmatmul.f32.gmra.mxu0 %v5290
        %v5292 = vpop.f32.mrf.mxu0
        %v5293 = vadd.f32 %v4921, %v5292
        %v5294 = vand.u32 %v3819, 4294901760
        %v5295 = vsub.f32 %v3819, %v5294
        %v5296 = vand.u32 %v5295, 4294901760
        %5297 = vmatmul.f32.gmra.mxu0 %v5296
        %v5298 = vpop.f32.mrf.mxu0
        %v5299 = vadd.f32 %v4926, %v5298
        %v5300 = vand.u32 %v3822, 4294901760
        %v5301 = vsub.f32 %v3822, %v5300
        %v5302 = vand.u32 %v5301, 4294901760
        %5303 = vmatmul.f32.gmra.mxu0 %v5302
        %v5304 = vpop.f32.mrf.mxu0
        %v5305 = vadd.f32 %v4931, %v5304
        %v5306 = vand.u32 %v3825, 4294901760
        %v5307 = vsub.f32 %v3825, %v5306
        %v5308 = vand.u32 %v5307, 4294901760
        %5309 = vmatmul.f32.gmra.mxu0 %v5308
        %v5310 = vpop.f32.mrf.mxu0
        %v5311 = vadd.f32 %v4936, %v5310
        %v5312 = vand.u32 %v3828, 4294901760
        %v5313 = vsub.f32 %v3828, %v5312
        %v5314 = vand.u32 %v5313, 4294901760
        %5315 = vmatmul.f32.gmra.mxu0 %v5314
        %v5316 = vpop.f32.mrf.mxu0
        %v5317 = vadd.f32 %v4941, %v5316
        %v5318 = vand.u32 %v3831, 4294901760
        %v5319 = vsub.f32 %v3831, %v5318
        %v5320 = vand.u32 %v5319, 4294901760
        %5321 = vmatmul.f32.gmra.mxu0 %v5320
        %v5322 = vpop.f32.mrf.mxu0
        %v5323 = vadd.f32 %v4946, %v5322
        %v5324 = vand.u32 %v3834, 4294901760
        %v5325 = vsub.f32 %v3834, %v5324
        %v5326 = vand.u32 %v5325, 4294901760
        %5327 = vmatmul.f32.gmra.mxu0 %v5326
        %v5328 = vpop.f32.mrf.mxu0
        %v5329 = vadd.f32 %v4951, %v5328
        %v5330 = vand.u32 %v3837, 4294901760
        %v5331 = vsub.f32 %v3837, %v5330
        %v5332 = vand.u32 %v5331, 4294901760
        %5333 = vmatmul.f32.gmra.mxu0 %v5332
        %v5334 = vpop.f32.mrf.mxu0
        %v5335 = vadd.f32 %v4956, %v5334
        %v5336 = vand.u32 %v3840, 4294901760
        %v5337 = vsub.f32 %v3840, %v5336
        %v5338 = vand.u32 %v5337, 4294901760
        %5339 = vmatmul.f32.gmra.mxu0 %v5338
        %v5340 = vpop.f32.mrf.mxu0
        %v5341 = vadd.f32 %v4961, %v5340
        %v5342 = vand.u32 %v3843, 4294901760
        %v5343 = vsub.f32 %v3843, %v5342
        %v5344 = vand.u32 %v5343, 4294901760
        %5345 = vmatmul.f32.gmra.mxu0 %v5344
        %v5346 = vpop.f32.mrf.mxu0
        %v5347 = vadd.f32 %v4966, %v5346
        %v5348 = vand.u32 %v3846, 4294901760
        %v5349 = vsub.f32 %v3846, %v5348
        %v5350 = vand.u32 %v5349, 4294901760
        %5351 = vmatmul.f32.gmra.mxu0 %v5350
        %v5352 = vpop.f32.mrf.mxu0
        %v5353 = vadd.f32 %v4971, %v5352
        %v5354 = vand.u32 %v3849, 4294901760
        %v5355 = vsub.f32 %v3849, %v5354
        %v5356 = vand.u32 %v5355, 4294901760
        %5357 = vmatmul.f32.gmra.mxu0 %v5356
        %v5358 = vpop.f32.mrf.mxu0
        %v5359 = vadd.f32 %v4976, %v5358
        %v5360 = vand.u32 %v3852, 4294901760
        %v5361 = vsub.f32 %v3852, %v5360
        %v5362 = vand.u32 %v5361, 4294901760
        %5363 = vmatmul.f32.gmra.mxu0 %v5362
        %v5364 = vpop.f32.mrf.mxu0
        %v5365 = vadd.f32 %v4981, %v5364
        %v5366 = vand.u32 %v3855, 4294901760
        %v5367 = vsub.f32 %v3855, %v5366
        %v5368 = vand.u32 %v5367, 4294901760
        %5369 = vmatmul.f32.gmra.mxu0 %v5368
        %v5370 = vpop.f32.mrf.mxu0
        %v5371 = vadd.f32 %v4986, %v5370
        %v5372 = vand.u32 %v3858, 4294901760
        %v5373 = vsub.f32 %v3858, %v5372
        %v5374 = vand.u32 %v5373, 4294901760
        %5375 = vmatmul.f32.gmra.mxu0 %v5374
        %v5376 = vpop.f32.mrf.mxu0
        %v5377 = vadd.f32 %v4991, %v5376
        %v5378 = vand.u32 %v3861, 4294901760
        %v5379 = vsub.f32 %v3861, %v5378
        %v5380 = vand.u32 %v5379, 4294901760
        %5381 = vmatmul.f32.gmra.mxu0 %v5380
        %v5382 = vpop.f32.mrf.mxu0
        %v5383 = vadd.f32 %v4996, %v5382
        %v5384 = vand.u32 %v3864, 4294901760
        %v5385 = vsub.f32 %v3864, %v5384
        %v5386 = vand.u32 %v5385, 4294901760
        %5387 = vmatmul.f32.gmra.mxu0 %v5386
        %v5388 = vpop.f32.mrf.mxu0
        %v5389 = vadd.f32 %v5001, %v5388
        %v5390 = vand.u32 %v3867, 4294901760
        %v5391 = vsub.f32 %v3867, %v5390
        %v5392 = vand.u32 %v5391, 4294901760
        %5393 = vmatmul.f32.gmra.mxu0 %v5392
        %v5394 = vpop.f32.mrf.mxu0
        %v5395 = vadd.f32 %v5006, %v5394
        %v5396 = vand.u32 %v3870, 4294901760
        %v5397 = vsub.f32 %v3870, %v5396
        %v5398 = vand.u32 %v5397, 4294901760
        %5399 = vmatmul.f32.gmra.mxu0 %v5398
        %v5400 = vpop.f32.mrf.mxu0
        %v5401 = vadd.f32 %v5011, %v5400
        %v5402 = vand.u32 %v3873, 4294901760
        %v5403 = vsub.f32 %v3873, %v5402
        %v5404 = vand.u32 %v5403, 4294901760
        %5405 = vmatmul.f32.gmra.mxu0 %v5404
        %v5406 = vpop.f32.mrf.mxu0
        %v5407 = vadd.f32 %v5016, %v5406
        %v5408 = vand.u32 %v3876, 4294901760
        %v5409 = vsub.f32 %v3876, %v5408
        %v5410 = vand.u32 %v5409, 4294901760
        %5411 = vmatmul.f32.gmra.mxu0 %v5410
        %v5412 = vpop.f32.mrf.mxu0
        %v5413 = vadd.f32 %v5021, %v5412
        %v5414 = vand.u32 %v3879, 4294901760
        %v5415 = vsub.f32 %v3879, %v5414
        %v5416 = vand.u32 %v5415, 4294901760
        %5417 = vmatmul.f32.gmra.mxu0 %v5416
        %v5418 = vpop.f32.mrf.mxu0
        %v5419 = vadd.f32 %v5026, %v5418
        %v5420 = vand.u32 %v3882, 4294901760
        %v5421 = vsub.f32 %v3882, %v5420
        %v5422 = vand.u32 %v5421, 4294901760
        %5423 = vmatmul.f32.gmra.mxu0 %v5422
        %v5424 = vpop.f32.mrf.mxu0
        %v5425 = vadd.f32 %v5031, %v5424
        %v5426 = vand.u32 %v3885, 4294901760
        %v5427 = vsub.f32 %v3885, %v5426
        %v5428 = vand.u32 %v5427, 4294901760
        %5429 = vmatmul.f32.gmra.mxu0 %v5428
        %v5430 = vpop.f32.mrf.mxu0
        %v5431 = vadd.f32 %v5036, %v5430
        %v5432 = vand.u32 %v3888, 4294901760
        %v5433 = vsub.f32 %v3888, %v5432
        %v5434 = vand.u32 %v5433, 4294901760
        %5435 = vmatmul.f32.gmra.mxu0 %v5434
        %v5436 = vpop.f32.mrf.mxu0
        %v5437 = vadd.f32 %v5041, %v5436
        %v5438 = vand.u32 %v3891, 4294901760
        %v5439 = vsub.f32 %v3891, %v5438
        %v5440 = vand.u32 %v5439, 4294901760
        %5441 = vmatmul.f32.gmra.mxu0 %v5440
        %v5442 = vpop.f32.mrf.mxu0
        %v5443 = vadd.f32 %v5046, %v5442
        %v5444 = vand.u32 %v3894, 4294901760
        %v5445 = vsub.f32 %v3894, %v5444
        %v5446 = vand.u32 %v5445, 4294901760
        %5447 = vmatmul.f32.gmra.mxu0 %v5446
        %v5448 = vpop.f32.mrf.mxu0
        %v5449 = vadd.f32 %v5051, %v5448
        %v5450 = vand.u32 %v3897, 4294901760
        %v5451 = vsub.f32 %v3897, %v5450
        %v5452 = vand.u32 %v5451, 4294901760
        %5453 = vmatmul.f32.gmra.mxu0 %v5452
        %v5454 = vpop.f32.mrf.mxu0
        %v5455 = vadd.f32 %v5056, %v5454
        %v5456 = vand.u32 %v3900, 4294901760
        %v5457 = vsub.f32 %v3900, %v5456
        %v5458 = vand.u32 %v5457, 4294901760
        %5459 = vmatmul.f32.gmra.mxu0 %v5458
        %v5460 = vpop.f32.mrf.mxu0
        %v5461 = vadd.f32 %v5061, %v5460
        %v5462 = vand.u32 %v3903, 4294901760
        %v5463 = vsub.f32 %v3903, %v5462
        %v5464 = vand.u32 %v5463, 4294901760
        %5465 = vmatmul.f32.gmra.mxu0 %v5464
        %v5466 = vpop.f32.mrf.mxu0
        %v5467 = vadd.f32 %v5066, %v5466
        %v5468 = vand.u32 %v3906, 4294901760
        %v5469 = vsub.f32 %v3906, %v5468
        %v5470 = vand.u32 %v5469, 4294901760
        %5471 = vmatmul.f32.gmra.mxu0 %v5470
        %v5472 = vpop.f32.mrf.mxu0
        %v5473 = vadd.f32 %v5071, %v5472
        %v5474 = vand.u32 %v3909, 4294901760
        %v5475 = vsub.f32 %v3909, %v5474
        %v5476 = vand.u32 %v5475, 4294901760
        %5477 = vmatmul.f32.gmra.mxu0 %v5476
        %v5478 = vpop.f32.mrf.mxu0
        %v5479 = vadd.f32 %v5076, %v5478
        %v5480 = vand.u32 %v3912, 4294901760
        %v5481 = vsub.f32 %v3912, %v5480
        %v5482 = vand.u32 %v5481, 4294901760
        %5483 = vmatmul.f32.gmra.mxu0 %v5482
        %v5484 = vpop.f32.mrf.mxu0
        %v5485 = vadd.f32 %v5081, %v5484
        %v5486 = vand.u32 %v3915, 4294901760
        %v5487 = vsub.f32 %v3915, %v5486
        %v5488 = vand.u32 %v5487, 4294901760
        %5489 = vmatmul.f32.gmra.mxu0 %v5488
        %v5490 = vpop.f32.mrf.mxu0
        %v5491 = vadd.f32 %v5086, %v5490
        %5492 = vdwg.mxu0
        %5493 = vmatpush.msra.mxu0 0.0
        %5494 = vmatpush.msra.mxu0 0.0
        %5495 = vmatpush.msra.mxu0 0.0
        %5496 = vmatpush.msra.mxu0 0.0
        %5497 = vmatpush.msra.mxu0 0.0
        %5498 = vmatpush.msra.mxu0 0.0
        %5499 = vmatpush.msra.mxu0 0.0
        %5500 = vmatpush.msra.mxu0 0.0
        %5501 = vmatpush.msra.mxu0 0.0
        %5502 = vmatpush.msra.mxu0 0.0
        %5503 = vmatpush.msra.mxu0 0.0
        %5504 = vmatpush.msra.mxu0 0.0
        %v5505 = vand.u32 %v3719, 4294901760
        %v5506 = vsub.f32 %v3719, %v5505
        %v5507 = vand.u32 %v5506, 4294901760
        %5508 = vmatpush.msra.mxu0 %v5507
        %v5509 = vand.u32 %v3718, 4294901760
        %v5510 = vsub.f32 %v3718, %v5509
        %v5511 = vand.u32 %v5510, 4294901760
        %5512 = vmatpush.msra.mxu0 %v5511
        %v5513 = vand.u32 %v3717, 4294901760
        %v5514 = vsub.f32 %v3717, %v5513
        %v5515 = vand.u32 %v5514, 4294901760
        %5516 = vmatpush.msra.mxu0 %v5515
        %v5517 = vand.u32 %v3716, 4294901760
        %v5518 = vsub.f32 %v3716, %v5517
        %v5519 = vand.u32 %v5518, 4294901760
        %5520 = vmatpush.msra.mxu0 %v5519
        %v5521 = vand.u32 %v3726, 4294901760
        %5522 = vmatmul.f32.gmra.mxu0 %v5521
        %v5523 = vpop.f32.mrf.mxu0
        %v5524 = vadd.f32 %v5113, %v5523
        %v5525 = vand.u32 %v3729, 4294901760
        %5526 = vmatmul.f32.gmra.mxu0 %v5525
        %v5527 = vpop.f32.mrf.mxu0
        %v5528 = vadd.f32 %v5119, %v5527
        %v5529 = vand.u32 %v3732, 4294901760
        %5530 = vmatmul.f32.gmra.mxu0 %v5529
        %v5531 = vpop.f32.mrf.mxu0
        %v5532 = vadd.f32 %v5125, %v5531
        %v5533 = vand.u32 %v3735, 4294901760
        %5534 = vmatmul.f32.gmra.mxu0 %v5533
        %v5535 = vpop.f32.mrf.mxu0
        %v5536 = vadd.f32 %v5131, %v5535
        %v5537 = vand.u32 %v3738, 4294901760
        %5538 = vmatmul.f32.gmra.mxu0 %v5537
        %v5539 = vpop.f32.mrf.mxu0
        %v5540 = vadd.f32 %v5137, %v5539
        %v5541 = vand.u32 %v3741, 4294901760
        %5542 = vmatmul.f32.gmra.mxu0 %v5541
        %v5543 = vpop.f32.mrf.mxu0
        %v5544 = vadd.f32 %v5143, %v5543
        %v5545 = vand.u32 %v3744, 4294901760
        %5546 = vmatmul.f32.gmra.mxu0 %v5545
        %v5547 = vpop.f32.mrf.mxu0
        %v5548 = vadd.f32 %v5149, %v5547
        %v5549 = vand.u32 %v3747, 4294901760
        %5550 = vmatmul.f32.gmra.mxu0 %v5549
        %v5551 = vpop.f32.mrf.mxu0
        %v5552 = vadd.f32 %v5155, %v5551
        %v5553 = vand.u32 %v3750, 4294901760
        %5554 = vmatmul.f32.gmra.mxu0 %v5553
        %v5555 = vpop.f32.mrf.mxu0
        %v5556 = vadd.f32 %v5161, %v5555
        %v5557 = vand.u32 %v3753, 4294901760
        %5558 = vmatmul.f32.gmra.mxu0 %v5557
        %v5559 = vpop.f32.mrf.mxu0
        %v5560 = vadd.f32 %v5167, %v5559
        %v5561 = vand.u32 %v3756, 4294901760
        %5562 = vmatmul.f32.gmra.mxu0 %v5561
        %v5563 = vpop.f32.mrf.mxu0
        %v5564 = vadd.f32 %v5173, %v5563
        %v5565 = vand.u32 %v3759, 4294901760
        %5566 = vmatmul.f32.gmra.mxu0 %v5565
        %v5567 = vpop.f32.mrf.mxu0
        %v5568 = vadd.f32 %v5179, %v5567
        %v5569 = vand.u32 %v3762, 4294901760
        %5570 = vmatmul.f32.gmra.mxu0 %v5569
        %v5571 = vpop.f32.mrf.mxu0
        %v5572 = vadd.f32 %v5185, %v5571
        %v5573 = vand.u32 %v3765, 4294901760
        %5574 = vmatmul.f32.gmra.mxu0 %v5573
        %v5575 = vpop.f32.mrf.mxu0
        %v5576 = vadd.f32 %v5191, %v5575
        %v5577 = vand.u32 %v3768, 4294901760
        %5578 = vmatmul.f32.gmra.mxu0 %v5577
        %v5579 = vpop.f32.mrf.mxu0
        %v5580 = vadd.f32 %v5197, %v5579
        %v5581 = vand.u32 %v3771, 4294901760
        %5582 = vmatmul.f32.gmra.mxu0 %v5581
        %v5583 = vpop.f32.mrf.mxu0
        %v5584 = vadd.f32 %v5203, %v5583
        %v5585 = vand.u32 %v3774, 4294901760
        %5586 = vmatmul.f32.gmra.mxu0 %v5585
        %v5587 = vpop.f32.mrf.mxu0
        %v5588 = vadd.f32 %v5209, %v5587
        %v5589 = vand.u32 %v3777, 4294901760
        %5590 = vmatmul.f32.gmra.mxu0 %v5589
        %v5591 = vpop.f32.mrf.mxu0
        %v5592 = vadd.f32 %v5215, %v5591
        %v5593 = vand.u32 %v3780, 4294901760
        %5594 = vmatmul.f32.gmra.mxu0 %v5593
        %v5595 = vpop.f32.mrf.mxu0
        %v5596 = vadd.f32 %v5221, %v5595
        %v5597 = vand.u32 %v3783, 4294901760
        %5598 = vmatmul.f32.gmra.mxu0 %v5597
        %v5599 = vpop.f32.mrf.mxu0
        %v5600 = vadd.f32 %v5227, %v5599
        %v5601 = vand.u32 %v3786, 4294901760
        %5602 = vmatmul.f32.gmra.mxu0 %v5601
        %v5603 = vpop.f32.mrf.mxu0
        %v5604 = vadd.f32 %v5233, %v5603
        %v5605 = vand.u32 %v3789, 4294901760
        %5606 = vmatmul.f32.gmra.mxu0 %v5605
        %v5607 = vpop.f32.mrf.mxu0
        %v5608 = vadd.f32 %v5239, %v5607
        %v5609 = vand.u32 %v3792, 4294901760
        %5610 = vmatmul.f32.gmra.mxu0 %v5609
        %v5611 = vpop.f32.mrf.mxu0
        %v5612 = vadd.f32 %v5245, %v5611
        %v5613 = vand.u32 %v3795, 4294901760
        %5614 = vmatmul.f32.gmra.mxu0 %v5613
        %v5615 = vpop.f32.mrf.mxu0
        %v5616 = vadd.f32 %v5251, %v5615
        %v5617 = vand.u32 %v3798, 4294901760
        %5618 = vmatmul.f32.gmra.mxu0 %v5617
        %v5619 = vpop.f32.mrf.mxu0
        %v5620 = vadd.f32 %v5257, %v5619
        %v5621 = vand.u32 %v3801, 4294901760
        %5622 = vmatmul.f32.gmra.mxu0 %v5621
        %v5623 = vpop.f32.mrf.mxu0
        %v5624 = vadd.f32 %v5263, %v5623
        %v5625 = vand.u32 %v3804, 4294901760
        %5626 = vmatmul.f32.gmra.mxu0 %v5625
        %v5627 = vpop.f32.mrf.mxu0
        %v5628 = vadd.f32 %v5269, %v5627
        %v5629 = vand.u32 %v3807, 4294901760
        %5630 = vmatmul.f32.gmra.mxu0 %v5629
        %v5631 = vpop.f32.mrf.mxu0
        %v5632 = vadd.f32 %v5275, %v5631
        %v5633 = vand.u32 %v3810, 4294901760
        %5634 = vmatmul.f32.gmra.mxu0 %v5633
        %v5635 = vpop.f32.mrf.mxu0
        %v5636 = vadd.f32 %v5281, %v5635
        %v5637 = vand.u32 %v3813, 4294901760
        %5638 = vmatmul.f32.gmra.mxu0 %v5637
        %v5639 = vpop.f32.mrf.mxu0
        %v5640 = vadd.f32 %v5287, %v5639
        %v5641 = vand.u32 %v3816, 4294901760
        %5642 = vmatmul.f32.gmra.mxu0 %v5641
        %v5643 = vpop.f32.mrf.mxu0
        %v5644 = vadd.f32 %v5293, %v5643
        %v5645 = vand.u32 %v3819, 4294901760
        %5646 = vmatmul.f32.gmra.mxu0 %v5645
        %v5647 = vpop.f32.mrf.mxu0
        %v5648 = vadd.f32 %v5299, %v5647
        %v5649 = vand.u32 %v3822, 4294901760
        %5650 = vmatmul.f32.gmra.mxu0 %v5649
        %v5651 = vpop.f32.mrf.mxu0
        %v5652 = vadd.f32 %v5305, %v5651
        %v5653 = vand.u32 %v3825, 4294901760
        %5654 = vmatmul.f32.gmra.mxu0 %v5653
        %v5655 = vpop.f32.mrf.mxu0
        %v5656 = vadd.f32 %v5311, %v5655
        %v5657 = vand.u32 %v3828, 4294901760
        %5658 = vmatmul.f32.gmra.mxu0 %v5657
        %v5659 = vpop.f32.mrf.mxu0
        %v5660 = vadd.f32 %v5317, %v5659
        %v5661 = vand.u32 %v3831, 4294901760
        %5662 = vmatmul.f32.gmra.mxu0 %v5661
        %v5663 = vpop.f32.mrf.mxu0
        %v5664 = vadd.f32 %v5323, %v5663
        %v5665 = vand.u32 %v3834, 4294901760
        %5666 = vmatmul.f32.gmra.mxu0 %v5665
        %v5667 = vpop.f32.mrf.mxu0
        %v5668 = vadd.f32 %v5329, %v5667
        %v5669 = vand.u32 %v3837, 4294901760
        %5670 = vmatmul.f32.gmra.mxu0 %v5669
        %v5671 = vpop.f32.mrf.mxu0
        %v5672 = vadd.f32 %v5335, %v5671
        %v5673 = vand.u32 %v3840, 4294901760
        %5674 = vmatmul.f32.gmra.mxu0 %v5673
        %v5675 = vpop.f32.mrf.mxu0
        %v5676 = vadd.f32 %v5341, %v5675
        %v5677 = vand.u32 %v3843, 4294901760
        %5678 = vmatmul.f32.gmra.mxu0 %v5677
        %v5679 = vpop.f32.mrf.mxu0
        %v5680 = vadd.f32 %v5347, %v5679
        %v5681 = vand.u32 %v3846, 4294901760
        %5682 = vmatmul.f32.gmra.mxu0 %v5681
        %v5683 = vpop.f32.mrf.mxu0
        %v5684 = vadd.f32 %v5353, %v5683
        %v5685 = vand.u32 %v3849, 4294901760
        %5686 = vmatmul.f32.gmra.mxu0 %v5685
        %v5687 = vpop.f32.mrf.mxu0
        %v5688 = vadd.f32 %v5359, %v5687
        %v5689 = vand.u32 %v3852, 4294901760
        %5690 = vmatmul.f32.gmra.mxu0 %v5689
        %v5691 = vpop.f32.mrf.mxu0
        %v5692 = vadd.f32 %v5365, %v5691
        %v5693 = vand.u32 %v3855, 4294901760
        %5694 = vmatmul.f32.gmra.mxu0 %v5693
        %v5695 = vpop.f32.mrf.mxu0
        %v5696 = vadd.f32 %v5371, %v5695
        %v5697 = vand.u32 %v3858, 4294901760
        %5698 = vmatmul.f32.gmra.mxu0 %v5697
        %v5699 = vpop.f32.mrf.mxu0
        %v5700 = vadd.f32 %v5377, %v5699
        %v5701 = vand.u32 %v3861, 4294901760
        %5702 = vmatmul.f32.gmra.mxu0 %v5701
        %v5703 = vpop.f32.mrf.mxu0
        %v5704 = vadd.f32 %v5383, %v5703
        %v5705 = vand.u32 %v3864, 4294901760
        %5706 = vmatmul.f32.gmra.mxu0 %v5705
        %v5707 = vpop.f32.mrf.mxu0
        %v5708 = vadd.f32 %v5389, %v5707
        %v5709 = vand.u32 %v3867, 4294901760
        %5710 = vmatmul.f32.gmra.mxu0 %v5709
        %v5711 = vpop.f32.mrf.mxu0
        %v5712 = vadd.f32 %v5395, %v5711
        %v5713 = vand.u32 %v3870, 4294901760
        %5714 = vmatmul.f32.gmra.mxu0 %v5713
        %v5715 = vpop.f32.mrf.mxu0
        %v5716 = vadd.f32 %v5401, %v5715
        %v5717 = vand.u32 %v3873, 4294901760
        %5718 = vmatmul.f32.gmra.mxu0 %v5717
        %v5719 = vpop.f32.mrf.mxu0
        %v5720 = vadd.f32 %v5407, %v5719
        %v5721 = vand.u32 %v3876, 4294901760
        %5722 = vmatmul.f32.gmra.mxu0 %v5721
        %v5723 = vpop.f32.mrf.mxu0
        %v5724 = vadd.f32 %v5413, %v5723
        %v5725 = vand.u32 %v3879, 4294901760
        %5726 = vmatmul.f32.gmra.mxu0 %v5725
        %v5727 = vpop.f32.mrf.mxu0
        %v5728 = vadd.f32 %v5419, %v5727
        %v5729 = vand.u32 %v3882, 4294901760
        %5730 = vmatmul.f32.gmra.mxu0 %v5729
        %v5731 = vpop.f32.mrf.mxu0
        %v5732 = vadd.f32 %v5425, %v5731
        %v5733 = vand.u32 %v3885, 4294901760
        %5734 = vmatmul.f32.gmra.mxu0 %v5733
        %v5735 = vpop.f32.mrf.mxu0
        %v5736 = vadd.f32 %v5431, %v5735
        %v5737 = vand.u32 %v3888, 4294901760
        %5738 = vmatmul.f32.gmra.mxu0 %v5737
        %v5739 = vpop.f32.mrf.mxu0
        %v5740 = vadd.f32 %v5437, %v5739
        %v5741 = vand.u32 %v3891, 4294901760
        %5742 = vmatmul.f32.gmra.mxu0 %v5741
        %v5743 = vpop.f32.mrf.mxu0
        %v5744 = vadd.f32 %v5443, %v5743
        %v5745 = vand.u32 %v3894, 4294901760
        %5746 = vmatmul.f32.gmra.mxu0 %v5745
        %v5747 = vpop.f32.mrf.mxu0
        %v5748 = vadd.f32 %v5449, %v5747
        %v5749 = vand.u32 %v3897, 4294901760
        %5750 = vmatmul.f32.gmra.mxu0 %v5749
        %v5751 = vpop.f32.mrf.mxu0
        %v5752 = vadd.f32 %v5455, %v5751
        %v5753 = vand.u32 %v3900, 4294901760
        %5754 = vmatmul.f32.gmra.mxu0 %v5753
        %v5755 = vpop.f32.mrf.mxu0
        %v5756 = vadd.f32 %v5461, %v5755
        %v5757 = vand.u32 %v3903, 4294901760
        %5758 = vmatmul.f32.gmra.mxu0 %v5757
        %v5759 = vpop.f32.mrf.mxu0
        %v5760 = vadd.f32 %v5467, %v5759
        %v5761 = vand.u32 %v3906, 4294901760
        %5762 = vmatmul.f32.gmra.mxu0 %v5761
        %v5763 = vpop.f32.mrf.mxu0
        %v5764 = vadd.f32 %v5473, %v5763
        %v5765 = vand.u32 %v3909, 4294901760
        %5766 = vmatmul.f32.gmra.mxu0 %v5765
        %v5767 = vpop.f32.mrf.mxu0
        %v5768 = vadd.f32 %v5479, %v5767
        %v5769 = vand.u32 %v3912, 4294901760
        %5770 = vmatmul.f32.gmra.mxu0 %v5769
        %v5771 = vpop.f32.mrf.mxu0
        %v5772 = vadd.f32 %v5485, %v5771
        %v5773 = vand.u32 %v3915, 4294901760
        %5774 = vmatmul.f32.gmra.mxu0 %v5773
        %v5775 = vpop.f32.mrf.mxu0
        %v5776 = vadd.f32 %v5491, %v5775
        %5777 = vdwg.mxu0
        %5778 = vmatpush.msra.mxu0 0.0
        %5779 = vmatpush.msra.mxu0 0.0
        %5780 = vmatpush.msra.mxu0 0.0
        %5781 = vmatpush.msra.mxu0 0.0
        %5782 = vmatpush.msra.mxu0 0.0
        %5783 = vmatpush.msra.mxu0 0.0
        %5784 = vmatpush.msra.mxu0 0.0
        %5785 = vmatpush.msra.mxu0 0.0
        %5786 = vmatpush.msra.mxu0 0.0
        %5787 = vmatpush.msra.mxu0 0.0
        %5788 = vmatpush.msra.mxu0 0.0
        %5789 = vmatpush.msra.mxu0 0.0
        %v5790 = vand.u32 %v3719, 4294901760
        %5791 = vmatpush.msra.mxu0 %v5790
        %v5792 = vand.u32 %v3718, 4294901760
        %5793 = vmatpush.msra.mxu0 %v5792
        %v5794 = vand.u32 %v3717, 4294901760
        %5795 = vmatpush.msra.mxu0 %v5794
        %v5796 = vand.u32 %v3716, 4294901760
        %5797 = vmatpush.msra.mxu0 %v5796
        %v5798 = vand.u32 %v3726, 4294901760
        %5799 = vmatmul.f32.gmra.mxu0 %v5798
        %v5800 = vpop.f32.mrf.mxu0
        %v5801 = vadd.f32 %v5524, %v5800
        %v5802 = vand.u32 %v3729, 4294901760
        %5803 = vmatmul.f32.gmra.mxu0 %v5802
        %v5804 = vpop.f32.mrf.mxu0
        %v5805 = vadd.f32 %v5528, %v5804
        %v5806 = vand.u32 %v3732, 4294901760
        %5807 = vmatmul.f32.gmra.mxu0 %v5806
        %v5808 = vpop.f32.mrf.mxu0
        %v5809 = vadd.f32 %v5532, %v5808
        %v5810 = vand.u32 %v3735, 4294901760
        %5811 = vmatmul.f32.gmra.mxu0 %v5810
        %v5812 = vpop.f32.mrf.mxu0
        %v5813 = vadd.f32 %v5536, %v5812
        %v5814 = vand.u32 %v3738, 4294901760
        %5815 = vmatmul.f32.gmra.mxu0 %v5814
        %v5816 = vpop.f32.mrf.mxu0
        %v5817 = vadd.f32 %v5540, %v5816
        %v5818 = vand.u32 %v3741, 4294901760
        %5819 = vmatmul.f32.gmra.mxu0 %v5818
        %v5820 = vpop.f32.mrf.mxu0
        %v5821 = vadd.f32 %v5544, %v5820
        %v5822 = vand.u32 %v3744, 4294901760
        %5823 = vmatmul.f32.gmra.mxu0 %v5822
        %v5824 = vpop.f32.mrf.mxu0
        %v5825 = vadd.f32 %v5548, %v5824
        %v5826 = vand.u32 %v3747, 4294901760
        %5827 = vmatmul.f32.gmra.mxu0 %v5826
        %v5828 = vpop.f32.mrf.mxu0
        %v5829 = vadd.f32 %v5552, %v5828
        %v5830 = vand.u32 %v3750, 4294901760
        %5831 = vmatmul.f32.gmra.mxu0 %v5830
        %v5832 = vpop.f32.mrf.mxu0
        %v5833 = vadd.f32 %v5556, %v5832
        %v5834 = vand.u32 %v3753, 4294901760
        %5835 = vmatmul.f32.gmra.mxu0 %v5834
        %v5836 = vpop.f32.mrf.mxu0
        %v5837 = vadd.f32 %v5560, %v5836
        %v5838 = vand.u32 %v3756, 4294901760
        %5839 = vmatmul.f32.gmra.mxu0 %v5838
        %v5840 = vpop.f32.mrf.mxu0
        %v5841 = vadd.f32 %v5564, %v5840
        %v5842 = vand.u32 %v3759, 4294901760
        %5843 = vmatmul.f32.gmra.mxu0 %v5842
        %v5844 = vpop.f32.mrf.mxu0
        %v5845 = vadd.f32 %v5568, %v5844
        %v5846 = vand.u32 %v3762, 4294901760
        %5847 = vmatmul.f32.gmra.mxu0 %v5846
        %v5848 = vpop.f32.mrf.mxu0
        %v5849 = vadd.f32 %v5572, %v5848
        %v5850 = vand.u32 %v3765, 4294901760
        %5851 = vmatmul.f32.gmra.mxu0 %v5850
        %v5852 = vpop.f32.mrf.mxu0
        %v5853 = vadd.f32 %v5576, %v5852
        %v5854 = vand.u32 %v3768, 4294901760
        %5855 = vmatmul.f32.gmra.mxu0 %v5854
        %v5856 = vpop.f32.mrf.mxu0
        %v5857 = vadd.f32 %v5580, %v5856
        %v5858 = vand.u32 %v3771, 4294901760
        %5859 = vmatmul.f32.gmra.mxu0 %v5858
        %v5860 = vpop.f32.mrf.mxu0
        %v5861 = vadd.f32 %v5584, %v5860
        %v5862 = vand.u32 %v3774, 4294901760
        %5863 = vmatmul.f32.gmra.mxu0 %v5862
        %v5864 = vpop.f32.mrf.mxu0
        %v5865 = vadd.f32 %v5588, %v5864
        %v5866 = vand.u32 %v3777, 4294901760
        %5867 = vmatmul.f32.gmra.mxu0 %v5866
        %v5868 = vpop.f32.mrf.mxu0
        %v5869 = vadd.f32 %v5592, %v5868
        %v5870 = vand.u32 %v3780, 4294901760
        %5871 = vmatmul.f32.gmra.mxu0 %v5870
        %v5872 = vpop.f32.mrf.mxu0
        %v5873 = vadd.f32 %v5596, %v5872
        %v5874 = vand.u32 %v3783, 4294901760
        %5875 = vmatmul.f32.gmra.mxu0 %v5874
        %v5876 = vpop.f32.mrf.mxu0
        %v5877 = vadd.f32 %v5600, %v5876
        %v5878 = vand.u32 %v3786, 4294901760
        %5879 = vmatmul.f32.gmra.mxu0 %v5878
        %v5880 = vpop.f32.mrf.mxu0
        %v5881 = vadd.f32 %v5604, %v5880
        %v5882 = vand.u32 %v3789, 4294901760
        %5883 = vmatmul.f32.gmra.mxu0 %v5882
        %v5884 = vpop.f32.mrf.mxu0
        %v5885 = vadd.f32 %v5608, %v5884
        %v5886 = vand.u32 %v3792, 4294901760
        %5887 = vmatmul.f32.gmra.mxu0 %v5886
        %v5888 = vpop.f32.mrf.mxu0
        %v5889 = vadd.f32 %v5612, %v5888
        %v5890 = vand.u32 %v3795, 4294901760
        %5891 = vmatmul.f32.gmra.mxu0 %v5890
        %v5892 = vpop.f32.mrf.mxu0
        %v5893 = vadd.f32 %v5616, %v5892
        %v5894 = vand.u32 %v3798, 4294901760
        %5895 = vmatmul.f32.gmra.mxu0 %v5894
        %v5896 = vpop.f32.mrf.mxu0
        %v5897 = vadd.f32 %v5620, %v5896
        %v5898 = vand.u32 %v3801, 4294901760
        %5899 = vmatmul.f32.gmra.mxu0 %v5898
        %v5900 = vpop.f32.mrf.mxu0
        %v5901 = vadd.f32 %v5624, %v5900
        %v5902 = vand.u32 %v3804, 4294901760
        %5903 = vmatmul.f32.gmra.mxu0 %v5902
        %v5904 = vpop.f32.mrf.mxu0
        %v5905 = vadd.f32 %v5628, %v5904
        %v5906 = vand.u32 %v3807, 4294901760
        %5907 = vmatmul.f32.gmra.mxu0 %v5906
        %v5908 = vpop.f32.mrf.mxu0
        %v5909 = vadd.f32 %v5632, %v5908
        %v5910 = vand.u32 %v3810, 4294901760
        %5911 = vmatmul.f32.gmra.mxu0 %v5910
        %v5912 = vpop.f32.mrf.mxu0
        %v5913 = vadd.f32 %v5636, %v5912
        %v5914 = vand.u32 %v3813, 4294901760
        %5915 = vmatmul.f32.gmra.mxu0 %v5914
        %v5916 = vpop.f32.mrf.mxu0
        %v5917 = vadd.f32 %v5640, %v5916
        %v5918 = vand.u32 %v3816, 4294901760
        %5919 = vmatmul.f32.gmra.mxu0 %v5918
        %v5920 = vpop.f32.mrf.mxu0
        %v5921 = vadd.f32 %v5644, %v5920
        %v5922 = vand.u32 %v3819, 4294901760
        %5923 = vmatmul.f32.gmra.mxu0 %v5922
        %v5924 = vpop.f32.mrf.mxu0
        %v5925 = vadd.f32 %v5648, %v5924
        %v5926 = vand.u32 %v3822, 4294901760
        %5927 = vmatmul.f32.gmra.mxu0 %v5926
        %v5928 = vpop.f32.mrf.mxu0
        %v5929 = vadd.f32 %v5652, %v5928
        %v5930 = vand.u32 %v3825, 4294901760
        %5931 = vmatmul.f32.gmra.mxu0 %v5930
        %v5932 = vpop.f32.mrf.mxu0
        %v5933 = vadd.f32 %v5656, %v5932
        %v5934 = vand.u32 %v3828, 4294901760
        %5935 = vmatmul.f32.gmra.mxu0 %v5934
        %v5936 = vpop.f32.mrf.mxu0
        %v5937 = vadd.f32 %v5660, %v5936
        %v5938 = vand.u32 %v3831, 4294901760
        %5939 = vmatmul.f32.gmra.mxu0 %v5938
        %v5940 = vpop.f32.mrf.mxu0
        %v5941 = vadd.f32 %v5664, %v5940
        %v5942 = vand.u32 %v3834, 4294901760
        %5943 = vmatmul.f32.gmra.mxu0 %v5942
        %v5944 = vpop.f32.mrf.mxu0
        %v5945 = vadd.f32 %v5668, %v5944
        %v5946 = vand.u32 %v3837, 4294901760
        %5947 = vmatmul.f32.gmra.mxu0 %v5946
        %v5948 = vpop.f32.mrf.mxu0
        %v5949 = vadd.f32 %v5672, %v5948
        %v5950 = vand.u32 %v3840, 4294901760
        %5951 = vmatmul.f32.gmra.mxu0 %v5950
        %v5952 = vpop.f32.mrf.mxu0
        %v5953 = vadd.f32 %v5676, %v5952
        %v5954 = vand.u32 %v3843, 4294901760
        %5955 = vmatmul.f32.gmra.mxu0 %v5954
        %v5956 = vpop.f32.mrf.mxu0
        %v5957 = vadd.f32 %v5680, %v5956
        %v5958 = vand.u32 %v3846, 4294901760
        %5959 = vmatmul.f32.gmra.mxu0 %v5958
        %v5960 = vpop.f32.mrf.mxu0
        %v5961 = vadd.f32 %v5684, %v5960
        %v5962 = vand.u32 %v3849, 4294901760
        %5963 = vmatmul.f32.gmra.mxu0 %v5962
        %v5964 = vpop.f32.mrf.mxu0
        %v5965 = vadd.f32 %v5688, %v5964
        %v5966 = vand.u32 %v3852, 4294901760
        %5967 = vmatmul.f32.gmra.mxu0 %v5966
        %v5968 = vpop.f32.mrf.mxu0
        %v5969 = vadd.f32 %v5692, %v5968
        %v5970 = vand.u32 %v3855, 4294901760
        %5971 = vmatmul.f32.gmra.mxu0 %v5970
        %v5972 = vpop.f32.mrf.mxu0
        %v5973 = vadd.f32 %v5696, %v5972
        %v5974 = vand.u32 %v3858, 4294901760
        %5975 = vmatmul.f32.gmra.mxu0 %v5974
        %v5976 = vpop.f32.mrf.mxu0
        %v5977 = vadd.f32 %v5700, %v5976
        %v5978 = vand.u32 %v3861, 4294901760
        %5979 = vmatmul.f32.gmra.mxu0 %v5978
        %v5980 = vpop.f32.mrf.mxu0
        %v5981 = vadd.f32 %v5704, %v5980
        %v5982 = vand.u32 %v3864, 4294901760
        %5983 = vmatmul.f32.gmra.mxu0 %v5982
        %v5984 = vpop.f32.mrf.mxu0
        %v5985 = vadd.f32 %v5708, %v5984
        %v5986 = vand.u32 %v3867, 4294901760
        %5987 = vmatmul.f32.gmra.mxu0 %v5986
        %v5988 = vpop.f32.mrf.mxu0
        %v5989 = vadd.f32 %v5712, %v5988
        %v5990 = vand.u32 %v3870, 4294901760
        %5991 = vmatmul.f32.gmra.mxu0 %v5990
        %v5992 = vpop.f32.mrf.mxu0
        %v5993 = vadd.f32 %v5716, %v5992
        %v5994 = vand.u32 %v3873, 4294901760
        %5995 = vmatmul.f32.gmra.mxu0 %v5994
        %v5996 = vpop.f32.mrf.mxu0
        %v5997 = vadd.f32 %v5720, %v5996
        %v5998 = vand.u32 %v3876, 4294901760
        %5999 = vmatmul.f32.gmra.mxu0 %v5998
        %v6000 = vpop.f32.mrf.mxu0
        %v6001 = vadd.f32 %v5724, %v6000
        %v6002 = vand.u32 %v3879, 4294901760
        %6003 = vmatmul.f32.gmra.mxu0 %v6002
        %v6004 = vpop.f32.mrf.mxu0
        %v6005 = vadd.f32 %v5728, %v6004
        %v6006 = vand.u32 %v3882, 4294901760
        %6007 = vmatmul.f32.gmra.mxu0 %v6006
        %v6008 = vpop.f32.mrf.mxu0
        %v6009 = vadd.f32 %v5732, %v6008
        %v6010 = vand.u32 %v3885, 4294901760
        %6011 = vmatmul.f32.gmra.mxu0 %v6010
        %v6012 = vpop.f32.mrf.mxu0
        %v6013 = vadd.f32 %v5736, %v6012
        %v6014 = vand.u32 %v3888, 4294901760
        %6015 = vmatmul.f32.gmra.mxu0 %v6014
        %v6016 = vpop.f32.mrf.mxu0
        %v6017 = vadd.f32 %v5740, %v6016
        %v6018 = vand.u32 %v3891, 4294901760
        %6019 = vmatmul.f32.gmra.mxu0 %v6018
        %v6020 = vpop.f32.mrf.mxu0
        %v6021 = vadd.f32 %v5744, %v6020
        %v6022 = vand.u32 %v3894, 4294901760
        %6023 = vmatmul.f32.gmra.mxu0 %v6022
        %v6024 = vpop.f32.mrf.mxu0
        %v6025 = vadd.f32 %v5748, %v6024
        %v6026 = vand.u32 %v3897, 4294901760
        %6027 = vmatmul.f32.gmra.mxu0 %v6026
        %v6028 = vpop.f32.mrf.mxu0
        %v6029 = vadd.f32 %v5752, %v6028
        %v6030 = vand.u32 %v3900, 4294901760
        %6031 = vmatmul.f32.gmra.mxu0 %v6030
        %v6032 = vpop.f32.mrf.mxu0
        %v6033 = vadd.f32 %v5756, %v6032
        %v6034 = vand.u32 %v3903, 4294901760
        %6035 = vmatmul.f32.gmra.mxu0 %v6034
        %v6036 = vpop.f32.mrf.mxu0
        %v6037 = vadd.f32 %v5760, %v6036
        %v6038 = vand.u32 %v3906, 4294901760
        %6039 = vmatmul.f32.gmra.mxu0 %v6038
        %v6040 = vpop.f32.mrf.mxu0
        %v6041 = vadd.f32 %v5764, %v6040
        %v6042 = vand.u32 %v3909, 4294901760
        %6043 = vmatmul.f32.gmra.mxu0 %v6042
        %v6044 = vpop.f32.mrf.mxu0
        %v6045 = vadd.f32 %v5768, %v6044
        %v6046 = vand.u32 %v3912, 4294901760
        %6047 = vmatmul.f32.gmra.mxu0 %v6046
        %v6048 = vpop.f32.mrf.mxu0
        %v6049 = vadd.f32 %v5772, %v6048
        %v6050 = vand.u32 %v3915, 4294901760
        %6051 = vmatmul.f32.gmra.mxu0 %v6050
        %v6052 = vpop.f32.mrf.mxu0
        %v6053 = vadd.f32 %v5776, %v6052
        %6054 = vdwg.mxu0
        %v6055 = vtanh.pop %v5801
        %v6056 = vtanh.pop %v5805
        %v6057 = vtanh.pop %v5809
        %v6058 = vtanh.pop %v5813
        %v6059 = vtanh.pop %v5817
        %v6060 = vtanh.pop %v5821
        %v6061 = vtanh.pop %v5825
        %v6062 = vtanh.pop %v5829
        %v6063 = vtanh.pop %v5833
        %v6064 = vtanh.pop %v5837
        %v6065 = vtanh.pop %v5841
        %v6066 = vtanh.pop %v5845
        %v6067 = vtanh.pop %v5849
        %v6068 = vtanh.pop %v5853
        %v6069 = vtanh.pop %v5857
        %v6070 = vtanh.pop %v5861
        %v6071 = vtanh.pop %v5865
        %v6072 = vtanh.pop %v5869
        %v6073 = vtanh.pop %v5873
        %v6074 = vtanh.pop %v5877
        %v6075 = vtanh.pop %v5881
        %v6076 = vtanh.pop %v5885
        %v6077 = vtanh.pop %v5889
        %v6078 = vtanh.pop %v5893
        %v6079 = vtanh.pop %v5897
        %v6080 = vtanh.pop %v5901
        %v6081 = vtanh.pop %v5905
        %v6082 = vtanh.pop %v5909
        %v6083 = vtanh.pop %v5913
        %v6084 = vtanh.pop %v5917
        %v6085 = vtanh.pop %v5921
        %v6086 = vtanh.pop %v5925
        %v6087 = vtanh.pop %v5929
        %v6088 = vtanh.pop %v5933
        %v6089 = vtanh.pop %v5937
        %v6090 = vtanh.pop %v5941
        %v6091 = vtanh.pop %v5945
        %v6092 = vtanh.pop %v5949
        %v6093 = vtanh.pop %v5953
        %v6094 = vtanh.pop %v5957
        %v6095 = vtanh.pop %v5961
        %v6096 = vtanh.pop %v5965
        %v6097 = vtanh.pop %v5969
        %v6098 = vtanh.pop %v5973
        %v6099 = vtanh.pop %v5977
        %v6100 = vtanh.pop %v5981
        %v6101 = vtanh.pop %v5985
        %v6102 = vtanh.pop %v5989
        %v6103 = vtanh.pop %v5993
        %v6104 = vtanh.pop %v5997
        %v6105 = vtanh.pop %v6001
        %v6106 = vtanh.pop %v6005
        %v6107 = vtanh.pop %v6009
        %v6108 = vtanh.pop %v6013
        %v6109 = vtanh.pop %v6017
        %v6110 = vtanh.pop %v6021
        %v6111 = vtanh.pop %v6025
        %v6112 = vtanh.pop %v6029
        %v6113 = vtanh.pop %v6033
        %v6114 = vtanh.pop %v6037
        %v6115 = vtanh.pop %v6041
        %v6116 = vtanh.pop %v6045
        %v6117 = vtanh.pop %v6049
        %v6118 = vtanh.pop %v6053
        %v6119 = vadd.f32 %v6055, %v3651
        %v6120 = vadd.f32 %v6056, %v3652
        %v6121 = vadd.f32 %v6057, %v3653
        %v6122 = vadd.f32 %v6058, %v3654
        %v6123 = vadd.f32 %v6059, %v3655
        %v6124 = vadd.f32 %v6060, %v3656
        %v6125 = vadd.f32 %v6061, %v3657
        %v6126 = vadd.f32 %v6062, %v3658
        %v6127 = vadd.f32 %v6063, %v3659
        %v6128 = vadd.f32 %v6064, %v3660
        %v6129 = vadd.f32 %v6065, %v3661
        %v6130 = vadd.f32 %v6066, %v3662
        %v6131 = vadd.f32 %v6067, %v3663
        %v6132 = vadd.f32 %v6068, %v3664
        %v6133 = vadd.f32 %v6069, %v3665
        %v6134 = vadd.f32 %v6070, %v3666
        %v6135 = vadd.f32 %v6071, %v3667
        %v6136 = vadd.f32 %v6072, %v3668
        %v6137 = vadd.f32 %v6073, %v3669
        %v6138 = vadd.f32 %v6074, %v3670
        %v6139 = vadd.f32 %v6075, %v3671
        %v6140 = vadd.f32 %v6076, %v3672
        %v6141 = vadd.f32 %v6077, %v3673
        %v6142 = vadd.f32 %v6078, %v3674
        %v6143 = vadd.f32 %v6079, %v3675
        %v6144 = vadd.f32 %v6080, %v3676
        %v6145 = vadd.f32 %v6081, %v3677
        %v6146 = vadd.f32 %v6082, %v3678
        %v6147 = vadd.f32 %v6083, %v3679
        %v6148 = vadd.f32 %v6084, %v3680
        %v6149 = vadd.f32 %v6085, %v3681
        %v6150 = vadd.f32 %v6086, %v3682
        %v6151 = vadd.f32 %v6087, %v3683
        %v6152 = vadd.f32 %v6088, %v3684
        %v6153 = vadd.f32 %v6089, %v3685
        %v6154 = vadd.f32 %v6090, %v3686
        %v6155 = vadd.f32 %v6091, %v3687
        %v6156 = vadd.f32 %v6092, %v3688
        %v6157 = vadd.f32 %v6093, %v3689
        %v6158 = vadd.f32 %v6094, %v3690
        %v6159 = vadd.f32 %v6095, %v3691
        %v6160 = vadd.f32 %v6096, %v3692
        %v6161 = vadd.f32 %v6097, %v3693
        %v6162 = vadd.f32 %v6098, %v3694
        %v6163 = vadd.f32 %v6099, %v3695
        %v6164 = vadd.f32 %v6100, %v3696
        %v6165 = vadd.f32 %v6101, %v3697
        %v6166 = vadd.f32 %v6102, %v3698
        %v6167 = vadd.f32 %v6103, %v3699
        %v6168 = vadd.f32 %v6104, %v3700
        %v6169 = vadd.f32 %v6105, %v3701
        %v6170 = vadd.f32 %v6106, %v3702
        %v6171 = vadd.f32 %v6107, %v3703
        %v6172 = vadd.f32 %v6108, %v3704
        %v6173 = vadd.f32 %v6109, %v3705
        %v6174 = vadd.f32 %v6110, %v3706
        %v6175 = vadd.f32 %v6111, %v3707
        %v6176 = vadd.f32 %v6112, %v3708
        %v6177 = vadd.f32 %v6113, %v3709
        %v6178 = vadd.f32 %v6114, %v3710
        %v6179 = vadd.f32 %v6115, %v3711
        %v6180 = vadd.f32 %v6116, %v3712
        %v6181 = vadd.f32 %v6117, %v3713
        %v6182 = vadd.f32 %v6118, %v3714
        %s6183 = scalar_lea.vmem %s3, 64
        %v6184 = vld [vmem:[%s6183] sm:$0xff]
        %v6185 = vld [vmem:[%s6183 + $0x8] sm:$0xff]
        %v6186 = vld [vmem:[%s6183 + $0x10] sm:$0xff]
        %v6187 = vld [vmem:[%s6183 + $0x18] sm:$0xff]
        %s6188 = scalar_lea.vmem %s4, 2
        %v6189 = vld [vmem:[%s6188] sm:$0x1]
        %v6191 = vperm.slane %v6189, 0
        %v6194 = vsel %vm1256, %v6119, 0
        %v6197 = vsel %vm1256, %v6120, 0
        %v6200 = vsel %vm1256, %v6121, 0
        %v6203 = vsel %vm1256, %v6122, 0
        %v6206 = vsel %vm1256, %v6123, 0
        %v6209 = vsel %vm1256, %v6124, 0
        %v6212 = vsel %vm1256, %v6125, 0
        %v6215 = vsel %vm1256, %v6126, 0
        %v6218 = vsel %vm1256, %v6127, 0
        %v6221 = vsel %vm1256, %v6128, 0
        %v6224 = vsel %vm1256, %v6129, 0
        %v6227 = vsel %vm1256, %v6130, 0
        %v6230 = vsel %vm1256, %v6131, 0
        %v6233 = vsel %vm1256, %v6132, 0
        %v6236 = vsel %vm1256, %v6133, 0
        %v6239 = vsel %vm1256, %v6134, 0
        %v6242 = vsel %vm1256, %v6135, 0
        %v6245 = vsel %vm1256, %v6136, 0
        %v6248 = vsel %vm1256, %v6137, 0
        %v6251 = vsel %vm1256, %v6138, 0
        %v6254 = vsel %vm1256, %v6139, 0
        %v6257 = vsel %vm1256, %v6140, 0
        %v6260 = vsel %vm1256, %v6141, 0
        %v6263 = vsel %vm1256, %v6142, 0
        %v6266 = vsel %vm1256, %v6143, 0
        %v6269 = vsel %vm1256, %v6144, 0
        %v6272 = vsel %vm1256, %v6145, 0
        %v6275 = vsel %vm1256, %v6146, 0
        %v6278 = vsel %vm1256, %v6147, 0
        %v6281 = vsel %vm1256, %v6148, 0
        %v6284 = vsel %vm1256, %v6149, 0
        %v6287 = vsel %vm1256, %v6150, 0
        %v6290 = vsel %vm1256, %v6151, 0
        %v6293 = vsel %vm1256, %v6152, 0
        %v6296 = vsel %vm1256, %v6153, 0
        %v6299 = vsel %vm1256, %v6154, 0
        %v6302 = vsel %vm1256, %v6155, 0
        %v6305 = vsel %vm1256, %v6156, 0
        %v6308 = vsel %vm1256, %v6157, 0
        %v6311 = vsel %vm1256, %v6158, 0
        %v6314 = vsel %vm1256, %v6159, 0
        %v6317 = vsel %vm1256, %v6160, 0
        %v6320 = vsel %vm1256, %v6161, 0
        %v6323 = vsel %vm1256, %v6162, 0
        %v6326 = vsel %vm1256, %v6163, 0
        %v6329 = vsel %vm1256, %v6164, 0
        %v6332 = vsel %vm1256, %v6165, 0
        %v6335 = vsel %vm1256, %v6166, 0
        %v6338 = vsel %vm1256, %v6167, 0
        %v6341 = vsel %vm1256, %v6168, 0
        %v6344 = vsel %vm1256, %v6169, 0
        %v6347 = vsel %vm1256, %v6170, 0
        %v6350 = vsel %vm1256, %v6171, 0
        %v6353 = vsel %vm1256, %v6172, 0
        %v6356 = vsel %vm1256, %v6173, 0
        %v6359 = vsel %vm1256, %v6174, 0
        %v6362 = vsel %vm1256, %v6175, 0
        %v6365 = vsel %vm1256, %v6176, 0
        %v6368 = vsel %vm1256, %v6177, 0
        %v6371 = vsel %vm1256, %v6178, 0
        %v6374 = vsel %vm1256, %v6179, 0
        %v6377 = vsel %vm1256, %v6180, 0
        %v6380 = vsel %vm1256, %v6181, 0
        %v6383 = vsel %vm1256, %v6182, 0
        %6385 = vmatpush.msra.mxu0 0.0
        %6386 = vmatpush.msra.mxu0 0.0
        %6387 = vmatpush.msra.mxu0 0.0
        %6388 = vmatpush.msra.mxu0 0.0
        %6389 = vmatpush.msra.mxu0 0.0
        %6390 = vmatpush.msra.mxu0 0.0
        %6391 = vmatpush.msra.mxu0 0.0
        %6392 = vmatpush.msra.mxu0 0.0
        %6393 = vmatpush.msra.mxu0 0.0
        %6394 = vmatpush.msra.mxu0 0.0
        %6395 = vmatpush.msra.mxu0 0.0
        %6396 = vmatpush.msra.mxu0 0.0
        %v6397 = vand.u32 %v6187, 4294901760
        %6398 = vmatpush.msra.mxu0 %v6397
        %v6399 = vand.u32 %v6186, 4294901760
        %6400 = vmatpush.msra.mxu0 %v6399
        %v6401 = vand.u32 %v6185, 4294901760
        %6402 = vmatpush.msra.mxu0 %v6401
        %v6403 = vand.u32 %v6184, 4294901760
        %6404 = vmatpush.msra.mxu0 %v6403
        %v6405 = vand.u32 %v6194, 4294901760
        %v6406 = vsub.f32 %v6194, %v6405
        %v6407 = vand.u32 %v6406, 4294901760
        %v6408 = vsub.f32 %v6406, %v6407
        %v6409 = vand.u32 %v6408, 4294901760
        %6410 = vmatmul.f32.gmra.mxu0 %v6409
        %v6411 = vpop.f32.mrf.mxu0
        %v6412 = vadd.f32 %v6191, %v6411
        %v6413 = vand.u32 %v6197, 4294901760
        %v6414 = vsub.f32 %v6197, %v6413
        %v6415 = vand.u32 %v6414, 4294901760
        %v6416 = vsub.f32 %v6414, %v6415
        %v6417 = vand.u32 %v6416, 4294901760
        %6418 = vmatmul.f32.gmra.mxu0 %v6417
        %v6419 = vpop.f32.mrf.mxu0
        %v6420 = vadd.f32 %v6191, %v6419
        %v6421 = vand.u32 %v6200, 4294901760
        %v6422 = vsub.f32 %v6200, %v6421
        %v6423 = vand.u32 %v6422, 4294901760
        %v6424 = vsub.f32 %v6422, %v6423
        %v6425 = vand.u32 %v6424, 4294901760
        %6426 = vmatmul.f32.gmra.mxu0 %v6425
        %v6427 = vpop.f32.mrf.mxu0
        %v6428 = vadd.f32 %v6191, %v6427
        %v6429 = vand.u32 %v6203, 4294901760
        %v6430 = vsub.f32 %v6203, %v6429
        %v6431 = vand.u32 %v6430, 4294901760
        %v6432 = vsub.f32 %v6430, %v6431
        %v6433 = vand.u32 %v6432, 4294901760
        %6434 = vmatmul.f32.gmra.mxu0 %v6433
        %v6435 = vpop.f32.mrf.mxu0
        %v6436 = vadd.f32 %v6191, %v6435
        %v6437 = vand.u32 %v6206, 4294901760
        %v6438 = vsub.f32 %v6206, %v6437
        %v6439 = vand.u32 %v6438, 4294901760
        %v6440 = vsub.f32 %v6438, %v6439
        %v6441 = vand.u32 %v6440, 4294901760
        %6442 = vmatmul.f32.gmra.mxu0 %v6441
        %v6443 = vpop.f32.mrf.mxu0
        %v6444 = vadd.f32 %v6191, %v6443
        %v6445 = vand.u32 %v6209, 4294901760
        %v6446 = vsub.f32 %v6209, %v6445
        %v6447 = vand.u32 %v6446, 4294901760
        %v6448 = vsub.f32 %v6446, %v6447
        %v6449 = vand.u32 %v6448, 4294901760
        %6450 = vmatmul.f32.gmra.mxu0 %v6449
        %v6451 = vpop.f32.mrf.mxu0
        %v6452 = vadd.f32 %v6191, %v6451
        %v6453 = vand.u32 %v6212, 4294901760
        %v6454 = vsub.f32 %v6212, %v6453
        %v6455 = vand.u32 %v6454, 4294901760
        %v6456 = vsub.f32 %v6454, %v6455
        %v6457 = vand.u32 %v6456, 4294901760
        %6458 = vmatmul.f32.gmra.mxu0 %v6457
        %v6459 = vpop.f32.mrf.mxu0
        %v6460 = vadd.f32 %v6191, %v6459
        %v6461 = vand.u32 %v6215, 4294901760
        %v6462 = vsub.f32 %v6215, %v6461
        %v6463 = vand.u32 %v6462, 4294901760
        %v6464 = vsub.f32 %v6462, %v6463
        %v6465 = vand.u32 %v6464, 4294901760
        %6466 = vmatmul.f32.gmra.mxu0 %v6465
        %v6467 = vpop.f32.mrf.mxu0
        %v6468 = vadd.f32 %v6191, %v6467
        %v6469 = vand.u32 %v6218, 4294901760
        %v6470 = vsub.f32 %v6218, %v6469
        %v6471 = vand.u32 %v6470, 4294901760
        %v6472 = vsub.f32 %v6470, %v6471
        %v6473 = vand.u32 %v6472, 4294901760
        %6474 = vmatmul.f32.gmra.mxu0 %v6473
        %v6475 = vpop.f32.mrf.mxu0
        %v6476 = vadd.f32 %v6191, %v6475
        %v6477 = vand.u32 %v6221, 4294901760
        %v6478 = vsub.f32 %v6221, %v6477
        %v6479 = vand.u32 %v6478, 4294901760
        %v6480 = vsub.f32 %v6478, %v6479
        %v6481 = vand.u32 %v6480, 4294901760
        %6482 = vmatmul.f32.gmra.mxu0 %v6481
        %v6483 = vpop.f32.mrf.mxu0
        %v6484 = vadd.f32 %v6191, %v6483
        %v6485 = vand.u32 %v6224, 4294901760
        %v6486 = vsub.f32 %v6224, %v6485
        %v6487 = vand.u32 %v6486, 4294901760
        %v6488 = vsub.f32 %v6486, %v6487
        %v6489 = vand.u32 %v6488, 4294901760
        %6490 = vmatmul.f32.gmra.mxu0 %v6489
        %v6491 = vpop.f32.mrf.mxu0
        %v6492 = vadd.f32 %v6191, %v6491
        %v6493 = vand.u32 %v6227, 4294901760
        %v6494 = vsub.f32 %v6227, %v6493
        %v6495 = vand.u32 %v6494, 4294901760
        %v6496 = vsub.f32 %v6494, %v6495
        %v6497 = vand.u32 %v6496, 4294901760
        %6498 = vmatmul.f32.gmra.mxu0 %v6497
        %v6499 = vpop.f32.mrf.mxu0
        %v6500 = vadd.f32 %v6191, %v6499
        %v6501 = vand.u32 %v6230, 4294901760
        %v6502 = vsub.f32 %v6230, %v6501
        %v6503 = vand.u32 %v6502, 4294901760
        %v6504 = vsub.f32 %v6502, %v6503
        %v6505 = vand.u32 %v6504, 4294901760
        %6506 = vmatmul.f32.gmra.mxu0 %v6505
        %v6507 = vpop.f32.mrf.mxu0
        %v6508 = vadd.f32 %v6191, %v6507
        %v6509 = vand.u32 %v6233, 4294901760
        %v6510 = vsub.f32 %v6233, %v6509
        %v6511 = vand.u32 %v6510, 4294901760
        %v6512 = vsub.f32 %v6510, %v6511
        %v6513 = vand.u32 %v6512, 4294901760
        %6514 = vmatmul.f32.gmra.mxu0 %v6513
        %v6515 = vpop.f32.mrf.mxu0
        %v6516 = vadd.f32 %v6191, %v6515
        %v6517 = vand.u32 %v6236, 4294901760
        %v6518 = vsub.f32 %v6236, %v6517
        %v6519 = vand.u32 %v6518, 4294901760
        %v6520 = vsub.f32 %v6518, %v6519
        %v6521 = vand.u32 %v6520, 4294901760
        %6522 = vmatmul.f32.gmra.mxu0 %v6521
        %v6523 = vpop.f32.mrf.mxu0
        %v6524 = vadd.f32 %v6191, %v6523
        %v6525 = vand.u32 %v6239, 4294901760
        %v6526 = vsub.f32 %v6239, %v6525
        %v6527 = vand.u32 %v6526, 4294901760
        %v6528 = vsub.f32 %v6526, %v6527
        %v6529 = vand.u32 %v6528, 4294901760
        %6530 = vmatmul.f32.gmra.mxu0 %v6529
        %v6531 = vpop.f32.mrf.mxu0
        %v6532 = vadd.f32 %v6191, %v6531
        %v6533 = vand.u32 %v6242, 4294901760
        %v6534 = vsub.f32 %v6242, %v6533
        %v6535 = vand.u32 %v6534, 4294901760
        %v6536 = vsub.f32 %v6534, %v6535
        %v6537 = vand.u32 %v6536, 4294901760
        %6538 = vmatmul.f32.gmra.mxu0 %v6537
        %v6539 = vpop.f32.mrf.mxu0
        %v6540 = vadd.f32 %v6191, %v6539
        %v6541 = vand.u32 %v6245, 4294901760
        %v6542 = vsub.f32 %v6245, %v6541
        %v6543 = vand.u32 %v6542, 4294901760
        %v6544 = vsub.f32 %v6542, %v6543
        %v6545 = vand.u32 %v6544, 4294901760
        %6546 = vmatmul.f32.gmra.mxu0 %v6545
        %v6547 = vpop.f32.mrf.mxu0
        %v6548 = vadd.f32 %v6191, %v6547
        %v6549 = vand.u32 %v6248, 4294901760
        %v6550 = vsub.f32 %v6248, %v6549
        %v6551 = vand.u32 %v6550, 4294901760
        %v6552 = vsub.f32 %v6550, %v6551
        %v6553 = vand.u32 %v6552, 4294901760
        %6554 = vmatmul.f32.gmra.mxu0 %v6553
        %v6555 = vpop.f32.mrf.mxu0
        %v6556 = vadd.f32 %v6191, %v6555
        %v6557 = vand.u32 %v6251, 4294901760
        %v6558 = vsub.f32 %v6251, %v6557
        %v6559 = vand.u32 %v6558, 4294901760
        %v6560 = vsub.f32 %v6558, %v6559
        %v6561 = vand.u32 %v6560, 4294901760
        %6562 = vmatmul.f32.gmra.mxu0 %v6561
        %v6563 = vpop.f32.mrf.mxu0
        %v6564 = vadd.f32 %v6191, %v6563
        %v6565 = vand.u32 %v6254, 4294901760
        %v6566 = vsub.f32 %v6254, %v6565
        %v6567 = vand.u32 %v6566, 4294901760
        %v6568 = vsub.f32 %v6566, %v6567
        %v6569 = vand.u32 %v6568, 4294901760
        %6570 = vmatmul.f32.gmra.mxu0 %v6569
        %v6571 = vpop.f32.mrf.mxu0
        %v6572 = vadd.f32 %v6191, %v6571
        %v6573 = vand.u32 %v6257, 4294901760
        %v6574 = vsub.f32 %v6257, %v6573
        %v6575 = vand.u32 %v6574, 4294901760
        %v6576 = vsub.f32 %v6574, %v6575
        %v6577 = vand.u32 %v6576, 4294901760
        %6578 = vmatmul.f32.gmra.mxu0 %v6577
        %v6579 = vpop.f32.mrf.mxu0
        %v6580 = vadd.f32 %v6191, %v6579
        %v6581 = vand.u32 %v6260, 4294901760
        %v6582 = vsub.f32 %v6260, %v6581
        %v6583 = vand.u32 %v6582, 4294901760
        %v6584 = vsub.f32 %v6582, %v6583
        %v6585 = vand.u32 %v6584, 4294901760
        %6586 = vmatmul.f32.gmra.mxu0 %v6585
        %v6587 = vpop.f32.mrf.mxu0
        %v6588 = vadd.f32 %v6191, %v6587
        %v6589 = vand.u32 %v6263, 4294901760
        %v6590 = vsub.f32 %v6263, %v6589
        %v6591 = vand.u32 %v6590, 4294901760
        %v6592 = vsub.f32 %v6590, %v6591
        %v6593 = vand.u32 %v6592, 4294901760
        %6594 = vmatmul.f32.gmra.mxu0 %v6593
        %v6595 = vpop.f32.mrf.mxu0
        %v6596 = vadd.f32 %v6191, %v6595
        %v6597 = vand.u32 %v6266, 4294901760
        %v6598 = vsub.f32 %v6266, %v6597
        %v6599 = vand.u32 %v6598, 4294901760
        %v6600 = vsub.f32 %v6598, %v6599
        %v6601 = vand.u32 %v6600, 4294901760
        %6602 = vmatmul.f32.gmra.mxu0 %v6601
        %v6603 = vpop.f32.mrf.mxu0
        %v6604 = vadd.f32 %v6191, %v6603
        %v6605 = vand.u32 %v6269, 4294901760
        %v6606 = vsub.f32 %v6269, %v6605
        %v6607 = vand.u32 %v6606, 4294901760
        %v6608 = vsub.f32 %v6606, %v6607
        %v6609 = vand.u32 %v6608, 4294901760
        %6610 = vmatmul.f32.gmra.mxu0 %v6609
        %v6611 = vpop.f32.mrf.mxu0
        %v6612 = vadd.f32 %v6191, %v6611
        %v6613 = vand.u32 %v6272, 4294901760
        %v6614 = vsub.f32 %v6272, %v6613
        %v6615 = vand.u32 %v6614, 4294901760
        %v6616 = vsub.f32 %v6614, %v6615
        %v6617 = vand.u32 %v6616, 4294901760
        %6618 = vmatmul.f32.gmra.mxu0 %v6617
        %v6619 = vpop.f32.mrf.mxu0
        %v6620 = vadd.f32 %v6191, %v6619
        %v6621 = vand.u32 %v6275, 4294901760
        %v6622 = vsub.f32 %v6275, %v6621
        %v6623 = vand.u32 %v6622, 4294901760
        %v6624 = vsub.f32 %v6622, %v6623
        %v6625 = vand.u32 %v6624, 4294901760
        %6626 = vmatmul.f32.gmra.mxu0 %v6625
        %v6627 = vpop.f32.mrf.mxu0
        %v6628 = vadd.f32 %v6191, %v6627
        %v6629 = vand.u32 %v6278, 4294901760
        %v6630 = vsub.f32 %v6278, %v6629
        %v6631 = vand.u32 %v6630, 4294901760
        %v6632 = vsub.f32 %v6630, %v6631
        %v6633 = vand.u32 %v6632, 4294901760
        %6634 = vmatmul.f32.gmra.mxu0 %v6633
        %v6635 = vpop.f32.mrf.mxu0
        %v6636 = vadd.f32 %v6191, %v6635
        %v6637 = vand.u32 %v6281, 4294901760
        %v6638 = vsub.f32 %v6281, %v6637
        %v6639 = vand.u32 %v6638, 4294901760
        %v6640 = vsub.f32 %v6638, %v6639
        %v6641 = vand.u32 %v6640, 4294901760
        %6642 = vmatmul.f32.gmra.mxu0 %v6641
        %v6643 = vpop.f32.mrf.mxu0
        %v6644 = vadd.f32 %v6191, %v6643
        %v6645 = vand.u32 %v6284, 4294901760
        %v6646 = vsub.f32 %v6284, %v6645
        %v6647 = vand.u32 %v6646, 4294901760
        %v6648 = vsub.f32 %v6646, %v6647
        %v6649 = vand.u32 %v6648, 4294901760
        %6650 = vmatmul.f32.gmra.mxu0 %v6649
        %v6651 = vpop.f32.mrf.mxu0
        %v6652 = vadd.f32 %v6191, %v6651
        %v6653 = vand.u32 %v6287, 4294901760
        %v6654 = vsub.f32 %v6287, %v6653
        %v6655 = vand.u32 %v6654, 4294901760
        %v6656 = vsub.f32 %v6654, %v6655
        %v6657 = vand.u32 %v6656, 4294901760
        %6658 = vmatmul.f32.gmra.mxu0 %v6657
        %v6659 = vpop.f32.mrf.mxu0
        %v6660 = vadd.f32 %v6191, %v6659
        %v6661 = vand.u32 %v6290, 4294901760
        %v6662 = vsub.f32 %v6290, %v6661
        %v6663 = vand.u32 %v6662, 4294901760
        %v6664 = vsub.f32 %v6662, %v6663
        %v6665 = vand.u32 %v6664, 4294901760
        %6666 = vmatmul.f32.gmra.mxu0 %v6665
        %v6667 = vpop.f32.mrf.mxu0
        %v6668 = vadd.f32 %v6191, %v6667
        %v6669 = vand.u32 %v6293, 4294901760
        %v6670 = vsub.f32 %v6293, %v6669
        %v6671 = vand.u32 %v6670, 4294901760
        %v6672 = vsub.f32 %v6670, %v6671
        %v6673 = vand.u32 %v6672, 4294901760
        %6674 = vmatmul.f32.gmra.mxu0 %v6673
        %v6675 = vpop.f32.mrf.mxu0
        %v6676 = vadd.f32 %v6191, %v6675
        %v6677 = vand.u32 %v6296, 4294901760
        %v6678 = vsub.f32 %v6296, %v6677
        %v6679 = vand.u32 %v6678, 4294901760
        %v6680 = vsub.f32 %v6678, %v6679
        %v6681 = vand.u32 %v6680, 4294901760
        %6682 = vmatmul.f32.gmra.mxu0 %v6681
        %v6683 = vpop.f32.mrf.mxu0
        %v6684 = vadd.f32 %v6191, %v6683
        %v6685 = vand.u32 %v6299, 4294901760
        %v6686 = vsub.f32 %v6299, %v6685
        %v6687 = vand.u32 %v6686, 4294901760
        %v6688 = vsub.f32 %v6686, %v6687
        %v6689 = vand.u32 %v6688, 4294901760
        %6690 = vmatmul.f32.gmra.mxu0 %v6689
        %v6691 = vpop.f32.mrf.mxu0
        %v6692 = vadd.f32 %v6191, %v6691
        %v6693 = vand.u32 %v6302, 4294901760
        %v6694 = vsub.f32 %v6302, %v6693
        %v6695 = vand.u32 %v6694, 4294901760
        %v6696 = vsub.f32 %v6694, %v6695
        %v6697 = vand.u32 %v6696, 4294901760
        %6698 = vmatmul.f32.gmra.mxu0 %v6697
        %v6699 = vpop.f32.mrf.mxu0
        %v6700 = vadd.f32 %v6191, %v6699
        %v6701 = vand.u32 %v6305, 4294901760
        %v6702 = vsub.f32 %v6305, %v6701
        %v6703 = vand.u32 %v6702, 4294901760
        %v6704 = vsub.f32 %v6702, %v6703
        %v6705 = vand.u32 %v6704, 4294901760
        %6706 = vmatmul.f32.gmra.mxu0 %v6705
        %v6707 = vpop.f32.mrf.mxu0
        %v6708 = vadd.f32 %v6191, %v6707
        %v6709 = vand.u32 %v6308, 4294901760
        %v6710 = vsub.f32 %v6308, %v6709
        %v6711 = vand.u32 %v6710, 4294901760
        %v6712 = vsub.f32 %v6710, %v6711
        %v6713 = vand.u32 %v6712, 4294901760
        %6714 = vmatmul.f32.gmra.mxu0 %v6713
        %v6715 = vpop.f32.mrf.mxu0
        %v6716 = vadd.f32 %v6191, %v6715
        %v6717 = vand.u32 %v6311, 4294901760
        %v6718 = vsub.f32 %v6311, %v6717
        %v6719 = vand.u32 %v6718, 4294901760
        %v6720 = vsub.f32 %v6718, %v6719
        %v6721 = vand.u32 %v6720, 4294901760
        %6722 = vmatmul.f32.gmra.mxu0 %v6721
        %v6723 = vpop.f32.mrf.mxu0
        %v6724 = vadd.f32 %v6191, %v6723
        %v6725 = vand.u32 %v6314, 4294901760
        %v6726 = vsub.f32 %v6314, %v6725
        %v6727 = vand.u32 %v6726, 4294901760
        %v6728 = vsub.f32 %v6726, %v6727
        %v6729 = vand.u32 %v6728, 4294901760
        %6730 = vmatmul.f32.gmra.mxu0 %v6729
        %v6731 = vpop.f32.mrf.mxu0
        %v6732 = vadd.f32 %v6191, %v6731
        %v6733 = vand.u32 %v6317, 4294901760
        %v6734 = vsub.f32 %v6317, %v6733
        %v6735 = vand.u32 %v6734, 4294901760
        %v6736 = vsub.f32 %v6734, %v6735
        %v6737 = vand.u32 %v6736, 4294901760
        %6738 = vmatmul.f32.gmra.mxu0 %v6737
        %v6739 = vpop.f32.mrf.mxu0
        %v6740 = vadd.f32 %v6191, %v6739
        %v6741 = vand.u32 %v6320, 4294901760
        %v6742 = vsub.f32 %v6320, %v6741
        %v6743 = vand.u32 %v6742, 4294901760
        %v6744 = vsub.f32 %v6742, %v6743
        %v6745 = vand.u32 %v6744, 4294901760
        %6746 = vmatmul.f32.gmra.mxu0 %v6745
        %v6747 = vpop.f32.mrf.mxu0
        %v6748 = vadd.f32 %v6191, %v6747
        %v6749 = vand.u32 %v6323, 4294901760
        %v6750 = vsub.f32 %v6323, %v6749
        %v6751 = vand.u32 %v6750, 4294901760
        %v6752 = vsub.f32 %v6750, %v6751
        %v6753 = vand.u32 %v6752, 4294901760
        %6754 = vmatmul.f32.gmra.mxu0 %v6753
        %v6755 = vpop.f32.mrf.mxu0
        %v6756 = vadd.f32 %v6191, %v6755
        %v6757 = vand.u32 %v6326, 4294901760
        %v6758 = vsub.f32 %v6326, %v6757
        %v6759 = vand.u32 %v6758, 4294901760
        %v6760 = vsub.f32 %v6758, %v6759
        %v6761 = vand.u32 %v6760, 4294901760
        %6762 = vmatmul.f32.gmra.mxu0 %v6761
        %v6763 = vpop.f32.mrf.mxu0
        %v6764 = vadd.f32 %v6191, %v6763
        %v6765 = vand.u32 %v6329, 4294901760
        %v6766 = vsub.f32 %v6329, %v6765
        %v6767 = vand.u32 %v6766, 4294901760
        %v6768 = vsub.f32 %v6766, %v6767
        %v6769 = vand.u32 %v6768, 4294901760
        %6770 = vmatmul.f32.gmra.mxu0 %v6769
        %v6771 = vpop.f32.mrf.mxu0
        %v6772 = vadd.f32 %v6191, %v6771
        %v6773 = vand.u32 %v6332, 4294901760
        %v6774 = vsub.f32 %v6332, %v6773
        %v6775 = vand.u32 %v6774, 4294901760
        %v6776 = vsub.f32 %v6774, %v6775
        %v6777 = vand.u32 %v6776, 4294901760
        %6778 = vmatmul.f32.gmra.mxu0 %v6777
        %v6779 = vpop.f32.mrf.mxu0
        %v6780 = vadd.f32 %v6191, %v6779
        %v6781 = vand.u32 %v6335, 4294901760
        %v6782 = vsub.f32 %v6335, %v6781
        %v6783 = vand.u32 %v6782, 4294901760
        %v6784 = vsub.f32 %v6782, %v6783
        %v6785 = vand.u32 %v6784, 4294901760
        %6786 = vmatmul.f32.gmra.mxu0 %v6785
        %v6787 = vpop.f32.mrf.mxu0
        %v6788 = vadd.f32 %v6191, %v6787
        %v6789 = vand.u32 %v6338, 4294901760
        %v6790 = vsub.f32 %v6338, %v6789
        %v6791 = vand.u32 %v6790, 4294901760
        %v6792 = vsub.f32 %v6790, %v6791
        %v6793 = vand.u32 %v6792, 4294901760
        %6794 = vmatmul.f32.gmra.mxu0 %v6793
        %v6795 = vpop.f32.mrf.mxu0
        %v6796 = vadd.f32 %v6191, %v6795
        %v6797 = vand.u32 %v6341, 4294901760
        %v6798 = vsub.f32 %v6341, %v6797
        %v6799 = vand.u32 %v6798, 4294901760
        %v6800 = vsub.f32 %v6798, %v6799
        %v6801 = vand.u32 %v6800, 4294901760
        %6802 = vmatmul.f32.gmra.mxu0 %v6801
        %v6803 = vpop.f32.mrf.mxu0
        %v6804 = vadd.f32 %v6191, %v6803
        %v6805 = vand.u32 %v6344, 4294901760
        %v6806 = vsub.f32 %v6344, %v6805
        %v6807 = vand.u32 %v6806, 4294901760
        %v6808 = vsub.f32 %v6806, %v6807
        %v6809 = vand.u32 %v6808, 4294901760
        %6810 = vmatmul.f32.gmra.mxu0 %v6809
        %v6811 = vpop.f32.mrf.mxu0
        %v6812 = vadd.f32 %v6191, %v6811
        %v6813 = vand.u32 %v6347, 4294901760
        %v6814 = vsub.f32 %v6347, %v6813
        %v6815 = vand.u32 %v6814, 4294901760
        %v6816 = vsub.f32 %v6814, %v6815
        %v6817 = vand.u32 %v6816, 4294901760
        %6818 = vmatmul.f32.gmra.mxu0 %v6817
        %v6819 = vpop.f32.mrf.mxu0
        %v6820 = vadd.f32 %v6191, %v6819
        %v6821 = vand.u32 %v6350, 4294901760
        %v6822 = vsub.f32 %v6350, %v6821
        %v6823 = vand.u32 %v6822, 4294901760
        %v6824 = vsub.f32 %v6822, %v6823
        %v6825 = vand.u32 %v6824, 4294901760
        %6826 = vmatmul.f32.gmra.mxu0 %v6825
        %v6827 = vpop.f32.mrf.mxu0
        %v6828 = vadd.f32 %v6191, %v6827
        %v6829 = vand.u32 %v6353, 4294901760
        %v6830 = vsub.f32 %v6353, %v6829
        %v6831 = vand.u32 %v6830, 4294901760
        %v6832 = vsub.f32 %v6830, %v6831
        %v6833 = vand.u32 %v6832, 4294901760
        %6834 = vmatmul.f32.gmra.mxu0 %v6833
        %v6835 = vpop.f32.mrf.mxu0
        %v6836 = vadd.f32 %v6191, %v6835
        %v6837 = vand.u32 %v6356, 4294901760
        %v6838 = vsub.f32 %v6356, %v6837
        %v6839 = vand.u32 %v6838, 4294901760
        %v6840 = vsub.f32 %v6838, %v6839
        %v6841 = vand.u32 %v6840, 4294901760
        %6842 = vmatmul.f32.gmra.mxu0 %v6841
        %v6843 = vpop.f32.mrf.mxu0
        %v6844 = vadd.f32 %v6191, %v6843
        %v6845 = vand.u32 %v6359, 4294901760
        %v6846 = vsub.f32 %v6359, %v6845
        %v6847 = vand.u32 %v6846, 4294901760
        %v6848 = vsub.f32 %v6846, %v6847
        %v6849 = vand.u32 %v6848, 4294901760
        %6850 = vmatmul.f32.gmra.mxu0 %v6849
        %v6851 = vpop.f32.mrf.mxu0
        %v6852 = vadd.f32 %v6191, %v6851
        %v6853 = vand.u32 %v6362, 4294901760
        %v6854 = vsub.f32 %v6362, %v6853
        %v6855 = vand.u32 %v6854, 4294901760
        %v6856 = vsub.f32 %v6854, %v6855
        %v6857 = vand.u32 %v6856, 4294901760
        %6858 = vmatmul.f32.gmra.mxu0 %v6857
        %v6859 = vpop.f32.mrf.mxu0
        %v6860 = vadd.f32 %v6191, %v6859
        %v6861 = vand.u32 %v6365, 4294901760
        %v6862 = vsub.f32 %v6365, %v6861
        %v6863 = vand.u32 %v6862, 4294901760
        %v6864 = vsub.f32 %v6862, %v6863
        %v6865 = vand.u32 %v6864, 4294901760
        %6866 = vmatmul.f32.gmra.mxu0 %v6865
        %v6867 = vpop.f32.mrf.mxu0
        %v6868 = vadd.f32 %v6191, %v6867
        %v6869 = vand.u32 %v6368, 4294901760
        %v6870 = vsub.f32 %v6368, %v6869
        %v6871 = vand.u32 %v6870, 4294901760
        %v6872 = vsub.f32 %v6870, %v6871
        %v6873 = vand.u32 %v6872, 4294901760
        %6874 = vmatmul.f32.gmra.mxu0 %v6873
        %v6875 = vpop.f32.mrf.mxu0
        %v6876 = vadd.f32 %v6191, %v6875
        %v6877 = vand.u32 %v6371, 4294901760
        %v6878 = vsub.f32 %v6371, %v6877
        %v6879 = vand.u32 %v6878, 4294901760
        %v6880 = vsub.f32 %v6878, %v6879
        %v6881 = vand.u32 %v6880, 4294901760
        %6882 = vmatmul.f32.gmra.mxu0 %v6881
        %v6883 = vpop.f32.mrf.mxu0
        %v6884 = vadd.f32 %v6191, %v6883
        %v6885 = vand.u32 %v6374, 4294901760
        %v6886 = vsub.f32 %v6374, %v6885
        %v6887 = vand.u32 %v6886, 4294901760
        %v6888 = vsub.f32 %v6886, %v6887
        %v6889 = vand.u32 %v6888, 4294901760
        %6890 = vmatmul.f32.gmra.mxu0 %v6889
        %v6891 = vpop.f32.mrf.mxu0
        %v6892 = vadd.f32 %v6191, %v6891
        %v6893 = vand.u32 %v6377, 4294901760
        %v6894 = vsub.f32 %v6377, %v6893
        %v6895 = vand.u32 %v6894, 4294901760
        %v6896 = vsub.f32 %v6894, %v6895
        %v6897 = vand.u32 %v6896, 4294901760
        %6898 = vmatmul.f32.gmra.mxu0 %v6897
        %v6899 = vpop.f32.mrf.mxu0
        %v6900 = vadd.f32 %v6191, %v6899
        %v6901 = vand.u32 %v6380, 4294901760
        %v6902 = vsub.f32 %v6380, %v6901
        %v6903 = vand.u32 %v6902, 4294901760
        %v6904 = vsub.f32 %v6902, %v6903
        %v6905 = vand.u32 %v6904, 4294901760
        %6906 = vmatmul.f32.gmra.mxu0 %v6905
        %v6907 = vpop.f32.mrf.mxu0
        %v6908 = vadd.f32 %v6191, %v6907
        %v6909 = vand.u32 %v6383, 4294901760
        %v6910 = vsub.f32 %v6383, %v6909
        %v6911 = vand.u32 %v6910, 4294901760
        %v6912 = vsub.f32 %v6910, %v6911
        %v6913 = vand.u32 %v6912, 4294901760
        %6914 = vmatmul.f32.gmra.mxu0 %v6913
        %v6915 = vpop.f32.mrf.mxu0
        %v6916 = vadd.f32 %v6191, %v6915
        %6917 = vdwg.mxu0
        %6918 = vmatpush.msra.mxu0 0.0
        %6919 = vmatpush.msra.mxu0 0.0
        %6920 = vmatpush.msra.mxu0 0.0
        %6921 = vmatpush.msra.mxu0 0.0
        %6922 = vmatpush.msra.mxu0 0.0
        %6923 = vmatpush.msra.mxu0 0.0
        %6924 = vmatpush.msra.mxu0 0.0
        %6925 = vmatpush.msra.mxu0 0.0
        %6926 = vmatpush.msra.mxu0 0.0
        %6927 = vmatpush.msra.mxu0 0.0
        %6928 = vmatpush.msra.mxu0 0.0
        %6929 = vmatpush.msra.mxu0 0.0
        %v6930 = vand.u32 %v6187, 4294901760
        %v6931 = vsub.f32 %v6187, %v6930
        %v6932 = vand.u32 %v6931, 4294901760
        %v6933 = vsub.f32 %v6931, %v6932
        %v6934 = vand.u32 %v6933, 4294901760
        %6935 = vmatpush.msra.mxu0 %v6934
        %v6936 = vand.u32 %v6186, 4294901760
        %v6937 = vsub.f32 %v6186, %v6936
        %v6938 = vand.u32 %v6937, 4294901760
        %v6939 = vsub.f32 %v6937, %v6938
        %v6940 = vand.u32 %v6939, 4294901760
        %6941 = vmatpush.msra.mxu0 %v6940
        %v6942 = vand.u32 %v6185, 4294901760
        %v6943 = vsub.f32 %v6185, %v6942
        %v6944 = vand.u32 %v6943, 4294901760
        %v6945 = vsub.f32 %v6943, %v6944
        %v6946 = vand.u32 %v6945, 4294901760
        %6947 = vmatpush.msra.mxu0 %v6946
        %v6948 = vand.u32 %v6184, 4294901760
        %v6949 = vsub.f32 %v6184, %v6948
        %v6950 = vand.u32 %v6949, 4294901760
        %v6951 = vsub.f32 %v6949, %v6950
        %v6952 = vand.u32 %v6951, 4294901760
        %6953 = vmatpush.msra.mxu0 %v6952
        %v6954 = vand.u32 %v6194, 4294901760
        %6955 = vmatmul.f32.gmra.mxu0 %v6954
        %v6956 = vpop.f32.mrf.mxu0
        %v6957 = vadd.f32 %v6412, %v6956
        %v6958 = vand.u32 %v6197, 4294901760
        %6959 = vmatmul.f32.gmra.mxu0 %v6958
        %v6960 = vpop.f32.mrf.mxu0
        %v6961 = vadd.f32 %v6420, %v6960
        %v6962 = vand.u32 %v6200, 4294901760
        %6963 = vmatmul.f32.gmra.mxu0 %v6962
        %v6964 = vpop.f32.mrf.mxu0
        %v6965 = vadd.f32 %v6428, %v6964
        %v6966 = vand.u32 %v6203, 4294901760
        %6967 = vmatmul.f32.gmra.mxu0 %v6966
        %v6968 = vpop.f32.mrf.mxu0
        %v6969 = vadd.f32 %v6436, %v6968
        %v6970 = vand.u32 %v6206, 4294901760
        %6971 = vmatmul.f32.gmra.mxu0 %v6970
        %v6972 = vpop.f32.mrf.mxu0
        %v6973 = vadd.f32 %v6444, %v6972
        %v6974 = vand.u32 %v6209, 4294901760
        %6975 = vmatmul.f32.gmra.mxu0 %v6974
        %v6976 = vpop.f32.mrf.mxu0
        %v6977 = vadd.f32 %v6452, %v6976
        %v6978 = vand.u32 %v6212, 4294901760
        %6979 = vmatmul.f32.gmra.mxu0 %v6978
        %v6980 = vpop.f32.mrf.mxu0
        %v6981 = vadd.f32 %v6460, %v6980
        %v6982 = vand.u32 %v6215, 4294901760
        %6983 = vmatmul.f32.gmra.mxu0 %v6982
        %v6984 = vpop.f32.mrf.mxu0
        %v6985 = vadd.f32 %v6468, %v6984
        %v6986 = vand.u32 %v6218, 4294901760
        %6987 = vmatmul.f32.gmra.mxu0 %v6986
        %v6988 = vpop.f32.mrf.mxu0
        %v6989 = vadd.f32 %v6476, %v6988
        %v6990 = vand.u32 %v6221, 4294901760
        %6991 = vmatmul.f32.gmra.mxu0 %v6990
        %v6992 = vpop.f32.mrf.mxu0
        %v6993 = vadd.f32 %v6484, %v6992
        %v6994 = vand.u32 %v6224, 4294901760
        %6995 = vmatmul.f32.gmra.mxu0 %v6994
        %v6996 = vpop.f32.mrf.mxu0
        %v6997 = vadd.f32 %v6492, %v6996
        %v6998 = vand.u32 %v6227, 4294901760
        %6999 = vmatmul.f32.gmra.mxu0 %v6998
        %v7000 = vpop.f32.mrf.mxu0
        %v7001 = vadd.f32 %v6500, %v7000
        %v7002 = vand.u32 %v6230, 4294901760
        %7003 = vmatmul.f32.gmra.mxu0 %v7002
        %v7004 = vpop.f32.mrf.mxu0
        %v7005 = vadd.f32 %v6508, %v7004
        %v7006 = vand.u32 %v6233, 4294901760
        %7007 = vmatmul.f32.gmra.mxu0 %v7006
        %v7008 = vpop.f32.mrf.mxu0
        %v7009 = vadd.f32 %v6516, %v7008
        %v7010 = vand.u32 %v6236, 4294901760
        %7011 = vmatmul.f32.gmra.mxu0 %v7010
        %v7012 = vpop.f32.mrf.mxu0
        %v7013 = vadd.f32 %v6524, %v7012
        %v7014 = vand.u32 %v6239, 4294901760
        %7015 = vmatmul.f32.gmra.mxu0 %v7014
        %v7016 = vpop.f32.mrf.mxu0
        %v7017 = vadd.f32 %v6532, %v7016
        %v7018 = vand.u32 %v6242, 4294901760
        %7019 = vmatmul.f32.gmra.mxu0 %v7018
        %v7020 = vpop.f32.mrf.mxu0
        %v7021 = vadd.f32 %v6540, %v7020
        %v7022 = vand.u32 %v6245, 4294901760
        %7023 = vmatmul.f32.gmra.mxu0 %v7022
        %v7024 = vpop.f32.mrf.mxu0
        %v7025 = vadd.f32 %v6548, %v7024
        %v7026 = vand.u32 %v6248, 4294901760
        %7027 = vmatmul.f32.gmra.mxu0 %v7026
        %v7028 = vpop.f32.mrf.mxu0
        %v7029 = vadd.f32 %v6556, %v7028
        %v7030 = vand.u32 %v6251, 4294901760
        %7031 = vmatmul.f32.gmra.mxu0 %v7030
        %v7032 = vpop.f32.mrf.mxu0
        %v7033 = vadd.f32 %v6564, %v7032
        %v7034 = vand.u32 %v6254, 4294901760
        %7035 = vmatmul.f32.gmra.mxu0 %v7034
        %v7036 = vpop.f32.mrf.mxu0
        %v7037 = vadd.f32 %v6572, %v7036
        %v7038 = vand.u32 %v6257, 4294901760
        %7039 = vmatmul.f32.gmra.mxu0 %v7038
        %v7040 = vpop.f32.mrf.mxu0
        %v7041 = vadd.f32 %v6580, %v7040
        %v7042 = vand.u32 %v6260, 4294901760
        %7043 = vmatmul.f32.gmra.mxu0 %v7042
        %v7044 = vpop.f32.mrf.mxu0
        %v7045 = vadd.f32 %v6588, %v7044
        %v7046 = vand.u32 %v6263, 4294901760
        %7047 = vmatmul.f32.gmra.mxu0 %v7046
        %v7048 = vpop.f32.mrf.mxu0
        %v7049 = vadd.f32 %v6596, %v7048
        %v7050 = vand.u32 %v6266, 4294901760
        %7051 = vmatmul.f32.gmra.mxu0 %v7050
        %v7052 = vpop.f32.mrf.mxu0
        %v7053 = vadd.f32 %v6604, %v7052
        %v7054 = vand.u32 %v6269, 4294901760
        %7055 = vmatmul.f32.gmra.mxu0 %v7054
        %v7056 = vpop.f32.mrf.mxu0
        %v7057 = vadd.f32 %v6612, %v7056
        %v7058 = vand.u32 %v6272, 4294901760
        %7059 = vmatmul.f32.gmra.mxu0 %v7058
        %v7060 = vpop.f32.mrf.mxu0
        %v7061 = vadd.f32 %v6620, %v7060
        %v7062 = vand.u32 %v6275, 4294901760
        %7063 = vmatmul.f32.gmra.mxu0 %v7062
        %v7064 = vpop.f32.mrf.mxu0
        %v7065 = vadd.f32 %v6628, %v7064
        %v7066 = vand.u32 %v6278, 4294901760
        %7067 = vmatmul.f32.gmra.mxu0 %v7066
        %v7068 = vpop.f32.mrf.mxu0
        %v7069 = vadd.f32 %v6636, %v7068
        %v7070 = vand.u32 %v6281, 4294901760
        %7071 = vmatmul.f32.gmra.mxu0 %v7070
        %v7072 = vpop.f32.mrf.mxu0
        %v7073 = vadd.f32 %v6644, %v7072
        %v7074 = vand.u32 %v6284, 4294901760
        %7075 = vmatmul.f32.gmra.mxu0 %v7074
        %v7076 = vpop.f32.mrf.mxu0
        %v7077 = vadd.f32 %v6652, %v7076
        %v7078 = vand.u32 %v6287, 4294901760
        %7079 = vmatmul.f32.gmra.mxu0 %v7078
        %v7080 = vpop.f32.mrf.mxu0
        %v7081 = vadd.f32 %v6660, %v7080
        %v7082 = vand.u32 %v6290, 4294901760
        %7083 = vmatmul.f32.gmra.mxu0 %v7082
        %v7084 = vpop.f32.mrf.mxu0
        %v7085 = vadd.f32 %v6668, %v7084
        %v7086 = vand.u32 %v6293, 4294901760
        %7087 = vmatmul.f32.gmra.mxu0 %v7086
        %v7088 = vpop.f32.mrf.mxu0
        %v7089 = vadd.f32 %v6676, %v7088
        %v7090 = vand.u32 %v6296, 4294901760
        %7091 = vmatmul.f32.gmra.mxu0 %v7090
        %v7092 = vpop.f32.mrf.mxu0
        %v7093 = vadd.f32 %v6684, %v7092
        %v7094 = vand.u32 %v6299, 4294901760
        %7095 = vmatmul.f32.gmra.mxu0 %v7094
        %v7096 = vpop.f32.mrf.mxu0
        %v7097 = vadd.f32 %v6692, %v7096
        %v7098 = vand.u32 %v6302, 4294901760
        %7099 = vmatmul.f32.gmra.mxu0 %v7098
        %v7100 = vpop.f32.mrf.mxu0
        %v7101 = vadd.f32 %v6700, %v7100
        %v7102 = vand.u32 %v6305, 4294901760
        %7103 = vmatmul.f32.gmra.mxu0 %v7102
        %v7104 = vpop.f32.mrf.mxu0
        %v7105 = vadd.f32 %v6708, %v7104
        %v7106 = vand.u32 %v6308, 4294901760
        %7107 = vmatmul.f32.gmra.mxu0 %v7106
        %v7108 = vpop.f32.mrf.mxu0
        %v7109 = vadd.f32 %v6716, %v7108
        %v7110 = vand.u32 %v6311, 4294901760
        %7111 = vmatmul.f32.gmra.mxu0 %v7110
        %v7112 = vpop.f32.mrf.mxu0
        %v7113 = vadd.f32 %v6724, %v7112
        %v7114 = vand.u32 %v6314, 4294901760
        %7115 = vmatmul.f32.gmra.mxu0 %v7114
        %v7116 = vpop.f32.mrf.mxu0
        %v7117 = vadd.f32 %v6732, %v7116
        %v7118 = vand.u32 %v6317, 4294901760
        %7119 = vmatmul.f32.gmra.mxu0 %v7118
        %v7120 = vpop.f32.mrf.mxu0
        %v7121 = vadd.f32 %v6740, %v7120
        %v7122 = vand.u32 %v6320, 4294901760
        %7123 = vmatmul.f32.gmra.mxu0 %v7122
        %v7124 = vpop.f32.mrf.mxu0
        %v7125 = vadd.f32 %v6748, %v7124
        %v7126 = vand.u32 %v6323, 4294901760
        %7127 = vmatmul.f32.gmra.mxu0 %v7126
        %v7128 = vpop.f32.mrf.mxu0
        %v7129 = vadd.f32 %v6756, %v7128
        %v7130 = vand.u32 %v6326, 4294901760
        %7131 = vmatmul.f32.gmra.mxu0 %v7130
        %v7132 = vpop.f32.mrf.mxu0
        %v7133 = vadd.f32 %v6764, %v7132
        %v7134 = vand.u32 %v6329, 4294901760
        %7135 = vmatmul.f32.gmra.mxu0 %v7134
        %v7136 = vpop.f32.mrf.mxu0
        %v7137 = vadd.f32 %v6772, %v7136
        %v7138 = vand.u32 %v6332, 4294901760
        %7139 = vmatmul.f32.gmra.mxu0 %v7138
        %v7140 = vpop.f32.mrf.mxu0
        %v7141 = vadd.f32 %v6780, %v7140
        %v7142 = vand.u32 %v6335, 4294901760
        %7143 = vmatmul.f32.gmra.mxu0 %v7142
        %v7144 = vpop.f32.mrf.mxu0
        %v7145 = vadd.f32 %v6788, %v7144
        %v7146 = vand.u32 %v6338, 4294901760
        %7147 = vmatmul.f32.gmra.mxu0 %v7146
        %v7148 = vpop.f32.mrf.mxu0
        %v7149 = vadd.f32 %v6796, %v7148
        %v7150 = vand.u32 %v6341, 4294901760
        %7151 = vmatmul.f32.gmra.mxu0 %v7150
        %v7152 = vpop.f32.mrf.mxu0
        %v7153 = vadd.f32 %v6804, %v7152
        %v7154 = vand.u32 %v6344, 4294901760
        %7155 = vmatmul.f32.gmra.mxu0 %v7154
        %v7156 = vpop.f32.mrf.mxu0
        %v7157 = vadd.f32 %v6812, %v7156
        %v7158 = vand.u32 %v6347, 4294901760
        %7159 = vmatmul.f32.gmra.mxu0 %v7158
        %v7160 = vpop.f32.mrf.mxu0
        %v7161 = vadd.f32 %v6820, %v7160
        %v7162 = vand.u32 %v6350, 4294901760
        %7163 = vmatmul.f32.gmra.mxu0 %v7162
        %v7164 = vpop.f32.mrf.mxu0
        %v7165 = vadd.f32 %v6828, %v7164
        %v7166 = vand.u32 %v6353, 4294901760
        %7167 = vmatmul.f32.gmra.mxu0 %v7166
        %v7168 = vpop.f32.mrf.mxu0
        %v7169 = vadd.f32 %v6836, %v7168
        %v7170 = vand.u32 %v6356, 4294901760
        %7171 = vmatmul.f32.gmra.mxu0 %v7170
        %v7172 = vpop.f32.mrf.mxu0
        %v7173 = vadd.f32 %v6844, %v7172
        %v7174 = vand.u32 %v6359, 4294901760
        %7175 = vmatmul.f32.gmra.mxu0 %v7174
        %v7176 = vpop.f32.mrf.mxu0
        %v7177 = vadd.f32 %v6852, %v7176
        %v7178 = vand.u32 %v6362, 4294901760
        %7179 = vmatmul.f32.gmra.mxu0 %v7178
        %v7180 = vpop.f32.mrf.mxu0
        %v7181 = vadd.f32 %v6860, %v7180
        %v7182 = vand.u32 %v6365, 4294901760
        %7183 = vmatmul.f32.gmra.mxu0 %v7182
        %v7184 = vpop.f32.mrf.mxu0
        %v7185 = vadd.f32 %v6868, %v7184
        %v7186 = vand.u32 %v6368, 4294901760
        %7187 = vmatmul.f32.gmra.mxu0 %v7186
        %v7188 = vpop.f32.mrf.mxu0
        %v7189 = vadd.f32 %v6876, %v7188
        %v7190 = vand.u32 %v6371, 4294901760
        %7191 = vmatmul.f32.gmra.mxu0 %v7190
        %v7192 = vpop.f32.mrf.mxu0
        %v7193 = vadd.f32 %v6884, %v7192
        %v7194 = vand.u32 %v6374, 4294901760
        %7195 = vmatmul.f32.gmra.mxu0 %v7194
        %v7196 = vpop.f32.mrf.mxu0
        %v7197 = vadd.f32 %v6892, %v7196
        %v7198 = vand.u32 %v6377, 4294901760
        %7199 = vmatmul.f32.gmra.mxu0 %v7198
        %v7200 = vpop.f32.mrf.mxu0
        %v7201 = vadd.f32 %v6900, %v7200
        %v7202 = vand.u32 %v6380, 4294901760
        %7203 = vmatmul.f32.gmra.mxu0 %v7202
        %v7204 = vpop.f32.mrf.mxu0
        %v7205 = vadd.f32 %v6908, %v7204
        %v7206 = vand.u32 %v6383, 4294901760
        %7207 = vmatmul.f32.gmra.mxu0 %v7206
        %v7208 = vpop.f32.mrf.mxu0
        %v7209 = vadd.f32 %v6916, %v7208
        %7210 = vdwg.mxu0
        %7211 = vmatpush.msra.mxu0 0.0
        %7212 = vmatpush.msra.mxu0 0.0
        %7213 = vmatpush.msra.mxu0 0.0
        %7214 = vmatpush.msra.mxu0 0.0
        %7215 = vmatpush.msra.mxu0 0.0
        %7216 = vmatpush.msra.mxu0 0.0
        %7217 = vmatpush.msra.mxu0 0.0
        %7218 = vmatpush.msra.mxu0 0.0
        %7219 = vmatpush.msra.mxu0 0.0
        %7220 = vmatpush.msra.mxu0 0.0
        %7221 = vmatpush.msra.mxu0 0.0
        %7222 = vmatpush.msra.mxu0 0.0
        %v7223 = vand.u32 %v6187, 4294901760
        %v7224 = vsub.f32 %v6187, %v7223
        %7225 = vmatpush.msra.mxu0 %v7224
        %v7226 = vand.u32 %v6186, 4294901760
        %v7227 = vsub.f32 %v6186, %v7226
        %7228 = vmatpush.msra.mxu0 %v7227
        %v7229 = vand.u32 %v6185, 4294901760
        %v7230 = vsub.f32 %v6185, %v7229
        %7231 = vmatpush.msra.mxu0 %v7230
        %v7232 = vand.u32 %v6184, 4294901760
        %v7233 = vsub.f32 %v6184, %v7232
        %7234 = vmatpush.msra.mxu0 %v7233
        %v7235 = vand.u32 %v6194, 4294901760
        %v7236 = vsub.f32 %v6194, %v7235
        %7237 = vmatmul.f32.gmra.mxu0 %v7236
        %v7238 = vpop.f32.mrf.mxu0
        %v7239 = vadd.f32 %v6957, %v7238
        %v7240 = vand.u32 %v6197, 4294901760
        %v7241 = vsub.f32 %v6197, %v7240
        %7242 = vmatmul.f32.gmra.mxu0 %v7241
        %v7243 = vpop.f32.mrf.mxu0
        %v7244 = vadd.f32 %v6961, %v7243
        %v7245 = vand.u32 %v6200, 4294901760
        %v7246 = vsub.f32 %v6200, %v7245
        %7247 = vmatmul.f32.gmra.mxu0 %v7246
        %v7248 = vpop.f32.mrf.mxu0
        %v7249 = vadd.f32 %v6965, %v7248
        %v7250 = vand.u32 %v6203, 4294901760
        %v7251 = vsub.f32 %v6203, %v7250
        %7252 = vmatmul.f32.gmra.mxu0 %v7251
        %v7253 = vpop.f32.mrf.mxu0
        %v7254 = vadd.f32 %v6969, %v7253
        %v7255 = vand.u32 %v6206, 4294901760
        %v7256 = vsub.f32 %v6206, %v7255
        %7257 = vmatmul.f32.gmra.mxu0 %v7256
        %v7258 = vpop.f32.mrf.mxu0
        %v7259 = vadd.f32 %v6973, %v7258
        %v7260 = vand.u32 %v6209, 4294901760
        %v7261 = vsub.f32 %v6209, %v7260
        %7262 = vmatmul.f32.gmra.mxu0 %v7261
        %v7263 = vpop.f32.mrf.mxu0
        %v7264 = vadd.f32 %v6977, %v7263
        %v7265 = vand.u32 %v6212, 4294901760
        %v7266 = vsub.f32 %v6212, %v7265
        %7267 = vmatmul.f32.gmra.mxu0 %v7266
        %v7268 = vpop.f32.mrf.mxu0
        %v7269 = vadd.f32 %v6981, %v7268
        %v7270 = vand.u32 %v6215, 4294901760
        %v7271 = vsub.f32 %v6215, %v7270
        %7272 = vmatmul.f32.gmra.mxu0 %v7271
        %v7273 = vpop.f32.mrf.mxu0
        %v7274 = vadd.f32 %v6985, %v7273
        %v7275 = vand.u32 %v6218, 4294901760
        %v7276 = vsub.f32 %v6218, %v7275
        %7277 = vmatmul.f32.gmra.mxu0 %v7276
        %v7278 = vpop.f32.mrf.mxu0
        %v7279 = vadd.f32 %v6989, %v7278
        %v7280 = vand.u32 %v6221, 4294901760
        %v7281 = vsub.f32 %v6221, %v7280
        %7282 = vmatmul.f32.gmra.mxu0 %v7281
        %v7283 = vpop.f32.mrf.mxu0
        %v7284 = vadd.f32 %v6993, %v7283
        %v7285 = vand.u32 %v6224, 4294901760
        %v7286 = vsub.f32 %v6224, %v7285
        %7287 = vmatmul.f32.gmra.mxu0 %v7286
        %v7288 = vpop.f32.mrf.mxu0
        %v7289 = vadd.f32 %v6997, %v7288
        %v7290 = vand.u32 %v6227, 4294901760
        %v7291 = vsub.f32 %v6227, %v7290
        %7292 = vmatmul.f32.gmra.mxu0 %v7291
        %v7293 = vpop.f32.mrf.mxu0
        %v7294 = vadd.f32 %v7001, %v7293
        %v7295 = vand.u32 %v6230, 4294901760
        %v7296 = vsub.f32 %v6230, %v7295
        %7297 = vmatmul.f32.gmra.mxu0 %v7296
        %v7298 = vpop.f32.mrf.mxu0
        %v7299 = vadd.f32 %v7005, %v7298
        %v7300 = vand.u32 %v6233, 4294901760
        %v7301 = vsub.f32 %v6233, %v7300
        %7302 = vmatmul.f32.gmra.mxu0 %v7301
        %v7303 = vpop.f32.mrf.mxu0
        %v7304 = vadd.f32 %v7009, %v7303
        %v7305 = vand.u32 %v6236, 4294901760
        %v7306 = vsub.f32 %v6236, %v7305
        %7307 = vmatmul.f32.gmra.mxu0 %v7306
        %v7308 = vpop.f32.mrf.mxu0
        %v7309 = vadd.f32 %v7013, %v7308
        %v7310 = vand.u32 %v6239, 4294901760
        %v7311 = vsub.f32 %v6239, %v7310
        %7312 = vmatmul.f32.gmra.mxu0 %v7311
        %v7313 = vpop.f32.mrf.mxu0
        %v7314 = vadd.f32 %v7017, %v7313
        %v7315 = vand.u32 %v6242, 4294901760
        %v7316 = vsub.f32 %v6242, %v7315
        %7317 = vmatmul.f32.gmra.mxu0 %v7316
        %v7318 = vpop.f32.mrf.mxu0
        %v7319 = vadd.f32 %v7021, %v7318
        %v7320 = vand.u32 %v6245, 4294901760
        %v7321 = vsub.f32 %v6245, %v7320
        %7322 = vmatmul.f32.gmra.mxu0 %v7321
        %v7323 = vpop.f32.mrf.mxu0
        %v7324 = vadd.f32 %v7025, %v7323
        %v7325 = vand.u32 %v6248, 4294901760
        %v7326 = vsub.f32 %v6248, %v7325
        %7327 = vmatmul.f32.gmra.mxu0 %v7326
        %v7328 = vpop.f32.mrf.mxu0
        %v7329 = vadd.f32 %v7029, %v7328
        %v7330 = vand.u32 %v6251, 4294901760
        %v7331 = vsub.f32 %v6251, %v7330
        %7332 = vmatmul.f32.gmra.mxu0 %v7331
        %v7333 = vpop.f32.mrf.mxu0
        %v7334 = vadd.f32 %v7033, %v7333
        %v7335 = vand.u32 %v6254, 4294901760
        %v7336 = vsub.f32 %v6254, %v7335
        %7337 = vmatmul.f32.gmra.mxu0 %v7336
        %v7338 = vpop.f32.mrf.mxu0
        %v7339 = vadd.f32 %v7037, %v7338
        %v7340 = vand.u32 %v6257, 4294901760
        %v7341 = vsub.f32 %v6257, %v7340
        %7342 = vmatmul.f32.gmra.mxu0 %v7341
        %v7343 = vpop.f32.mrf.mxu0
        %v7344 = vadd.f32 %v7041, %v7343
        %v7345 = vand.u32 %v6260, 4294901760
        %v7346 = vsub.f32 %v6260, %v7345
        %7347 = vmatmul.f32.gmra.mxu0 %v7346
        %v7348 = vpop.f32.mrf.mxu0
        %v7349 = vadd.f32 %v7045, %v7348
        %v7350 = vand.u32 %v6263, 4294901760
        %v7351 = vsub.f32 %v6263, %v7350
        %7352 = vmatmul.f32.gmra.mxu0 %v7351
        %v7353 = vpop.f32.mrf.mxu0
        %v7354 = vadd.f32 %v7049, %v7353
        %v7355 = vand.u32 %v6266, 4294901760
        %v7356 = vsub.f32 %v6266, %v7355
        %7357 = vmatmul.f32.gmra.mxu0 %v7356
        %v7358 = vpop.f32.mrf.mxu0
        %v7359 = vadd.f32 %v7053, %v7358
        %v7360 = vand.u32 %v6269, 4294901760
        %v7361 = vsub.f32 %v6269, %v7360
        %7362 = vmatmul.f32.gmra.mxu0 %v7361
        %v7363 = vpop.f32.mrf.mxu0
        %v7364 = vadd.f32 %v7057, %v7363
        %v7365 = vand.u32 %v6272, 4294901760
        %v7366 = vsub.f32 %v6272, %v7365
        %7367 = vmatmul.f32.gmra.mxu0 %v7366
        %v7368 = vpop.f32.mrf.mxu0
        %v7369 = vadd.f32 %v7061, %v7368
        %v7370 = vand.u32 %v6275, 4294901760
        %v7371 = vsub.f32 %v6275, %v7370
        %7372 = vmatmul.f32.gmra.mxu0 %v7371
        %v7373 = vpop.f32.mrf.mxu0
        %v7374 = vadd.f32 %v7065, %v7373
        %v7375 = vand.u32 %v6278, 4294901760
        %v7376 = vsub.f32 %v6278, %v7375
        %7377 = vmatmul.f32.gmra.mxu0 %v7376
        %v7378 = vpop.f32.mrf.mxu0
        %v7379 = vadd.f32 %v7069, %v7378
        %v7380 = vand.u32 %v6281, 4294901760
        %v7381 = vsub.f32 %v6281, %v7380
        %7382 = vmatmul.f32.gmra.mxu0 %v7381
        %v7383 = vpop.f32.mrf.mxu0
        %v7384 = vadd.f32 %v7073, %v7383
        %v7385 = vand.u32 %v6284, 4294901760
        %v7386 = vsub.f32 %v6284, %v7385
        %7387 = vmatmul.f32.gmra.mxu0 %v7386
        %v7388 = vpop.f32.mrf.mxu0
        %v7389 = vadd.f32 %v7077, %v7388
        %v7390 = vand.u32 %v6287, 4294901760
        %v7391 = vsub.f32 %v6287, %v7390
        %7392 = vmatmul.f32.gmra.mxu0 %v7391
        %v7393 = vpop.f32.mrf.mxu0
        %v7394 = vadd.f32 %v7081, %v7393
        %v7395 = vand.u32 %v6290, 4294901760
        %v7396 = vsub.f32 %v6290, %v7395
        %7397 = vmatmul.f32.gmra.mxu0 %v7396
        %v7398 = vpop.f32.mrf.mxu0
        %v7399 = vadd.f32 %v7085, %v7398
        %v7400 = vand.u32 %v6293, 4294901760
        %v7401 = vsub.f32 %v6293, %v7400
        %7402 = vmatmul.f32.gmra.mxu0 %v7401
        %v7403 = vpop.f32.mrf.mxu0
        %v7404 = vadd.f32 %v7089, %v7403
        %v7405 = vand.u32 %v6296, 4294901760
        %v7406 = vsub.f32 %v6296, %v7405
        %7407 = vmatmul.f32.gmra.mxu0 %v7406
        %v7408 = vpop.f32.mrf.mxu0
        %v7409 = vadd.f32 %v7093, %v7408
        %v7410 = vand.u32 %v6299, 4294901760
        %v7411 = vsub.f32 %v6299, %v7410
        %7412 = vmatmul.f32.gmra.mxu0 %v7411
        %v7413 = vpop.f32.mrf.mxu0
        %v7414 = vadd.f32 %v7097, %v7413
        %v7415 = vand.u32 %v6302, 4294901760
        %v7416 = vsub.f32 %v6302, %v7415
        %7417 = vmatmul.f32.gmra.mxu0 %v7416
        %v7418 = vpop.f32.mrf.mxu0
        %v7419 = vadd.f32 %v7101, %v7418
        %v7420 = vand.u32 %v6305, 4294901760
        %v7421 = vsub.f32 %v6305, %v7420
        %7422 = vmatmul.f32.gmra.mxu0 %v7421
        %v7423 = vpop.f32.mrf.mxu0
        %v7424 = vadd.f32 %v7105, %v7423
        %v7425 = vand.u32 %v6308, 4294901760
        %v7426 = vsub.f32 %v6308, %v7425
        %7427 = vmatmul.f32.gmra.mxu0 %v7426
        %v7428 = vpop.f32.mrf.mxu0
        %v7429 = vadd.f32 %v7109, %v7428
        %v7430 = vand.u32 %v6311, 4294901760
        %v7431 = vsub.f32 %v6311, %v7430
        %7432 = vmatmul.f32.gmra.mxu0 %v7431
        %v7433 = vpop.f32.mrf.mxu0
        %v7434 = vadd.f32 %v7113, %v7433
        %v7435 = vand.u32 %v6314, 4294901760
        %v7436 = vsub.f32 %v6314, %v7435
        %7437 = vmatmul.f32.gmra.mxu0 %v7436
        %v7438 = vpop.f32.mrf.mxu0
        %v7439 = vadd.f32 %v7117, %v7438
        %v7440 = vand.u32 %v6317, 4294901760
        %v7441 = vsub.f32 %v6317, %v7440
        %7442 = vmatmul.f32.gmra.mxu0 %v7441
        %v7443 = vpop.f32.mrf.mxu0
        %v7444 = vadd.f32 %v7121, %v7443
        %v7445 = vand.u32 %v6320, 4294901760
        %v7446 = vsub.f32 %v6320, %v7445
        %7447 = vmatmul.f32.gmra.mxu0 %v7446
        %v7448 = vpop.f32.mrf.mxu0
        %v7449 = vadd.f32 %v7125, %v7448
        %v7450 = vand.u32 %v6323, 4294901760
        %v7451 = vsub.f32 %v6323, %v7450
        %7452 = vmatmul.f32.gmra.mxu0 %v7451
        %v7453 = vpop.f32.mrf.mxu0
        %v7454 = vadd.f32 %v7129, %v7453
        %v7455 = vand.u32 %v6326, 4294901760
        %v7456 = vsub.f32 %v6326, %v7455
        %7457 = vmatmul.f32.gmra.mxu0 %v7456
        %v7458 = vpop.f32.mrf.mxu0
        %v7459 = vadd.f32 %v7133, %v7458
        %v7460 = vand.u32 %v6329, 4294901760
        %v7461 = vsub.f32 %v6329, %v7460
        %7462 = vmatmul.f32.gmra.mxu0 %v7461
        %v7463 = vpop.f32.mrf.mxu0
        %v7464 = vadd.f32 %v7137, %v7463
        %v7465 = vand.u32 %v6332, 4294901760
        %v7466 = vsub.f32 %v6332, %v7465
        %7467 = vmatmul.f32.gmra.mxu0 %v7466
        %v7468 = vpop.f32.mrf.mxu0
        %v7469 = vadd.f32 %v7141, %v7468
        %v7470 = vand.u32 %v6335, 4294901760
        %v7471 = vsub.f32 %v6335, %v7470
        %7472 = vmatmul.f32.gmra.mxu0 %v7471
        %v7473 = vpop.f32.mrf.mxu0
        %v7474 = vadd.f32 %v7145, %v7473
        %v7475 = vand.u32 %v6338, 4294901760
        %v7476 = vsub.f32 %v6338, %v7475
        %7477 = vmatmul.f32.gmra.mxu0 %v7476
        %v7478 = vpop.f32.mrf.mxu0
        %v7479 = vadd.f32 %v7149, %v7478
        %v7480 = vand.u32 %v6341, 4294901760
        %v7481 = vsub.f32 %v6341, %v7480
        %7482 = vmatmul.f32.gmra.mxu0 %v7481
        %v7483 = vpop.f32.mrf.mxu0
        %v7484 = vadd.f32 %v7153, %v7483
        %v7485 = vand.u32 %v6344, 4294901760
        %v7486 = vsub.f32 %v6344, %v7485
        %7487 = vmatmul.f32.gmra.mxu0 %v7486
        %v7488 = vpop.f32.mrf.mxu0
        %v7489 = vadd.f32 %v7157, %v7488
        %v7490 = vand.u32 %v6347, 4294901760
        %v7491 = vsub.f32 %v6347, %v7490
        %7492 = vmatmul.f32.gmra.mxu0 %v7491
        %v7493 = vpop.f32.mrf.mxu0
        %v7494 = vadd.f32 %v7161, %v7493
        %v7495 = vand.u32 %v6350, 4294901760
        %v7496 = vsub.f32 %v6350, %v7495
        %7497 = vmatmul.f32.gmra.mxu0 %v7496
        %v7498 = vpop.f32.mrf.mxu0
        %v7499 = vadd.f32 %v7165, %v7498
        %v7500 = vand.u32 %v6353, 4294901760
        %v7501 = vsub.f32 %v6353, %v7500
        %7502 = vmatmul.f32.gmra.mxu0 %v7501
        %v7503 = vpop.f32.mrf.mxu0
        %v7504 = vadd.f32 %v7169, %v7503
        %v7505 = vand.u32 %v6356, 4294901760
        %v7506 = vsub.f32 %v6356, %v7505
        %7507 = vmatmul.f32.gmra.mxu0 %v7506
        %v7508 = vpop.f32.mrf.mxu0
        %v7509 = vadd.f32 %v7173, %v7508
        %v7510 = vand.u32 %v6359, 4294901760
        %v7511 = vsub.f32 %v6359, %v7510
        %7512 = vmatmul.f32.gmra.mxu0 %v7511
        %v7513 = vpop.f32.mrf.mxu0
        %v7514 = vadd.f32 %v7177, %v7513
        %v7515 = vand.u32 %v6362, 4294901760
        %v7516 = vsub.f32 %v6362, %v7515
        %7517 = vmatmul.f32.gmra.mxu0 %v7516
        %v7518 = vpop.f32.mrf.mxu0
        %v7519 = vadd.f32 %v7181, %v7518
        %v7520 = vand.u32 %v6365, 4294901760
        %v7521 = vsub.f32 %v6365, %v7520
        %7522 = vmatmul.f32.gmra.mxu0 %v7521
        %v7523 = vpop.f32.mrf.mxu0
        %v7524 = vadd.f32 %v7185, %v7523
        %v7525 = vand.u32 %v6368, 4294901760
        %v7526 = vsub.f32 %v6368, %v7525
        %7527 = vmatmul.f32.gmra.mxu0 %v7526
        %v7528 = vpop.f32.mrf.mxu0
        %v7529 = vadd.f32 %v7189, %v7528
        %v7530 = vand.u32 %v6371, 4294901760
        %v7531 = vsub.f32 %v6371, %v7530
        %7532 = vmatmul.f32.gmra.mxu0 %v7531
        %v7533 = vpop.f32.mrf.mxu0
        %v7534 = vadd.f32 %v7193, %v7533
        %v7535 = vand.u32 %v6374, 4294901760
        %v7536 = vsub.f32 %v6374, %v7535
        %7537 = vmatmul.f32.gmra.mxu0 %v7536
        %v7538 = vpop.f32.mrf.mxu0
        %v7539 = vadd.f32 %v7197, %v7538
        %v7540 = vand.u32 %v6377, 4294901760
        %v7541 = vsub.f32 %v6377, %v7540
        %7542 = vmatmul.f32.gmra.mxu0 %v7541
        %v7543 = vpop.f32.mrf.mxu0
        %v7544 = vadd.f32 %v7201, %v7543
        %v7545 = vand.u32 %v6380, 4294901760
        %v7546 = vsub.f32 %v6380, %v7545
        %7547 = vmatmul.f32.gmra.mxu0 %v7546
        %v7548 = vpop.f32.mrf.mxu0
        %v7549 = vadd.f32 %v7205, %v7548
        %v7550 = vand.u32 %v6383, 4294901760
        %v7551 = vsub.f32 %v6383, %v7550
        %7552 = vmatmul.f32.gmra.mxu0 %v7551
        %v7553 = vpop.f32.mrf.mxu0
        %v7554 = vadd.f32 %v7209, %v7553
        %7555 = vdwg.mxu0
        %7556 = vmatpush.msra.mxu0 0.0
        %7557 = vmatpush.msra.mxu0 0.0
        %7558 = vmatpush.msra.mxu0 0.0
        %7559 = vmatpush.msra.mxu0 0.0
        %7560 = vmatpush.msra.mxu0 0.0
        %7561 = vmatpush.msra.mxu0 0.0
        %7562 = vmatpush.msra.mxu0 0.0
        %7563 = vmatpush.msra.mxu0 0.0
        %7564 = vmatpush.msra.mxu0 0.0
        %7565 = vmatpush.msra.mxu0 0.0
        %7566 = vmatpush.msra.mxu0 0.0
        %7567 = vmatpush.msra.mxu0 0.0
        %v7568 = vand.u32 %v6187, 4294901760
        %7569 = vmatpush.msra.mxu0 %v7568
        %v7570 = vand.u32 %v6186, 4294901760
        %7571 = vmatpush.msra.mxu0 %v7570
        %v7572 = vand.u32 %v6185, 4294901760
        %7573 = vmatpush.msra.mxu0 %v7572
        %v7574 = vand.u32 %v6184, 4294901760
        %7575 = vmatpush.msra.mxu0 %v7574
        %v7576 = vand.u32 %v6194, 4294901760
        %v7577 = vsub.f32 %v6194, %v7576
        %v7578 = vand.u32 %v7577, 4294901760
        %7579 = vmatmul.f32.gmra.mxu0 %v7578
        %v7580 = vpop.f32.mrf.mxu0
        %v7581 = vadd.f32 %v7239, %v7580
        %v7582 = vand.u32 %v6197, 4294901760
        %v7583 = vsub.f32 %v6197, %v7582
        %v7584 = vand.u32 %v7583, 4294901760
        %7585 = vmatmul.f32.gmra.mxu0 %v7584
        %v7586 = vpop.f32.mrf.mxu0
        %v7587 = vadd.f32 %v7244, %v7586
        %v7588 = vand.u32 %v6200, 4294901760
        %v7589 = vsub.f32 %v6200, %v7588
        %v7590 = vand.u32 %v7589, 4294901760
        %7591 = vmatmul.f32.gmra.mxu0 %v7590
        %v7592 = vpop.f32.mrf.mxu0
        %v7593 = vadd.f32 %v7249, %v7592
        %v7594 = vand.u32 %v6203, 4294901760
        %v7595 = vsub.f32 %v6203, %v7594
        %v7596 = vand.u32 %v7595, 4294901760
        %7597 = vmatmul.f32.gmra.mxu0 %v7596
        %v7598 = vpop.f32.mrf.mxu0
        %v7599 = vadd.f32 %v7254, %v7598
        %v7600 = vand.u32 %v6206, 4294901760
        %v7601 = vsub.f32 %v6206, %v7600
        %v7602 = vand.u32 %v7601, 4294901760
        %7603 = vmatmul.f32.gmra.mxu0 %v7602
        %v7604 = vpop.f32.mrf.mxu0
        %v7605 = vadd.f32 %v7259, %v7604
        %v7606 = vand.u32 %v6209, 4294901760
        %v7607 = vsub.f32 %v6209, %v7606
        %v7608 = vand.u32 %v7607, 4294901760
        %7609 = vmatmul.f32.gmra.mxu0 %v7608
        %v7610 = vpop.f32.mrf.mxu0
        %v7611 = vadd.f32 %v7264, %v7610
        %v7612 = vand.u32 %v6212, 4294901760
        %v7613 = vsub.f32 %v6212, %v7612
        %v7614 = vand.u32 %v7613, 4294901760
        %7615 = vmatmul.f32.gmra.mxu0 %v7614
        %v7616 = vpop.f32.mrf.mxu0
        %v7617 = vadd.f32 %v7269, %v7616
        %v7618 = vand.u32 %v6215, 4294901760
        %v7619 = vsub.f32 %v6215, %v7618
        %v7620 = vand.u32 %v7619, 4294901760
        %7621 = vmatmul.f32.gmra.mxu0 %v7620
        %v7622 = vpop.f32.mrf.mxu0
        %v7623 = vadd.f32 %v7274, %v7622
        %v7624 = vand.u32 %v6218, 4294901760
        %v7625 = vsub.f32 %v6218, %v7624
        %v7626 = vand.u32 %v7625, 4294901760
        %7627 = vmatmul.f32.gmra.mxu0 %v7626
        %v7628 = vpop.f32.mrf.mxu0
        %v7629 = vadd.f32 %v7279, %v7628
        %v7630 = vand.u32 %v6221, 4294901760
        %v7631 = vsub.f32 %v6221, %v7630
        %v7632 = vand.u32 %v7631, 4294901760
        %7633 = vmatmul.f32.gmra.mxu0 %v7632
        %v7634 = vpop.f32.mrf.mxu0
        %v7635 = vadd.f32 %v7284, %v7634
        %v7636 = vand.u32 %v6224, 4294901760
        %v7637 = vsub.f32 %v6224, %v7636
        %v7638 = vand.u32 %v7637, 4294901760
        %7639 = vmatmul.f32.gmra.mxu0 %v7638
        %v7640 = vpop.f32.mrf.mxu0
        %v7641 = vadd.f32 %v7289, %v7640
        %v7642 = vand.u32 %v6227, 4294901760
        %v7643 = vsub.f32 %v6227, %v7642
        %v7644 = vand.u32 %v7643, 4294901760
        %7645 = vmatmul.f32.gmra.mxu0 %v7644
        %v7646 = vpop.f32.mrf.mxu0
        %v7647 = vadd.f32 %v7294, %v7646
        %v7648 = vand.u32 %v6230, 4294901760
        %v7649 = vsub.f32 %v6230, %v7648
        %v7650 = vand.u32 %v7649, 4294901760
        %7651 = vmatmul.f32.gmra.mxu0 %v7650
        %v7652 = vpop.f32.mrf.mxu0
        %v7653 = vadd.f32 %v7299, %v7652
        %v7654 = vand.u32 %v6233, 4294901760
        %v7655 = vsub.f32 %v6233, %v7654
        %v7656 = vand.u32 %v7655, 4294901760
        %7657 = vmatmul.f32.gmra.mxu0 %v7656
        %v7658 = vpop.f32.mrf.mxu0
        %v7659 = vadd.f32 %v7304, %v7658
        %v7660 = vand.u32 %v6236, 4294901760
        %v7661 = vsub.f32 %v6236, %v7660
        %v7662 = vand.u32 %v7661, 4294901760
        %7663 = vmatmul.f32.gmra.mxu0 %v7662
        %v7664 = vpop.f32.mrf.mxu0
        %v7665 = vadd.f32 %v7309, %v7664
        %v7666 = vand.u32 %v6239, 4294901760
        %v7667 = vsub.f32 %v6239, %v7666
        %v7668 = vand.u32 %v7667, 4294901760
        %7669 = vmatmul.f32.gmra.mxu0 %v7668
        %v7670 = vpop.f32.mrf.mxu0
        %v7671 = vadd.f32 %v7314, %v7670
        %v7672 = vand.u32 %v6242, 4294901760
        %v7673 = vsub.f32 %v6242, %v7672
        %v7674 = vand.u32 %v7673, 4294901760
        %7675 = vmatmul.f32.gmra.mxu0 %v7674
        %v7676 = vpop.f32.mrf.mxu0
        %v7677 = vadd.f32 %v7319, %v7676
        %v7678 = vand.u32 %v6245, 4294901760
        %v7679 = vsub.f32 %v6245, %v7678
        %v7680 = vand.u32 %v7679, 4294901760
        %7681 = vmatmul.f32.gmra.mxu0 %v7680
        %v7682 = vpop.f32.mrf.mxu0
        %v7683 = vadd.f32 %v7324, %v7682
        %v7684 = vand.u32 %v6248, 4294901760
        %v7685 = vsub.f32 %v6248, %v7684
        %v7686 = vand.u32 %v7685, 4294901760
        %7687 = vmatmul.f32.gmra.mxu0 %v7686
        %v7688 = vpop.f32.mrf.mxu0
        %v7689 = vadd.f32 %v7329, %v7688
        %v7690 = vand.u32 %v6251, 4294901760
        %v7691 = vsub.f32 %v6251, %v7690
        %v7692 = vand.u32 %v7691, 4294901760
        %7693 = vmatmul.f32.gmra.mxu0 %v7692
        %v7694 = vpop.f32.mrf.mxu0
        %v7695 = vadd.f32 %v7334, %v7694
        %v7696 = vand.u32 %v6254, 4294901760
        %v7697 = vsub.f32 %v6254, %v7696
        %v7698 = vand.u32 %v7697, 4294901760
        %7699 = vmatmul.f32.gmra.mxu0 %v7698
        %v7700 = vpop.f32.mrf.mxu0
        %v7701 = vadd.f32 %v7339, %v7700
        %v7702 = vand.u32 %v6257, 4294901760
        %v7703 = vsub.f32 %v6257, %v7702
        %v7704 = vand.u32 %v7703, 4294901760
        %7705 = vmatmul.f32.gmra.mxu0 %v7704
        %v7706 = vpop.f32.mrf.mxu0
        %v7707 = vadd.f32 %v7344, %v7706
        %v7708 = vand.u32 %v6260, 4294901760
        %v7709 = vsub.f32 %v6260, %v7708
        %v7710 = vand.u32 %v7709, 4294901760
        %7711 = vmatmul.f32.gmra.mxu0 %v7710
        %v7712 = vpop.f32.mrf.mxu0
        %v7713 = vadd.f32 %v7349, %v7712
        %v7714 = vand.u32 %v6263, 4294901760
        %v7715 = vsub.f32 %v6263, %v7714
        %v7716 = vand.u32 %v7715, 4294901760
        %7717 = vmatmul.f32.gmra.mxu0 %v7716
        %v7718 = vpop.f32.mrf.mxu0
        %v7719 = vadd.f32 %v7354, %v7718
        %v7720 = vand.u32 %v6266, 4294901760
        %v7721 = vsub.f32 %v6266, %v7720
        %v7722 = vand.u32 %v7721, 4294901760
        %7723 = vmatmul.f32.gmra.mxu0 %v7722
        %v7724 = vpop.f32.mrf.mxu0
        %v7725 = vadd.f32 %v7359, %v7724
        %v7726 = vand.u32 %v6269, 4294901760
        %v7727 = vsub.f32 %v6269, %v7726
        %v7728 = vand.u32 %v7727, 4294901760
        %7729 = vmatmul.f32.gmra.mxu0 %v7728
        %v7730 = vpop.f32.mrf.mxu0
        %v7731 = vadd.f32 %v7364, %v7730
        %v7732 = vand.u32 %v6272, 4294901760
        %v7733 = vsub.f32 %v6272, %v7732
        %v7734 = vand.u32 %v7733, 4294901760
        %7735 = vmatmul.f32.gmra.mxu0 %v7734
        %v7736 = vpop.f32.mrf.mxu0
        %v7737 = vadd.f32 %v7369, %v7736
        %v7738 = vand.u32 %v6275, 4294901760
        %v7739 = vsub.f32 %v6275, %v7738
        %v7740 = vand.u32 %v7739, 4294901760
        %7741 = vmatmul.f32.gmra.mxu0 %v7740
        %v7742 = vpop.f32.mrf.mxu0
        %v7743 = vadd.f32 %v7374, %v7742
        %v7744 = vand.u32 %v6278, 4294901760
        %v7745 = vsub.f32 %v6278, %v7744
        %v7746 = vand.u32 %v7745, 4294901760
        %7747 = vmatmul.f32.gmra.mxu0 %v7746
        %v7748 = vpop.f32.mrf.mxu0
        %v7749 = vadd.f32 %v7379, %v7748
        %v7750 = vand.u32 %v6281, 4294901760
        %v7751 = vsub.f32 %v6281, %v7750
        %v7752 = vand.u32 %v7751, 4294901760
        %7753 = vmatmul.f32.gmra.mxu0 %v7752
        %v7754 = vpop.f32.mrf.mxu0
        %v7755 = vadd.f32 %v7384, %v7754
        %v7756 = vand.u32 %v6284, 4294901760
        %v7757 = vsub.f32 %v6284, %v7756
        %v7758 = vand.u32 %v7757, 4294901760
        %7759 = vmatmul.f32.gmra.mxu0 %v7758
        %v7760 = vpop.f32.mrf.mxu0
        %v7761 = vadd.f32 %v7389, %v7760
        %v7762 = vand.u32 %v6287, 4294901760
        %v7763 = vsub.f32 %v6287, %v7762
        %v7764 = vand.u32 %v7763, 4294901760
        %7765 = vmatmul.f32.gmra.mxu0 %v7764
        %v7766 = vpop.f32.mrf.mxu0
        %v7767 = vadd.f32 %v7394, %v7766
        %v7768 = vand.u32 %v6290, 4294901760
        %v7769 = vsub.f32 %v6290, %v7768
        %v7770 = vand.u32 %v7769, 4294901760
        %7771 = vmatmul.f32.gmra.mxu0 %v7770
        %v7772 = vpop.f32.mrf.mxu0
        %v7773 = vadd.f32 %v7399, %v7772
        %v7774 = vand.u32 %v6293, 4294901760
        %v7775 = vsub.f32 %v6293, %v7774
        %v7776 = vand.u32 %v7775, 4294901760
        %7777 = vmatmul.f32.gmra.mxu0 %v7776
        %v7778 = vpop.f32.mrf.mxu0
        %v7779 = vadd.f32 %v7404, %v7778
        %v7780 = vand.u32 %v6296, 4294901760
        %v7781 = vsub.f32 %v6296, %v7780
        %v7782 = vand.u32 %v7781, 4294901760
        %7783 = vmatmul.f32.gmra.mxu0 %v7782
        %v7784 = vpop.f32.mrf.mxu0
        %v7785 = vadd.f32 %v7409, %v7784
        %v7786 = vand.u32 %v6299, 4294901760
        %v7787 = vsub.f32 %v6299, %v7786
        %v7788 = vand.u32 %v7787, 4294901760
        %7789 = vmatmul.f32.gmra.mxu0 %v7788
        %v7790 = vpop.f32.mrf.mxu0
        %v7791 = vadd.f32 %v7414, %v7790
        %v7792 = vand.u32 %v6302, 4294901760
        %v7793 = vsub.f32 %v6302, %v7792
        %v7794 = vand.u32 %v7793, 4294901760
        %7795 = vmatmul.f32.gmra.mxu0 %v7794
        %v7796 = vpop.f32.mrf.mxu0
        %v7797 = vadd.f32 %v7419, %v7796
        %v7798 = vand.u32 %v6305, 4294901760
        %v7799 = vsub.f32 %v6305, %v7798
        %v7800 = vand.u32 %v7799, 4294901760
        %7801 = vmatmul.f32.gmra.mxu0 %v7800
        %v7802 = vpop.f32.mrf.mxu0
        %v7803 = vadd.f32 %v7424, %v7802
        %v7804 = vand.u32 %v6308, 4294901760
        %v7805 = vsub.f32 %v6308, %v7804
        %v7806 = vand.u32 %v7805, 4294901760
        %7807 = vmatmul.f32.gmra.mxu0 %v7806
        %v7808 = vpop.f32.mrf.mxu0
        %v7809 = vadd.f32 %v7429, %v7808
        %v7810 = vand.u32 %v6311, 4294901760
        %v7811 = vsub.f32 %v6311, %v7810
        %v7812 = vand.u32 %v7811, 4294901760
        %7813 = vmatmul.f32.gmra.mxu0 %v7812
        %v7814 = vpop.f32.mrf.mxu0
        %v7815 = vadd.f32 %v7434, %v7814
        %v7816 = vand.u32 %v6314, 4294901760
        %v7817 = vsub.f32 %v6314, %v7816
        %v7818 = vand.u32 %v7817, 4294901760
        %7819 = vmatmul.f32.gmra.mxu0 %v7818
        %v7820 = vpop.f32.mrf.mxu0
        %v7821 = vadd.f32 %v7439, %v7820
        %v7822 = vand.u32 %v6317, 4294901760
        %v7823 = vsub.f32 %v6317, %v7822
        %v7824 = vand.u32 %v7823, 4294901760
        %7825 = vmatmul.f32.gmra.mxu0 %v7824
        %v7826 = vpop.f32.mrf.mxu0
        %v7827 = vadd.f32 %v7444, %v7826
        %v7828 = vand.u32 %v6320, 4294901760
        %v7829 = vsub.f32 %v6320, %v7828
        %v7830 = vand.u32 %v7829, 4294901760
        %7831 = vmatmul.f32.gmra.mxu0 %v7830
        %v7832 = vpop.f32.mrf.mxu0
        %v7833 = vadd.f32 %v7449, %v7832
        %v7834 = vand.u32 %v6323, 4294901760
        %v7835 = vsub.f32 %v6323, %v7834
        %v7836 = vand.u32 %v7835, 4294901760
        %7837 = vmatmul.f32.gmra.mxu0 %v7836
        %v7838 = vpop.f32.mrf.mxu0
        %v7839 = vadd.f32 %v7454, %v7838
        %v7840 = vand.u32 %v6326, 4294901760
        %v7841 = vsub.f32 %v6326, %v7840
        %v7842 = vand.u32 %v7841, 4294901760
        %7843 = vmatmul.f32.gmra.mxu0 %v7842
        %v7844 = vpop.f32.mrf.mxu0
        %v7845 = vadd.f32 %v7459, %v7844
        %v7846 = vand.u32 %v6329, 4294901760
        %v7847 = vsub.f32 %v6329, %v7846
        %v7848 = vand.u32 %v7847, 4294901760
        %7849 = vmatmul.f32.gmra.mxu0 %v7848
        %v7850 = vpop.f32.mrf.mxu0
        %v7851 = vadd.f32 %v7464, %v7850
        %v7852 = vand.u32 %v6332, 4294901760
        %v7853 = vsub.f32 %v6332, %v7852
        %v7854 = vand.u32 %v7853, 4294901760
        %7855 = vmatmul.f32.gmra.mxu0 %v7854
        %v7856 = vpop.f32.mrf.mxu0
        %v7857 = vadd.f32 %v7469, %v7856
        %v7858 = vand.u32 %v6335, 4294901760
        %v7859 = vsub.f32 %v6335, %v7858
        %v7860 = vand.u32 %v7859, 4294901760
        %7861 = vmatmul.f32.gmra.mxu0 %v7860
        %v7862 = vpop.f32.mrf.mxu0
        %v7863 = vadd.f32 %v7474, %v7862
        %v7864 = vand.u32 %v6338, 4294901760
        %v7865 = vsub.f32 %v6338, %v7864
        %v7866 = vand.u32 %v7865, 4294901760
        %7867 = vmatmul.f32.gmra.mxu0 %v7866
        %v7868 = vpop.f32.mrf.mxu0
        %v7869 = vadd.f32 %v7479, %v7868
        %v7870 = vand.u32 %v6341, 4294901760
        %v7871 = vsub.f32 %v6341, %v7870
        %v7872 = vand.u32 %v7871, 4294901760
        %7873 = vmatmul.f32.gmra.mxu0 %v7872
        %v7874 = vpop.f32.mrf.mxu0
        %v7875 = vadd.f32 %v7484, %v7874
        %v7876 = vand.u32 %v6344, 4294901760
        %v7877 = vsub.f32 %v6344, %v7876
        %v7878 = vand.u32 %v7877, 4294901760
        %7879 = vmatmul.f32.gmra.mxu0 %v7878
        %v7880 = vpop.f32.mrf.mxu0
        %v7881 = vadd.f32 %v7489, %v7880
        %v7882 = vand.u32 %v6347, 4294901760
        %v7883 = vsub.f32 %v6347, %v7882
        %v7884 = vand.u32 %v7883, 4294901760
        %7885 = vmatmul.f32.gmra.mxu0 %v7884
        %v7886 = vpop.f32.mrf.mxu0
        %v7887 = vadd.f32 %v7494, %v7886
        %v7888 = vand.u32 %v6350, 4294901760
        %v7889 = vsub.f32 %v6350, %v7888
        %v7890 = vand.u32 %v7889, 4294901760
        %7891 = vmatmul.f32.gmra.mxu0 %v7890
        %v7892 = vpop.f32.mrf.mxu0
        %v7893 = vadd.f32 %v7499, %v7892
        %v7894 = vand.u32 %v6353, 4294901760
        %v7895 = vsub.f32 %v6353, %v7894
        %v7896 = vand.u32 %v7895, 4294901760
        %7897 = vmatmul.f32.gmra.mxu0 %v7896
        %v7898 = vpop.f32.mrf.mxu0
        %v7899 = vadd.f32 %v7504, %v7898
        %v7900 = vand.u32 %v6356, 4294901760
        %v7901 = vsub.f32 %v6356, %v7900
        %v7902 = vand.u32 %v7901, 4294901760
        %7903 = vmatmul.f32.gmra.mxu0 %v7902
        %v7904 = vpop.f32.mrf.mxu0
        %v7905 = vadd.f32 %v7509, %v7904
        %v7906 = vand.u32 %v6359, 4294901760
        %v7907 = vsub.f32 %v6359, %v7906
        %v7908 = vand.u32 %v7907, 4294901760
        %7909 = vmatmul.f32.gmra.mxu0 %v7908
        %v7910 = vpop.f32.mrf.mxu0
        %v7911 = vadd.f32 %v7514, %v7910
        %v7912 = vand.u32 %v6362, 4294901760
        %v7913 = vsub.f32 %v6362, %v7912
        %v7914 = vand.u32 %v7913, 4294901760
        %7915 = vmatmul.f32.gmra.mxu0 %v7914
        %v7916 = vpop.f32.mrf.mxu0
        %v7917 = vadd.f32 %v7519, %v7916
        %v7918 = vand.u32 %v6365, 4294901760
        %v7919 = vsub.f32 %v6365, %v7918
        %v7920 = vand.u32 %v7919, 4294901760
        %7921 = vmatmul.f32.gmra.mxu0 %v7920
        %v7922 = vpop.f32.mrf.mxu0
        %v7923 = vadd.f32 %v7524, %v7922
        %v7924 = vand.u32 %v6368, 4294901760
        %v7925 = vsub.f32 %v6368, %v7924
        %v7926 = vand.u32 %v7925, 4294901760
        %7927 = vmatmul.f32.gmra.mxu0 %v7926
        %v7928 = vpop.f32.mrf.mxu0
        %v7929 = vadd.f32 %v7529, %v7928
        %v7930 = vand.u32 %v6371, 4294901760
        %v7931 = vsub.f32 %v6371, %v7930
        %v7932 = vand.u32 %v7931, 4294901760
        %7933 = vmatmul.f32.gmra.mxu0 %v7932
        %v7934 = vpop.f32.mrf.mxu0
        %v7935 = vadd.f32 %v7534, %v7934
        %v7936 = vand.u32 %v6374, 4294901760
        %v7937 = vsub.f32 %v6374, %v7936
        %v7938 = vand.u32 %v7937, 4294901760
        %7939 = vmatmul.f32.gmra.mxu0 %v7938
        %v7940 = vpop.f32.mrf.mxu0
        %v7941 = vadd.f32 %v7539, %v7940
        %v7942 = vand.u32 %v6377, 4294901760
        %v7943 = vsub.f32 %v6377, %v7942
        %v7944 = vand.u32 %v7943, 4294901760
        %7945 = vmatmul.f32.gmra.mxu0 %v7944
        %v7946 = vpop.f32.mrf.mxu0
        %v7947 = vadd.f32 %v7544, %v7946
        %v7948 = vand.u32 %v6380, 4294901760
        %v7949 = vsub.f32 %v6380, %v7948
        %v7950 = vand.u32 %v7949, 4294901760
        %7951 = vmatmul.f32.gmra.mxu0 %v7950
        %v7952 = vpop.f32.mrf.mxu0
        %v7953 = vadd.f32 %v7549, %v7952
        %v7954 = vand.u32 %v6383, 4294901760
        %v7955 = vsub.f32 %v6383, %v7954
        %v7956 = vand.u32 %v7955, 4294901760
        %7957 = vmatmul.f32.gmra.mxu0 %v7956
        %v7958 = vpop.f32.mrf.mxu0
        %v7959 = vadd.f32 %v7554, %v7958
        %7960 = vdwg.mxu0
        %7961 = vmatpush.msra.mxu0 0.0
        %7962 = vmatpush.msra.mxu0 0.0
        %7963 = vmatpush.msra.mxu0 0.0
        %7964 = vmatpush.msra.mxu0 0.0
        %7965 = vmatpush.msra.mxu0 0.0
        %7966 = vmatpush.msra.mxu0 0.0
        %7967 = vmatpush.msra.mxu0 0.0
        %7968 = vmatpush.msra.mxu0 0.0
        %7969 = vmatpush.msra.mxu0 0.0
        %7970 = vmatpush.msra.mxu0 0.0
        %7971 = vmatpush.msra.mxu0 0.0
        %7972 = vmatpush.msra.mxu0 0.0
        %v7973 = vand.u32 %v6187, 4294901760
        %v7974 = vsub.f32 %v6187, %v7973
        %v7975 = vand.u32 %v7974, 4294901760
        %7976 = vmatpush.msra.mxu0 %v7975
        %v7977 = vand.u32 %v6186, 4294901760
        %v7978 = vsub.f32 %v6186, %v7977
        %v7979 = vand.u32 %v7978, 4294901760
        %7980 = vmatpush.msra.mxu0 %v7979
        %v7981 = vand.u32 %v6185, 4294901760
        %v7982 = vsub.f32 %v6185, %v7981
        %v7983 = vand.u32 %v7982, 4294901760
        %7984 = vmatpush.msra.mxu0 %v7983
        %v7985 = vand.u32 %v6184, 4294901760
        %v7986 = vsub.f32 %v6184, %v7985
        %v7987 = vand.u32 %v7986, 4294901760
        %7988 = vmatpush.msra.mxu0 %v7987
        %v7989 = vand.u32 %v6194, 4294901760
        %7990 = vmatmul.f32.gmra.mxu0 %v7989
        %v7991 = vpop.f32.mrf.mxu0
        %v7992 = vadd.f32 %v7581, %v7991
        %v7993 = vand.u32 %v6197, 4294901760
        %7994 = vmatmul.f32.gmra.mxu0 %v7993
        %v7995 = vpop.f32.mrf.mxu0
        %v7996 = vadd.f32 %v7587, %v7995
        %v7997 = vand.u32 %v6200, 4294901760
        %7998 = vmatmul.f32.gmra.mxu0 %v7997
        %v7999 = vpop.f32.mrf.mxu0
        %v8000 = vadd.f32 %v7593, %v7999
        %v8001 = vand.u32 %v6203, 4294901760
        %8002 = vmatmul.f32.gmra.mxu0 %v8001
        %v8003 = vpop.f32.mrf.mxu0
        %v8004 = vadd.f32 %v7599, %v8003
        %v8005 = vand.u32 %v6206, 4294901760
        %8006 = vmatmul.f32.gmra.mxu0 %v8005
        %v8007 = vpop.f32.mrf.mxu0
        %v8008 = vadd.f32 %v7605, %v8007
        %v8009 = vand.u32 %v6209, 4294901760
        %8010 = vmatmul.f32.gmra.mxu0 %v8009
        %v8011 = vpop.f32.mrf.mxu0
        %v8012 = vadd.f32 %v7611, %v8011
        %v8013 = vand.u32 %v6212, 4294901760
        %8014 = vmatmul.f32.gmra.mxu0 %v8013
        %v8015 = vpop.f32.mrf.mxu0
        %v8016 = vadd.f32 %v7617, %v8015
        %v8017 = vand.u32 %v6215, 4294901760
        %8018 = vmatmul.f32.gmra.mxu0 %v8017
        %v8019 = vpop.f32.mrf.mxu0
        %v8020 = vadd.f32 %v7623, %v8019
        %v8021 = vand.u32 %v6218, 4294901760
        %8022 = vmatmul.f32.gmra.mxu0 %v8021
        %v8023 = vpop.f32.mrf.mxu0
        %v8024 = vadd.f32 %v7629, %v8023
        %v8025 = vand.u32 %v6221, 4294901760
        %8026 = vmatmul.f32.gmra.mxu0 %v8025
        %v8027 = vpop.f32.mrf.mxu0
        %v8028 = vadd.f32 %v7635, %v8027
        %v8029 = vand.u32 %v6224, 4294901760
        %8030 = vmatmul.f32.gmra.mxu0 %v8029
        %v8031 = vpop.f32.mrf.mxu0
        %v8032 = vadd.f32 %v7641, %v8031
        %v8033 = vand.u32 %v6227, 4294901760
        %8034 = vmatmul.f32.gmra.mxu0 %v8033
        %v8035 = vpop.f32.mrf.mxu0
        %v8036 = vadd.f32 %v7647, %v8035
        %v8037 = vand.u32 %v6230, 4294901760
        %8038 = vmatmul.f32.gmra.mxu0 %v8037
        %v8039 = vpop.f32.mrf.mxu0
        %v8040 = vadd.f32 %v7653, %v8039
        %v8041 = vand.u32 %v6233, 4294901760
        %8042 = vmatmul.f32.gmra.mxu0 %v8041
        %v8043 = vpop.f32.mrf.mxu0
        %v8044 = vadd.f32 %v7659, %v8043
        %v8045 = vand.u32 %v6236, 4294901760
        %8046 = vmatmul.f32.gmra.mxu0 %v8045
        %v8047 = vpop.f32.mrf.mxu0
        %v8048 = vadd.f32 %v7665, %v8047
        %v8049 = vand.u32 %v6239, 4294901760
        %8050 = vmatmul.f32.gmra.mxu0 %v8049
        %v8051 = vpop.f32.mrf.mxu0
        %v8052 = vadd.f32 %v7671, %v8051
        %v8053 = vand.u32 %v6242, 4294901760
        %8054 = vmatmul.f32.gmra.mxu0 %v8053
        %v8055 = vpop.f32.mrf.mxu0
        %v8056 = vadd.f32 %v7677, %v8055
        %v8057 = vand.u32 %v6245, 4294901760
        %8058 = vmatmul.f32.gmra.mxu0 %v8057
        %v8059 = vpop.f32.mrf.mxu0
        %v8060 = vadd.f32 %v7683, %v8059
        %v8061 = vand.u32 %v6248, 4294901760
        %8062 = vmatmul.f32.gmra.mxu0 %v8061
        %v8063 = vpop.f32.mrf.mxu0
        %v8064 = vadd.f32 %v7689, %v8063
        %v8065 = vand.u32 %v6251, 4294901760
        %8066 = vmatmul.f32.gmra.mxu0 %v8065
        %v8067 = vpop.f32.mrf.mxu0
        %v8068 = vadd.f32 %v7695, %v8067
        %v8069 = vand.u32 %v6254, 4294901760
        %8070 = vmatmul.f32.gmra.mxu0 %v8069
        %v8071 = vpop.f32.mrf.mxu0
        %v8072 = vadd.f32 %v7701, %v8071
        %v8073 = vand.u32 %v6257, 4294901760
        %8074 = vmatmul.f32.gmra.mxu0 %v8073
        %v8075 = vpop.f32.mrf.mxu0
        %v8076 = vadd.f32 %v7707, %v8075
        %v8077 = vand.u32 %v6260, 4294901760
        %8078 = vmatmul.f32.gmra.mxu0 %v8077
        %v8079 = vpop.f32.mrf.mxu0
        %v8080 = vadd.f32 %v7713, %v8079
        %v8081 = vand.u32 %v6263, 4294901760
        %8082 = vmatmul.f32.gmra.mxu0 %v8081
        %v8083 = vpop.f32.mrf.mxu0
        %v8084 = vadd.f32 %v7719, %v8083
        %v8085 = vand.u32 %v6266, 4294901760
        %8086 = vmatmul.f32.gmra.mxu0 %v8085
        %v8087 = vpop.f32.mrf.mxu0
        %v8088 = vadd.f32 %v7725, %v8087
        %v8089 = vand.u32 %v6269, 4294901760
        %8090 = vmatmul.f32.gmra.mxu0 %v8089
        %v8091 = vpop.f32.mrf.mxu0
        %v8092 = vadd.f32 %v7731, %v8091
        %v8093 = vand.u32 %v6272, 4294901760
        %8094 = vmatmul.f32.gmra.mxu0 %v8093
        %v8095 = vpop.f32.mrf.mxu0
        %v8096 = vadd.f32 %v7737, %v8095
        %v8097 = vand.u32 %v6275, 4294901760
        %8098 = vmatmul.f32.gmra.mxu0 %v8097
        %v8099 = vpop.f32.mrf.mxu0
        %v8100 = vadd.f32 %v7743, %v8099
        %v8101 = vand.u32 %v6278, 4294901760
        %8102 = vmatmul.f32.gmra.mxu0 %v8101
        %v8103 = vpop.f32.mrf.mxu0
        %v8104 = vadd.f32 %v7749, %v8103
        %v8105 = vand.u32 %v6281, 4294901760
        %8106 = vmatmul.f32.gmra.mxu0 %v8105
        %v8107 = vpop.f32.mrf.mxu0
        %v8108 = vadd.f32 %v7755, %v8107
        %v8109 = vand.u32 %v6284, 4294901760
        %8110 = vmatmul.f32.gmra.mxu0 %v8109
        %v8111 = vpop.f32.mrf.mxu0
        %v8112 = vadd.f32 %v7761, %v8111
        %v8113 = vand.u32 %v6287, 4294901760
        %8114 = vmatmul.f32.gmra.mxu0 %v8113
        %v8115 = vpop.f32.mrf.mxu0
        %v8116 = vadd.f32 %v7767, %v8115
        %v8117 = vand.u32 %v6290, 4294901760
        %8118 = vmatmul.f32.gmra.mxu0 %v8117
        %v8119 = vpop.f32.mrf.mxu0
        %v8120 = vadd.f32 %v7773, %v8119
        %v8121 = vand.u32 %v6293, 4294901760
        %8122 = vmatmul.f32.gmra.mxu0 %v8121
        %v8123 = vpop.f32.mrf.mxu0
        %v8124 = vadd.f32 %v7779, %v8123
        %v8125 = vand.u32 %v6296, 4294901760
        %8126 = vmatmul.f32.gmra.mxu0 %v8125
        %v8127 = vpop.f32.mrf.mxu0
        %v8128 = vadd.f32 %v7785, %v8127
        %v8129 = vand.u32 %v6299, 4294901760
        %8130 = vmatmul.f32.gmra.mxu0 %v8129
        %v8131 = vpop.f32.mrf.mxu0
        %v8132 = vadd.f32 %v7791, %v8131
        %v8133 = vand.u32 %v6302, 4294901760
        %8134 = vmatmul.f32.gmra.mxu0 %v8133
        %v8135 = vpop.f32.mrf.mxu0
        %v8136 = vadd.f32 %v7797, %v8135
        %v8137 = vand.u32 %v6305, 4294901760
        %8138 = vmatmul.f32.gmra.mxu0 %v8137
        %v8139 = vpop.f32.mrf.mxu0
        %v8140 = vadd.f32 %v7803, %v8139
        %v8141 = vand.u32 %v6308, 4294901760
        %8142 = vmatmul.f32.gmra.mxu0 %v8141
        %v8143 = vpop.f32.mrf.mxu0
        %v8144 = vadd.f32 %v7809, %v8143
        %v8145 = vand.u32 %v6311, 4294901760
        %8146 = vmatmul.f32.gmra.mxu0 %v8145
        %v8147 = vpop.f32.mrf.mxu0
        %v8148 = vadd.f32 %v7815, %v8147
        %v8149 = vand.u32 %v6314, 4294901760
        %8150 = vmatmul.f32.gmra.mxu0 %v8149
        %v8151 = vpop.f32.mrf.mxu0
        %v8152 = vadd.f32 %v7821, %v8151
        %v8153 = vand.u32 %v6317, 4294901760
        %8154 = vmatmul.f32.gmra.mxu0 %v8153
        %v8155 = vpop.f32.mrf.mxu0
        %v8156 = vadd.f32 %v7827, %v8155
        %v8157 = vand.u32 %v6320, 4294901760
        %8158 = vmatmul.f32.gmra.mxu0 %v8157
        %v8159 = vpop.f32.mrf.mxu0
        %v8160 = vadd.f32 %v7833, %v8159
        %v8161 = vand.u32 %v6323, 4294901760
        %8162 = vmatmul.f32.gmra.mxu0 %v8161
        %v8163 = vpop.f32.mrf.mxu0
        %v8164 = vadd.f32 %v7839, %v8163
        %v8165 = vand.u32 %v6326, 4294901760
        %8166 = vmatmul.f32.gmra.mxu0 %v8165
        %v8167 = vpop.f32.mrf.mxu0
        %v8168 = vadd.f32 %v7845, %v8167
        %v8169 = vand.u32 %v6329, 4294901760
        %8170 = vmatmul.f32.gmra.mxu0 %v8169
        %v8171 = vpop.f32.mrf.mxu0
        %v8172 = vadd.f32 %v7851, %v8171
        %v8173 = vand.u32 %v6332, 4294901760
        %8174 = vmatmul.f32.gmra.mxu0 %v8173
        %v8175 = vpop.f32.mrf.mxu0
        %v8176 = vadd.f32 %v7857, %v8175
        %v8177 = vand.u32 %v6335, 4294901760
        %8178 = vmatmul.f32.gmra.mxu0 %v8177
        %v8179 = vpop.f32.mrf.mxu0
        %v8180 = vadd.f32 %v7863, %v8179
        %v8181 = vand.u32 %v6338, 4294901760
        %8182 = vmatmul.f32.gmra.mxu0 %v8181
        %v8183 = vpop.f32.mrf.mxu0
        %v8184 = vadd.f32 %v7869, %v8183
        %v8185 = vand.u32 %v6341, 4294901760
        %8186 = vmatmul.f32.gmra.mxu0 %v8185
        %v8187 = vpop.f32.mrf.mxu0
        %v8188 = vadd.f32 %v7875, %v8187
        %v8189 = vand.u32 %v6344, 4294901760
        %8190 = vmatmul.f32.gmra.mxu0 %v8189
        %v8191 = vpop.f32.mrf.mxu0
        %v8192 = vadd.f32 %v7881, %v8191
        %v8193 = vand.u32 %v6347, 4294901760
        %8194 = vmatmul.f32.gmra.mxu0 %v8193
        %v8195 = vpop.f32.mrf.mxu0
        %v8196 = vadd.f32 %v7887, %v8195
        %v8197 = vand.u32 %v6350, 4294901760
        %8198 = vmatmul.f32.gmra.mxu0 %v8197
        %v8199 = vpop.f32.mrf.mxu0
        %v8200 = vadd.f32 %v7893, %v8199
        %v8201 = vand.u32 %v6353, 4294901760
        %8202 = vmatmul.f32.gmra.mxu0 %v8201
        %v8203 = vpop.f32.mrf.mxu0
        %v8204 = vadd.f32 %v7899, %v8203
        %v8205 = vand.u32 %v6356, 4294901760
        %8206 = vmatmul.f32.gmra.mxu0 %v8205
        %v8207 = vpop.f32.mrf.mxu0
        %v8208 = vadd.f32 %v7905, %v8207
        %v8209 = vand.u32 %v6359, 4294901760
        %8210 = vmatmul.f32.gmra.mxu0 %v8209
        %v8211 = vpop.f32.mrf.mxu0
        %v8212 = vadd.f32 %v7911, %v8211
        %v8213 = vand.u32 %v6362, 4294901760
        %8214 = vmatmul.f32.gmra.mxu0 %v8213
        %v8215 = vpop.f32.mrf.mxu0
        %v8216 = vadd.f32 %v7917, %v8215
        %v8217 = vand.u32 %v6365, 4294901760
        %8218 = vmatmul.f32.gmra.mxu0 %v8217
        %v8219 = vpop.f32.mrf.mxu0
        %v8220 = vadd.f32 %v7923, %v8219
        %v8221 = vand.u32 %v6368, 4294901760
        %8222 = vmatmul.f32.gmra.mxu0 %v8221
        %v8223 = vpop.f32.mrf.mxu0
        %v8224 = vadd.f32 %v7929, %v8223
        %v8225 = vand.u32 %v6371, 4294901760
        %8226 = vmatmul.f32.gmra.mxu0 %v8225
        %v8227 = vpop.f32.mrf.mxu0
        %v8228 = vadd.f32 %v7935, %v8227
        %v8229 = vand.u32 %v6374, 4294901760
        %8230 = vmatmul.f32.gmra.mxu0 %v8229
        %v8231 = vpop.f32.mrf.mxu0
        %v8232 = vadd.f32 %v7941, %v8231
        %v8233 = vand.u32 %v6377, 4294901760
        %8234 = vmatmul.f32.gmra.mxu0 %v8233
        %v8235 = vpop.f32.mrf.mxu0
        %v8236 = vadd.f32 %v7947, %v8235
        %v8237 = vand.u32 %v6380, 4294901760
        %8238 = vmatmul.f32.gmra.mxu0 %v8237
        %v8239 = vpop.f32.mrf.mxu0
        %v8240 = vadd.f32 %v7953, %v8239
        %v8241 = vand.u32 %v6383, 4294901760
        %8242 = vmatmul.f32.gmra.mxu0 %v8241
        %v8243 = vpop.f32.mrf.mxu0
        %v8244 = vadd.f32 %v7959, %v8243
        %8245 = vdwg.mxu0
        %8246 = vmatpush.msra.mxu0 0.0
        %8247 = vmatpush.msra.mxu0 0.0
        %8248 = vmatpush.msra.mxu0 0.0
        %8249 = vmatpush.msra.mxu0 0.0
        %8250 = vmatpush.msra.mxu0 0.0
        %8251 = vmatpush.msra.mxu0 0.0
        %8252 = vmatpush.msra.mxu0 0.0
        %8253 = vmatpush.msra.mxu0 0.0
        %8254 = vmatpush.msra.mxu0 0.0
        %8255 = vmatpush.msra.mxu0 0.0
        %8256 = vmatpush.msra.mxu0 0.0
        %8257 = vmatpush.msra.mxu0 0.0
        %v8258 = vand.u32 %v6187, 4294901760
        %8259 = vmatpush.msra.mxu0 %v8258
        %v8260 = vand.u32 %v6186, 4294901760
        %8261 = vmatpush.msra.mxu0 %v8260
        %v8262 = vand.u32 %v6185, 4294901760
        %8263 = vmatpush.msra.mxu0 %v8262
        %v8264 = vand.u32 %v6184, 4294901760
        %8265 = vmatpush.msra.mxu0 %v8264
        %v8266 = vand.u32 %v6194, 4294901760
        %8267 = vmatmul.f32.gmra.mxu0 %v8266
        %v8268 = vpop.f32.mrf.mxu0
        %v8269 = vadd.f32 %v7992, %v8268
        %v8270 = vand.u32 %v6197, 4294901760
        %8271 = vmatmul.f32.gmra.mxu0 %v8270
        %v8272 = vpop.f32.mrf.mxu0
        %v8273 = vadd.f32 %v7996, %v8272
        %v8274 = vand.u32 %v6200, 4294901760
        %8275 = vmatmul.f32.gmra.mxu0 %v8274
        %v8276 = vpop.f32.mrf.mxu0
        %v8277 = vadd.f32 %v8000, %v8276
        %v8278 = vand.u32 %v6203, 4294901760
        %8279 = vmatmul.f32.gmra.mxu0 %v8278
        %v8280 = vpop.f32.mrf.mxu0
        %v8281 = vadd.f32 %v8004, %v8280
        %v8282 = vand.u32 %v6206, 4294901760
        %8283 = vmatmul.f32.gmra.mxu0 %v8282
        %v8284 = vpop.f32.mrf.mxu0
        %v8285 = vadd.f32 %v8008, %v8284
        %v8286 = vand.u32 %v6209, 4294901760
        %8287 = vmatmul.f32.gmra.mxu0 %v8286
        %v8288 = vpop.f32.mrf.mxu0
        %v8289 = vadd.f32 %v8012, %v8288
        %v8290 = vand.u32 %v6212, 4294901760
        %8291 = vmatmul.f32.gmra.mxu0 %v8290
        %v8292 = vpop.f32.mrf.mxu0
        %v8293 = vadd.f32 %v8016, %v8292
        %v8294 = vand.u32 %v6215, 4294901760
        %8295 = vmatmul.f32.gmra.mxu0 %v8294
        %v8296 = vpop.f32.mrf.mxu0
        %v8297 = vadd.f32 %v8020, %v8296
        %v8298 = vand.u32 %v6218, 4294901760
        %8299 = vmatmul.f32.gmra.mxu0 %v8298
        %v8300 = vpop.f32.mrf.mxu0
        %v8301 = vadd.f32 %v8024, %v8300
        %v8302 = vand.u32 %v6221, 4294901760
        %8303 = vmatmul.f32.gmra.mxu0 %v8302
        %v8304 = vpop.f32.mrf.mxu0
        %v8305 = vadd.f32 %v8028, %v8304
        %v8306 = vand.u32 %v6224, 4294901760
        %8307 = vmatmul.f32.gmra.mxu0 %v8306
        %v8308 = vpop.f32.mrf.mxu0
        %v8309 = vadd.f32 %v8032, %v8308
        %v8310 = vand.u32 %v6227, 4294901760
        %8311 = vmatmul.f32.gmra.mxu0 %v8310
        %v8312 = vpop.f32.mrf.mxu0
        %v8313 = vadd.f32 %v8036, %v8312
        %v8314 = vand.u32 %v6230, 4294901760
        %8315 = vmatmul.f32.gmra.mxu0 %v8314
        %v8316 = vpop.f32.mrf.mxu0
        %v8317 = vadd.f32 %v8040, %v8316
        %v8318 = vand.u32 %v6233, 4294901760
        %8319 = vmatmul.f32.gmra.mxu0 %v8318
        %v8320 = vpop.f32.mrf.mxu0
        %v8321 = vadd.f32 %v8044, %v8320
        %v8322 = vand.u32 %v6236, 4294901760
        %8323 = vmatmul.f32.gmra.mxu0 %v8322
        %v8324 = vpop.f32.mrf.mxu0
        %v8325 = vadd.f32 %v8048, %v8324
        %v8326 = vand.u32 %v6239, 4294901760
        %8327 = vmatmul.f32.gmra.mxu0 %v8326
        %v8328 = vpop.f32.mrf.mxu0
        %v8329 = vadd.f32 %v8052, %v8328
        %v8330 = vand.u32 %v6242, 4294901760
        %8331 = vmatmul.f32.gmra.mxu0 %v8330
        %v8332 = vpop.f32.mrf.mxu0
        %v8333 = vadd.f32 %v8056, %v8332
        %v8334 = vand.u32 %v6245, 4294901760
        %8335 = vmatmul.f32.gmra.mxu0 %v8334
        %v8336 = vpop.f32.mrf.mxu0
        %v8337 = vadd.f32 %v8060, %v8336
        %v8338 = vand.u32 %v6248, 4294901760
        %8339 = vmatmul.f32.gmra.mxu0 %v8338
        %v8340 = vpop.f32.mrf.mxu0
        %v8341 = vadd.f32 %v8064, %v8340
        %v8342 = vand.u32 %v6251, 4294901760
        %8343 = vmatmul.f32.gmra.mxu0 %v8342
        %v8344 = vpop.f32.mrf.mxu0
        %v8345 = vadd.f32 %v8068, %v8344
        %v8346 = vand.u32 %v6254, 4294901760
        %8347 = vmatmul.f32.gmra.mxu0 %v8346
        %v8348 = vpop.f32.mrf.mxu0
        %v8349 = vadd.f32 %v8072, %v8348
        %v8350 = vand.u32 %v6257, 4294901760
        %8351 = vmatmul.f32.gmra.mxu0 %v8350
        %v8352 = vpop.f32.mrf.mxu0
        %v8353 = vadd.f32 %v8076, %v8352
        %v8354 = vand.u32 %v6260, 4294901760
        %8355 = vmatmul.f32.gmra.mxu0 %v8354
        %v8356 = vpop.f32.mrf.mxu0
        %v8357 = vadd.f32 %v8080, %v8356
        %v8358 = vand.u32 %v6263, 4294901760
        %8359 = vmatmul.f32.gmra.mxu0 %v8358
        %v8360 = vpop.f32.mrf.mxu0
        %v8361 = vadd.f32 %v8084, %v8360
        %v8362 = vand.u32 %v6266, 4294901760
        %8363 = vmatmul.f32.gmra.mxu0 %v8362
        %v8364 = vpop.f32.mrf.mxu0
        %v8365 = vadd.f32 %v8088, %v8364
        %v8366 = vand.u32 %v6269, 4294901760
        %8367 = vmatmul.f32.gmra.mxu0 %v8366
        %v8368 = vpop.f32.mrf.mxu0
        %v8369 = vadd.f32 %v8092, %v8368
        %v8370 = vand.u32 %v6272, 4294901760
        %8371 = vmatmul.f32.gmra.mxu0 %v8370
        %v8372 = vpop.f32.mrf.mxu0
        %v8373 = vadd.f32 %v8096, %v8372
        %v8374 = vand.u32 %v6275, 4294901760
        %8375 = vmatmul.f32.gmra.mxu0 %v8374
        %v8376 = vpop.f32.mrf.mxu0
        %v8377 = vadd.f32 %v8100, %v8376
        %v8378 = vand.u32 %v6278, 4294901760
        %8379 = vmatmul.f32.gmra.mxu0 %v8378
        %v8380 = vpop.f32.mrf.mxu0
        %v8381 = vadd.f32 %v8104, %v8380
        %v8382 = vand.u32 %v6281, 4294901760
        %8383 = vmatmul.f32.gmra.mxu0 %v8382
        %v8384 = vpop.f32.mrf.mxu0
        %v8385 = vadd.f32 %v8108, %v8384
        %v8386 = vand.u32 %v6284, 4294901760
        %8387 = vmatmul.f32.gmra.mxu0 %v8386
        %v8388 = vpop.f32.mrf.mxu0
        %v8389 = vadd.f32 %v8112, %v8388
        %v8390 = vand.u32 %v6287, 4294901760
        %8391 = vmatmul.f32.gmra.mxu0 %v8390
        %v8392 = vpop.f32.mrf.mxu0
        %v8393 = vadd.f32 %v8116, %v8392
        %v8394 = vand.u32 %v6290, 4294901760
        %8395 = vmatmul.f32.gmra.mxu0 %v8394
        %v8396 = vpop.f32.mrf.mxu0
        %v8397 = vadd.f32 %v8120, %v8396
        %v8398 = vand.u32 %v6293, 4294901760
        %8399 = vmatmul.f32.gmra.mxu0 %v8398
        %v8400 = vpop.f32.mrf.mxu0
        %v8401 = vadd.f32 %v8124, %v8400
        %v8402 = vand.u32 %v6296, 4294901760
        %8403 = vmatmul.f32.gmra.mxu0 %v8402
        %v8404 = vpop.f32.mrf.mxu0
        %v8405 = vadd.f32 %v8128, %v8404
        %v8406 = vand.u32 %v6299, 4294901760
        %8407 = vmatmul.f32.gmra.mxu0 %v8406
        %v8408 = vpop.f32.mrf.mxu0
        %v8409 = vadd.f32 %v8132, %v8408
        %v8410 = vand.u32 %v6302, 4294901760
        %8411 = vmatmul.f32.gmra.mxu0 %v8410
        %v8412 = vpop.f32.mrf.mxu0
        %v8413 = vadd.f32 %v8136, %v8412
        %v8414 = vand.u32 %v6305, 4294901760
        %8415 = vmatmul.f32.gmra.mxu0 %v8414
        %v8416 = vpop.f32.mrf.mxu0
        %v8417 = vadd.f32 %v8140, %v8416
        %v8418 = vand.u32 %v6308, 4294901760
        %8419 = vmatmul.f32.gmra.mxu0 %v8418
        %v8420 = vpop.f32.mrf.mxu0
        %v8421 = vadd.f32 %v8144, %v8420
        %v8422 = vand.u32 %v6311, 4294901760
        %8423 = vmatmul.f32.gmra.mxu0 %v8422
        %v8424 = vpop.f32.mrf.mxu0
        %v8425 = vadd.f32 %v8148, %v8424
        %v8426 = vand.u32 %v6314, 4294901760
        %8427 = vmatmul.f32.gmra.mxu0 %v8426
        %v8428 = vpop.f32.mrf.mxu0
        %v8429 = vadd.f32 %v8152, %v8428
        %v8430 = vand.u32 %v6317, 4294901760
        %8431 = vmatmul.f32.gmra.mxu0 %v8430
        %v8432 = vpop.f32.mrf.mxu0
        %v8433 = vadd.f32 %v8156, %v8432
        %v8434 = vand.u32 %v6320, 4294901760
        %8435 = vmatmul.f32.gmra.mxu0 %v8434
        %v8436 = vpop.f32.mrf.mxu0
        %v8437 = vadd.f32 %v8160, %v8436
        %v8438 = vand.u32 %v6323, 4294901760
        %8439 = vmatmul.f32.gmra.mxu0 %v8438
        %v8440 = vpop.f32.mrf.mxu0
        %v8441 = vadd.f32 %v8164, %v8440
        %v8442 = vand.u32 %v6326, 4294901760
        %8443 = vmatmul.f32.gmra.mxu0 %v8442
        %v8444 = vpop.f32.mrf.mxu0
        %v8445 = vadd.f32 %v8168, %v8444
        %v8446 = vand.u32 %v6329, 4294901760
        %8447 = vmatmul.f32.gmra.mxu0 %v8446
        %v8448 = vpop.f32.mrf.mxu0
        %v8449 = vadd.f32 %v8172, %v8448
        %v8450 = vand.u32 %v6332, 4294901760
        %8451 = vmatmul.f32.gmra.mxu0 %v8450
        %v8452 = vpop.f32.mrf.mxu0
        %v8453 = vadd.f32 %v8176, %v8452
        %v8454 = vand.u32 %v6335, 4294901760
        %8455 = vmatmul.f32.gmra.mxu0 %v8454
        %v8456 = vpop.f32.mrf.mxu0
        %v8457 = vadd.f32 %v8180, %v8456
        %v8458 = vand.u32 %v6338, 4294901760
        %8459 = vmatmul.f32.gmra.mxu0 %v8458
        %v8460 = vpop.f32.mrf.mxu0
        %v8461 = vadd.f32 %v8184, %v8460
        %v8462 = vand.u32 %v6341, 4294901760
        %8463 = vmatmul.f32.gmra.mxu0 %v8462
        %v8464 = vpop.f32.mrf.mxu0
        %v8465 = vadd.f32 %v8188, %v8464
        %v8466 = vand.u32 %v6344, 4294901760
        %8467 = vmatmul.f32.gmra.mxu0 %v8466
        %v8468 = vpop.f32.mrf.mxu0
        %v8469 = vadd.f32 %v8192, %v8468
        %v8470 = vand.u32 %v6347, 4294901760
        %8471 = vmatmul.f32.gmra.mxu0 %v8470
        %v8472 = vpop.f32.mrf.mxu0
        %v8473 = vadd.f32 %v8196, %v8472
        %v8474 = vand.u32 %v6350, 4294901760
        %8475 = vmatmul.f32.gmra.mxu0 %v8474
        %v8476 = vpop.f32.mrf.mxu0
        %v8477 = vadd.f32 %v8200, %v8476
        %v8478 = vand.u32 %v6353, 4294901760
        %8479 = vmatmul.f32.gmra.mxu0 %v8478
        %v8480 = vpop.f32.mrf.mxu0
        %v8481 = vadd.f32 %v8204, %v8480
        %v8482 = vand.u32 %v6356, 4294901760
        %8483 = vmatmul.f32.gmra.mxu0 %v8482
        %v8484 = vpop.f32.mrf.mxu0
        %v8485 = vadd.f32 %v8208, %v8484
        %v8486 = vand.u32 %v6359, 4294901760
        %8487 = vmatmul.f32.gmra.mxu0 %v8486
        %v8488 = vpop.f32.mrf.mxu0
        %v8489 = vadd.f32 %v8212, %v8488
        %v8490 = vand.u32 %v6362, 4294901760
        %8491 = vmatmul.f32.gmra.mxu0 %v8490
        %v8492 = vpop.f32.mrf.mxu0
        %v8493 = vadd.f32 %v8216, %v8492
        %v8494 = vand.u32 %v6365, 4294901760
        %8495 = vmatmul.f32.gmra.mxu0 %v8494
        %v8496 = vpop.f32.mrf.mxu0
        %v8497 = vadd.f32 %v8220, %v8496
        %v8498 = vand.u32 %v6368, 4294901760
        %8499 = vmatmul.f32.gmra.mxu0 %v8498
        %v8500 = vpop.f32.mrf.mxu0
        %v8501 = vadd.f32 %v8224, %v8500
        %v8502 = vand.u32 %v6371, 4294901760
        %8503 = vmatmul.f32.gmra.mxu0 %v8502
        %v8504 = vpop.f32.mrf.mxu0
        %v8505 = vadd.f32 %v8228, %v8504
        %v8506 = vand.u32 %v6374, 4294901760
        %8507 = vmatmul.f32.gmra.mxu0 %v8506
        %v8508 = vpop.f32.mrf.mxu0
        %v8509 = vadd.f32 %v8232, %v8508
        %v8510 = vand.u32 %v6377, 4294901760
        %8511 = vmatmul.f32.gmra.mxu0 %v8510
        %v8512 = vpop.f32.mrf.mxu0
        %v8513 = vadd.f32 %v8236, %v8512
        %v8514 = vand.u32 %v6380, 4294901760
        %8515 = vmatmul.f32.gmra.mxu0 %v8514
        %v8516 = vpop.f32.mrf.mxu0
        %v8517 = vadd.f32 %v8240, %v8516
        %v8518 = vand.u32 %v6383, 4294901760
        %8519 = vmatmul.f32.gmra.mxu0 %v8518
        %v8520 = vpop.f32.mrf.mxu0
        %v8521 = vadd.f32 %v8244, %v8520
        %8522 = vdwg.mxu0
        %v8523 = vtanh.pop %v8269
        %v8524 = vtanh.pop %v8273
        %v8525 = vtanh.pop %v8277
        %v8526 = vtanh.pop %v8281
        %v8527 = vtanh.pop %v8285
        %v8528 = vtanh.pop %v8289
        %v8529 = vtanh.pop %v8293
        %v8530 = vtanh.pop %v8297
        %v8531 = vtanh.pop %v8301
        %v8532 = vtanh.pop %v8305
        %v8533 = vtanh.pop %v8309
        %v8534 = vtanh.pop %v8313
        %v8535 = vtanh.pop %v8317
        %v8536 = vtanh.pop %v8321
        %v8537 = vtanh.pop %v8325
        %v8538 = vtanh.pop %v8329
        %v8539 = vtanh.pop %v8333
        %v8540 = vtanh.pop %v8337
        %v8541 = vtanh.pop %v8341
        %v8542 = vtanh.pop %v8345
        %v8543 = vtanh.pop %v8349
        %v8544 = vtanh.pop %v8353
        %v8545 = vtanh.pop %v8357
        %v8546 = vtanh.pop %v8361
        %v8547 = vtanh.pop %v8365
        %v8548 = vtanh.pop %v8369
        %v8549 = vtanh.pop %v8373
        %v8550 = vtanh.pop %v8377
        %v8551 = vtanh.pop %v8381
        %v8552 = vtanh.pop %v8385
        %v8553 = vtanh.pop %v8389
        %v8554 = vtanh.pop %v8393
        %v8555 = vtanh.pop %v8397
        %v8556 = vtanh.pop %v8401
        %v8557 = vtanh.pop %v8405
        %v8558 = vtanh.pop %v8409
        %v8559 = vtanh.pop %v8413
        %v8560 = vtanh.pop %v8417
        %v8561 = vtanh.pop %v8421
        %v8562 = vtanh.pop %v8425
        %v8563 = vtanh.pop %v8429
        %v8564 = vtanh.pop %v8433
        %v8565 = vtanh.pop %v8437
        %v8566 = vtanh.pop %v8441
        %v8567 = vtanh.pop %v8445
        %v8568 = vtanh.pop %v8449
        %v8569 = vtanh.pop %v8453
        %v8570 = vtanh.pop %v8457
        %v8571 = vtanh.pop %v8461
        %v8572 = vtanh.pop %v8465
        %v8573 = vtanh.pop %v8469
        %v8574 = vtanh.pop %v8473
        %v8575 = vtanh.pop %v8477
        %v8576 = vtanh.pop %v8481
        %v8577 = vtanh.pop %v8485
        %v8578 = vtanh.pop %v8489
        %v8579 = vtanh.pop %v8493
        %v8580 = vtanh.pop %v8497
        %v8581 = vtanh.pop %v8501
        %v8582 = vtanh.pop %v8505
        %v8583 = vtanh.pop %v8509
        %v8584 = vtanh.pop %v8513
        %v8585 = vtanh.pop %v8517
        %v8586 = vtanh.pop %v8521
        %v8587 = vadd.f32 %v8523, %v6119
        %v8588 = vadd.f32 %v8524, %v6120
        %v8589 = vadd.f32 %v8525, %v6121
        %v8590 = vadd.f32 %v8526, %v6122
        %v8591 = vadd.f32 %v8527, %v6123
        %v8592 = vadd.f32 %v8528, %v6124
        %v8593 = vadd.f32 %v8529, %v6125
        %v8594 = vadd.f32 %v8530, %v6126
        %v8595 = vadd.f32 %v8531, %v6127
        %v8596 = vadd.f32 %v8532, %v6128
        %v8597 = vadd.f32 %v8533, %v6129
        %v8598 = vadd.f32 %v8534, %v6130
        %v8599 = vadd.f32 %v8535, %v6131
        %v8600 = vadd.f32 %v8536, %v6132
        %v8601 = vadd.f32 %v8537, %v6133
        %v8602 = vadd.f32 %v8538, %v6134
        %v8603 = vadd.f32 %v8539, %v6135
        %v8604 = vadd.f32 %v8540, %v6136
        %v8605 = vadd.f32 %v8541, %v6137
        %v8606 = vadd.f32 %v8542, %v6138
        %v8607 = vadd.f32 %v8543, %v6139
        %v8608 = vadd.f32 %v8544, %v6140
        %v8609 = vadd.f32 %v8545, %v6141
        %v8610 = vadd.f32 %v8546, %v6142
        %v8611 = vadd.f32 %v8547, %v6143
        %v8612 = vadd.f32 %v8548, %v6144
        %v8613 = vadd.f32 %v8549, %v6145
        %v8614 = vadd.f32 %v8550, %v6146
        %v8615 = vadd.f32 %v8551, %v6147
        %v8616 = vadd.f32 %v8552, %v6148
        %v8617 = vadd.f32 %v8553, %v6149
        %v8618 = vadd.f32 %v8554, %v6150
        %v8619 = vadd.f32 %v8555, %v6151
        %v8620 = vadd.f32 %v8556, %v6152
        %v8621 = vadd.f32 %v8557, %v6153
        %v8622 = vadd.f32 %v8558, %v6154
        %v8623 = vadd.f32 %v8559, %v6155
        %v8624 = vadd.f32 %v8560, %v6156
        %v8625 = vadd.f32 %v8561, %v6157
        %v8626 = vadd.f32 %v8562, %v6158
        %v8627 = vadd.f32 %v8563, %v6159
        %v8628 = vadd.f32 %v8564, %v6160
        %v8629 = vadd.f32 %v8565, %v6161
        %v8630 = vadd.f32 %v8566, %v6162
        %v8631 = vadd.f32 %v8567, %v6163
        %v8632 = vadd.f32 %v8568, %v6164
        %v8633 = vadd.f32 %v8569, %v6165
        %v8634 = vadd.f32 %v8570, %v6166
        %v8635 = vadd.f32 %v8571, %v6167
        %v8636 = vadd.f32 %v8572, %v6168
        %v8637 = vadd.f32 %v8573, %v6169
        %v8638 = vadd.f32 %v8574, %v6170
        %v8639 = vadd.f32 %v8575, %v6171
        %v8640 = vadd.f32 %v8576, %v6172
        %v8641 = vadd.f32 %v8577, %v6173
        %v8642 = vadd.f32 %v8578, %v6174
        %v8643 = vadd.f32 %v8579, %v6175
        %v8644 = vadd.f32 %v8580, %v6176
        %v8645 = vadd.f32 %v8581, %v6177
        %v8646 = vadd.f32 %v8582, %v6178
        %v8647 = vadd.f32 %v8583, %v6179
        %v8648 = vadd.f32 %v8584, %v6180
        %v8649 = vadd.f32 %v8585, %v6181
        %v8650 = vadd.f32 %v8586, %v6182
        %v8651 = vld [vmem:[%s5] sm:$0xff]
        %v8652 = vld [vmem:[%s5 + $0x8] sm:$0xff]
        %v8653 = vld [vmem:[%s5 + $0x10] sm:$0xff]
        %v8654 = vld [vmem:[%s5 + $0x18] sm:$0xff]
        %v8655 = vld [vmem:[%s6] sm:$0x1]
        %v8657 = vperm.slane %v8655, 0
        %v8660 = vsel %vm1256, %v8587, 0
        %v8663 = vsel %vm1256, %v8588, 0
        %v8666 = vsel %vm1256, %v8589, 0
        %v8669 = vsel %vm1256, %v8590, 0
        %v8672 = vsel %vm1256, %v8591, 0
        %v8675 = vsel %vm1256, %v8592, 0
        %v8678 = vsel %vm1256, %v8593, 0
        %v8681 = vsel %vm1256, %v8594, 0
        %v8684 = vsel %vm1256, %v8595, 0
        %v8687 = vsel %vm1256, %v8596, 0
        %v8690 = vsel %vm1256, %v8597, 0
        %v8693 = vsel %vm1256, %v8598, 0
        %v8696 = vsel %vm1256, %v8599, 0
        %v8699 = vsel %vm1256, %v8600, 0
        %v8702 = vsel %vm1256, %v8601, 0
        %v8705 = vsel %vm1256, %v8602, 0
        %v8708 = vsel %vm1256, %v8603, 0
        %v8711 = vsel %vm1256, %v8604, 0
        %v8714 = vsel %vm1256, %v8605, 0
        %v8717 = vsel %vm1256, %v8606, 0
        %v8720 = vsel %vm1256, %v8607, 0
        %v8723 = vsel %vm1256, %v8608, 0
        %v8726 = vsel %vm1256, %v8609, 0
        %v8729 = vsel %vm1256, %v8610, 0
        %v8732 = vsel %vm1256, %v8611, 0
        %v8735 = vsel %vm1256, %v8612, 0
        %v8738 = vsel %vm1256, %v8613, 0
        %v8741 = vsel %vm1256, %v8614, 0
        %v8744 = vsel %vm1256, %v8615, 0
        %v8747 = vsel %vm1256, %v8616, 0
        %v8750 = vsel %vm1256, %v8617, 0
        %v8753 = vsel %vm1256, %v8618, 0
        %v8756 = vsel %vm1256, %v8619, 0
        %v8759 = vsel %vm1256, %v8620, 0
        %v8762 = vsel %vm1256, %v8621, 0
        %v8765 = vsel %vm1256, %v8622, 0
        %v8768 = vsel %vm1256, %v8623, 0
        %v8771 = vsel %vm1256, %v8624, 0
        %v8774 = vsel %vm1256, %v8625, 0
        %v8777 = vsel %vm1256, %v8626, 0
        %v8780 = vsel %vm1256, %v8627, 0
        %v8783 = vsel %vm1256, %v8628, 0
        %v8786 = vsel %vm1256, %v8629, 0
        %v8789 = vsel %vm1256, %v8630, 0
        %v8792 = vsel %vm1256, %v8631, 0
        %v8795 = vsel %vm1256, %v8632, 0
        %v8798 = vsel %vm1256, %v8633, 0
        %v8801 = vsel %vm1256, %v8634, 0
        %v8804 = vsel %vm1256, %v8635, 0
        %v8807 = vsel %vm1256, %v8636, 0
        %v8810 = vsel %vm1256, %v8637, 0
        %v8813 = vsel %vm1256, %v8638, 0
        %v8816 = vsel %vm1256, %v8639, 0
        %v8819 = vsel %vm1256, %v8640, 0
        %v8822 = vsel %vm1256, %v8641, 0
        %v8825 = vsel %vm1256, %v8642, 0
        %v8828 = vsel %vm1256, %v8643, 0
        %v8831 = vsel %vm1256, %v8644, 0
        %v8834 = vsel %vm1256, %v8645, 0
        %v8837 = vsel %vm1256, %v8646, 0
        %v8840 = vsel %vm1256, %v8647, 0
        %v8843 = vsel %vm1256, %v8648, 0
        %v8846 = vsel %vm1256, %v8649, 0
        %v8849 = vsel %vm1256, %v8650, 0
        %8851 = vmatpush.msra.mxu0 0.0
        %8852 = vmatpush.msra.mxu0 0.0
        %8853 = vmatpush.msra.mxu0 0.0
        %8854 = vmatpush.msra.mxu0 0.0
        %8855 = vmatpush.msra.mxu0 0.0
        %8856 = vmatpush.msra.mxu0 0.0
        %8857 = vmatpush.msra.mxu0 0.0
        %8858 = vmatpush.msra.mxu0 0.0
        %8859 = vmatpush.msra.mxu0 0.0
        %8860 = vmatpush.msra.mxu0 0.0
        %8861 = vmatpush.msra.mxu0 0.0
        %8862 = vmatpush.msra.mxu0 0.0
        %v8863 = vand.u32 %v8654, 4294901760
        %8864 = vmatpush.msra.mxu0 %v8863
        %v8865 = vand.u32 %v8653, 4294901760
        %8866 = vmatpush.msra.mxu0 %v8865
        %v8867 = vand.u32 %v8652, 4294901760
        %8868 = vmatpush.msra.mxu0 %v8867
        %v8869 = vand.u32 %v8651, 4294901760
        %8870 = vmatpush.msra.mxu0 %v8869
        %v8871 = vand.u32 %v8660, 4294901760
        %v8872 = vsub.f32 %v8660, %v8871
        %v8873 = vand.u32 %v8872, 4294901760
        %v8874 = vsub.f32 %v8872, %v8873
        %v8875 = vand.u32 %v8874, 4294901760
        %8876 = vmatmul.f32.gmra.mxu0 %v8875
        %v8877 = vpop.f32.mrf.mxu0
        %v8878 = vadd.f32 %v8657, %v8877
        %v8879 = vand.u32 %v8663, 4294901760
        %v8880 = vsub.f32 %v8663, %v8879
        %v8881 = vand.u32 %v8880, 4294901760
        %v8882 = vsub.f32 %v8880, %v8881
        %v8883 = vand.u32 %v8882, 4294901760
        %8884 = vmatmul.f32.gmra.mxu0 %v8883
        %v8885 = vpop.f32.mrf.mxu0
        %v8886 = vadd.f32 %v8657, %v8885
        %v8887 = vand.u32 %v8666, 4294901760
        %v8888 = vsub.f32 %v8666, %v8887
        %v8889 = vand.u32 %v8888, 4294901760
        %v8890 = vsub.f32 %v8888, %v8889
        %v8891 = vand.u32 %v8890, 4294901760
        %8892 = vmatmul.f32.gmra.mxu0 %v8891
        %v8893 = vpop.f32.mrf.mxu0
        %v8894 = vadd.f32 %v8657, %v8893
        %v8895 = vand.u32 %v8669, 4294901760
        %v8896 = vsub.f32 %v8669, %v8895
        %v8897 = vand.u32 %v8896, 4294901760
        %v8898 = vsub.f32 %v8896, %v8897
        %v8899 = vand.u32 %v8898, 4294901760
        %8900 = vmatmul.f32.gmra.mxu0 %v8899
        %v8901 = vpop.f32.mrf.mxu0
        %v8902 = vadd.f32 %v8657, %v8901
        %v8903 = vand.u32 %v8672, 4294901760
        %v8904 = vsub.f32 %v8672, %v8903
        %v8905 = vand.u32 %v8904, 4294901760
        %v8906 = vsub.f32 %v8904, %v8905
        %v8907 = vand.u32 %v8906, 4294901760
        %8908 = vmatmul.f32.gmra.mxu0 %v8907
        %v8909 = vpop.f32.mrf.mxu0
        %v8910 = vadd.f32 %v8657, %v8909
        %v8911 = vand.u32 %v8675, 4294901760
        %v8912 = vsub.f32 %v8675, %v8911
        %v8913 = vand.u32 %v8912, 4294901760
        %v8914 = vsub.f32 %v8912, %v8913
        %v8915 = vand.u32 %v8914, 4294901760
        %8916 = vmatmul.f32.gmra.mxu0 %v8915
        %v8917 = vpop.f32.mrf.mxu0
        %v8918 = vadd.f32 %v8657, %v8917
        %v8919 = vand.u32 %v8678, 4294901760
        %v8920 = vsub.f32 %v8678, %v8919
        %v8921 = vand.u32 %v8920, 4294901760
        %v8922 = vsub.f32 %v8920, %v8921
        %v8923 = vand.u32 %v8922, 4294901760
        %8924 = vmatmul.f32.gmra.mxu0 %v8923
        %v8925 = vpop.f32.mrf.mxu0
        %v8926 = vadd.f32 %v8657, %v8925
        %v8927 = vand.u32 %v8681, 4294901760
        %v8928 = vsub.f32 %v8681, %v8927
        %v8929 = vand.u32 %v8928, 4294901760
        %v8930 = vsub.f32 %v8928, %v8929
        %v8931 = vand.u32 %v8930, 4294901760
        %8932 = vmatmul.f32.gmra.mxu0 %v8931
        %v8933 = vpop.f32.mrf.mxu0
        %v8934 = vadd.f32 %v8657, %v8933
        %v8935 = vand.u32 %v8684, 4294901760
        %v8936 = vsub.f32 %v8684, %v8935
        %v8937 = vand.u32 %v8936, 4294901760
        %v8938 = vsub.f32 %v8936, %v8937
        %v8939 = vand.u32 %v8938, 4294901760
        %8940 = vmatmul.f32.gmra.mxu0 %v8939
        %v8941 = vpop.f32.mrf.mxu0
        %v8942 = vadd.f32 %v8657, %v8941
        %v8943 = vand.u32 %v8687, 4294901760
        %v8944 = vsub.f32 %v8687, %v8943
        %v8945 = vand.u32 %v8944, 4294901760
        %v8946 = vsub.f32 %v8944, %v8945
        %v8947 = vand.u32 %v8946, 4294901760
        %8948 = vmatmul.f32.gmra.mxu0 %v8947
        %v8949 = vpop.f32.mrf.mxu0
        %v8950 = vadd.f32 %v8657, %v8949
        %v8951 = vand.u32 %v8690, 4294901760
        %v8952 = vsub.f32 %v8690, %v8951
        %v8953 = vand.u32 %v8952, 4294901760
        %v8954 = vsub.f32 %v8952, %v8953
        %v8955 = vand.u32 %v8954, 4294901760
        %8956 = vmatmul.f32.gmra.mxu0 %v8955
        %v8957 = vpop.f32.mrf.mxu0
        %v8958 = vadd.f32 %v8657, %v8957
        %v8959 = vand.u32 %v8693, 4294901760
        %v8960 = vsub.f32 %v8693, %v8959
        %v8961 = vand.u32 %v8960, 4294901760
        %v8962 = vsub.f32 %v8960, %v8961
        %v8963 = vand.u32 %v8962, 4294901760
        %8964 = vmatmul.f32.gmra.mxu0 %v8963
        %v8965 = vpop.f32.mrf.mxu0
        %v8966 = vadd.f32 %v8657, %v8965
        %v8967 = vand.u32 %v8696, 4294901760
        %v8968 = vsub.f32 %v8696, %v8967
        %v8969 = vand.u32 %v8968, 4294901760
        %v8970 = vsub.f32 %v8968, %v8969
        %v8971 = vand.u32 %v8970, 4294901760
        %8972 = vmatmul.f32.gmra.mxu0 %v8971
        %v8973 = vpop.f32.mrf.mxu0
        %v8974 = vadd.f32 %v8657, %v8973
        %v8975 = vand.u32 %v8699, 4294901760
        %v8976 = vsub.f32 %v8699, %v8975
        %v8977 = vand.u32 %v8976, 4294901760
        %v8978 = vsub.f32 %v8976, %v8977
        %v8979 = vand.u32 %v8978, 4294901760
        %8980 = vmatmul.f32.gmra.mxu0 %v8979
        %v8981 = vpop.f32.mrf.mxu0
        %v8982 = vadd.f32 %v8657, %v8981
        %v8983 = vand.u32 %v8702, 4294901760
        %v8984 = vsub.f32 %v8702, %v8983
        %v8985 = vand.u32 %v8984, 4294901760
        %v8986 = vsub.f32 %v8984, %v8985
        %v8987 = vand.u32 %v8986, 4294901760
        %8988 = vmatmul.f32.gmra.mxu0 %v8987
        %v8989 = vpop.f32.mrf.mxu0
        %v8990 = vadd.f32 %v8657, %v8989
        %v8991 = vand.u32 %v8705, 4294901760
        %v8992 = vsub.f32 %v8705, %v8991
        %v8993 = vand.u32 %v8992, 4294901760
        %v8994 = vsub.f32 %v8992, %v8993
        %v8995 = vand.u32 %v8994, 4294901760
        %8996 = vmatmul.f32.gmra.mxu0 %v8995
        %v8997 = vpop.f32.mrf.mxu0
        %v8998 = vadd.f32 %v8657, %v8997
        %v8999 = vand.u32 %v8708, 4294901760
        %v9000 = vsub.f32 %v8708, %v8999
        %v9001 = vand.u32 %v9000, 4294901760
        %v9002 = vsub.f32 %v9000, %v9001
        %v9003 = vand.u32 %v9002, 4294901760
        %9004 = vmatmul.f32.gmra.mxu0 %v9003
        %v9005 = vpop.f32.mrf.mxu0
        %v9006 = vadd.f32 %v8657, %v9005
        %v9007 = vand.u32 %v8711, 4294901760
        %v9008 = vsub.f32 %v8711, %v9007
        %v9009 = vand.u32 %v9008, 4294901760
        %v9010 = vsub.f32 %v9008, %v9009
        %v9011 = vand.u32 %v9010, 4294901760
        %9012 = vmatmul.f32.gmra.mxu0 %v9011
        %v9013 = vpop.f32.mrf.mxu0
        %v9014 = vadd.f32 %v8657, %v9013
        %v9015 = vand.u32 %v8714, 4294901760
        %v9016 = vsub.f32 %v8714, %v9015
        %v9017 = vand.u32 %v9016, 4294901760
        %v9018 = vsub.f32 %v9016, %v9017
        %v9019 = vand.u32 %v9018, 4294901760
        %9020 = vmatmul.f32.gmra.mxu0 %v9019
        %v9021 = vpop.f32.mrf.mxu0
        %v9022 = vadd.f32 %v8657, %v9021
        %v9023 = vand.u32 %v8717, 4294901760
        %v9024 = vsub.f32 %v8717, %v9023
        %v9025 = vand.u32 %v9024, 4294901760
        %v9026 = vsub.f32 %v9024, %v9025
        %v9027 = vand.u32 %v9026, 4294901760
        %9028 = vmatmul.f32.gmra.mxu0 %v9027
        %v9029 = vpop.f32.mrf.mxu0
        %v9030 = vadd.f32 %v8657, %v9029
        %v9031 = vand.u32 %v8720, 4294901760
        %v9032 = vsub.f32 %v8720, %v9031
        %v9033 = vand.u32 %v9032, 4294901760
        %v9034 = vsub.f32 %v9032, %v9033
        %v9035 = vand.u32 %v9034, 4294901760
        %9036 = vmatmul.f32.gmra.mxu0 %v9035
        %v9037 = vpop.f32.mrf.mxu0
        %v9038 = vadd.f32 %v8657, %v9037
        %v9039 = vand.u32 %v8723, 4294901760
        %v9040 = vsub.f32 %v8723, %v9039
        %v9041 = vand.u32 %v9040, 4294901760
        %v9042 = vsub.f32 %v9040, %v9041
        %v9043 = vand.u32 %v9042, 4294901760
        %9044 = vmatmul.f32.gmra.mxu0 %v9043
        %v9045 = vpop.f32.mrf.mxu0
        %v9046 = vadd.f32 %v8657, %v9045
        %v9047 = vand.u32 %v8726, 4294901760
        %v9048 = vsub.f32 %v8726, %v9047
        %v9049 = vand.u32 %v9048, 4294901760
        %v9050 = vsub.f32 %v9048, %v9049
        %v9051 = vand.u32 %v9050, 4294901760
        %9052 = vmatmul.f32.gmra.mxu0 %v9051
        %v9053 = vpop.f32.mrf.mxu0
        %v9054 = vadd.f32 %v8657, %v9053
        %v9055 = vand.u32 %v8729, 4294901760
        %v9056 = vsub.f32 %v8729, %v9055
        %v9057 = vand.u32 %v9056, 4294901760
        %v9058 = vsub.f32 %v9056, %v9057
        %v9059 = vand.u32 %v9058, 4294901760
        %9060 = vmatmul.f32.gmra.mxu0 %v9059
        %v9061 = vpop.f32.mrf.mxu0
        %v9062 = vadd.f32 %v8657, %v9061
        %v9063 = vand.u32 %v8732, 4294901760
        %v9064 = vsub.f32 %v8732, %v9063
        %v9065 = vand.u32 %v9064, 4294901760
        %v9066 = vsub.f32 %v9064, %v9065
        %v9067 = vand.u32 %v9066, 4294901760
        %9068 = vmatmul.f32.gmra.mxu0 %v9067
        %v9069 = vpop.f32.mrf.mxu0
        %v9070 = vadd.f32 %v8657, %v9069
        %v9071 = vand.u32 %v8735, 4294901760
        %v9072 = vsub.f32 %v8735, %v9071
        %v9073 = vand.u32 %v9072, 4294901760
        %v9074 = vsub.f32 %v9072, %v9073
        %v9075 = vand.u32 %v9074, 4294901760
        %9076 = vmatmul.f32.gmra.mxu0 %v9075
        %v9077 = vpop.f32.mrf.mxu0
        %v9078 = vadd.f32 %v8657, %v9077
        %v9079 = vand.u32 %v8738, 4294901760
        %v9080 = vsub.f32 %v8738, %v9079
        %v9081 = vand.u32 %v9080, 4294901760
        %v9082 = vsub.f32 %v9080, %v9081
        %v9083 = vand.u32 %v9082, 4294901760
        %9084 = vmatmul.f32.gmra.mxu0 %v9083
        %v9085 = vpop.f32.mrf.mxu0
        %v9086 = vadd.f32 %v8657, %v9085
        %v9087 = vand.u32 %v8741, 4294901760
        %v9088 = vsub.f32 %v8741, %v9087
        %v9089 = vand.u32 %v9088, 4294901760
        %v9090 = vsub.f32 %v9088, %v9089
        %v9091 = vand.u32 %v9090, 4294901760
        %9092 = vmatmul.f32.gmra.mxu0 %v9091
        %v9093 = vpop.f32.mrf.mxu0
        %v9094 = vadd.f32 %v8657, %v9093
        %v9095 = vand.u32 %v8744, 4294901760
        %v9096 = vsub.f32 %v8744, %v9095
        %v9097 = vand.u32 %v9096, 4294901760
        %v9098 = vsub.f32 %v9096, %v9097
        %v9099 = vand.u32 %v9098, 4294901760
        %9100 = vmatmul.f32.gmra.mxu0 %v9099
        %v9101 = vpop.f32.mrf.mxu0
        %v9102 = vadd.f32 %v8657, %v9101
        %v9103 = vand.u32 %v8747, 4294901760
        %v9104 = vsub.f32 %v8747, %v9103
        %v9105 = vand.u32 %v9104, 4294901760
        %v9106 = vsub.f32 %v9104, %v9105
        %v9107 = vand.u32 %v9106, 4294901760
        %9108 = vmatmul.f32.gmra.mxu0 %v9107
        %v9109 = vpop.f32.mrf.mxu0
        %v9110 = vadd.f32 %v8657, %v9109
        %v9111 = vand.u32 %v8750, 4294901760
        %v9112 = vsub.f32 %v8750, %v9111
        %v9113 = vand.u32 %v9112, 4294901760
        %v9114 = vsub.f32 %v9112, %v9113
        %v9115 = vand.u32 %v9114, 4294901760
        %9116 = vmatmul.f32.gmra.mxu0 %v9115
        %v9117 = vpop.f32.mrf.mxu0
        %v9118 = vadd.f32 %v8657, %v9117
        %v9119 = vand.u32 %v8753, 4294901760
        %v9120 = vsub.f32 %v8753, %v9119
        %v9121 = vand.u32 %v9120, 4294901760
        %v9122 = vsub.f32 %v9120, %v9121
        %v9123 = vand.u32 %v9122, 4294901760
        %9124 = vmatmul.f32.gmra.mxu0 %v9123
        %v9125 = vpop.f32.mrf.mxu0
        %v9126 = vadd.f32 %v8657, %v9125
        %v9127 = vand.u32 %v8756, 4294901760
        %v9128 = vsub.f32 %v8756, %v9127
        %v9129 = vand.u32 %v9128, 4294901760
        %v9130 = vsub.f32 %v9128, %v9129
        %v9131 = vand.u32 %v9130, 4294901760
        %9132 = vmatmul.f32.gmra.mxu0 %v9131
        %v9133 = vpop.f32.mrf.mxu0
        %v9134 = vadd.f32 %v8657, %v9133
        %v9135 = vand.u32 %v8759, 4294901760
        %v9136 = vsub.f32 %v8759, %v9135
        %v9137 = vand.u32 %v9136, 4294901760
        %v9138 = vsub.f32 %v9136, %v9137
        %v9139 = vand.u32 %v9138, 4294901760
        %9140 = vmatmul.f32.gmra.mxu0 %v9139
        %v9141 = vpop.f32.mrf.mxu0
        %v9142 = vadd.f32 %v8657, %v9141
        %v9143 = vand.u32 %v8762, 4294901760
        %v9144 = vsub.f32 %v8762, %v9143
        %v9145 = vand.u32 %v9144, 4294901760
        %v9146 = vsub.f32 %v9144, %v9145
        %v9147 = vand.u32 %v9146, 4294901760
        %9148 = vmatmul.f32.gmra.mxu0 %v9147
        %v9149 = vpop.f32.mrf.mxu0
        %v9150 = vadd.f32 %v8657, %v9149
        %v9151 = vand.u32 %v8765, 4294901760
        %v9152 = vsub.f32 %v8765, %v9151
        %v9153 = vand.u32 %v9152, 4294901760
        %v9154 = vsub.f32 %v9152, %v9153
        %v9155 = vand.u32 %v9154, 4294901760
        %9156 = vmatmul.f32.gmra.mxu0 %v9155
        %v9157 = vpop.f32.mrf.mxu0
        %v9158 = vadd.f32 %v8657, %v9157
        %v9159 = vand.u32 %v8768, 4294901760
        %v9160 = vsub.f32 %v8768, %v9159
        %v9161 = vand.u32 %v9160, 4294901760
        %v9162 = vsub.f32 %v9160, %v9161
        %v9163 = vand.u32 %v9162, 4294901760
        %9164 = vmatmul.f32.gmra.mxu0 %v9163
        %v9165 = vpop.f32.mrf.mxu0
        %v9166 = vadd.f32 %v8657, %v9165
        %v9167 = vand.u32 %v8771, 4294901760
        %v9168 = vsub.f32 %v8771, %v9167
        %v9169 = vand.u32 %v9168, 4294901760
        %v9170 = vsub.f32 %v9168, %v9169
        %v9171 = vand.u32 %v9170, 4294901760
        %9172 = vmatmul.f32.gmra.mxu0 %v9171
        %v9173 = vpop.f32.mrf.mxu0
        %v9174 = vadd.f32 %v8657, %v9173
        %v9175 = vand.u32 %v8774, 4294901760
        %v9176 = vsub.f32 %v8774, %v9175
        %v9177 = vand.u32 %v9176, 4294901760
        %v9178 = vsub.f32 %v9176, %v9177
        %v9179 = vand.u32 %v9178, 4294901760
        %9180 = vmatmul.f32.gmra.mxu0 %v9179
        %v9181 = vpop.f32.mrf.mxu0
        %v9182 = vadd.f32 %v8657, %v9181
        %v9183 = vand.u32 %v8777, 4294901760
        %v9184 = vsub.f32 %v8777, %v9183
        %v9185 = vand.u32 %v9184, 4294901760
        %v9186 = vsub.f32 %v9184, %v9185
        %v9187 = vand.u32 %v9186, 4294901760
        %9188 = vmatmul.f32.gmra.mxu0 %v9187
        %v9189 = vpop.f32.mrf.mxu0
        %v9190 = vadd.f32 %v8657, %v9189
        %v9191 = vand.u32 %v8780, 4294901760
        %v9192 = vsub.f32 %v8780, %v9191
        %v9193 = vand.u32 %v9192, 4294901760
        %v9194 = vsub.f32 %v9192, %v9193
        %v9195 = vand.u32 %v9194, 4294901760
        %9196 = vmatmul.f32.gmra.mxu0 %v9195
        %v9197 = vpop.f32.mrf.mxu0
        %v9198 = vadd.f32 %v8657, %v9197
        %v9199 = vand.u32 %v8783, 4294901760
        %v9200 = vsub.f32 %v8783, %v9199
        %v9201 = vand.u32 %v9200, 4294901760
        %v9202 = vsub.f32 %v9200, %v9201
        %v9203 = vand.u32 %v9202, 4294901760
        %9204 = vmatmul.f32.gmra.mxu0 %v9203
        %v9205 = vpop.f32.mrf.mxu0
        %v9206 = vadd.f32 %v8657, %v9205
        %v9207 = vand.u32 %v8786, 4294901760
        %v9208 = vsub.f32 %v8786, %v9207
        %v9209 = vand.u32 %v9208, 4294901760
        %v9210 = vsub.f32 %v9208, %v9209
        %v9211 = vand.u32 %v9210, 4294901760
        %9212 = vmatmul.f32.gmra.mxu0 %v9211
        %v9213 = vpop.f32.mrf.mxu0
        %v9214 = vadd.f32 %v8657, %v9213
        %v9215 = vand.u32 %v8789, 4294901760
        %v9216 = vsub.f32 %v8789, %v9215
        %v9217 = vand.u32 %v9216, 4294901760
        %v9218 = vsub.f32 %v9216, %v9217
        %v9219 = vand.u32 %v9218, 4294901760
        %9220 = vmatmul.f32.gmra.mxu0 %v9219
        %v9221 = vpop.f32.mrf.mxu0
        %v9222 = vadd.f32 %v8657, %v9221
        %v9223 = vand.u32 %v8792, 4294901760
        %v9224 = vsub.f32 %v8792, %v9223
        %v9225 = vand.u32 %v9224, 4294901760
        %v9226 = vsub.f32 %v9224, %v9225
        %v9227 = vand.u32 %v9226, 4294901760
        %9228 = vmatmul.f32.gmra.mxu0 %v9227
        %v9229 = vpop.f32.mrf.mxu0
        %v9230 = vadd.f32 %v8657, %v9229
        %v9231 = vand.u32 %v8795, 4294901760
        %v9232 = vsub.f32 %v8795, %v9231
        %v9233 = vand.u32 %v9232, 4294901760
        %v9234 = vsub.f32 %v9232, %v9233
        %v9235 = vand.u32 %v9234, 4294901760
        %9236 = vmatmul.f32.gmra.mxu0 %v9235
        %v9237 = vpop.f32.mrf.mxu0
        %v9238 = vadd.f32 %v8657, %v9237
        %v9239 = vand.u32 %v8798, 4294901760
        %v9240 = vsub.f32 %v8798, %v9239
        %v9241 = vand.u32 %v9240, 4294901760
        %v9242 = vsub.f32 %v9240, %v9241
        %v9243 = vand.u32 %v9242, 4294901760
        %9244 = vmatmul.f32.gmra.mxu0 %v9243
        %v9245 = vpop.f32.mrf.mxu0
        %v9246 = vadd.f32 %v8657, %v9245
        %v9247 = vand.u32 %v8801, 4294901760
        %v9248 = vsub.f32 %v8801, %v9247
        %v9249 = vand.u32 %v9248, 4294901760
        %v9250 = vsub.f32 %v9248, %v9249
        %v9251 = vand.u32 %v9250, 4294901760
        %9252 = vmatmul.f32.gmra.mxu0 %v9251
        %v9253 = vpop.f32.mrf.mxu0
        %v9254 = vadd.f32 %v8657, %v9253
        %v9255 = vand.u32 %v8804, 4294901760
        %v9256 = vsub.f32 %v8804, %v9255
        %v9257 = vand.u32 %v9256, 4294901760
        %v9258 = vsub.f32 %v9256, %v9257
        %v9259 = vand.u32 %v9258, 4294901760
        %9260 = vmatmul.f32.gmra.mxu0 %v9259
        %v9261 = vpop.f32.mrf.mxu0
        %v9262 = vadd.f32 %v8657, %v9261
        %v9263 = vand.u32 %v8807, 4294901760
        %v9264 = vsub.f32 %v8807, %v9263
        %v9265 = vand.u32 %v9264, 4294901760
        %v9266 = vsub.f32 %v9264, %v9265
        %v9267 = vand.u32 %v9266, 4294901760
        %9268 = vmatmul.f32.gmra.mxu0 %v9267
        %v9269 = vpop.f32.mrf.mxu0
        %v9270 = vadd.f32 %v8657, %v9269
        %v9271 = vand.u32 %v8810, 4294901760
        %v9272 = vsub.f32 %v8810, %v9271
        %v9273 = vand.u32 %v9272, 4294901760
        %v9274 = vsub.f32 %v9272, %v9273
        %v9275 = vand.u32 %v9274, 4294901760
        %9276 = vmatmul.f32.gmra.mxu0 %v9275
        %v9277 = vpop.f32.mrf.mxu0
        %v9278 = vadd.f32 %v8657, %v9277
        %v9279 = vand.u32 %v8813, 4294901760
        %v9280 = vsub.f32 %v8813, %v9279
        %v9281 = vand.u32 %v9280, 4294901760
        %v9282 = vsub.f32 %v9280, %v9281
        %v9283 = vand.u32 %v9282, 4294901760
        %9284 = vmatmul.f32.gmra.mxu0 %v9283
        %v9285 = vpop.f32.mrf.mxu0
        %v9286 = vadd.f32 %v8657, %v9285
        %v9287 = vand.u32 %v8816, 4294901760
        %v9288 = vsub.f32 %v8816, %v9287
        %v9289 = vand.u32 %v9288, 4294901760
        %v9290 = vsub.f32 %v9288, %v9289
        %v9291 = vand.u32 %v9290, 4294901760
        %9292 = vmatmul.f32.gmra.mxu0 %v9291
        %v9293 = vpop.f32.mrf.mxu0
        %v9294 = vadd.f32 %v8657, %v9293
        %v9295 = vand.u32 %v8819, 4294901760
        %v9296 = vsub.f32 %v8819, %v9295
        %v9297 = vand.u32 %v9296, 4294901760
        %v9298 = vsub.f32 %v9296, %v9297
        %v9299 = vand.u32 %v9298, 4294901760
        %9300 = vmatmul.f32.gmra.mxu0 %v9299
        %v9301 = vpop.f32.mrf.mxu0
        %v9302 = vadd.f32 %v8657, %v9301
        %v9303 = vand.u32 %v8822, 4294901760
        %v9304 = vsub.f32 %v8822, %v9303
        %v9305 = vand.u32 %v9304, 4294901760
        %v9306 = vsub.f32 %v9304, %v9305
        %v9307 = vand.u32 %v9306, 4294901760
        %9308 = vmatmul.f32.gmra.mxu0 %v9307
        %v9309 = vpop.f32.mrf.mxu0
        %v9310 = vadd.f32 %v8657, %v9309
        %v9311 = vand.u32 %v8825, 4294901760
        %v9312 = vsub.f32 %v8825, %v9311
        %v9313 = vand.u32 %v9312, 4294901760
        %v9314 = vsub.f32 %v9312, %v9313
        %v9315 = vand.u32 %v9314, 4294901760
        %9316 = vmatmul.f32.gmra.mxu0 %v9315
        %v9317 = vpop.f32.mrf.mxu0
        %v9318 = vadd.f32 %v8657, %v9317
        %v9319 = vand.u32 %v8828, 4294901760
        %v9320 = vsub.f32 %v8828, %v9319
        %v9321 = vand.u32 %v9320, 4294901760
        %v9322 = vsub.f32 %v9320, %v9321
        %v9323 = vand.u32 %v9322, 4294901760
        %9324 = vmatmul.f32.gmra.mxu0 %v9323
        %v9325 = vpop.f32.mrf.mxu0
        %v9326 = vadd.f32 %v8657, %v9325
        %v9327 = vand.u32 %v8831, 4294901760
        %v9328 = vsub.f32 %v8831, %v9327
        %v9329 = vand.u32 %v9328, 4294901760
        %v9330 = vsub.f32 %v9328, %v9329
        %v9331 = vand.u32 %v9330, 4294901760
        %9332 = vmatmul.f32.gmra.mxu0 %v9331
        %v9333 = vpop.f32.mrf.mxu0
        %v9334 = vadd.f32 %v8657, %v9333
        %v9335 = vand.u32 %v8834, 4294901760
        %v9336 = vsub.f32 %v8834, %v9335
        %v9337 = vand.u32 %v9336, 4294901760
        %v9338 = vsub.f32 %v9336, %v9337
        %v9339 = vand.u32 %v9338, 4294901760
        %9340 = vmatmul.f32.gmra.mxu0 %v9339
        %v9341 = vpop.f32.mrf.mxu0
        %v9342 = vadd.f32 %v8657, %v9341
        %v9343 = vand.u32 %v8837, 4294901760
        %v9344 = vsub.f32 %v8837, %v9343
        %v9345 = vand.u32 %v9344, 4294901760
        %v9346 = vsub.f32 %v9344, %v9345
        %v9347 = vand.u32 %v9346, 4294901760
        %9348 = vmatmul.f32.gmra.mxu0 %v9347
        %v9349 = vpop.f32.mrf.mxu0
        %v9350 = vadd.f32 %v8657, %v9349
        %v9351 = vand.u32 %v8840, 4294901760
        %v9352 = vsub.f32 %v8840, %v9351
        %v9353 = vand.u32 %v9352, 4294901760
        %v9354 = vsub.f32 %v9352, %v9353
        %v9355 = vand.u32 %v9354, 4294901760
        %9356 = vmatmul.f32.gmra.mxu0 %v9355
        %v9357 = vpop.f32.mrf.mxu0
        %v9358 = vadd.f32 %v8657, %v9357
        %v9359 = vand.u32 %v8843, 4294901760
        %v9360 = vsub.f32 %v8843, %v9359
        %v9361 = vand.u32 %v9360, 4294901760
        %v9362 = vsub.f32 %v9360, %v9361
        %v9363 = vand.u32 %v9362, 4294901760
        %9364 = vmatmul.f32.gmra.mxu0 %v9363
        %v9365 = vpop.f32.mrf.mxu0
        %v9366 = vadd.f32 %v8657, %v9365
        %v9367 = vand.u32 %v8846, 4294901760
        %v9368 = vsub.f32 %v8846, %v9367
        %v9369 = vand.u32 %v9368, 4294901760
        %v9370 = vsub.f32 %v9368, %v9369
        %v9371 = vand.u32 %v9370, 4294901760
        %9372 = vmatmul.f32.gmra.mxu0 %v9371
        %v9373 = vpop.f32.mrf.mxu0
        %v9374 = vadd.f32 %v8657, %v9373
        %v9375 = vand.u32 %v8849, 4294901760
        %v9376 = vsub.f32 %v8849, %v9375
        %v9377 = vand.u32 %v9376, 4294901760
        %v9378 = vsub.f32 %v9376, %v9377
        %v9379 = vand.u32 %v9378, 4294901760
        %9380 = vmatmul.f32.gmra.mxu0 %v9379
        %v9381 = vpop.f32.mrf.mxu0
        %v9382 = vadd.f32 %v8657, %v9381
        %9383 = vdwg.mxu0
        %9384 = vmatpush.msra.mxu0 0.0
        %9385 = vmatpush.msra.mxu0 0.0
        %9386 = vmatpush.msra.mxu0 0.0
        %9387 = vmatpush.msra.mxu0 0.0
        %9388 = vmatpush.msra.mxu0 0.0
        %9389 = vmatpush.msra.mxu0 0.0
        %9390 = vmatpush.msra.mxu0 0.0
        %9391 = vmatpush.msra.mxu0 0.0
        %9392 = vmatpush.msra.mxu0 0.0
        %9393 = vmatpush.msra.mxu0 0.0
        %9394 = vmatpush.msra.mxu0 0.0
        %9395 = vmatpush.msra.mxu0 0.0
        %v9396 = vand.u32 %v8654, 4294901760
        %v9397 = vsub.f32 %v8654, %v9396
        %v9398 = vand.u32 %v9397, 4294901760
        %v9399 = vsub.f32 %v9397, %v9398
        %v9400 = vand.u32 %v9399, 4294901760
        %9401 = vmatpush.msra.mxu0 %v9400
        %v9402 = vand.u32 %v8653, 4294901760
        %v9403 = vsub.f32 %v8653, %v9402
        %v9404 = vand.u32 %v9403, 4294901760
        %v9405 = vsub.f32 %v9403, %v9404
        %v9406 = vand.u32 %v9405, 4294901760
        %9407 = vmatpush.msra.mxu0 %v9406
        %v9408 = vand.u32 %v8652, 4294901760
        %v9409 = vsub.f32 %v8652, %v9408
        %v9410 = vand.u32 %v9409, 4294901760
        %v9411 = vsub.f32 %v9409, %v9410
        %v9412 = vand.u32 %v9411, 4294901760
        %9413 = vmatpush.msra.mxu0 %v9412
        %v9414 = vand.u32 %v8651, 4294901760
        %v9415 = vsub.f32 %v8651, %v9414
        %v9416 = vand.u32 %v9415, 4294901760
        %v9417 = vsub.f32 %v9415, %v9416
        %v9418 = vand.u32 %v9417, 4294901760
        %9419 = vmatpush.msra.mxu0 %v9418
        %v9420 = vand.u32 %v8660, 4294901760
        %9421 = vmatmul.f32.gmra.mxu0 %v9420
        %v9422 = vpop.f32.mrf.mxu0
        %v9423 = vadd.f32 %v8878, %v9422
        %v9424 = vand.u32 %v8663, 4294901760
        %9425 = vmatmul.f32.gmra.mxu0 %v9424
        %v9426 = vpop.f32.mrf.mxu0
        %v9427 = vadd.f32 %v8886, %v9426
        %v9428 = vand.u32 %v8666, 4294901760
        %9429 = vmatmul.f32.gmra.mxu0 %v9428
        %v9430 = vpop.f32.mrf.mxu0
        %v9431 = vadd.f32 %v8894, %v9430
        %v9432 = vand.u32 %v8669, 4294901760
        %9433 = vmatmul.f32.gmra.mxu0 %v9432
        %v9434 = vpop.f32.mrf.mxu0
        %v9435 = vadd.f32 %v8902, %v9434
        %v9436 = vand.u32 %v8672, 4294901760
        %9437 = vmatmul.f32.gmra.mxu0 %v9436
        %v9438 = vpop.f32.mrf.mxu0
        %v9439 = vadd.f32 %v8910, %v9438
        %v9440 = vand.u32 %v8675, 4294901760
        %9441 = vmatmul.f32.gmra.mxu0 %v9440
        %v9442 = vpop.f32.mrf.mxu0
        %v9443 = vadd.f32 %v8918, %v9442
        %v9444 = vand.u32 %v8678, 4294901760
        %9445 = vmatmul.f32.gmra.mxu0 %v9444
        %v9446 = vpop.f32.mrf.mxu0
        %v9447 = vadd.f32 %v8926, %v9446
        %v9448 = vand.u32 %v8681, 4294901760
        %9449 = vmatmul.f32.gmra.mxu0 %v9448
        %v9450 = vpop.f32.mrf.mxu0
        %v9451 = vadd.f32 %v8934, %v9450
        %v9452 = vand.u32 %v8684, 4294901760
        %9453 = vmatmul.f32.gmra.mxu0 %v9452
        %v9454 = vpop.f32.mrf.mxu0
        %v9455 = vadd.f32 %v8942, %v9454
        %v9456 = vand.u32 %v8687, 4294901760
        %9457 = vmatmul.f32.gmra.mxu0 %v9456
        %v9458 = vpop.f32.mrf.mxu0
        %v9459 = vadd.f32 %v8950, %v9458
        %v9460 = vand.u32 %v8690, 4294901760
        %9461 = vmatmul.f32.gmra.mxu0 %v9460
        %v9462 = vpop.f32.mrf.mxu0
        %v9463 = vadd.f32 %v8958, %v9462
        %v9464 = vand.u32 %v8693, 4294901760
        %9465 = vmatmul.f32.gmra.mxu0 %v9464
        %v9466 = vpop.f32.mrf.mxu0
        %v9467 = vadd.f32 %v8966, %v9466
        %v9468 = vand.u32 %v8696, 4294901760
        %9469 = vmatmul.f32.gmra.mxu0 %v9468
        %v9470 = vpop.f32.mrf.mxu0
        %v9471 = vadd.f32 %v8974, %v9470
        %v9472 = vand.u32 %v8699, 4294901760
        %9473 = vmatmul.f32.gmra.mxu0 %v9472
        %v9474 = vpop.f32.mrf.mxu0
        %v9475 = vadd.f32 %v8982, %v9474
        %v9476 = vand.u32 %v8702, 4294901760
        %9477 = vmatmul.f32.gmra.mxu0 %v9476
        %v9478 = vpop.f32.mrf.mxu0
        %v9479 = vadd.f32 %v8990, %v9478
        %v9480 = vand.u32 %v8705, 4294901760
        %9481 = vmatmul.f32.gmra.mxu0 %v9480
        %v9482 = vpop.f32.mrf.mxu0
        %v9483 = vadd.f32 %v8998, %v9482
        %v9484 = vand.u32 %v8708, 4294901760
        %9485 = vmatmul.f32.gmra.mxu0 %v9484
        %v9486 = vpop.f32.mrf.mxu0
        %v9487 = vadd.f32 %v9006, %v9486
        %v9488 = vand.u32 %v8711, 4294901760
        %9489 = vmatmul.f32.gmra.mxu0 %v9488
        %v9490 = vpop.f32.mrf.mxu0
        %v9491 = vadd.f32 %v9014, %v9490
        %v9492 = vand.u32 %v8714, 4294901760
        %9493 = vmatmul.f32.gmra.mxu0 %v9492
        %v9494 = vpop.f32.mrf.mxu0
        %v9495 = vadd.f32 %v9022, %v9494
        %v9496 = vand.u32 %v8717, 4294901760
        %9497 = vmatmul.f32.gmra.mxu0 %v9496
        %v9498 = vpop.f32.mrf.mxu0
        %v9499 = vadd.f32 %v9030, %v9498
        %v9500 = vand.u32 %v8720, 4294901760
        %9501 = vmatmul.f32.gmra.mxu0 %v9500
        %v9502 = vpop.f32.mrf.mxu0
        %v9503 = vadd.f32 %v9038, %v9502
        %v9504 = vand.u32 %v8723, 4294901760
        %9505 = vmatmul.f32.gmra.mxu0 %v9504
        %v9506 = vpop.f32.mrf.mxu0
        %v9507 = vadd.f32 %v9046, %v9506
        %v9508 = vand.u32 %v8726, 4294901760
        %9509 = vmatmul.f32.gmra.mxu0 %v9508
        %v9510 = vpop.f32.mrf.mxu0
        %v9511 = vadd.f32 %v9054, %v9510
        %v9512 = vand.u32 %v8729, 4294901760
        %9513 = vmatmul.f32.gmra.mxu0 %v9512
        %v9514 = vpop.f32.mrf.mxu0
        %v9515 = vadd.f32 %v9062, %v9514
        %v9516 = vand.u32 %v8732, 4294901760
        %9517 = vmatmul.f32.gmra.mxu0 %v9516
        %v9518 = vpop.f32.mrf.mxu0
        %v9519 = vadd.f32 %v9070, %v9518
        %v9520 = vand.u32 %v8735, 4294901760
        %9521 = vmatmul.f32.gmra.mxu0 %v9520
        %v9522 = vpop.f32.mrf.mxu0
        %v9523 = vadd.f32 %v9078, %v9522
        %v9524 = vand.u32 %v8738, 4294901760
        %9525 = vmatmul.f32.gmra.mxu0 %v9524
        %v9526 = vpop.f32.mrf.mxu0
        %v9527 = vadd.f32 %v9086, %v9526
        %v9528 = vand.u32 %v8741, 4294901760
        %9529 = vmatmul.f32.gmra.mxu0 %v9528
        %v9530 = vpop.f32.mrf.mxu0
        %v9531 = vadd.f32 %v9094, %v9530
        %v9532 = vand.u32 %v8744, 4294901760
        %9533 = vmatmul.f32.gmra.mxu0 %v9532
        %v9534 = vpop.f32.mrf.mxu0
        %v9535 = vadd.f32 %v9102, %v9534
        %v9536 = vand.u32 %v8747, 4294901760
        %9537 = vmatmul.f32.gmra.mxu0 %v9536
        %v9538 = vpop.f32.mrf.mxu0
        %v9539 = vadd.f32 %v9110, %v9538
        %v9540 = vand.u32 %v8750, 4294901760
        %9541 = vmatmul.f32.gmra.mxu0 %v9540
        %v9542 = vpop.f32.mrf.mxu0
        %v9543 = vadd.f32 %v9118, %v9542
        %v9544 = vand.u32 %v8753, 4294901760
        %9545 = vmatmul.f32.gmra.mxu0 %v9544
        %v9546 = vpop.f32.mrf.mxu0
        %v9547 = vadd.f32 %v9126, %v9546
        %v9548 = vand.u32 %v8756, 4294901760
        %9549 = vmatmul.f32.gmra.mxu0 %v9548
        %v9550 = vpop.f32.mrf.mxu0
        %v9551 = vadd.f32 %v9134, %v9550
        %v9552 = vand.u32 %v8759, 4294901760
        %9553 = vmatmul.f32.gmra.mxu0 %v9552
        %v9554 = vpop.f32.mrf.mxu0
        %v9555 = vadd.f32 %v9142, %v9554
        %v9556 = vand.u32 %v8762, 4294901760
        %9557 = vmatmul.f32.gmra.mxu0 %v9556
        %v9558 = vpop.f32.mrf.mxu0
        %v9559 = vadd.f32 %v9150, %v9558
        %v9560 = vand.u32 %v8765, 4294901760
        %9561 = vmatmul.f32.gmra.mxu0 %v9560
        %v9562 = vpop.f32.mrf.mxu0
        %v9563 = vadd.f32 %v9158, %v9562
        %v9564 = vand.u32 %v8768, 4294901760
        %9565 = vmatmul.f32.gmra.mxu0 %v9564
        %v9566 = vpop.f32.mrf.mxu0
        %v9567 = vadd.f32 %v9166, %v9566
        %v9568 = vand.u32 %v8771, 4294901760
        %9569 = vmatmul.f32.gmra.mxu0 %v9568
        %v9570 = vpop.f32.mrf.mxu0
        %v9571 = vadd.f32 %v9174, %v9570
        %v9572 = vand.u32 %v8774, 4294901760
        %9573 = vmatmul.f32.gmra.mxu0 %v9572
        %v9574 = vpop.f32.mrf.mxu0
        %v9575 = vadd.f32 %v9182, %v9574
        %v9576 = vand.u32 %v8777, 4294901760
        %9577 = vmatmul.f32.gmra.mxu0 %v9576
        %v9578 = vpop.f32.mrf.mxu0
        %v9579 = vadd.f32 %v9190, %v9578
        %v9580 = vand.u32 %v8780, 4294901760
        %9581 = vmatmul.f32.gmra.mxu0 %v9580
        %v9582 = vpop.f32.mrf.mxu0
        %v9583 = vadd.f32 %v9198, %v9582
        %v9584 = vand.u32 %v8783, 4294901760
        %9585 = vmatmul.f32.gmra.mxu0 %v9584
        %v9586 = vpop.f32.mrf.mxu0
        %v9587 = vadd.f32 %v9206, %v9586
        %v9588 = vand.u32 %v8786, 4294901760
        %9589 = vmatmul.f32.gmra.mxu0 %v9588
        %v9590 = vpop.f32.mrf.mxu0
        %v9591 = vadd.f32 %v9214, %v9590
        %v9592 = vand.u32 %v8789, 4294901760
        %9593 = vmatmul.f32.gmra.mxu0 %v9592
        %v9594 = vpop.f32.mrf.mxu0
        %v9595 = vadd.f32 %v9222, %v9594
        %v9596 = vand.u32 %v8792, 4294901760
        %9597 = vmatmul.f32.gmra.mxu0 %v9596
        %v9598 = vpop.f32.mrf.mxu0
        %v9599 = vadd.f32 %v9230, %v9598
        %v9600 = vand.u32 %v8795, 4294901760
        %9601 = vmatmul.f32.gmra.mxu0 %v9600
        %v9602 = vpop.f32.mrf.mxu0
        %v9603 = vadd.f32 %v9238, %v9602
        %v9604 = vand.u32 %v8798, 4294901760
        %9605 = vmatmul.f32.gmra.mxu0 %v9604
        %v9606 = vpop.f32.mrf.mxu0
        %v9607 = vadd.f32 %v9246, %v9606
        %v9608 = vand.u32 %v8801, 4294901760
        %9609 = vmatmul.f32.gmra.mxu0 %v9608
        %v9610 = vpop.f32.mrf.mxu0
        %v9611 = vadd.f32 %v9254, %v9610
        %v9612 = vand.u32 %v8804, 4294901760
        %9613 = vmatmul.f32.gmra.mxu0 %v9612
        %v9614 = vpop.f32.mrf.mxu0
        %v9615 = vadd.f32 %v9262, %v9614
        %v9616 = vand.u32 %v8807, 4294901760
        %9617 = vmatmul.f32.gmra.mxu0 %v9616
        %v9618 = vpop.f32.mrf.mxu0
        %v9619 = vadd.f32 %v9270, %v9618
        %v9620 = vand.u32 %v8810, 4294901760
        %9621 = vmatmul.f32.gmra.mxu0 %v9620
        %v9622 = vpop.f32.mrf.mxu0
        %v9623 = vadd.f32 %v9278, %v9622
        %v9624 = vand.u32 %v8813, 4294901760
        %9625 = vmatmul.f32.gmra.mxu0 %v9624
        %v9626 = vpop.f32.mrf.mxu0
        %v9627 = vadd.f32 %v9286, %v9626
        %v9628 = vand.u32 %v8816, 4294901760
        %9629 = vmatmul.f32.gmra.mxu0 %v9628
        %v9630 = vpop.f32.mrf.mxu0
        %v9631 = vadd.f32 %v9294, %v9630
        %v9632 = vand.u32 %v8819, 4294901760
        %9633 = vmatmul.f32.gmra.mxu0 %v9632
        %v9634 = vpop.f32.mrf.mxu0
        %v9635 = vadd.f32 %v9302, %v9634
        %v9636 = vand.u32 %v8822, 4294901760
        %9637 = vmatmul.f32.gmra.mxu0 %v9636
        %v9638 = vpop.f32.mrf.mxu0
        %v9639 = vadd.f32 %v9310, %v9638
        %v9640 = vand.u32 %v8825, 4294901760
        %9641 = vmatmul.f32.gmra.mxu0 %v9640
        %v9642 = vpop.f32.mrf.mxu0
        %v9643 = vadd.f32 %v9318, %v9642
        %v9644 = vand.u32 %v8828, 4294901760
        %9645 = vmatmul.f32.gmra.mxu0 %v9644
        %v9646 = vpop.f32.mrf.mxu0
        %v9647 = vadd.f32 %v9326, %v9646
        %v9648 = vand.u32 %v8831, 4294901760
        %9649 = vmatmul.f32.gmra.mxu0 %v9648
        %v9650 = vpop.f32.mrf.mxu0
        %v9651 = vadd.f32 %v9334, %v9650
        %v9652 = vand.u32 %v8834, 4294901760
        %9653 = vmatmul.f32.gmra.mxu0 %v9652
        %v9654 = vpop.f32.mrf.mxu0
        %v9655 = vadd.f32 %v9342, %v9654
        %v9656 = vand.u32 %v8837, 4294901760
        %9657 = vmatmul.f32.gmra.mxu0 %v9656
        %v9658 = vpop.f32.mrf.mxu0
        %v9659 = vadd.f32 %v9350, %v9658
        %v9660 = vand.u32 %v8840, 4294901760
        %9661 = vmatmul.f32.gmra.mxu0 %v9660
        %v9662 = vpop.f32.mrf.mxu0
        %v9663 = vadd.f32 %v9358, %v9662
        %v9664 = vand.u32 %v8843, 4294901760
        %9665 = vmatmul.f32.gmra.mxu0 %v9664
        %v9666 = vpop.f32.mrf.mxu0
        %v9667 = vadd.f32 %v9366, %v9666
        %v9668 = vand.u32 %v8846, 4294901760
        %9669 = vmatmul.f32.gmra.mxu0 %v9668
        %v9670 = vpop.f32.mrf.mxu0
        %v9671 = vadd.f32 %v9374, %v9670
        %v9672 = vand.u32 %v8849, 4294901760
        %9673 = vmatmul.f32.gmra.mxu0 %v9672
        %v9674 = vpop.f32.mrf.mxu0
        %v9675 = vadd.f32 %v9382, %v9674
        %9676 = vdwg.mxu0
        %9677 = vmatpush.msra.mxu0 0.0
        %9678 = vmatpush.msra.mxu0 0.0
        %9679 = vmatpush.msra.mxu0 0.0
        %9680 = vmatpush.msra.mxu0 0.0
        %9681 = vmatpush.msra.mxu0 0.0
        %9682 = vmatpush.msra.mxu0 0.0
        %9683 = vmatpush.msra.mxu0 0.0
        %9684 = vmatpush.msra.mxu0 0.0
        %9685 = vmatpush.msra.mxu0 0.0
        %9686 = vmatpush.msra.mxu0 0.0
        %9687 = vmatpush.msra.mxu0 0.0
        %9688 = vmatpush.msra.mxu0 0.0
        %v9689 = vand.u32 %v8654, 4294901760
        %v9690 = vsub.f32 %v8654, %v9689
        %9691 = vmatpush.msra.mxu0 %v9690
        %v9692 = vand.u32 %v8653, 4294901760
        %v9693 = vsub.f32 %v8653, %v9692
        %9694 = vmatpush.msra.mxu0 %v9693
        %v9695 = vand.u32 %v8652, 4294901760
        %v9696 = vsub.f32 %v8652, %v9695
        %9697 = vmatpush.msra.mxu0 %v9696
        %v9698 = vand.u32 %v8651, 4294901760
        %v9699 = vsub.f32 %v8651, %v9698
        %9700 = vmatpush.msra.mxu0 %v9699
        %v9701 = vand.u32 %v8660, 4294901760
        %v9702 = vsub.f32 %v8660, %v9701
        %9703 = vmatmul.f32.gmra.mxu0 %v9702
        %v9704 = vpop.f32.mrf.mxu0
        %v9705 = vadd.f32 %v9423, %v9704
        %v9706 = vand.u32 %v8663, 4294901760
        %v9707 = vsub.f32 %v8663, %v9706
        %9708 = vmatmul.f32.gmra.mxu0 %v9707
        %v9709 = vpop.f32.mrf.mxu0
        %v9710 = vadd.f32 %v9427, %v9709
        %v9711 = vand.u32 %v8666, 4294901760
        %v9712 = vsub.f32 %v8666, %v9711
        %9713 = vmatmul.f32.gmra.mxu0 %v9712
        %v9714 = vpop.f32.mrf.mxu0
        %v9715 = vadd.f32 %v9431, %v9714
        %v9716 = vand.u32 %v8669, 4294901760
        %v9717 = vsub.f32 %v8669, %v9716
        %9718 = vmatmul.f32.gmra.mxu0 %v9717
        %v9719 = vpop.f32.mrf.mxu0
        %v9720 = vadd.f32 %v9435, %v9719
        %v9721 = vand.u32 %v8672, 4294901760
        %v9722 = vsub.f32 %v8672, %v9721
        %9723 = vmatmul.f32.gmra.mxu0 %v9722
        %v9724 = vpop.f32.mrf.mxu0
        %v9725 = vadd.f32 %v9439, %v9724
        %v9726 = vand.u32 %v8675, 4294901760
        %v9727 = vsub.f32 %v8675, %v9726
        %9728 = vmatmul.f32.gmra.mxu0 %v9727
        %v9729 = vpop.f32.mrf.mxu0
        %v9730 = vadd.f32 %v9443, %v9729
        %v9731 = vand.u32 %v8678, 4294901760
        %v9732 = vsub.f32 %v8678, %v9731
        %9733 = vmatmul.f32.gmra.mxu0 %v9732
        %v9734 = vpop.f32.mrf.mxu0
        %v9735 = vadd.f32 %v9447, %v9734
        %v9736 = vand.u32 %v8681, 4294901760
        %v9737 = vsub.f32 %v8681, %v9736
        %9738 = vmatmul.f32.gmra.mxu0 %v9737
        %v9739 = vpop.f32.mrf.mxu0
        %v9740 = vadd.f32 %v9451, %v9739
        %v9741 = vand.u32 %v8684, 4294901760
        %v9742 = vsub.f32 %v8684, %v9741
        %9743 = vmatmul.f32.gmra.mxu0 %v9742
        %v9744 = vpop.f32.mrf.mxu0
        %v9745 = vadd.f32 %v9455, %v9744
        %v9746 = vand.u32 %v8687, 4294901760
        %v9747 = vsub.f32 %v8687, %v9746
        %9748 = vmatmul.f32.gmra.mxu0 %v9747
        %v9749 = vpop.f32.mrf.mxu0
        %v9750 = vadd.f32 %v9459, %v9749
        %v9751 = vand.u32 %v8690, 4294901760
        %v9752 = vsub.f32 %v8690, %v9751
        %9753 = vmatmul.f32.gmra.mxu0 %v9752
        %v9754 = vpop.f32.mrf.mxu0
        %v9755 = vadd.f32 %v9463, %v9754
        %v9756 = vand.u32 %v8693, 4294901760
        %v9757 = vsub.f32 %v8693, %v9756
        %9758 = vmatmul.f32.gmra.mxu0 %v9757
        %v9759 = vpop.f32.mrf.mxu0
        %v9760 = vadd.f32 %v9467, %v9759
        %v9761 = vand.u32 %v8696, 4294901760
        %v9762 = vsub.f32 %v8696, %v9761
        %9763 = vmatmul.f32.gmra.mxu0 %v9762
        %v9764 = vpop.f32.mrf.mxu0
        %v9765 = vadd.f32 %v9471, %v9764
        %v9766 = vand.u32 %v8699, 4294901760
        %v9767 = vsub.f32 %v8699, %v9766
        %9768 = vmatmul.f32.gmra.mxu0 %v9767
        %v9769 = vpop.f32.mrf.mxu0
        %v9770 = vadd.f32 %v9475, %v9769
        %v9771 = vand.u32 %v8702, 4294901760
        %v9772 = vsub.f32 %v8702, %v9771
        %9773 = vmatmul.f32.gmra.mxu0 %v9772
        %v9774 = vpop.f32.mrf.mxu0
        %v9775 = vadd.f32 %v9479, %v9774
        %v9776 = vand.u32 %v8705, 4294901760
        %v9777 = vsub.f32 %v8705, %v9776
        %9778 = vmatmul.f32.gmra.mxu0 %v9777
        %v9779 = vpop.f32.mrf.mxu0
        %v9780 = vadd.f32 %v9483, %v9779
        %v9781 = vand.u32 %v8708, 4294901760
        %v9782 = vsub.f32 %v8708, %v9781
        %9783 = vmatmul.f32.gmra.mxu0 %v9782
        %v9784 = vpop.f32.mrf.mxu0
        %v9785 = vadd.f32 %v9487, %v9784
        %v9786 = vand.u32 %v8711, 4294901760
        %v9787 = vsub.f32 %v8711, %v9786
        %9788 = vmatmul.f32.gmra.mxu0 %v9787
        %v9789 = vpop.f32.mrf.mxu0
        %v9790 = vadd.f32 %v9491, %v9789
        %v9791 = vand.u32 %v8714, 4294901760
        %v9792 = vsub.f32 %v8714, %v9791
        %9793 = vmatmul.f32.gmra.mxu0 %v9792
        %v9794 = vpop.f32.mrf.mxu0
        %v9795 = vadd.f32 %v9495, %v9794
        %v9796 = vand.u32 %v8717, 4294901760
        %v9797 = vsub.f32 %v8717, %v9796
        %9798 = vmatmul.f32.gmra.mxu0 %v9797
        %v9799 = vpop.f32.mrf.mxu0
        %v9800 = vadd.f32 %v9499, %v9799
        %v9801 = vand.u32 %v8720, 4294901760
        %v9802 = vsub.f32 %v8720, %v9801
        %9803 = vmatmul.f32.gmra.mxu0 %v9802
        %v9804 = vpop.f32.mrf.mxu0
        %v9805 = vadd.f32 %v9503, %v9804
        %v9806 = vand.u32 %v8723, 4294901760
        %v9807 = vsub.f32 %v8723, %v9806
        %9808 = vmatmul.f32.gmra.mxu0 %v9807
        %v9809 = vpop.f32.mrf.mxu0
        %v9810 = vadd.f32 %v9507, %v9809
        %v9811 = vand.u32 %v8726, 4294901760
        %v9812 = vsub.f32 %v8726, %v9811
        %9813 = vmatmul.f32.gmra.mxu0 %v9812
        %v9814 = vpop.f32.mrf.mxu0
        %v9815 = vadd.f32 %v9511, %v9814
        %v9816 = vand.u32 %v8729, 4294901760
        %v9817 = vsub.f32 %v8729, %v9816
        %9818 = vmatmul.f32.gmra.mxu0 %v9817
        %v9819 = vpop.f32.mrf.mxu0
        %v9820 = vadd.f32 %v9515, %v9819
        %v9821 = vand.u32 %v8732, 4294901760
        %v9822 = vsub.f32 %v8732, %v9821
        %9823 = vmatmul.f32.gmra.mxu0 %v9822
        %v9824 = vpop.f32.mrf.mxu0
        %v9825 = vadd.f32 %v9519, %v9824
        %v9826 = vand.u32 %v8735, 4294901760
        %v9827 = vsub.f32 %v8735, %v9826
        %9828 = vmatmul.f32.gmra.mxu0 %v9827
        %v9829 = vpop.f32.mrf.mxu0
        %v9830 = vadd.f32 %v9523, %v9829
        %v9831 = vand.u32 %v8738, 4294901760
        %v9832 = vsub.f32 %v8738, %v9831
        %9833 = vmatmul.f32.gmra.mxu0 %v9832
        %v9834 = vpop.f32.mrf.mxu0
        %v9835 = vadd.f32 %v9527, %v9834
        %v9836 = vand.u32 %v8741, 4294901760
        %v9837 = vsub.f32 %v8741, %v9836
        %9838 = vmatmul.f32.gmra.mxu0 %v9837
        %v9839 = vpop.f32.mrf.mxu0
        %v9840 = vadd.f32 %v9531, %v9839
        %v9841 = vand.u32 %v8744, 4294901760
        %v9842 = vsub.f32 %v8744, %v9841
        %9843 = vmatmul.f32.gmra.mxu0 %v9842
        %v9844 = vpop.f32.mrf.mxu0
        %v9845 = vadd.f32 %v9535, %v9844
        %v9846 = vand.u32 %v8747, 4294901760
        %v9847 = vsub.f32 %v8747, %v9846
        %9848 = vmatmul.f32.gmra.mxu0 %v9847
        %v9849 = vpop.f32.mrf.mxu0
        %v9850 = vadd.f32 %v9539, %v9849
        %v9851 = vand.u32 %v8750, 4294901760
        %v9852 = vsub.f32 %v8750, %v9851
        %9853 = vmatmul.f32.gmra.mxu0 %v9852
        %v9854 = vpop.f32.mrf.mxu0
        %v9855 = vadd.f32 %v9543, %v9854
        %v9856 = vand.u32 %v8753, 4294901760
        %v9857 = vsub.f32 %v8753, %v9856
        %9858 = vmatmul.f32.gmra.mxu0 %v9857
        %v9859 = vpop.f32.mrf.mxu0
        %v9860 = vadd.f32 %v9547, %v9859
        %v9861 = vand.u32 %v8756, 4294901760
        %v9862 = vsub.f32 %v8756, %v9861
        %9863 = vmatmul.f32.gmra.mxu0 %v9862
        %v9864 = vpop.f32.mrf.mxu0
        %v9865 = vadd.f32 %v9551, %v9864
        %v9866 = vand.u32 %v8759, 4294901760
        %v9867 = vsub.f32 %v8759, %v9866
        %9868 = vmatmul.f32.gmra.mxu0 %v9867
        %v9869 = vpop.f32.mrf.mxu0
        %v9870 = vadd.f32 %v9555, %v9869
        %v9871 = vand.u32 %v8762, 4294901760
        %v9872 = vsub.f32 %v8762, %v9871
        %9873 = vmatmul.f32.gmra.mxu0 %v9872
        %v9874 = vpop.f32.mrf.mxu0
        %v9875 = vadd.f32 %v9559, %v9874
        %v9876 = vand.u32 %v8765, 4294901760
        %v9877 = vsub.f32 %v8765, %v9876
        %9878 = vmatmul.f32.gmra.mxu0 %v9877
        %v9879 = vpop.f32.mrf.mxu0
        %v9880 = vadd.f32 %v9563, %v9879
        %v9881 = vand.u32 %v8768, 4294901760
        %v9882 = vsub.f32 %v8768, %v9881
        %9883 = vmatmul.f32.gmra.mxu0 %v9882
        %v9884 = vpop.f32.mrf.mxu0
        %v9885 = vadd.f32 %v9567, %v9884
        %v9886 = vand.u32 %v8771, 4294901760
        %v9887 = vsub.f32 %v8771, %v9886
        %9888 = vmatmul.f32.gmra.mxu0 %v9887
        %v9889 = vpop.f32.mrf.mxu0
        %v9890 = vadd.f32 %v9571, %v9889
        %v9891 = vand.u32 %v8774, 4294901760
        %v9892 = vsub.f32 %v8774, %v9891
        %9893 = vmatmul.f32.gmra.mxu0 %v9892
        %v9894 = vpop.f32.mrf.mxu0
        %v9895 = vadd.f32 %v9575, %v9894
        %v9896 = vand.u32 %v8777, 4294901760
        %v9897 = vsub.f32 %v8777, %v9896
        %9898 = vmatmul.f32.gmra.mxu0 %v9897
        %v9899 = vpop.f32.mrf.mxu0
        %v9900 = vadd.f32 %v9579, %v9899
        %v9901 = vand.u32 %v8780, 4294901760
        %v9902 = vsub.f32 %v8780, %v9901
        %9903 = vmatmul.f32.gmra.mxu0 %v9902
        %v9904 = vpop.f32.mrf.mxu0
        %v9905 = vadd.f32 %v9583, %v9904
        %v9906 = vand.u32 %v8783, 4294901760
        %v9907 = vsub.f32 %v8783, %v9906
        %9908 = vmatmul.f32.gmra.mxu0 %v9907
        %v9909 = vpop.f32.mrf.mxu0
        %v9910 = vadd.f32 %v9587, %v9909
        %v9911 = vand.u32 %v8786, 4294901760
        %v9912 = vsub.f32 %v8786, %v9911
        %9913 = vmatmul.f32.gmra.mxu0 %v9912
        %v9914 = vpop.f32.mrf.mxu0
        %v9915 = vadd.f32 %v9591, %v9914
        %v9916 = vand.u32 %v8789, 4294901760
        %v9917 = vsub.f32 %v8789, %v9916
        %9918 = vmatmul.f32.gmra.mxu0 %v9917
        %v9919 = vpop.f32.mrf.mxu0
        %v9920 = vadd.f32 %v9595, %v9919
        %v9921 = vand.u32 %v8792, 4294901760
        %v9922 = vsub.f32 %v8792, %v9921
        %9923 = vmatmul.f32.gmra.mxu0 %v9922
        %v9924 = vpop.f32.mrf.mxu0
        %v9925 = vadd.f32 %v9599, %v9924
        %v9926 = vand.u32 %v8795, 4294901760
        %v9927 = vsub.f32 %v8795, %v9926
        %9928 = vmatmul.f32.gmra.mxu0 %v9927
        %v9929 = vpop.f32.mrf.mxu0
        %v9930 = vadd.f32 %v9603, %v9929
        %v9931 = vand.u32 %v8798, 4294901760
        %v9932 = vsub.f32 %v8798, %v9931
        %9933 = vmatmul.f32.gmra.mxu0 %v9932
        %v9934 = vpop.f32.mrf.mxu0
        %v9935 = vadd.f32 %v9607, %v9934
        %v9936 = vand.u32 %v8801, 4294901760
        %v9937 = vsub.f32 %v8801, %v9936
        %9938 = vmatmul.f32.gmra.mxu0 %v9937
        %v9939 = vpop.f32.mrf.mxu0
        %v9940 = vadd.f32 %v9611, %v9939
        %v9941 = vand.u32 %v8804, 4294901760
        %v9942 = vsub.f32 %v8804, %v9941
        %9943 = vmatmul.f32.gmra.mxu0 %v9942
        %v9944 = vpop.f32.mrf.mxu0
        %v9945 = vadd.f32 %v9615, %v9944
        %v9946 = vand.u32 %v8807, 4294901760
        %v9947 = vsub.f32 %v8807, %v9946
        %9948 = vmatmul.f32.gmra.mxu0 %v9947
        %v9949 = vpop.f32.mrf.mxu0
        %v9950 = vadd.f32 %v9619, %v9949
        %v9951 = vand.u32 %v8810, 4294901760
        %v9952 = vsub.f32 %v8810, %v9951
        %9953 = vmatmul.f32.gmra.mxu0 %v9952
        %v9954 = vpop.f32.mrf.mxu0
        %v9955 = vadd.f32 %v9623, %v9954
        %v9956 = vand.u32 %v8813, 4294901760
        %v9957 = vsub.f32 %v8813, %v9956
        %9958 = vmatmul.f32.gmra.mxu0 %v9957
        %v9959 = vpop.f32.mrf.mxu0
        %v9960 = vadd.f32 %v9627, %v9959
        %v9961 = vand.u32 %v8816, 4294901760
        %v9962 = vsub.f32 %v8816, %v9961
        %9963 = vmatmul.f32.gmra.mxu0 %v9962
        %v9964 = vpop.f32.mrf.mxu0
        %v9965 = vadd.f32 %v9631, %v9964
        %v9966 = vand.u32 %v8819, 4294901760
        %v9967 = vsub.f32 %v8819, %v9966
        %9968 = vmatmul.f32.gmra.mxu0 %v9967
        %v9969 = vpop.f32.mrf.mxu0
        %v9970 = vadd.f32 %v9635, %v9969
        %v9971 = vand.u32 %v8822, 4294901760
        %v9972 = vsub.f32 %v8822, %v9971
        %9973 = vmatmul.f32.gmra.mxu0 %v9972
        %v9974 = vpop.f32.mrf.mxu0
        %v9975 = vadd.f32 %v9639, %v9974
        %v9976 = vand.u32 %v8825, 4294901760
        %v9977 = vsub.f32 %v8825, %v9976
        %9978 = vmatmul.f32.gmra.mxu0 %v9977
        %v9979 = vpop.f32.mrf.mxu0
        %v9980 = vadd.f32 %v9643, %v9979
        %v9981 = vand.u32 %v8828, 4294901760
        %v9982 = vsub.f32 %v8828, %v9981
        %9983 = vmatmul.f32.gmra.mxu0 %v9982
        %v9984 = vpop.f32.mrf.mxu0
        %v9985 = vadd.f32 %v9647, %v9984
        %v9986 = vand.u32 %v8831, 4294901760
        %v9987 = vsub.f32 %v8831, %v9986
        %9988 = vmatmul.f32.gmra.mxu0 %v9987
        %v9989 = vpop.f32.mrf.mxu0
        %v9990 = vadd.f32 %v9651, %v9989
        %v9991 = vand.u32 %v8834, 4294901760
        %v9992 = vsub.f32 %v8834, %v9991
        %9993 = vmatmul.f32.gmra.mxu0 %v9992
        %v9994 = vpop.f32.mrf.mxu0
        %v9995 = vadd.f32 %v9655, %v9994
        %v9996 = vand.u32 %v8837, 4294901760
        %v9997 = vsub.f32 %v8837, %v9996
        %9998 = vmatmul.f32.gmra.mxu0 %v9997
        %v9999 = vpop.f32.mrf.mxu0
        %v10000 = vadd.f32 %v9659, %v9999
        %v10001 = vand.u32 %v8840, 4294901760
        %v10002 = vsub.f32 %v8840, %v10001
        %10003 = vmatmul.f32.gmra.mxu0 %v10002
        %v10004 = vpop.f32.mrf.mxu0
        %v10005 = vadd.f32 %v9663, %v10004
        %v10006 = vand.u32 %v8843, 4294901760
        %v10007 = vsub.f32 %v8843, %v10006
        %10008 = vmatmul.f32.gmra.mxu0 %v10007
        %v10009 = vpop.f32.mrf.mxu0
        %v10010 = vadd.f32 %v9667, %v10009
        %v10011 = vand.u32 %v8846, 4294901760
        %v10012 = vsub.f32 %v8846, %v10011
        %10013 = vmatmul.f32.gmra.mxu0 %v10012
        %v10014 = vpop.f32.mrf.mxu0
        %v10015 = vadd.f32 %v9671, %v10014
        %v10016 = vand.u32 %v8849, 4294901760
        %v10017 = vsub.f32 %v8849, %v10016
        %10018 = vmatmul.f32.gmra.mxu0 %v10017
        %v10019 = vpop.f32.mrf.mxu0
        %v10020 = vadd.f32 %v9675, %v10019
        %10021 = vdwg.mxu0
        %10022 = vmatpush.msra.mxu0 0.0
        %10023 = vmatpush.msra.mxu0 0.0
        %10024 = vmatpush.msra.mxu0 0.0
        %10025 = vmatpush.msra.mxu0 0.0
        %10026 = vmatpush.msra.mxu0 0.0
        %10027 = vmatpush.msra.mxu0 0.0
        %10028 = vmatpush.msra.mxu0 0.0
        %10029 = vmatpush.msra.mxu0 0.0
        %10030 = vmatpush.msra.mxu0 0.0
        %10031 = vmatpush.msra.mxu0 0.0
        %10032 = vmatpush.msra.mxu0 0.0
        %10033 = vmatpush.msra.mxu0 0.0
        %v10034 = vand.u32 %v8654, 4294901760
        %10035 = vmatpush.msra.mxu0 %v10034
        %v10036 = vand.u32 %v8653, 4294901760
        %10037 = vmatpush.msra.mxu0 %v10036
        %v10038 = vand.u32 %v8652, 4294901760
        %10039 = vmatpush.msra.mxu0 %v10038
        %v10040 = vand.u32 %v8651, 4294901760
        %10041 = vmatpush.msra.mxu0 %v10040
        %v10042 = vand.u32 %v8660, 4294901760
        %v10043 = vsub.f32 %v8660, %v10042
        %v10044 = vand.u32 %v10043, 4294901760
        %10045 = vmatmul.f32.gmra.mxu0 %v10044
        %v10046 = vpop.f32.mrf.mxu0
        %v10047 = vadd.f32 %v9705, %v10046
        %v10048 = vand.u32 %v8663, 4294901760
        %v10049 = vsub.f32 %v8663, %v10048
        %v10050 = vand.u32 %v10049, 4294901760
        %10051 = vmatmul.f32.gmra.mxu0 %v10050
        %v10052 = vpop.f32.mrf.mxu0
        %v10053 = vadd.f32 %v9710, %v10052
        %v10054 = vand.u32 %v8666, 4294901760
        %v10055 = vsub.f32 %v8666, %v10054
        %v10056 = vand.u32 %v10055, 4294901760
        %10057 = vmatmul.f32.gmra.mxu0 %v10056
        %v10058 = vpop.f32.mrf.mxu0
        %v10059 = vadd.f32 %v9715, %v10058
        %v10060 = vand.u32 %v8669, 4294901760
        %v10061 = vsub.f32 %v8669, %v10060
        %v10062 = vand.u32 %v10061, 4294901760
        %10063 = vmatmul.f32.gmra.mxu0 %v10062
        %v10064 = vpop.f32.mrf.mxu0
        %v10065 = vadd.f32 %v9720, %v10064
        %v10066 = vand.u32 %v8672, 4294901760
        %v10067 = vsub.f32 %v8672, %v10066
        %v10068 = vand.u32 %v10067, 4294901760
        %10069 = vmatmul.f32.gmra.mxu0 %v10068
        %v10070 = vpop.f32.mrf.mxu0
        %v10071 = vadd.f32 %v9725, %v10070
        %v10072 = vand.u32 %v8675, 4294901760
        %v10073 = vsub.f32 %v8675, %v10072
        %v10074 = vand.u32 %v10073, 4294901760
        %10075 = vmatmul.f32.gmra.mxu0 %v10074
        %v10076 = vpop.f32.mrf.mxu0
        %v10077 = vadd.f32 %v9730, %v10076
        %v10078 = vand.u32 %v8678, 4294901760
        %v10079 = vsub.f32 %v8678, %v10078
        %v10080 = vand.u32 %v10079, 4294901760
        %10081 = vmatmul.f32.gmra.mxu0 %v10080
        %v10082 = vpop.f32.mrf.mxu0
        %v10083 = vadd.f32 %v9735, %v10082
        %v10084 = vand.u32 %v8681, 4294901760
        %v10085 = vsub.f32 %v8681, %v10084
        %v10086 = vand.u32 %v10085, 4294901760
        %10087 = vmatmul.f32.gmra.mxu0 %v10086
        %v10088 = vpop.f32.mrf.mxu0
        %v10089 = vadd.f32 %v9740, %v10088
        %v10090 = vand.u32 %v8684, 4294901760
        %v10091 = vsub.f32 %v8684, %v10090
        %v10092 = vand.u32 %v10091, 4294901760
        %10093 = vmatmul.f32.gmra.mxu0 %v10092
        %v10094 = vpop.f32.mrf.mxu0
        %v10095 = vadd.f32 %v9745, %v10094
        %v10096 = vand.u32 %v8687, 4294901760
        %v10097 = vsub.f32 %v8687, %v10096
        %v10098 = vand.u32 %v10097, 4294901760
        %10099 = vmatmul.f32.gmra.mxu0 %v10098
        %v10100 = vpop.f32.mrf.mxu0
        %v10101 = vadd.f32 %v9750, %v10100
        %v10102 = vand.u32 %v8690, 4294901760
        %v10103 = vsub.f32 %v8690, %v10102
        %v10104 = vand.u32 %v10103, 4294901760
        %10105 = vmatmul.f32.gmra.mxu0 %v10104
        %v10106 = vpop.f32.mrf.mxu0
        %v10107 = vadd.f32 %v9755, %v10106
        %v10108 = vand.u32 %v8693, 4294901760
        %v10109 = vsub.f32 %v8693, %v10108
        %v10110 = vand.u32 %v10109, 4294901760
        %10111 = vmatmul.f32.gmra.mxu0 %v10110
        %v10112 = vpop.f32.mrf.mxu0
        %v10113 = vadd.f32 %v9760, %v10112
        %v10114 = vand.u32 %v8696, 4294901760
        %v10115 = vsub.f32 %v8696, %v10114
        %v10116 = vand.u32 %v10115, 4294901760
        %10117 = vmatmul.f32.gmra.mxu0 %v10116
        %v10118 = vpop.f32.mrf.mxu0
        %v10119 = vadd.f32 %v9765, %v10118
        %v10120 = vand.u32 %v8699, 4294901760
        %v10121 = vsub.f32 %v8699, %v10120
        %v10122 = vand.u32 %v10121, 4294901760
        %10123 = vmatmul.f32.gmra.mxu0 %v10122
        %v10124 = vpop.f32.mrf.mxu0
        %v10125 = vadd.f32 %v9770, %v10124
        %v10126 = vand.u32 %v8702, 4294901760
        %v10127 = vsub.f32 %v8702, %v10126
        %v10128 = vand.u32 %v10127, 4294901760
        %10129 = vmatmul.f32.gmra.mxu0 %v10128
        %v10130 = vpop.f32.mrf.mxu0
        %v10131 = vadd.f32 %v9775, %v10130
        %v10132 = vand.u32 %v8705, 4294901760
        %v10133 = vsub.f32 %v8705, %v10132
        %v10134 = vand.u32 %v10133, 4294901760
        %10135 = vmatmul.f32.gmra.mxu0 %v10134
        %v10136 = vpop.f32.mrf.mxu0
        %v10137 = vadd.f32 %v9780, %v10136
        %v10138 = vand.u32 %v8708, 4294901760
        %v10139 = vsub.f32 %v8708, %v10138
        %v10140 = vand.u32 %v10139, 4294901760
        %10141 = vmatmul.f32.gmra.mxu0 %v10140
        %v10142 = vpop.f32.mrf.mxu0
        %v10143 = vadd.f32 %v9785, %v10142
        %v10144 = vand.u32 %v8711, 4294901760
        %v10145 = vsub.f32 %v8711, %v10144
        %v10146 = vand.u32 %v10145, 4294901760
        %10147 = vmatmul.f32.gmra.mxu0 %v10146
        %v10148 = vpop.f32.mrf.mxu0
        %v10149 = vadd.f32 %v9790, %v10148
        %v10150 = vand.u32 %v8714, 4294901760
        %v10151 = vsub.f32 %v8714, %v10150
        %v10152 = vand.u32 %v10151, 4294901760
        %10153 = vmatmul.f32.gmra.mxu0 %v10152
        %v10154 = vpop.f32.mrf.mxu0
        %v10155 = vadd.f32 %v9795, %v10154
        %v10156 = vand.u32 %v8717, 4294901760
        %v10157 = vsub.f32 %v8717, %v10156
        %v10158 = vand.u32 %v10157, 4294901760
        %10159 = vmatmul.f32.gmra.mxu0 %v10158
        %v10160 = vpop.f32.mrf.mxu0
        %v10161 = vadd.f32 %v9800, %v10160
        %v10162 = vand.u32 %v8720, 4294901760
        %v10163 = vsub.f32 %v8720, %v10162
        %v10164 = vand.u32 %v10163, 4294901760
        %10165 = vmatmul.f32.gmra.mxu0 %v10164
        %v10166 = vpop.f32.mrf.mxu0
        %v10167 = vadd.f32 %v9805, %v10166
        %v10168 = vand.u32 %v8723, 4294901760
        %v10169 = vsub.f32 %v8723, %v10168
        %v10170 = vand.u32 %v10169, 4294901760
        %10171 = vmatmul.f32.gmra.mxu0 %v10170
        %v10172 = vpop.f32.mrf.mxu0
        %v10173 = vadd.f32 %v9810, %v10172
        %v10174 = vand.u32 %v8726, 4294901760
        %v10175 = vsub.f32 %v8726, %v10174
        %v10176 = vand.u32 %v10175, 4294901760
        %10177 = vmatmul.f32.gmra.mxu0 %v10176
        %v10178 = vpop.f32.mrf.mxu0
        %v10179 = vadd.f32 %v9815, %v10178
        %v10180 = vand.u32 %v8729, 4294901760
        %v10181 = vsub.f32 %v8729, %v10180
        %v10182 = vand.u32 %v10181, 4294901760
        %10183 = vmatmul.f32.gmra.mxu0 %v10182
        %v10184 = vpop.f32.mrf.mxu0
        %v10185 = vadd.f32 %v9820, %v10184
        %v10186 = vand.u32 %v8732, 4294901760
        %v10187 = vsub.f32 %v8732, %v10186
        %v10188 = vand.u32 %v10187, 4294901760
        %10189 = vmatmul.f32.gmra.mxu0 %v10188
        %v10190 = vpop.f32.mrf.mxu0
        %v10191 = vadd.f32 %v9825, %v10190
        %v10192 = vand.u32 %v8735, 4294901760
        %v10193 = vsub.f32 %v8735, %v10192
        %v10194 = vand.u32 %v10193, 4294901760
        %10195 = vmatmul.f32.gmra.mxu0 %v10194
        %v10196 = vpop.f32.mrf.mxu0
        %v10197 = vadd.f32 %v9830, %v10196
        %v10198 = vand.u32 %v8738, 4294901760
        %v10199 = vsub.f32 %v8738, %v10198
        %v10200 = vand.u32 %v10199, 4294901760
        %10201 = vmatmul.f32.gmra.mxu0 %v10200
        %v10202 = vpop.f32.mrf.mxu0
        %v10203 = vadd.f32 %v9835, %v10202
        %v10204 = vand.u32 %v8741, 4294901760
        %v10205 = vsub.f32 %v8741, %v10204
        %v10206 = vand.u32 %v10205, 4294901760
        %10207 = vmatmul.f32.gmra.mxu0 %v10206
        %v10208 = vpop.f32.mrf.mxu0
        %v10209 = vadd.f32 %v9840, %v10208
        %v10210 = vand.u32 %v8744, 4294901760
        %v10211 = vsub.f32 %v8744, %v10210
        %v10212 = vand.u32 %v10211, 4294901760
        %10213 = vmatmul.f32.gmra.mxu0 %v10212
        %v10214 = vpop.f32.mrf.mxu0
        %v10215 = vadd.f32 %v9845, %v10214
        %v10216 = vand.u32 %v8747, 4294901760
        %v10217 = vsub.f32 %v8747, %v10216
        %v10218 = vand.u32 %v10217, 4294901760
        %10219 = vmatmul.f32.gmra.mxu0 %v10218
        %v10220 = vpop.f32.mrf.mxu0
        %v10221 = vadd.f32 %v9850, %v10220
        %v10222 = vand.u32 %v8750, 4294901760
        %v10223 = vsub.f32 %v8750, %v10222
        %v10224 = vand.u32 %v10223, 4294901760
        %10225 = vmatmul.f32.gmra.mxu0 %v10224
        %v10226 = vpop.f32.mrf.mxu0
        %v10227 = vadd.f32 %v9855, %v10226
        %v10228 = vand.u32 %v8753, 4294901760
        %v10229 = vsub.f32 %v8753, %v10228
        %v10230 = vand.u32 %v10229, 4294901760
        %10231 = vmatmul.f32.gmra.mxu0 %v10230
        %v10232 = vpop.f32.mrf.mxu0
        %v10233 = vadd.f32 %v9860, %v10232
        %v10234 = vand.u32 %v8756, 4294901760
        %v10235 = vsub.f32 %v8756, %v10234
        %v10236 = vand.u32 %v10235, 4294901760
        %10237 = vmatmul.f32.gmra.mxu0 %v10236
        %v10238 = vpop.f32.mrf.mxu0
        %v10239 = vadd.f32 %v9865, %v10238
        %v10240 = vand.u32 %v8759, 4294901760
        %v10241 = vsub.f32 %v8759, %v10240
        %v10242 = vand.u32 %v10241, 4294901760
        %10243 = vmatmul.f32.gmra.mxu0 %v10242
        %v10244 = vpop.f32.mrf.mxu0
        %v10245 = vadd.f32 %v9870, %v10244
        %v10246 = vand.u32 %v8762, 4294901760
        %v10247 = vsub.f32 %v8762, %v10246
        %v10248 = vand.u32 %v10247, 4294901760
        %10249 = vmatmul.f32.gmra.mxu0 %v10248
        %v10250 = vpop.f32.mrf.mxu0
        %v10251 = vadd.f32 %v9875, %v10250
        %v10252 = vand.u32 %v8765, 4294901760
        %v10253 = vsub.f32 %v8765, %v10252
        %v10254 = vand.u32 %v10253, 4294901760
        %10255 = vmatmul.f32.gmra.mxu0 %v10254
        %v10256 = vpop.f32.mrf.mxu0
        %v10257 = vadd.f32 %v9880, %v10256
        %v10258 = vand.u32 %v8768, 4294901760
        %v10259 = vsub.f32 %v8768, %v10258
        %v10260 = vand.u32 %v10259, 4294901760
        %10261 = vmatmul.f32.gmra.mxu0 %v10260
        %v10262 = vpop.f32.mrf.mxu0
        %v10263 = vadd.f32 %v9885, %v10262
        %v10264 = vand.u32 %v8771, 4294901760
        %v10265 = vsub.f32 %v8771, %v10264
        %v10266 = vand.u32 %v10265, 4294901760
        %10267 = vmatmul.f32.gmra.mxu0 %v10266
        %v10268 = vpop.f32.mrf.mxu0
        %v10269 = vadd.f32 %v9890, %v10268
        %v10270 = vand.u32 %v8774, 4294901760
        %v10271 = vsub.f32 %v8774, %v10270
        %v10272 = vand.u32 %v10271, 4294901760
        %10273 = vmatmul.f32.gmra.mxu0 %v10272
        %v10274 = vpop.f32.mrf.mxu0
        %v10275 = vadd.f32 %v9895, %v10274
        %v10276 = vand.u32 %v8777, 4294901760
        %v10277 = vsub.f32 %v8777, %v10276
        %v10278 = vand.u32 %v10277, 4294901760
        %10279 = vmatmul.f32.gmra.mxu0 %v10278
        %v10280 = vpop.f32.mrf.mxu0
        %v10281 = vadd.f32 %v9900, %v10280
        %v10282 = vand.u32 %v8780, 4294901760
        %v10283 = vsub.f32 %v8780, %v10282
        %v10284 = vand.u32 %v10283, 4294901760
        %10285 = vmatmul.f32.gmra.mxu0 %v10284
        %v10286 = vpop.f32.mrf.mxu0
        %v10287 = vadd.f32 %v9905, %v10286
        %v10288 = vand.u32 %v8783, 4294901760
        %v10289 = vsub.f32 %v8783, %v10288
        %v10290 = vand.u32 %v10289, 4294901760
        %10291 = vmatmul.f32.gmra.mxu0 %v10290
        %v10292 = vpop.f32.mrf.mxu0
        %v10293 = vadd.f32 %v9910, %v10292
        %v10294 = vand.u32 %v8786, 4294901760
        %v10295 = vsub.f32 %v8786, %v10294
        %v10296 = vand.u32 %v10295, 4294901760
        %10297 = vmatmul.f32.gmra.mxu0 %v10296
        %v10298 = vpop.f32.mrf.mxu0
        %v10299 = vadd.f32 %v9915, %v10298
        %v10300 = vand.u32 %v8789, 4294901760
        %v10301 = vsub.f32 %v8789, %v10300
        %v10302 = vand.u32 %v10301, 4294901760
        %10303 = vmatmul.f32.gmra.mxu0 %v10302
        %v10304 = vpop.f32.mrf.mxu0
        %v10305 = vadd.f32 %v9920, %v10304
        %v10306 = vand.u32 %v8792, 4294901760
        %v10307 = vsub.f32 %v8792, %v10306
        %v10308 = vand.u32 %v10307, 4294901760
        %10309 = vmatmul.f32.gmra.mxu0 %v10308
        %v10310 = vpop.f32.mrf.mxu0
        %v10311 = vadd.f32 %v9925, %v10310
        %v10312 = vand.u32 %v8795, 4294901760
        %v10313 = vsub.f32 %v8795, %v10312
        %v10314 = vand.u32 %v10313, 4294901760
        %10315 = vmatmul.f32.gmra.mxu0 %v10314
        %v10316 = vpop.f32.mrf.mxu0
        %v10317 = vadd.f32 %v9930, %v10316
        %v10318 = vand.u32 %v8798, 4294901760
        %v10319 = vsub.f32 %v8798, %v10318
        %v10320 = vand.u32 %v10319, 4294901760
        %10321 = vmatmul.f32.gmra.mxu0 %v10320
        %v10322 = vpop.f32.mrf.mxu0
        %v10323 = vadd.f32 %v9935, %v10322
        %v10324 = vand.u32 %v8801, 4294901760
        %v10325 = vsub.f32 %v8801, %v10324
        %v10326 = vand.u32 %v10325, 4294901760
        %10327 = vmatmul.f32.gmra.mxu0 %v10326
        %v10328 = vpop.f32.mrf.mxu0
        %v10329 = vadd.f32 %v9940, %v10328
        %v10330 = vand.u32 %v8804, 4294901760
        %v10331 = vsub.f32 %v8804, %v10330
        %v10332 = vand.u32 %v10331, 4294901760
        %10333 = vmatmul.f32.gmra.mxu0 %v10332
        %v10334 = vpop.f32.mrf.mxu0
        %v10335 = vadd.f32 %v9945, %v10334
        %v10336 = vand.u32 %v8807, 4294901760
        %v10337 = vsub.f32 %v8807, %v10336
        %v10338 = vand.u32 %v10337, 4294901760
        %10339 = vmatmul.f32.gmra.mxu0 %v10338
        %v10340 = vpop.f32.mrf.mxu0
        %v10341 = vadd.f32 %v9950, %v10340
        %v10342 = vand.u32 %v8810, 4294901760
        %v10343 = vsub.f32 %v8810, %v10342
        %v10344 = vand.u32 %v10343, 4294901760
        %10345 = vmatmul.f32.gmra.mxu0 %v10344
        %v10346 = vpop.f32.mrf.mxu0
        %v10347 = vadd.f32 %v9955, %v10346
        %v10348 = vand.u32 %v8813, 4294901760
        %v10349 = vsub.f32 %v8813, %v10348
        %v10350 = vand.u32 %v10349, 4294901760
        %10351 = vmatmul.f32.gmra.mxu0 %v10350
        %v10352 = vpop.f32.mrf.mxu0
        %v10353 = vadd.f32 %v9960, %v10352
        %v10354 = vand.u32 %v8816, 4294901760
        %v10355 = vsub.f32 %v8816, %v10354
        %v10356 = vand.u32 %v10355, 4294901760
        %10357 = vmatmul.f32.gmra.mxu0 %v10356
        %v10358 = vpop.f32.mrf.mxu0
        %v10359 = vadd.f32 %v9965, %v10358
        %v10360 = vand.u32 %v8819, 4294901760
        %v10361 = vsub.f32 %v8819, %v10360
        %v10362 = vand.u32 %v10361, 4294901760
        %10363 = vmatmul.f32.gmra.mxu0 %v10362
        %v10364 = vpop.f32.mrf.mxu0
        %v10365 = vadd.f32 %v9970, %v10364
        %v10366 = vand.u32 %v8822, 4294901760
        %v10367 = vsub.f32 %v8822, %v10366
        %v10368 = vand.u32 %v10367, 4294901760
        %10369 = vmatmul.f32.gmra.mxu0 %v10368
        %v10370 = vpop.f32.mrf.mxu0
        %v10371 = vadd.f32 %v9975, %v10370
        %v10372 = vand.u32 %v8825, 4294901760
        %v10373 = vsub.f32 %v8825, %v10372
        %v10374 = vand.u32 %v10373, 4294901760
        %10375 = vmatmul.f32.gmra.mxu0 %v10374
        %v10376 = vpop.f32.mrf.mxu0
        %v10377 = vadd.f32 %v9980, %v10376
        %v10378 = vand.u32 %v8828, 4294901760
        %v10379 = vsub.f32 %v8828, %v10378
        %v10380 = vand.u32 %v10379, 4294901760
        %10381 = vmatmul.f32.gmra.mxu0 %v10380
        %v10382 = vpop.f32.mrf.mxu0
        %v10383 = vadd.f32 %v9985, %v10382
        %v10384 = vand.u32 %v8831, 4294901760
        %v10385 = vsub.f32 %v8831, %v10384
        %v10386 = vand.u32 %v10385, 4294901760
        %10387 = vmatmul.f32.gmra.mxu0 %v10386
        %v10388 = vpop.f32.mrf.mxu0
        %v10389 = vadd.f32 %v9990, %v10388
        %v10390 = vand.u32 %v8834, 4294901760
        %v10391 = vsub.f32 %v8834, %v10390
        %v10392 = vand.u32 %v10391, 4294901760
        %10393 = vmatmul.f32.gmra.mxu0 %v10392
        %v10394 = vpop.f32.mrf.mxu0
        %v10395 = vadd.f32 %v9995, %v10394
        %v10396 = vand.u32 %v8837, 4294901760
        %v10397 = vsub.f32 %v8837, %v10396
        %v10398 = vand.u32 %v10397, 4294901760
        %10399 = vmatmul.f32.gmra.mxu0 %v10398
        %v10400 = vpop.f32.mrf.mxu0
        %v10401 = vadd.f32 %v10000, %v10400
        %v10402 = vand.u32 %v8840, 4294901760
        %v10403 = vsub.f32 %v8840, %v10402
        %v10404 = vand.u32 %v10403, 4294901760
        %10405 = vmatmul.f32.gmra.mxu0 %v10404
        %v10406 = vpop.f32.mrf.mxu0
        %v10407 = vadd.f32 %v10005, %v10406
        %v10408 = vand.u32 %v8843, 4294901760
        %v10409 = vsub.f32 %v8843, %v10408
        %v10410 = vand.u32 %v10409, 4294901760
        %10411 = vmatmul.f32.gmra.mxu0 %v10410
        %v10412 = vpop.f32.mrf.mxu0
        %v10413 = vadd.f32 %v10010, %v10412
        %v10414 = vand.u32 %v8846, 4294901760
        %v10415 = vsub.f32 %v8846, %v10414
        %v10416 = vand.u32 %v10415, 4294901760
        %10417 = vmatmul.f32.gmra.mxu0 %v10416
        %v10418 = vpop.f32.mrf.mxu0
        %v10419 = vadd.f32 %v10015, %v10418
        %v10420 = vand.u32 %v8849, 4294901760
        %v10421 = vsub.f32 %v8849, %v10420
        %v10422 = vand.u32 %v10421, 4294901760
        %10423 = vmatmul.f32.gmra.mxu0 %v10422
        %v10424 = vpop.f32.mrf.mxu0
        %v10425 = vadd.f32 %v10020, %v10424
        %10426 = vdwg.mxu0
        %10427 = vmatpush.msra.mxu0 0.0
        %10428 = vmatpush.msra.mxu0 0.0
        %10429 = vmatpush.msra.mxu0 0.0
        %10430 = vmatpush.msra.mxu0 0.0
        %10431 = vmatpush.msra.mxu0 0.0
        %10432 = vmatpush.msra.mxu0 0.0
        %10433 = vmatpush.msra.mxu0 0.0
        %10434 = vmatpush.msra.mxu0 0.0
        %10435 = vmatpush.msra.mxu0 0.0
        %10436 = vmatpush.msra.mxu0 0.0
        %10437 = vmatpush.msra.mxu0 0.0
        %10438 = vmatpush.msra.mxu0 0.0
        %v10439 = vand.u32 %v8654, 4294901760
        %v10440 = vsub.f32 %v8654, %v10439
        %v10441 = vand.u32 %v10440, 4294901760
        %10442 = vmatpush.msra.mxu0 %v10441
        %v10443 = vand.u32 %v8653, 4294901760
        %v10444 = vsub.f32 %v8653, %v10443
        %v10445 = vand.u32 %v10444, 4294901760
        %10446 = vmatpush.msra.mxu0 %v10445
        %v10447 = vand.u32 %v8652, 4294901760
        %v10448 = vsub.f32 %v8652, %v10447
        %v10449 = vand.u32 %v10448, 4294901760
        %10450 = vmatpush.msra.mxu0 %v10449
        %v10451 = vand.u32 %v8651, 4294901760
        %v10452 = vsub.f32 %v8651, %v10451
        %v10453 = vand.u32 %v10452, 4294901760
        %10454 = vmatpush.msra.mxu0 %v10453
        %v10455 = vand.u32 %v8660, 4294901760
        %10456 = vmatmul.f32.gmra.mxu0 %v10455
        %v10457 = vpop.f32.mrf.mxu0
        %v10458 = vadd.f32 %v10047, %v10457
        %v10459 = vand.u32 %v8663, 4294901760
        %10460 = vmatmul.f32.gmra.mxu0 %v10459
        %v10461 = vpop.f32.mrf.mxu0
        %v10462 = vadd.f32 %v10053, %v10461
        %v10463 = vand.u32 %v8666, 4294901760
        %10464 = vmatmul.f32.gmra.mxu0 %v10463
        %v10465 = vpop.f32.mrf.mxu0
        %v10466 = vadd.f32 %v10059, %v10465
        %v10467 = vand.u32 %v8669, 4294901760
        %10468 = vmatmul.f32.gmra.mxu0 %v10467
        %v10469 = vpop.f32.mrf.mxu0
        %v10470 = vadd.f32 %v10065, %v10469
        %v10471 = vand.u32 %v8672, 4294901760
        %10472 = vmatmul.f32.gmra.mxu0 %v10471
        %v10473 = vpop.f32.mrf.mxu0
        %v10474 = vadd.f32 %v10071, %v10473
        %v10475 = vand.u32 %v8675, 4294901760
        %10476 = vmatmul.f32.gmra.mxu0 %v10475
        %v10477 = vpop.f32.mrf.mxu0
        %v10478 = vadd.f32 %v10077, %v10477
        %v10479 = vand.u32 %v8678, 4294901760
        %10480 = vmatmul.f32.gmra.mxu0 %v10479
        %v10481 = vpop.f32.mrf.mxu0
        %v10482 = vadd.f32 %v10083, %v10481
        %v10483 = vand.u32 %v8681, 4294901760
        %10484 = vmatmul.f32.gmra.mxu0 %v10483
        %v10485 = vpop.f32.mrf.mxu0
        %v10486 = vadd.f32 %v10089, %v10485
        %v10487 = vand.u32 %v8684, 4294901760
        %10488 = vmatmul.f32.gmra.mxu0 %v10487
        %v10489 = vpop.f32.mrf.mxu0
        %v10490 = vadd.f32 %v10095, %v10489
        %v10491 = vand.u32 %v8687, 4294901760
        %10492 = vmatmul.f32.gmra.mxu0 %v10491
        %v10493 = vpop.f32.mrf.mxu0
        %v10494 = vadd.f32 %v10101, %v10493
        %v10495 = vand.u32 %v8690, 4294901760
        %10496 = vmatmul.f32.gmra.mxu0 %v10495
        %v10497 = vpop.f32.mrf.mxu0
        %v10498 = vadd.f32 %v10107, %v10497
        %v10499 = vand.u32 %v8693, 4294901760
        %10500 = vmatmul.f32.gmra.mxu0 %v10499
        %v10501 = vpop.f32.mrf.mxu0
        %v10502 = vadd.f32 %v10113, %v10501
        %v10503 = vand.u32 %v8696, 4294901760
        %10504 = vmatmul.f32.gmra.mxu0 %v10503
        %v10505 = vpop.f32.mrf.mxu0
        %v10506 = vadd.f32 %v10119, %v10505
        %v10507 = vand.u32 %v8699, 4294901760
        %10508 = vmatmul.f32.gmra.mxu0 %v10507
        %v10509 = vpop.f32.mrf.mxu0
        %v10510 = vadd.f32 %v10125, %v10509
        %v10511 = vand.u32 %v8702, 4294901760
        %10512 = vmatmul.f32.gmra.mxu0 %v10511
        %v10513 = vpop.f32.mrf.mxu0
        %v10514 = vadd.f32 %v10131, %v10513
        %v10515 = vand.u32 %v8705, 4294901760
        %10516 = vmatmul.f32.gmra.mxu0 %v10515
        %v10517 = vpop.f32.mrf.mxu0
        %v10518 = vadd.f32 %v10137, %v10517
        %v10519 = vand.u32 %v8708, 4294901760
        %10520 = vmatmul.f32.gmra.mxu0 %v10519
        %v10521 = vpop.f32.mrf.mxu0
        %v10522 = vadd.f32 %v10143, %v10521
        %v10523 = vand.u32 %v8711, 4294901760
        %10524 = vmatmul.f32.gmra.mxu0 %v10523
        %v10525 = vpop.f32.mrf.mxu0
        %v10526 = vadd.f32 %v10149, %v10525
        %v10527 = vand.u32 %v8714, 4294901760
        %10528 = vmatmul.f32.gmra.mxu0 %v10527
        %v10529 = vpop.f32.mrf.mxu0
        %v10530 = vadd.f32 %v10155, %v10529
        %v10531 = vand.u32 %v8717, 4294901760
        %10532 = vmatmul.f32.gmra.mxu0 %v10531
        %v10533 = vpop.f32.mrf.mxu0
        %v10534 = vadd.f32 %v10161, %v10533
        %v10535 = vand.u32 %v8720, 4294901760
        %10536 = vmatmul.f32.gmra.mxu0 %v10535
        %v10537 = vpop.f32.mrf.mxu0
        %v10538 = vadd.f32 %v10167, %v10537
        %v10539 = vand.u32 %v8723, 4294901760
        %10540 = vmatmul.f32.gmra.mxu0 %v10539
        %v10541 = vpop.f32.mrf.mxu0
        %v10542 = vadd.f32 %v10173, %v10541
        %v10543 = vand.u32 %v8726, 4294901760
        %10544 = vmatmul.f32.gmra.mxu0 %v10543
        %v10545 = vpop.f32.mrf.mxu0
        %v10546 = vadd.f32 %v10179, %v10545
        %v10547 = vand.u32 %v8729, 4294901760
        %10548 = vmatmul.f32.gmra.mxu0 %v10547
        %v10549 = vpop.f32.mrf.mxu0
        %v10550 = vadd.f32 %v10185, %v10549
        %v10551 = vand.u32 %v8732, 4294901760
        %10552 = vmatmul.f32.gmra.mxu0 %v10551
        %v10553 = vpop.f32.mrf.mxu0
        %v10554 = vadd.f32 %v10191, %v10553
        %v10555 = vand.u32 %v8735, 4294901760
        %10556 = vmatmul.f32.gmra.mxu0 %v10555
        %v10557 = vpop.f32.mrf.mxu0
        %v10558 = vadd.f32 %v10197, %v10557
        %v10559 = vand.u32 %v8738, 4294901760
        %10560 = vmatmul.f32.gmra.mxu0 %v10559
        %v10561 = vpop.f32.mrf.mxu0
        %v10562 = vadd.f32 %v10203, %v10561
        %v10563 = vand.u32 %v8741, 4294901760
        %10564 = vmatmul.f32.gmra.mxu0 %v10563
        %v10565 = vpop.f32.mrf.mxu0
        %v10566 = vadd.f32 %v10209, %v10565
        %v10567 = vand.u32 %v8744, 4294901760
        %10568 = vmatmul.f32.gmra.mxu0 %v10567
        %v10569 = vpop.f32.mrf.mxu0
        %v10570 = vadd.f32 %v10215, %v10569
        %v10571 = vand.u32 %v8747, 4294901760
        %10572 = vmatmul.f32.gmra.mxu0 %v10571
        %v10573 = vpop.f32.mrf.mxu0
        %v10574 = vadd.f32 %v10221, %v10573
        %v10575 = vand.u32 %v8750, 4294901760
        %10576 = vmatmul.f32.gmra.mxu0 %v10575
        %v10577 = vpop.f32.mrf.mxu0
        %v10578 = vadd.f32 %v10227, %v10577
        %v10579 = vand.u32 %v8753, 4294901760
        %10580 = vmatmul.f32.gmra.mxu0 %v10579
        %v10581 = vpop.f32.mrf.mxu0
        %v10582 = vadd.f32 %v10233, %v10581
        %v10583 = vand.u32 %v8756, 4294901760
        %10584 = vmatmul.f32.gmra.mxu0 %v10583
        %v10585 = vpop.f32.mrf.mxu0
        %v10586 = vadd.f32 %v10239, %v10585
        %v10587 = vand.u32 %v8759, 4294901760
        %10588 = vmatmul.f32.gmra.mxu0 %v10587
        %v10589 = vpop.f32.mrf.mxu0
        %v10590 = vadd.f32 %v10245, %v10589
        %v10591 = vand.u32 %v8762, 4294901760
        %10592 = vmatmul.f32.gmra.mxu0 %v10591
        %v10593 = vpop.f32.mrf.mxu0
        %v10594 = vadd.f32 %v10251, %v10593
        %v10595 = vand.u32 %v8765, 4294901760
        %10596 = vmatmul.f32.gmra.mxu0 %v10595
        %v10597 = vpop.f32.mrf.mxu0
        %v10598 = vadd.f32 %v10257, %v10597
        %v10599 = vand.u32 %v8768, 4294901760
        %10600 = vmatmul.f32.gmra.mxu0 %v10599
        %v10601 = vpop.f32.mrf.mxu0
        %v10602 = vadd.f32 %v10263, %v10601
        %v10603 = vand.u32 %v8771, 4294901760
        %10604 = vmatmul.f32.gmra.mxu0 %v10603
        %v10605 = vpop.f32.mrf.mxu0
        %v10606 = vadd.f32 %v10269, %v10605
        %v10607 = vand.u32 %v8774, 4294901760
        %10608 = vmatmul.f32.gmra.mxu0 %v10607
        %v10609 = vpop.f32.mrf.mxu0
        %v10610 = vadd.f32 %v10275, %v10609
        %v10611 = vand.u32 %v8777, 4294901760
        %10612 = vmatmul.f32.gmra.mxu0 %v10611
        %v10613 = vpop.f32.mrf.mxu0
        %v10614 = vadd.f32 %v10281, %v10613
        %v10615 = vand.u32 %v8780, 4294901760
        %10616 = vmatmul.f32.gmra.mxu0 %v10615
        %v10617 = vpop.f32.mrf.mxu0
        %v10618 = vadd.f32 %v10287, %v10617
        %v10619 = vand.u32 %v8783, 4294901760
        %10620 = vmatmul.f32.gmra.mxu0 %v10619
        %v10621 = vpop.f32.mrf.mxu0
        %v10622 = vadd.f32 %v10293, %v10621
        %v10623 = vand.u32 %v8786, 4294901760
        %10624 = vmatmul.f32.gmra.mxu0 %v10623
        %v10625 = vpop.f32.mrf.mxu0
        %v10626 = vadd.f32 %v10299, %v10625
        %v10627 = vand.u32 %v8789, 4294901760
        %10628 = vmatmul.f32.gmra.mxu0 %v10627
        %v10629 = vpop.f32.mrf.mxu0
        %v10630 = vadd.f32 %v10305, %v10629
        %v10631 = vand.u32 %v8792, 4294901760
        %10632 = vmatmul.f32.gmra.mxu0 %v10631
        %v10633 = vpop.f32.mrf.mxu0
        %v10634 = vadd.f32 %v10311, %v10633
        %v10635 = vand.u32 %v8795, 4294901760
        %10636 = vmatmul.f32.gmra.mxu0 %v10635
        %v10637 = vpop.f32.mrf.mxu0
        %v10638 = vadd.f32 %v10317, %v10637
        %v10639 = vand.u32 %v8798, 4294901760
        %10640 = vmatmul.f32.gmra.mxu0 %v10639
        %v10641 = vpop.f32.mrf.mxu0
        %v10642 = vadd.f32 %v10323, %v10641
        %v10643 = vand.u32 %v8801, 4294901760
        %10644 = vmatmul.f32.gmra.mxu0 %v10643
        %v10645 = vpop.f32.mrf.mxu0
        %v10646 = vadd.f32 %v10329, %v10645
        %v10647 = vand.u32 %v8804, 4294901760
        %10648 = vmatmul.f32.gmra.mxu0 %v10647
        %v10649 = vpop.f32.mrf.mxu0
        %v10650 = vadd.f32 %v10335, %v10649
        %v10651 = vand.u32 %v8807, 4294901760
        %10652 = vmatmul.f32.gmra.mxu0 %v10651
        %v10653 = vpop.f32.mrf.mxu0
        %v10654 = vadd.f32 %v10341, %v10653
        %v10655 = vand.u32 %v8810, 4294901760
        %10656 = vmatmul.f32.gmra.mxu0 %v10655
        %v10657 = vpop.f32.mrf.mxu0
        %v10658 = vadd.f32 %v10347, %v10657
        %v10659 = vand.u32 %v8813, 4294901760
        %10660 = vmatmul.f32.gmra.mxu0 %v10659
        %v10661 = vpop.f32.mrf.mxu0
        %v10662 = vadd.f32 %v10353, %v10661
        %v10663 = vand.u32 %v8816, 4294901760
        %10664 = vmatmul.f32.gmra.mxu0 %v10663
        %v10665 = vpop.f32.mrf.mxu0
        %v10666 = vadd.f32 %v10359, %v10665
        %v10667 = vand.u32 %v8819, 4294901760
        %10668 = vmatmul.f32.gmra.mxu0 %v10667
        %v10669 = vpop.f32.mrf.mxu0
        %v10670 = vadd.f32 %v10365, %v10669
        %v10671 = vand.u32 %v8822, 4294901760
        %10672 = vmatmul.f32.gmra.mxu0 %v10671
        %v10673 = vpop.f32.mrf.mxu0
        %v10674 = vadd.f32 %v10371, %v10673
        %v10675 = vand.u32 %v8825, 4294901760
        %10676 = vmatmul.f32.gmra.mxu0 %v10675
        %v10677 = vpop.f32.mrf.mxu0
        %v10678 = vadd.f32 %v10377, %v10677
        %v10679 = vand.u32 %v8828, 4294901760
        %10680 = vmatmul.f32.gmra.mxu0 %v10679
        %v10681 = vpop.f32.mrf.mxu0
        %v10682 = vadd.f32 %v10383, %v10681
        %v10683 = vand.u32 %v8831, 4294901760
        %10684 = vmatmul.f32.gmra.mxu0 %v10683
        %v10685 = vpop.f32.mrf.mxu0
        %v10686 = vadd.f32 %v10389, %v10685
        %v10687 = vand.u32 %v8834, 4294901760
        %10688 = vmatmul.f32.gmra.mxu0 %v10687
        %v10689 = vpop.f32.mrf.mxu0
        %v10690 = vadd.f32 %v10395, %v10689
        %v10691 = vand.u32 %v8837, 4294901760
        %10692 = vmatmul.f32.gmra.mxu0 %v10691
        %v10693 = vpop.f32.mrf.mxu0
        %v10694 = vadd.f32 %v10401, %v10693
        %v10695 = vand.u32 %v8840, 4294901760
        %10696 = vmatmul.f32.gmra.mxu0 %v10695
        %v10697 = vpop.f32.mrf.mxu0
        %v10698 = vadd.f32 %v10407, %v10697
        %v10699 = vand.u32 %v8843, 4294901760
        %10700 = vmatmul.f32.gmra.mxu0 %v10699
        %v10701 = vpop.f32.mrf.mxu0
        %v10702 = vadd.f32 %v10413, %v10701
        %v10703 = vand.u32 %v8846, 4294901760
        %10704 = vmatmul.f32.gmra.mxu0 %v10703
        %v10705 = vpop.f32.mrf.mxu0
        %v10706 = vadd.f32 %v10419, %v10705
        %v10707 = vand.u32 %v8849, 4294901760
        %10708 = vmatmul.f32.gmra.mxu0 %v10707
        %v10709 = vpop.f32.mrf.mxu0
        %v10710 = vadd.f32 %v10425, %v10709
        %10711 = vdwg.mxu0
        %10712 = vmatpush.msra.mxu0 0.0
        %10713 = vmatpush.msra.mxu0 0.0
        %10714 = vmatpush.msra.mxu0 0.0
        %10715 = vmatpush.msra.mxu0 0.0
        %10716 = vmatpush.msra.mxu0 0.0
        %10717 = vmatpush.msra.mxu0 0.0
        %10718 = vmatpush.msra.mxu0 0.0
        %10719 = vmatpush.msra.mxu0 0.0
        %10720 = vmatpush.msra.mxu0 0.0
        %10721 = vmatpush.msra.mxu0 0.0
        %10722 = vmatpush.msra.mxu0 0.0
        %10723 = vmatpush.msra.mxu0 0.0
        %v10724 = vand.u32 %v8654, 4294901760
        %10725 = vmatpush.msra.mxu0 %v10724
        %v10726 = vand.u32 %v8653, 4294901760
        %10727 = vmatpush.msra.mxu0 %v10726
        %v10728 = vand.u32 %v8652, 4294901760
        %10729 = vmatpush.msra.mxu0 %v10728
        %v10730 = vand.u32 %v8651, 4294901760
        %10731 = vmatpush.msra.mxu0 %v10730
        %v10732 = vand.u32 %v8660, 4294901760
        %10733 = vmatmul.f32.gmra.mxu0 %v10732
        %v10734 = vpop.f32.mrf.mxu0
        %v10735 = vadd.f32 %v10458, %v10734
        %v10736 = vand.u32 %v8663, 4294901760
        %10737 = vmatmul.f32.gmra.mxu0 %v10736
        %v10738 = vpop.f32.mrf.mxu0
        %v10739 = vadd.f32 %v10462, %v10738
        %v10740 = vand.u32 %v8666, 4294901760
        %10741 = vmatmul.f32.gmra.mxu0 %v10740
        %v10742 = vpop.f32.mrf.mxu0
        %v10743 = vadd.f32 %v10466, %v10742
        %v10744 = vand.u32 %v8669, 4294901760
        %10745 = vmatmul.f32.gmra.mxu0 %v10744
        %v10746 = vpop.f32.mrf.mxu0
        %v10747 = vadd.f32 %v10470, %v10746
        %v10748 = vand.u32 %v8672, 4294901760
        %10749 = vmatmul.f32.gmra.mxu0 %v10748
        %v10750 = vpop.f32.mrf.mxu0
        %v10751 = vadd.f32 %v10474, %v10750
        %v10752 = vand.u32 %v8675, 4294901760
        %10753 = vmatmul.f32.gmra.mxu0 %v10752
        %v10754 = vpop.f32.mrf.mxu0
        %v10755 = vadd.f32 %v10478, %v10754
        %v10756 = vand.u32 %v8678, 4294901760
        %10757 = vmatmul.f32.gmra.mxu0 %v10756
        %v10758 = vpop.f32.mrf.mxu0
        %v10759 = vadd.f32 %v10482, %v10758
        %v10760 = vand.u32 %v8681, 4294901760
        %10761 = vmatmul.f32.gmra.mxu0 %v10760
        %v10762 = vpop.f32.mrf.mxu0
        %v10763 = vadd.f32 %v10486, %v10762
        %v10764 = vand.u32 %v8684, 4294901760
        %10765 = vmatmul.f32.gmra.mxu0 %v10764
        %v10766 = vpop.f32.mrf.mxu0
        %v10767 = vadd.f32 %v10490, %v10766
        %v10768 = vand.u32 %v8687, 4294901760
        %10769 = vmatmul.f32.gmra.mxu0 %v10768
        %v10770 = vpop.f32.mrf.mxu0
        %v10771 = vadd.f32 %v10494, %v10770
        %v10772 = vand.u32 %v8690, 4294901760
        %10773 = vmatmul.f32.gmra.mxu0 %v10772
        %v10774 = vpop.f32.mrf.mxu0
        %v10775 = vadd.f32 %v10498, %v10774
        %v10776 = vand.u32 %v8693, 4294901760
        %10777 = vmatmul.f32.gmra.mxu0 %v10776
        %v10778 = vpop.f32.mrf.mxu0
        %v10779 = vadd.f32 %v10502, %v10778
        %v10780 = vand.u32 %v8696, 4294901760
        %10781 = vmatmul.f32.gmra.mxu0 %v10780
        %v10782 = vpop.f32.mrf.mxu0
        %v10783 = vadd.f32 %v10506, %v10782
        %v10784 = vand.u32 %v8699, 4294901760
        %10785 = vmatmul.f32.gmra.mxu0 %v10784
        %v10786 = vpop.f32.mrf.mxu0
        %v10787 = vadd.f32 %v10510, %v10786
        %v10788 = vand.u32 %v8702, 4294901760
        %10789 = vmatmul.f32.gmra.mxu0 %v10788
        %v10790 = vpop.f32.mrf.mxu0
        %v10791 = vadd.f32 %v10514, %v10790
        %v10792 = vand.u32 %v8705, 4294901760
        %10793 = vmatmul.f32.gmra.mxu0 %v10792
        %v10794 = vpop.f32.mrf.mxu0
        %v10795 = vadd.f32 %v10518, %v10794
        %v10796 = vand.u32 %v8708, 4294901760
        %10797 = vmatmul.f32.gmra.mxu0 %v10796
        %v10798 = vpop.f32.mrf.mxu0
        %v10799 = vadd.f32 %v10522, %v10798
        %v10800 = vand.u32 %v8711, 4294901760
        %10801 = vmatmul.f32.gmra.mxu0 %v10800
        %v10802 = vpop.f32.mrf.mxu0
        %v10803 = vadd.f32 %v10526, %v10802
        %v10804 = vand.u32 %v8714, 4294901760
        %10805 = vmatmul.f32.gmra.mxu0 %v10804
        %v10806 = vpop.f32.mrf.mxu0
        %v10807 = vadd.f32 %v10530, %v10806
        %v10808 = vand.u32 %v8717, 4294901760
        %10809 = vmatmul.f32.gmra.mxu0 %v10808
        %v10810 = vpop.f32.mrf.mxu0
        %v10811 = vadd.f32 %v10534, %v10810
        %v10812 = vand.u32 %v8720, 4294901760
        %10813 = vmatmul.f32.gmra.mxu0 %v10812
        %v10814 = vpop.f32.mrf.mxu0
        %v10815 = vadd.f32 %v10538, %v10814
        %v10816 = vand.u32 %v8723, 4294901760
        %10817 = vmatmul.f32.gmra.mxu0 %v10816
        %v10818 = vpop.f32.mrf.mxu0
        %v10819 = vadd.f32 %v10542, %v10818
        %v10820 = vand.u32 %v8726, 4294901760
        %10821 = vmatmul.f32.gmra.mxu0 %v10820
        %v10822 = vpop.f32.mrf.mxu0
        %v10823 = vadd.f32 %v10546, %v10822
        %v10824 = vand.u32 %v8729, 4294901760
        %10825 = vmatmul.f32.gmra.mxu0 %v10824
        %v10826 = vpop.f32.mrf.mxu0
        %v10827 = vadd.f32 %v10550, %v10826
        %v10828 = vand.u32 %v8732, 4294901760
        %10829 = vmatmul.f32.gmra.mxu0 %v10828
        %v10830 = vpop.f32.mrf.mxu0
        %v10831 = vadd.f32 %v10554, %v10830
        %v10832 = vand.u32 %v8735, 4294901760
        %10833 = vmatmul.f32.gmra.mxu0 %v10832
        %v10834 = vpop.f32.mrf.mxu0
        %v10835 = vadd.f32 %v10558, %v10834
        %v10836 = vand.u32 %v8738, 4294901760
        %10837 = vmatmul.f32.gmra.mxu0 %v10836
        %v10838 = vpop.f32.mrf.mxu0
        %v10839 = vadd.f32 %v10562, %v10838
        %v10840 = vand.u32 %v8741, 4294901760
        %10841 = vmatmul.f32.gmra.mxu0 %v10840
        %v10842 = vpop.f32.mrf.mxu0
        %v10843 = vadd.f32 %v10566, %v10842
        %v10844 = vand.u32 %v8744, 4294901760
        %10845 = vmatmul.f32.gmra.mxu0 %v10844
        %v10846 = vpop.f32.mrf.mxu0
        %v10847 = vadd.f32 %v10570, %v10846
        %v10848 = vand.u32 %v8747, 4294901760
        %10849 = vmatmul.f32.gmra.mxu0 %v10848
        %v10850 = vpop.f32.mrf.mxu0
        %v10851 = vadd.f32 %v10574, %v10850
        %v10852 = vand.u32 %v8750, 4294901760
        %10853 = vmatmul.f32.gmra.mxu0 %v10852
        %v10854 = vpop.f32.mrf.mxu0
        %v10855 = vadd.f32 %v10578, %v10854
        %v10856 = vand.u32 %v8753, 4294901760
        %10857 = vmatmul.f32.gmra.mxu0 %v10856
        %v10858 = vpop.f32.mrf.mxu0
        %v10859 = vadd.f32 %v10582, %v10858
        %v10860 = vand.u32 %v8756, 4294901760
        %10861 = vmatmul.f32.gmra.mxu0 %v10860
        %v10862 = vpop.f32.mrf.mxu0
        %v10863 = vadd.f32 %v10586, %v10862
        %v10864 = vand.u32 %v8759, 4294901760
        %10865 = vmatmul.f32.gmra.mxu0 %v10864
        %v10866 = vpop.f32.mrf.mxu0
        %v10867 = vadd.f32 %v10590, %v10866
        %v10868 = vand.u32 %v8762, 4294901760
        %10869 = vmatmul.f32.gmra.mxu0 %v10868
        %v10870 = vpop.f32.mrf.mxu0
        %v10871 = vadd.f32 %v10594, %v10870
        %v10872 = vand.u32 %v8765, 4294901760
        %10873 = vmatmul.f32.gmra.mxu0 %v10872
        %v10874 = vpop.f32.mrf.mxu0
        %v10875 = vadd.f32 %v10598, %v10874
        %v10876 = vand.u32 %v8768, 4294901760
        %10877 = vmatmul.f32.gmra.mxu0 %v10876
        %v10878 = vpop.f32.mrf.mxu0
        %v10879 = vadd.f32 %v10602, %v10878
        %v10880 = vand.u32 %v8771, 4294901760
        %10881 = vmatmul.f32.gmra.mxu0 %v10880
        %v10882 = vpop.f32.mrf.mxu0
        %v10883 = vadd.f32 %v10606, %v10882
        %v10884 = vand.u32 %v8774, 4294901760
        %10885 = vmatmul.f32.gmra.mxu0 %v10884
        %v10886 = vpop.f32.mrf.mxu0
        %v10887 = vadd.f32 %v10610, %v10886
        %v10888 = vand.u32 %v8777, 4294901760
        %10889 = vmatmul.f32.gmra.mxu0 %v10888
        %v10890 = vpop.f32.mrf.mxu0
        %v10891 = vadd.f32 %v10614, %v10890
        %v10892 = vand.u32 %v8780, 4294901760
        %10893 = vmatmul.f32.gmra.mxu0 %v10892
        %v10894 = vpop.f32.mrf.mxu0
        %v10895 = vadd.f32 %v10618, %v10894
        %v10896 = vand.u32 %v8783, 4294901760
        %10897 = vmatmul.f32.gmra.mxu0 %v10896
        %v10898 = vpop.f32.mrf.mxu0
        %v10899 = vadd.f32 %v10622, %v10898
        %v10900 = vand.u32 %v8786, 4294901760
        %10901 = vmatmul.f32.gmra.mxu0 %v10900
        %v10902 = vpop.f32.mrf.mxu0
        %v10903 = vadd.f32 %v10626, %v10902
        %v10904 = vand.u32 %v8789, 4294901760
        %10905 = vmatmul.f32.gmra.mxu0 %v10904
        %v10906 = vpop.f32.mrf.mxu0
        %v10907 = vadd.f32 %v10630, %v10906
        %v10908 = vand.u32 %v8792, 4294901760
        %10909 = vmatmul.f32.gmra.mxu0 %v10908
        %v10910 = vpop.f32.mrf.mxu0
        %v10911 = vadd.f32 %v10634, %v10910
        %v10912 = vand.u32 %v8795, 4294901760
        %10913 = vmatmul.f32.gmra.mxu0 %v10912
        %v10914 = vpop.f32.mrf.mxu0
        %v10915 = vadd.f32 %v10638, %v10914
        %v10916 = vand.u32 %v8798, 4294901760
        %10917 = vmatmul.f32.gmra.mxu0 %v10916
        %v10918 = vpop.f32.mrf.mxu0
        %v10919 = vadd.f32 %v10642, %v10918
        %v10920 = vand.u32 %v8801, 4294901760
        %10921 = vmatmul.f32.gmra.mxu0 %v10920
        %v10922 = vpop.f32.mrf.mxu0
        %v10923 = vadd.f32 %v10646, %v10922
        %v10924 = vand.u32 %v8804, 4294901760
        %10925 = vmatmul.f32.gmra.mxu0 %v10924
        %v10926 = vpop.f32.mrf.mxu0
        %v10927 = vadd.f32 %v10650, %v10926
        %v10928 = vand.u32 %v8807, 4294901760
        %10929 = vmatmul.f32.gmra.mxu0 %v10928
        %v10930 = vpop.f32.mrf.mxu0
        %v10931 = vadd.f32 %v10654, %v10930
        %v10932 = vand.u32 %v8810, 4294901760
        %10933 = vmatmul.f32.gmra.mxu0 %v10932
        %v10934 = vpop.f32.mrf.mxu0
        %v10935 = vadd.f32 %v10658, %v10934
        %v10936 = vand.u32 %v8813, 4294901760
        %10937 = vmatmul.f32.gmra.mxu0 %v10936
        %v10938 = vpop.f32.mrf.mxu0
        %v10939 = vadd.f32 %v10662, %v10938
        %v10940 = vand.u32 %v8816, 4294901760
        %10941 = vmatmul.f32.gmra.mxu0 %v10940
        %v10942 = vpop.f32.mrf.mxu0
        %v10943 = vadd.f32 %v10666, %v10942
        %v10944 = vand.u32 %v8819, 4294901760
        %10945 = vmatmul.f32.gmra.mxu0 %v10944
        %v10946 = vpop.f32.mrf.mxu0
        %v10947 = vadd.f32 %v10670, %v10946
        %v10948 = vand.u32 %v8822, 4294901760
        %10949 = vmatmul.f32.gmra.mxu0 %v10948
        %v10950 = vpop.f32.mrf.mxu0
        %v10951 = vadd.f32 %v10674, %v10950
        %v10952 = vand.u32 %v8825, 4294901760
        %10953 = vmatmul.f32.gmra.mxu0 %v10952
        %v10954 = vpop.f32.mrf.mxu0
        %v10955 = vadd.f32 %v10678, %v10954
        %v10956 = vand.u32 %v8828, 4294901760
        %10957 = vmatmul.f32.gmra.mxu0 %v10956
        %v10958 = vpop.f32.mrf.mxu0
        %v10959 = vadd.f32 %v10682, %v10958
        %v10960 = vand.u32 %v8831, 4294901760
        %10961 = vmatmul.f32.gmra.mxu0 %v10960
        %v10962 = vpop.f32.mrf.mxu0
        %v10963 = vadd.f32 %v10686, %v10962
        %v10964 = vand.u32 %v8834, 4294901760
        %10965 = vmatmul.f32.gmra.mxu0 %v10964
        %v10966 = vpop.f32.mrf.mxu0
        %v10967 = vadd.f32 %v10690, %v10966
        %v10968 = vand.u32 %v8837, 4294901760
        %10969 = vmatmul.f32.gmra.mxu0 %v10968
        %v10970 = vpop.f32.mrf.mxu0
        %v10971 = vadd.f32 %v10694, %v10970
        %v10972 = vand.u32 %v8840, 4294901760
        %10973 = vmatmul.f32.gmra.mxu0 %v10972
        %v10974 = vpop.f32.mrf.mxu0
        %v10975 = vadd.f32 %v10698, %v10974
        %v10976 = vand.u32 %v8843, 4294901760
        %10977 = vmatmul.f32.gmra.mxu0 %v10976
        %v10978 = vpop.f32.mrf.mxu0
        %v10979 = vadd.f32 %v10702, %v10978
        %v10980 = vand.u32 %v8846, 4294901760
        %10981 = vmatmul.f32.gmra.mxu0 %v10980
        %v10982 = vpop.f32.mrf.mxu0
        %v10983 = vadd.f32 %v10706, %v10982
        %v10984 = vand.u32 %v8849, 4294901760
        %10985 = vmatmul.f32.gmra.mxu0 %v10984
        %v10986 = vpop.f32.mrf.mxu0
        %v10987 = vadd.f32 %v10710, %v10986
        %10988 = vdwg.mxu0
        %10989 = vst [vmem:[%s272] sm:$0xff] %v10735
        %10990 = vst [vmem:[%s272 + $0x8] sm:$0xff] %v10739
        %10991 = vst [vmem:[%s272 + $0x10] sm:$0xff] %v10743
        %10992 = vst [vmem:[%s272 + $0x18] sm:$0xff] %v10747
        %10993 = vst [vmem:[%s272 + $0x20] sm:$0xff] %v10751
        %10994 = vst [vmem:[%s272 + $0x28] sm:$0xff] %v10755
        %10995 = vst [vmem:[%s272 + $0x30] sm:$0xff] %v10759
        %10996 = vst [vmem:[%s272 + $0x38] sm:$0xff] %v10763
        %10997 = vst [vmem:[%s272 + $0x40] sm:$0xff] %v10767
        %10998 = vst [vmem:[%s272 + $0x48] sm:$0xff] %v10771
        %10999 = vst [vmem:[%s272 + $0x50] sm:$0xff] %v10775
        %11000 = vst [vmem:[%s272 + $0x58] sm:$0xff] %v10779
        %11001 = vst [vmem:[%s272 + $0x60] sm:$0xff] %v10783
        %11002 = vst [vmem:[%s272 + $0x68] sm:$0xff] %v10787
        %11003 = vst [vmem:[%s272 + $0x70] sm:$0xff] %v10791
        %11004 = vst [vmem:[%s272 + $0x78] sm:$0xff] %v10795
        %11005 = vst [vmem:[%s272 + $0x80] sm:$0xff] %v10799
        %11006 = vst [vmem:[%s272 + $0x88] sm:$0xff] %v10803
        %11007 = vst [vmem:[%s272 + $0x90] sm:$0xff] %v10807
        %11008 = vst [vmem:[%s272 + $0x98] sm:$0xff] %v10811
        %11009 = vst [vmem:[%s272 + $0xa0] sm:$0xff] %v10815
        %11010 = vst [vmem:[%s272 + $0xa8] sm:$0xff] %v10819
        %11011 = vst [vmem:[%s272 + $0xb0] sm:$0xff] %v10823
        %11012 = vst [vmem:[%s272 + $0xb8] sm:$0xff] %v10827
        %11013 = vst [vmem:[%s272 + $0xc0] sm:$0xff] %v10831
        %11014 = vst [vmem:[%s272 + $0xc8] sm:$0xff] %v10835
        %11015 = vst [vmem:[%s272 + $0xd0] sm:$0xff] %v10839
        %11016 = vst [vmem:[%s272 + $0xd8] sm:$0xff] %v10843
        %11017 = vst [vmem:[%s272 + $0xe0] sm:$0xff] %v10847
        %11018 = vst [vmem:[%s272 + $0xe8] sm:$0xff] %v10851
        %11019 = vst [vmem:[%s272 + $0xf0] sm:$0xff] %v10855
        %11020 = vst [vmem:[%s272 + $0xf8] sm:$0xff] %v10859
        %11021 = vst [vmem:[%s272 + $0x100] sm:$0xff] %v10863
        %11022 = vst [vmem:[%s272 + $0x108] sm:$0xff] %v10867
        %11023 = vst [vmem:[%s272 + $0x110] sm:$0xff] %v10871
        %11024 = vst [vmem:[%s272 + $0x118] sm:$0xff] %v10875
        %11025 = vst [vmem:[%s272 + $0x120] sm:$0xff] %v10879
        %11026 = vst [vmem:[%s272 + $0x128] sm:$0xff] %v10883
        %11027 = vst [vmem:[%s272 + $0x130] sm:$0xff] %v10887
        %11028 = vst [vmem:[%s272 + $0x138] sm:$0xff] %v10891
        %11029 = vst [vmem:[%s272 + $0x140] sm:$0xff] %v10895
        %11030 = vst [vmem:[%s272 + $0x148] sm:$0xff] %v10899
        %11031 = vst [vmem:[%s272 + $0x150] sm:$0xff] %v10903
        %11032 = vst [vmem:[%s272 + $0x158] sm:$0xff] %v10907
        %11033 = vst [vmem:[%s272 + $0x160] sm:$0xff] %v10911
        %11034 = vst [vmem:[%s272 + $0x168] sm:$0xff] %v10915
        %11035 = vst [vmem:[%s272 + $0x170] sm:$0xff] %v10919
        %11036 = vst [vmem:[%s272 + $0x178] sm:$0xff] %v10923
        %11037 = vst [vmem:[%s272 + $0x180] sm:$0xff] %v10927
        %11038 = vst [vmem:[%s272 + $0x188] sm:$0xff] %v10931
        %11039 = vst [vmem:[%s272 + $0x190] sm:$0xff] %v10935
        %11040 = vst [vmem:[%s272 + $0x198] sm:$0xff] %v10939
        %11041 = vst [vmem:[%s272 + $0x1a0] sm:$0xff] %v10943
        %11042 = vst [vmem:[%s272 + $0x1a8] sm:$0xff] %v10947
        %11043 = vst [vmem:[%s272 + $0x1b0] sm:$0xff] %v10951
        %11044 = vst [vmem:[%s272 + $0x1b8] sm:$0xff] %v10955
        %11045 = vst [vmem:[%s272 + $0x1c0] sm:$0xff] %v10959
        %11046 = vst [vmem:[%s272 + $0x1c8] sm:$0xff] %v10963
        %11047 = vst [vmem:[%s272 + $0x1d0] sm:$0xff] %v10967
        %11048 = vst [vmem:[%s272 + $0x1d8] sm:$0xff] %v10971
        %11049 = vst [vmem:[%s272 + $0x1e0] sm:$0xff] %v10975
        %11050 = vst [vmem:[%s272 + $0x1e8] sm:$0xff] %v10979
        %11051 = vst [vmem:[%s272 + $0x1f0] sm:$0xff] %v10983
        %11052 = vst [vmem:[%s272 + $0x1f8] sm:$0xff] %v10987
        %s11053 = sand.u32 %s181, 1
        %s11054 = scalar_lea.sflag [#allocation3], %s11053
        %s11055 = sand.u32 %s181, 1
        %s11056 = smul.addr %s11055, 512
        %s11057 = scalar_lea.vmem [#allocation2], %s11056
        // Predicated region
        $region49: #{tpu_custom_call.1} parent=47 // pred_check
          %p11058 = pneg %p191
        $region50: #{tpu_custom_call.1} parent=47 // pred_check_branch
          %11060 = sbr.rel (%p11058) target = $region52
        $region51: #{tpu_custom_call.1} parent=47 // pred_region
          %s11061 = smul.u32 64, %s21
          %11063 = vsyncadd %s11054, 0
          %s11064 = smul.addr %s11061, 8
          %s11065 = scalar_lea.hbm %s7, %s11064
          %s11066 = sshll.u32 %s11057, 4
          %s11067 = int_to_ptr.vmem [resolvable:$true] %s11066
          %s11068 = sshll.u32 %s11065, 4
          %s11069 = int_to_ptr.hbm [resolvable:$true] %s11068
          %11074 = dma.vmem_to_hbm [thread:$0]  %s11067, 8192, %s11069, %s11054, 128, 128, 8
        $region52: #{tpu_custom_call.1} parent=47 // pred_fallthru
          _
      $region48: #{tpu_custom_call.1} parent=5 // pred_fallthru
        _
      %p11075 = scmp.le.s32.totalorder 2, %s16
      // Predicated region
      $region53: #{tpu_custom_call.1} parent=5 // pred_check
        %p11076 = pneg %p11075
      $region54: #{tpu_custom_call.1} parent=5 // pred_check_branch
        %11078 = sbr.rel (%p11076) target = $region56
      $region55: #{tpu_custom_call.1} parent=5 // pred_region
        %s11079 = ssub.s32 %s16, 2
        // Predicated region
        $region57: #{tpu_custom_call.1} parent=55 // pred_check
          %p11080 = pneg %p197
        $region58: #{tpu_custom_call.1} parent=55 // pred_check_branch
          %11082 = sbr.rel (%p11080) target = $region60
        $region59: #{tpu_custom_call.1} parent=55 // pred_region
          %s11083 = sand.u32 %s182, 1
          %s11084 = scalar_lea.sflag [#allocation3], %s11083
          %s11085 = sand.u32 %s182, 1
          %s11086 = smul.addr %s11085, 512
          %s11087 = scalar_lea.vmem [#allocation2], %s11086
          %11089 = dma.done %s11084, 8192
        $region60: #{tpu_custom_call.1} parent=55 // pred_fallthru
          _
      $region56: #{tpu_custom_call.1} parent=5 // pred_fallthru
        _
    $region6: #{tpu_custom_call.1} parent=1 // loop_footer
      %s20 = sadd.s32 1, %s16
    $region7: #{tpu_custom_call.1} parent=1 // loop_footer_branch
      %15 = sbr.rel target = $region3
    $region8: #{tpu_custom_call.1} parent=1 // loop_exit
      _
    %11090 = vsyncpa [#allocation3], 1
    %s11091 = scalar_lea.sflag [#allocation3], 1
    %11092 = vsyncpa %s11091, 1

</llo_original>
